<compile_context>
chip_gen: v5e
topology: v5e:2x2
jax: 0.10.0
libtpu: 0.0.40
codegen_flags: <defaults>
</compile_context>

<pallas_src>
import jax
import jax.numpy as jnp
import numpy as np
from jax.experimental import pallas as pl
from jax.experimental.pallas import tpu as pltpu


def _adaptive_pool_matrix(in_size: int, out_size: int) -> np.ndarray:
    """Row matrix implementing 1-D adaptive average pooling (PyTorch semantics)."""
    p = np.zeros((out_size, in_size), dtype=np.float32)
    for i in range(out_size):
        start = (i * in_size) // out_size
        end = -(-((i + 1) * in_size) // out_size)  # ceil
        p[i, start:end] = 1.0 / (end - start)
    return p


def _vmem_capacity_bytes() -> int:
    """Physical VMEM of the current TPU generation (conservative fallback)."""
    try:
        cap = int(pltpu.get_tpu_info().vmem_capacity_bytes)
        if cap > 0:
            return cap
    except Exception:
        pass
    return 64 << 20  # v7x has 64 MiB per TensorCore; safe lower bound everywhere


def _inception_aux_kernel(x_ref, pmat_ref, wc_ref, scale_ref, shift_ref,
                          w1_ref, b1_ref, w2_ref, b2_ref, out_ref, pooled_ref):
    tn, hw, c_in = x_ref.shape
    n_sp = pmat_ref.shape[0]            # 16 pooled spatial positions (4x4)
    oc = wc_ref.shape[1]                # 128 conv output channels

    pmat = pmat_ref[...]                # (16, HW) bf16, VMEM-resident

    # --- Stage 1: adaptive avg-pool per sample ------------------------------------
    # Iterations are independent (one small bf16 MXU matmul + contiguous full-tile
    # scratch write, no epilogue); partially unrolled for scheduler overlap.
    def pool_one(bi, carry):
        p = jnp.dot(pmat, x_ref[bi], preferred_element_type=jnp.float32)  # (16, C_in)
        pooled_ref[bi] = p.astype(jnp.bfloat16)
        return carry

    unroll = 8 if tn % 8 == 0 else 1
    jax.lax.fori_loop(0, tn, pool_one, 0, unroll=unroll)

    # --- Stage 2: 1x1 conv + folded BN + ReLU as ONE MXU matmul over the tile ------
    pooled = pooled_ref[...].reshape(tn * n_sp, c_in)        # free merge (16 % 8 == 0)
    conv = jnp.dot(pooled, wc_ref[...], preferred_element_type=jnp.float32)
    act = jnp.maximum(conv * scale_ref[...] + shift_ref[...], 0.0)   # f32 VPU epilogue
    act = act.astype(jnp.bfloat16)                                    # (TN*16, 128)

    # --- Stage 3: fc1 -> ReLU -> (eval dropout = identity) -> fc2 ------------------
    # Single remaining relayout: bf16 (TN*16,128)->(TN,2048); w1 is pre-relaid
    # s-major so flat index s*128+c matches torch's flatten order c*16+s.
    flat = act.reshape(tn, n_sp * oc)
    h1 = jnp.dot(flat, w1_ref[...], preferred_element_type=jnp.float32) + b1_ref[...]
    h1 = jnp.maximum(h1, 0.0)
    # F.dropout(p=0.2) is the identity in eval mode.
    # TODO(synk): training-mode dropout (pltpu.prng_seed/prng_random_bits) not implemented.
    logits = jnp.dot(h1.astype(jnp.bfloat16), w2_ref[...],
                     preferred_element_type=jnp.float32) + b2_ref[...]   # (TN, NC_PAD)
    out_ref[...] = logits.astype(out_ref.dtype)


def inception_aux_forward(x_nchw, params, *, batch_tile=None):
    n, c_in, h, w = x_nchw.shape
    hw = h * w
    oc = params["conv_w"].shape[0]                    # 128
    num_classes = params["fc2_b"].shape[0]
    nc_pad = 128 * pl.cdiv(num_classes, 128)          # lane-dense output width

    # exact adaptive_avg_pool2d(->4x4) as a (16, H*W) matrix over flat index h*W + w
    ph = _adaptive_pool_matrix(h, 4)
    pw = _adaptive_pool_matrix(w, 4)
    pmat = jnp.asarray(np.einsum("ih,jw->ijhw", ph, pw).reshape(16, hw),
                       dtype=jnp.bfloat16)

    # layout glue: NCHW -> (N, H*W, C_in); bf16 activation path (MXU-native, half HBM)
    x_l = jnp.transpose(x_nchw, (0, 2, 3, 1)).reshape(n, hw, c_in).astype(jnp.bfloat16)

    # fold eval-mode BatchNorm into per-channel scale/shift (kept f32 for the VPU)
    scale_v = params["bn_gamma"] / jnp.sqrt(params["bn_var"] + 1e-3)
    shift_v = params["bn_beta"] - params["bn_mean"] * scale_v
    scale = scale_v.reshape(1, oc).astype(jnp.float32)
    shift = shift_v.reshape(1, oc).astype(jnp.float32)

    wc_t = params["conv_w"].reshape(oc, c_in).T.astype(jnp.bfloat16)      # (C_in, 128)
    # fc1 weight (1024, 2048); torch flat index = c*16+s -> s-major rows (s*128+c)
    w1s = jnp.transpose(params["fc1_w"].reshape(1024, oc, 16),
                        (2, 1, 0)).reshape(16 * oc, 1024).astype(jnp.bfloat16)
    b1 = params["fc1_b"].reshape(1, 1024).astype(jnp.float32)
    # fc2: transpose + zero-pad class dim to a multiple of 128 lanes
    w2p = jnp.pad(params["fc2_w"].T,
                  ((0, 0), (0, nc_pad - num_classes))).astype(jnp.bfloat16)
    b2p = jnp.pad(params["fc2_b"],
                  (0, nc_pad - num_classes)).reshape(1, nc_pad).astype(jnp.float32)

    vmem_cap = _vmem_capacity_bytes()                 # 128 MiB v5e/v6e, 64 MiB v7x

    # --- batch tile selection (generation-aware) -----------------------------------
    if batch_tile is None:
        # double-buffered bf16 x block gets ~55% of physical VMEM; aim for M=64..128
        x_budget = max(8 << 20, int(0.55 * vmem_cap))
        tn = x_budget // (2 * hw * c_in * 2)
        tn = int(max(1, min(tn, 128, n)))
        if tn >= 8:
            tn = (tn // 8) * 8                        # sublane multiple after fitting
        # keep >= 2 grid steps so both v7x TensorCores get work on the parallel axis
        if n >= 16 and pl.cdiv(n, tn) < 2:
            tn = max(8, 8 * (pl.cdiv(n, 2) // 8))
    else:
        tn = int(min(batch_tile, n))
    grid = (pl.cdiv(n, tn),)

    # --- VMEM accounting: 2*(blocks + resident consts) + scratch + temps + headroom -
    x_block = tn * hw * c_in * 2                      # bf16
    out_block = tn * nc_pad * 4                       # f32
    const_bytes = (16 * hw * 2 + c_in * oc * 2 + 2 * oc * 4
                   + 16 * oc * 1024 * 2 + 1024 * 4 + 1024 * nc_pad * 2 + nc_pad * 4)
    scratch_bytes = tn * 16 * c_in * 2                # bf16 pooled scratch
    temp_bytes = (tn * 16 * oc * 6                    # conv f32 + act bf16
                  + tn * 16 * oc * 2                  # flat bf16
                  + tn * 1024 * 6 + tn * nc_pad * 4)  # h1 f32/bf16 + logits
    vmem_limit = (2 * (x_block + out_block + const_bytes)
                  + scratch_bytes + temp_bytes + (6 << 20))
    vmem_limit = int(min(max(vmem_limit, 32 << 20), (vmem_cap * 9) // 10))

    flops = 2 * n * (16 * hw * c_in + 16 * c_in * oc + 16 * oc * 1024 + 1024 * nc_pad)
    bytes_accessed = n * hw * c_in * 2 + n * nc_pad * 4 + const_bytes
    cost = pl.CostEstimate(flops=flops, transcendentals=0,
                           bytes_accessed=bytes_accessed)

    out_pad = pl.pallas_call(
        _inception_aux_kernel,
        out_shape=jax.ShapeDtypeStruct((n, nc_pad), jnp.float32),
        grid=grid,
        in_specs=[
            pl.BlockSpec((tn, hw, c_in), lambda i: (i, 0, 0)),   # x (batch tiled, bf16)
            pl.BlockSpec((16, hw), lambda i: (0, 0)),            # pooling matrix (bf16)
            pl.BlockSpec((c_in, oc), lambda i: (0, 0)),          # 1x1 conv weight (bf16)
            pl.BlockSpec((1, oc), lambda i: (0, 0)),             # BN scale (f32)
            pl.BlockSpec((1, oc), lambda i: (0, 0)),             # BN shift (f32)
            pl.BlockSpec((16 * oc, 1024), lambda i: (0, 0)),     # fc1 weight (bf16)
            pl.BlockSpec((1, 1024), lambda i: (0, 0)),           # fc1 bias (f32)
            pl.BlockSpec((1024, nc_pad), lambda i: (0, 0)),      # fc2 weight (bf16)
            pl.BlockSpec((1, nc_pad), lambda i: (0, 0)),         # fc2 bias (f32)
        ],
        out_specs=pl.BlockSpec((tn, nc_pad), lambda i: (i, 0)),
        scratch_shapes=[pltpu.VMEM((tn, 16, c_in), jnp.bfloat16)],
        compiler_params=pltpu.CompilerParams(
            dimension_semantics=("parallel",),
            vmem_limit_bytes=vmem_limit),
        cost_estimate=cost,
    )(x_l, pmat, wc_t, scale, shift, w1s, b1, w2p, b2p)

    return out_pad[:, :num_classes]


def inception_aux_reference(x_nchw, params):
    """Pure-JAX reference (H, W divisible by 4 -> uniform pooling)."""
    n, c_in, h, w = x_nchw.shape
    oc = params["conv_w"].shape[0]
    pooled = x_nchw.reshape(n, c_in, 4, h // 4, 4, w // 4).mean(axis=(3, 5))
    conv = jnp.einsum("ncij,oc->noij", pooled, params["conv_w"].reshape(oc, c_in))
    scale = params["bn_gamma"] / jnp.sqrt(params["bn_var"] + 1e-3)
    shift = params["bn_beta"] - params["bn_mean"] * scale
    act = jax.nn.relu(conv * scale[None, :, None, None] + shift[None, :, None, None])
    flat = act.reshape(n, oc * 16)                       # torch.flatten(x, 1) order
    h1 = jax.nn.relu(flat @ params["fc1_w"].T + params["fc1_b"])
    return h1 @ params["fc2_w"].T + params["fc2_b"]


if __name__ == "__main__":
    key = jax.random.PRNGKey(0)
    n, c_in, hh, ww = 2, 4, 16, 16
    num_classes = 10
    ks = jax.random.split(key, 9)

    params = {
        "conv_w": 0.1 * jax.random.normal(ks[0], (128, c_in, 1, 1), jnp.float32),
        "bn_gamma": 1.0 + 0.05 * jax.random.normal(ks[1], (128,), jnp.float32),
        "bn_beta": 0.05 * jax.random.normal(ks[2], (128,), jnp.float32),
        "bn_mean": 0.05 * jax.random.normal(ks[3], (128,), jnp.float32),
        "bn_var": 1.0 + 0.1 * jax.random.uniform(ks[4], (128,), jnp.float32),
        "fc1_w": 0.02 * jax.random.normal(ks[5], (1024, 2048), jnp.float32),
        "fc1_b": 0.01 * jax.random.normal(ks[6], (1024,), jnp.float32),
        "fc2_w": 0.02 * jax.random.normal(ks[7], (num_classes, 1024), jnp.float32),
        "fc2_b": 0.01 * jax.random.normal(ks[8], (num_classes,), jnp.float32),
    }
    x = jax.random.normal(key, (n, c_in, hh, ww), jnp.float32)

    out = jax.block_until_ready(inception_aux_forward(x, params))
    ref = jax.block_until_ready(inception_aux_reference(x, params))

    assert out.shape == (n, num_classes)
    np.testing.assert_allclose(np.asarray(out), np.asarray(ref), rtol=2e-2, atol=2e-2)
    print("KERNEL_OK")
</pallas_src>

<mosaic_0001>
module attributes {stable_mosaic.version = 11 : i64} {
  func.func @_inception_aux_kernel(%arg0: i32, %arg1: memref<2x256x4xbf16, #tpu.memory_space<vmem>>, %arg2: memref<16x256xbf16, #tpu.memory_space<vmem>>, %arg3: memref<4x128xbf16, #tpu.memory_space<vmem>>, %arg4: memref<1x128xf32, #tpu.memory_space<vmem>>, %arg5: memref<1x128xf32, #tpu.memory_space<vmem>>, %arg6: memref<2048x1024xbf16, #tpu.memory_space<vmem>>, %arg7: memref<1x1024xf32, #tpu.memory_space<vmem>>, %arg8: memref<1024x128xbf16, #tpu.memory_space<vmem>>, %arg9: memref<1x128xf32, #tpu.memory_space<vmem>>, %arg10: memref<2x128xf32, #tpu.memory_space<vmem>>, %arg11: memref<2x16x4xbf16, #tpu.memory_space<vmem>>) attributes {dimension_semantics = [#tpu.dimension_semantics<parallel>], iteration_bounds = array<i64: 1>, scalar_prefetch = 0 : i64, scratch_operands = 1 : i64, tpu.core_type = #tpu.core_type<tc>, window_params = [{transform_indices = @transform_0, window_bounds = array<i64: 2, 256, 4>}, {pipeline_mode = #tpu.pipeline_mode<synchronous>, transform_indices = @transform_1, window_bounds = array<i64: 16, 256>}, {pipeline_mode = #tpu.pipeline_mode<synchronous>, transform_indices = @transform_2, window_bounds = array<i64: 4, 128>}, {pipeline_mode = #tpu.pipeline_mode<synchronous>, transform_indices = @transform_3, window_bounds = array<i64: 1, 128>}, {pipeline_mode = #tpu.pipeline_mode<synchronous>, transform_indices = @transform_4, window_bounds = array<i64: 1, 128>}, {pipeline_mode = #tpu.pipeline_mode<synchronous>, transform_indices = @transform_5, window_bounds = array<i64: 2048, 1024>}, {pipeline_mode = #tpu.pipeline_mode<synchronous>, transform_indices = @transform_6, window_bounds = array<i64: 1, 1024>}, {pipeline_mode = #tpu.pipeline_mode<synchronous>, transform_indices = @transform_7, window_bounds = array<i64: 1024, 128>}, {pipeline_mode = #tpu.pipeline_mode<synchronous>, transform_indices = @transform_8, window_bounds = array<i64: 1, 128>}, {transform_indices = @transform_9, window_bounds = array<i64: 2, 128>}]} {
    %c0 = arith.constant 0 : index
    %c0_0 = arith.constant 0 : index
    %0 = vector.load %arg2[%c0, %c0_0] : memref<16x256xbf16, #tpu.memory_space<vmem>>, vector<16x256xbf16>
    %c0_i32 = arith.constant 0 : i32
    %c2_i32 = arith.constant 2 : i32
    %1 = arith.addi %c0_i32, %c2_i32 : i32
    %c1_i32 = arith.constant 1 : i32
    scf.for %arg12 = %c0_i32 to %1 step %c1_i32  : i32 {
      %30 = arith.index_cast %arg12 : i32 to index
      %c0_25 = arith.constant 0 : index
      %c0_26 = arith.constant 0 : index
      %31 = vector.load %arg1[%30, %c0_25, %c0_26] : memref<2x256x4xbf16, #tpu.memory_space<vmem>>, vector<1x256x4xbf16>
      %32 = vector.shape_cast %31 : vector<1x256x4xbf16> to vector<256x4xbf16>
      %cst_27 = arith.constant dense<0.000000e+00> : vector<16x4xf32>
      %33 = tpu.matmul %0, %32, %cst_27 {dimension_numbers = #tpu.dot_dimension_numbers<[1], [0], [0], [1], [0, 0, 1, 1], [], []>} : vector<16x256xbf16>, vector<256x4xbf16>, vector<16x4xf32> -> vector<16x4xf32>
      %34 = arith.truncf %33 : vector<16x4xf32> to vector<16x4xbf16>
      %35 = arith.index_cast %arg12 : i32 to index
      %c0_28 = arith.constant 0 : index
      %c0_29 = arith.constant 0 : index
      %36 = vector.load %arg11[%35, %c0_28, %c0_29] : memref<2x16x4xbf16, #tpu.memory_space<vmem>>, vector<1x16x4xbf16>
      %37 = vector.shape_cast %36 : vector<1x16x4xbf16> to vector<16x4xbf16>
      %38 = vector.shape_cast %34 : vector<16x4xbf16> to vector<1x16x4xbf16>
      tpu.vector_store %arg11[%35, %c0_28, %c0_29], %38 {strides = array<i32>} : memref<2x16x4xbf16, #tpu.memory_space<vmem>>, vector<1x16x4xbf16>,
    }
    %c2_i32_1 = arith.constant 2 : i32
    %c0_2 = arith.constant 0 : index
    %c0_3 = arith.constant 0 : index
    %c0_4 = arith.constant 0 : index
    %2 = vector.load %arg11[%c0_2, %c0_3, %c0_4] : memref<2x16x4xbf16, #tpu.memory_space<vmem>>, vector<2x16x4xbf16>
    %3 = vector.shape_cast %2 : vector<2x16x4xbf16> to vector<32x4xbf16>
    %c0_5 = arith.constant 0 : index
    %c0_6 = arith.constant 0 : index
    %4 = vector.load %arg3[%c0_5, %c0_6] : memref<4x128xbf16, #tpu.memory_space<vmem>>, vector<4x128xbf16>
    %cst = arith.constant dense<0.000000e+00> : vector<32x128xf32>
    %5 = tpu.matmul %3, %4, %cst {dimension_numbers = #tpu.dot_dimension_numbers<[1], [0], [0], [1], [0, 0, 1, 1], [], []>} : vector<32x4xbf16>, vector<4x128xbf16>, vector<32x128xf32> -> vector<32x128xf32>
    %c0_7 = arith.constant 0 : index
    %c0_8 = arith.constant 0 : index
    %6 = vector.load %arg4[%c0_7, %c0_8] : memref<1x128xf32, #tpu.memory_space<vmem>>, vector<1x128xf32>
    %7 = vector.broadcast %6 : vector<1x128xf32> to vector<32x128xf32>
    %8 = arith.mulf %5, %7 : vector<32x128xf32>
    %c0_9 = arith.constant 0 : index
    %c0_10 = arith.constant 0 : index
    %9 = vector.load %arg5[%c0_9, %c0_10] : memref<1x128xf32, #tpu.memory_space<vmem>>, vector<1x128xf32>
    %10 = vector.broadcast %9 : vector<1x128xf32> to vector<32x128xf32>
    %11 = arith.addf %8, %10 : vector<32x128xf32>
    %cst_11 = arith.constant 0.000000e+00 : f32
    %12 = vector.broadcast %cst_11 : f32 to vector<32x128xf32>
    %13 = arith.maximumf %11, %12 : vector<32x128xf32>
    %14 = arith.truncf %13 : vector<32x128xf32> to vector<32x128xbf16>
    %15 = vector.shape_cast %14 : vector<32x128xbf16> to vector<2x2048xbf16>
    %c0_12 = arith.constant 0 : index
    %c0_13 = arith.constant 0 : index
    %16 = vector.load %arg6[%c0_12, %c0_13] : memref<2048x1024xbf16, #tpu.memory_space<vmem>>, vector<2048x1024xbf16>
    %cst_14 = arith.constant dense<0.000000e+00> : vector<2x1024xf32>
    %17 = tpu.matmul %15, %16, %cst_14 {dimension_numbers = #tpu.dot_dimension_numbers<[1], [0], [0], [1], [0, 0, 1, 1], [], []>} : vector<2x2048xbf16>, vector<2048x1024xbf16>, vector<2x1024xf32> -> vector<2x1024xf32>
    %c0_15 = arith.constant 0 : index
    %c0_16 = arith.constant 0 : index
    %18 = vector.load %arg7[%c0_15, %c0_16] : memref<1x1024xf32, #tpu.memory_space<vmem>>, vector<1x1024xf32>
    %19 = vector.broadcast %18 : vector<1x1024xf32> to vector<2x1024xf32>
    %20 = arith.addf %17, %19 : vector<2x1024xf32>
    %cst_17 = arith.constant 0.000000e+00 : f32
    %21 = vector.broadcast %cst_17 : f32 to vector<2x1024xf32>
    %22 = arith.maximumf %20, %21 : vector<2x1024xf32>
    %23 = arith.truncf %22 : vector<2x1024xf32> to vector<2x1024xbf16>
    %c0_18 = arith.constant 0 : index
    %c0_19 = arith.constant 0 : index
    %24 = vector.load %arg8[%c0_18, %c0_19] : memref<1024x128xbf16, #tpu.memory_space<vmem>>, vector<1024x128xbf16>
    %cst_20 = arith.constant dense<0.000000e+00> : vector<2x128xf32>
    %25 = tpu.matmul %23, %24, %cst_20 {dimension_numbers = #tpu.dot_dimension_numbers<[1], [0], [0], [1], [0, 0, 1, 1], [], []>} : vector<2x1024xbf16>, vector<1024x128xbf16>, vector<2x128xf32> -> vector<2x128xf32>
    %c0_21 = arith.constant 0 : index
    %c0_22 = arith.constant 0 : index
    %26 = vector.load %arg9[%c0_21, %c0_22] : memref<1x128xf32, #tpu.memory_space<vmem>>, vector<1x128xf32>
    %27 = vector.broadcast %26 : vector<1x128xf32> to vector<2x128xf32>
    %28 = arith.addf %25, %27 : vector<2x128xf32>
    %c0_23 = arith.constant 0 : index
    %c0_24 = arith.constant 0 : index
    %29 = vector.load %arg10[%c0_23, %c0_24] : memref<2x128xf32, #tpu.memory_space<vmem>>, vector<2x128xf32>
    tpu.vector_store %arg10[%c0_23, %c0_24], %28 {strides = array<i32>} : memref<2x128xf32, #tpu.memory_space<vmem>>, vector<2x128xf32>,
    return
  }
  func.func @transform_0(%arg0: i32) -> (i32, i32, i32) {
    %c0_i32 = arith.constant 0 : i32
    %c0_i32_0 = arith.constant 0 : i32
    %c0_i32_1 = arith.constant 0 : i32
    return %arg0, %c0_i32, %c0_i32_0 : i32, i32, i32
  }
  func.func @transform_1(%arg0: i32) -> (i32, i32) {
    %c0_i32 = arith.constant 0 : i32
    %c0_i32_0 = arith.constant 0 : i32
    %c0_i32_1 = arith.constant 0 : i32
    return %c0_i32, %c0_i32_0 : i32, i32
  }
  func.func @transform_2(%arg0: i32) -> (i32, i32) {
    %c0_i32 = arith.constant 0 : i32
    %c0_i32_0 = arith.constant 0 : i32
    %c0_i32_1 = arith.constant 0 : i32
    return %c0_i32, %c0_i32_0 : i32, i32
  }
  func.func @transform_3(%arg0: i32) -> (i32, i32) {
    %c0_i32 = arith.constant 0 : i32
    %c0_i32_0 = arith.constant 0 : i32
    %c0_i32_1 = arith.constant 0 : i32
    return %c0_i32, %c0_i32_0 : i32, i32
  }
  func.func @transform_4(%arg0: i32) -> (i32, i32) {
    %c0_i32 = arith.constant 0 : i32
    %c0_i32_0 = arith.constant 0 : i32
    %c0_i32_1 = arith.constant 0 : i32
    return %c0_i32, %c0_i32_0 : i32, i32
  }
  func.func @transform_5(%arg0: i32) -> (i32, i32) {
    %c0_i32 = arith.constant 0 : i32
    %c0_i32_0 = arith.constant 0 : i32
    %c0_i32_1 = arith.constant 0 : i32
    return %c0_i32, %c0_i32_0 : i32, i32
  }
  func.func @transform_6(%arg0: i32) -> (i32, i32) {
    %c0_i32 = arith.constant 0 : i32
    %c0_i32_0 = arith.constant 0 : i32
    %c0_i32_1 = arith.constant 0 : i32
    return %c0_i32, %c0_i32_0 : i32, i32
  }
  func.func @transform_7(%arg0: i32) -> (i32, i32) {
    %c0_i32 = arith.constant 0 : i32
    %c0_i32_0 = arith.constant 0 : i32
    %c0_i32_1 = arith.constant 0 : i32
    return %c0_i32, %c0_i32_0 : i32, i32
  }
  func.func @transform_8(%arg0: i32) -> (i32, i32) {
    %c0_i32 = arith.constant 0 : i32
    %c0_i32_0 = arith.constant 0 : i32
    %c0_i32_1 = arith.constant 0 : i32
    return %c0_i32, %c0_i32_0 : i32, i32
  }
  func.func @transform_9(%arg0: i32) -> (i32, i32) {
    %c0_i32 = arith.constant 0 : i32
    %c0_i32_0 = arith.constant 0 : i32
    return %arg0, %c0_i32 : i32, i32
  }
}

</mosaic_0001>

<llo_original>
// kernel: tpu_custom_call.1
$region0: #{tpu_custom_call.1}
  #allocation0 [shape = 'u32[]', space=smem, size = 0x4, offset = 0x4, fixed_abs, tag = 'smem constant byte address 0x4 - core index']
  #allocation1 [shape = 'u32[72,128]{1,0:T(1,128)}', space=vmem, size = 0x9000, scoped, tag = 'internal scratch']
  #allocation2 [shape = 'bf16[2,16,4]{2,1,0:T(8,128)(2,1)}', space=vmem, size = 0x2000, scoped, tag = 'scratch operand']
  %s0 = inlined_call_operand.vmem [shape: bf16[2,256,4], index: 0, kind: input, shape index: {}]
  %s1 = inlined_call_operand.hbm [shape: bf16[16,256], index: 1, kind: input, shape index: {}]
  %s2 = inlined_call_operand.hbm [shape: bf16[4,128], index: 2, kind: input, shape index: {}]
  %s3 = inlined_call_operand.hbm [shape: f32[1,128], index: 3, kind: input, shape index: {}]
  %s4 = inlined_call_operand.hbm [shape: f32[1,128], index: 4, kind: input, shape index: {}]
  %s5 = inlined_call_operand.hbm [shape: bf16[2048,1024], index: 5, kind: input, shape index: {}]
  %s6 = inlined_call_operand.hbm [shape: f32[1,1024], index: 6, kind: input, shape index: {}]
  %s7 = inlined_call_operand.hbm [shape: bf16[1024,128], index: 7, kind: input, shape index: {}]
  %s8 = inlined_call_operand.hbm [shape: f32[1,128], index: 8, kind: input, shape index: {}]
  %s9 = inlined_call_operand.hbm [shape: f32[2,128], index: 9, kind: output, shape index: {}]
  %s10 = sld [smem:[#allocation0]]
  $region85: #{tpu_custom_call.1} parent=0
    _
  %s12 = ssub.s32 1, %s10
  %s13 = scalar_select 0, %s12, %s10
  $region1: #{tpu_custom_call.1} parent=0
    #allocation3 [shape = 'u8[8192]{0}', space=vmem, size = 0x2000, scoped, tag = 'input window, operand 1, single buffered']
    #allocation4 [shape = 's32[1]{0}', space=sflag, size = 0x4, scoped, tag = 'scoped memory for tpu_custom_call.1']
    #allocation5 [shape = 's32[1]{0}', space=sflag, size = 0x4, scoped, tag = 'scoped memory for tpu_custom_call.1']
    #allocation6 [shape = 'u8[1024]{0}', space=vmem, size = 0x400, scoped, tag = 'input window, operand 2, single buffered']
    #allocation7 [shape = 's32[1]{0}', space=sflag, size = 0x4, scoped, tag = 'scoped memory for tpu_custom_call.1']
    #allocation8 [shape = 'u8[512]{0}', space=vmem, size = 0x400, scoped, tag = 'input window, operand 3, single buffered']
    #allocation9 [shape = 'u8[512]{0}', space=vmem, size = 0x400, scoped, tag = 'input window, operand 4, single buffered']
    #allocation10 [shape = 's32[1]{0}', space=sflag, size = 0x4, scoped, tag = 'scoped memory for tpu_custom_call.1']
    #allocation11 [shape = 'u8[4194304]{0}', space=vmem, size = 0x400000, scoped, tag = 'input window, operand 5, single buffered']
    #allocation12 [shape = 'u8[4096]{0}', space=vmem, size = 0x1000, scoped, tag = 'input window, operand 6, single buffered']
    #allocation13 [shape = 's32[1]{0}', space=sflag, size = 0x4, scoped, tag = 'scoped memory for tpu_custom_call.1']
    #allocation14 [shape = 'u8[262144]{0}', space=vmem, size = 0x40000, scoped, tag = 'input window, operand 7, single buffered']
    #allocation15 [shape = 'u8[512]{0}', space=vmem, size = 0x400, scoped, tag = 'input window, operand 8, single buffered']
    #allocation16 [shape = 's32[1]{0}', space=sflag, size = 0x4, scoped, tag = 'scoped memory for tpu_custom_call.1']
    #allocation17 [shape = 'u8[1024]{0}', space=vmem, size = 0x400, scoped, tag = 'output window, operand 0, single buffered']
    %14 = vsyncpa [#allocation4], 0
    %15 = vsyncpa [#allocation7], 0
    %16 = vsyncpa [#allocation10], 0
    %17 = vsyncpa [#allocation13], 0
    %18 = vsyncpa [#allocation16], 0
    %19 = vsyncpa [#allocation5], 0
    // Predicated region
    $region2: #{tpu_custom_call.1} parent=1 // pred_check
      _
    $region3: #{tpu_custom_call.1} parent=1 // pred_check_branch
      %21 = sbr.rel (0) target = $region5
    $region4: #{tpu_custom_call.1} parent=1 // pred_region
      _
    $region5: #{tpu_custom_call.1} parent=1 // pred_fallthru
      _
    // Predicated region
    $region6: #{tpu_custom_call.1} parent=1 // pred_check
      _
    $region7: #{tpu_custom_call.1} parent=1 // pred_check_branch
      %23 = sbr.rel (0) target = $region9
    $region8: #{tpu_custom_call.1} parent=1 // pred_region
      %25 = vsyncadd [#allocation4], 0
      %s26 = sshll.u32 %s1, 4
      %s27 = int_to_ptr.hbm [resolvable:$true] %s26
      %s28 = sshll.u32 [#allocation3], 4
      %s29 = int_to_ptr.vmem [resolvable:$true] %s28
      %34 = dma.hbm_to_vmem [thread:$0]  %s27, 256, %s29, [#allocation4], 128, 128, 8
    $region9: #{tpu_custom_call.1} parent=1 // pred_fallthru
      _
    // Predicated region
    $region10: #{tpu_custom_call.1} parent=1 // pred_check
      _
    $region11: #{tpu_custom_call.1} parent=1 // pred_check_branch
      %36 = sbr.rel (0) target = $region13
    $region12: #{tpu_custom_call.1} parent=1 // pred_region
      %38 = vsyncadd [#allocation7], 0
      %s40 = sshll.u32 %s2, 4
      %s41 = int_to_ptr.hbm [resolvable:$true] %s40
      %s42 = sshll.u32 [#allocation6], 4
      %s43 = int_to_ptr.vmem [resolvable:$true] %s42
      %45 = dma.hbm_to_vmem [thread:$0]  %s41, 32, %s43, [#allocation7]
    $region13: #{tpu_custom_call.1} parent=1 // pred_fallthru
      _
    // Predicated region
    $region14: #{tpu_custom_call.1} parent=1 // pred_check
      _
    $region15: #{tpu_custom_call.1} parent=1 // pred_check_branch
      %47 = sbr.rel (0) target = $region17
    $region16: #{tpu_custom_call.1} parent=1 // pred_region
      %49 = vsyncadd [#allocation7], 0
      %s51 = sshll.u32 %s3, 4
      %s52 = int_to_ptr.hbm [resolvable:$true] %s51
      %s53 = sshll.u32 [#allocation8], 4
      %s54 = int_to_ptr.vmem [resolvable:$true] %s53
      %56 = dma.hbm_to_vmem [thread:$0]  %s52, 16, %s54, [#allocation7]
    $region17: #{tpu_custom_call.1} parent=1 // pred_fallthru
      _
    // Predicated region
    $region18: #{tpu_custom_call.1} parent=1 // pred_check
      _
    $region19: #{tpu_custom_call.1} parent=1 // pred_check_branch
      %58 = sbr.rel (0) target = $region21
    $region20: #{tpu_custom_call.1} parent=1 // pred_region
      %60 = vsyncadd [#allocation10], 0
      %s62 = sshll.u32 %s4, 4
      %s63 = int_to_ptr.hbm [resolvable:$true] %s62
      %s64 = sshll.u32 [#allocation9], 4
      %s65 = int_to_ptr.vmem [resolvable:$true] %s64
      %67 = dma.hbm_to_vmem [thread:$0]  %s63, 16, %s65, [#allocation10]
    $region21: #{tpu_custom_call.1} parent=1 // pred_fallthru
      _
    // Predicated region
    $region22: #{tpu_custom_call.1} parent=1 // pred_check
      _
    $region23: #{tpu_custom_call.1} parent=1 // pred_check_branch
      %69 = sbr.rel (0) target = $region25
    $region24: #{tpu_custom_call.1} parent=1 // pred_region
      %71 = vsyncadd [#allocation10], 0
      %s72 = sshll.u32 %s5, 4
      %s73 = int_to_ptr.hbm [resolvable:$true] %s72
      %s74 = sshll.u32 [#allocation11], 4
      %s75 = int_to_ptr.vmem [resolvable:$true] %s74
      %80 = dma.hbm_to_vmem [thread:$0]  %s73, 131072, %s75, [#allocation10], 512, 512, 32
    $region25: #{tpu_custom_call.1} parent=1 // pred_fallthru
      _
    // Predicated region
    $region26: #{tpu_custom_call.1} parent=1 // pred_check
      _
    $region27: #{tpu_custom_call.1} parent=1 // pred_check_branch
      %82 = sbr.rel (0) target = $region29
    $region28: #{tpu_custom_call.1} parent=1 // pred_region
      %84 = vsyncadd [#allocation13], 0
      %s86 = sshll.u32 %s6, 4
      %s87 = int_to_ptr.hbm [resolvable:$true] %s86
      %s88 = sshll.u32 [#allocation12], 4
      %s89 = int_to_ptr.vmem [resolvable:$true] %s88
      %91 = dma.hbm_to_vmem [thread:$0]  %s87, 128, %s89, [#allocation13]
    $region29: #{tpu_custom_call.1} parent=1 // pred_fallthru
      _
    // Predicated region
    $region30: #{tpu_custom_call.1} parent=1 // pred_check
      _
    $region31: #{tpu_custom_call.1} parent=1 // pred_check_branch
      %93 = sbr.rel (0) target = $region33
    $region32: #{tpu_custom_call.1} parent=1 // pred_region
      %95 = vsyncadd [#allocation13], 0
      %s96 = sshll.u32 %s7, 4
      %s97 = int_to_ptr.hbm [resolvable:$true] %s96
      %s98 = sshll.u32 [#allocation14], 4
      %s99 = int_to_ptr.vmem [resolvable:$true] %s98
      %104 = dma.hbm_to_vmem [thread:$0]  %s97, 8192, %s99, [#allocation13], 64, 64, 4
    $region33: #{tpu_custom_call.1} parent=1 // pred_fallthru
      _
    // Predicated region
    $region34: #{tpu_custom_call.1} parent=1 // pred_check
      _
    $region35: #{tpu_custom_call.1} parent=1 // pred_check_branch
      %106 = sbr.rel (0) target = $region37
    $region36: #{tpu_custom_call.1} parent=1 // pred_region
      %108 = vsyncadd [#allocation16], 0
      %s110 = sshll.u32 %s8, 4
      %s111 = int_to_ptr.hbm [resolvable:$true] %s110
      %s112 = sshll.u32 [#allocation15], 4
      %s113 = int_to_ptr.vmem [resolvable:$true] %s112
      %115 = dma.hbm_to_vmem [thread:$0]  %s111, 16, %s113, [#allocation16]
    $region37: #{tpu_custom_call.1} parent=1 // pred_fallthru
      _
    // Predicated region
    $region38: #{tpu_custom_call.1} parent=1 // pred_check
      _
    $region39: #{tpu_custom_call.1} parent=1 // pred_check_branch
      %117 = sbr.rel (0) target = $region41
    $region40: #{tpu_custom_call.1} parent=1 // pred_region
      %119 = dma.done [#allocation4], 256
    $region41: #{tpu_custom_call.1} parent=1 // pred_fallthru
      _
    // Predicated region
    $region42: #{tpu_custom_call.1} parent=1 // pred_check
      _
    $region43: #{tpu_custom_call.1} parent=1 // pred_check_branch
      %121 = sbr.rel (0) target = $region45
    $region44: #{tpu_custom_call.1} parent=1 // pred_region
      %123 = dma.done [#allocation7], 32
    $region45: #{tpu_custom_call.1} parent=1 // pred_fallthru
      _
    // Predicated region
    $region46: #{tpu_custom_call.1} parent=1 // pred_check
      _
    $region47: #{tpu_custom_call.1} parent=1 // pred_check_branch
      %125 = sbr.rel (0) target = $region49
    $region48: #{tpu_custom_call.1} parent=1 // pred_region
      %127 = dma.done [#allocation7], 16
    $region49: #{tpu_custom_call.1} parent=1 // pred_fallthru
      _
    // Predicated region
    $region50: #{tpu_custom_call.1} parent=1 // pred_check
      _
    $region51: #{tpu_custom_call.1} parent=1 // pred_check_branch
      %129 = sbr.rel (0) target = $region53
    $region52: #{tpu_custom_call.1} parent=1 // pred_region
      %131 = dma.done [#allocation10], 16
    $region53: #{tpu_custom_call.1} parent=1 // pred_fallthru
      _
    // Predicated region
    $region54: #{tpu_custom_call.1} parent=1 // pred_check
      _
    $region55: #{tpu_custom_call.1} parent=1 // pred_check_branch
      %133 = sbr.rel (0) target = $region57
    $region56: #{tpu_custom_call.1} parent=1 // pred_region
      %135 = dma.done [#allocation10], 131072
    $region57: #{tpu_custom_call.1} parent=1 // pred_fallthru
      _
    // Predicated region
    $region58: #{tpu_custom_call.1} parent=1 // pred_check
      _
    $region59: #{tpu_custom_call.1} parent=1 // pred_check_branch
      %137 = sbr.rel (0) target = $region61
    $region60: #{tpu_custom_call.1} parent=1 // pred_region
      %139 = dma.done [#allocation13], 128
    $region61: #{tpu_custom_call.1} parent=1 // pred_fallthru
      _
    // Predicated region
    $region62: #{tpu_custom_call.1} parent=1 // pred_check
      _
    $region63: #{tpu_custom_call.1} parent=1 // pred_check_branch
      %141 = sbr.rel (0) target = $region65
    $region64: #{tpu_custom_call.1} parent=1 // pred_region
      %143 = dma.done [#allocation13], 8192
    $region65: #{tpu_custom_call.1} parent=1 // pred_fallthru
      _
    // Predicated region
    $region66: #{tpu_custom_call.1} parent=1 // pred_check
      _
    $region67: #{tpu_custom_call.1} parent=1 // pred_check_branch
      %145 = sbr.rel (0) target = $region69
    $region68: #{tpu_custom_call.1} parent=1 // pred_region
      %147 = dma.done [#allocation16], 16
    $region69: #{tpu_custom_call.1} parent=1 // pred_fallthru
      _
    %v149 = vld [vmem:[#allocation3] sm:$0xff]
    %v150 = vld [vmem:[#allocation3 + $0x8] sm:$0xff]
    loop: start=0, step=1, limit=2
    $region70: #{tpu_custom_call.1} parent=1 // loop_pre_header
      _
    $region71: #{tpu_custom_call.1} parent=1 // loop_header
      %s152 = sphi 0, %s156
      %p153 = scmp.ge.s32.totalorder %s152, 2
    $region72: #{tpu_custom_call.1} parent=1 // loop_header_branch
      %155 = sbr.rel (%p153) target = $region76
    $region73: #{tpu_custom_call.1} parent=1 // loop_body
      %s157 = smul.u32 %s152, 32
      %s158 = smul.addr %s157, 4
      %s159 = scalar_lea.vmem %s0, %s158
      %v160 = vld [vmem:[%s159] sm:$0xf]
      %v161 = vld [vmem:[%s159 + $0x4] sm:$0xf]
      %v162 = vld [vmem:[%s159 + $0x8] sm:$0xf]
      %v163 = vld [vmem:[%s159 + $0xc] sm:$0xf]
      %v164 = vld [vmem:[%s159 + $0x10] sm:$0xf]
      %v165 = vld [vmem:[%s159 + $0x14] sm:$0xf]
      %v166 = vld [vmem:[%s159 + $0x18] sm:$0xf]
      %v167 = vld [vmem:[%s159 + $0x1c] sm:$0xf]
      %v168 = vld [vmem:[%s159 + $0x20] sm:$0xf]
      %v169 = vld [vmem:[%s159 + $0x24] sm:$0xf]
      %v170 = vld [vmem:[%s159 + $0x28] sm:$0xf]
      %v171 = vld [vmem:[%s159 + $0x2c] sm:$0xf]
      %v172 = vld [vmem:[%s159 + $0x30] sm:$0xf]
      %v173 = vld [vmem:[%s159 + $0x34] sm:$0xf]
      %v174 = vld [vmem:[%s159 + $0x38] sm:$0xf]
      %v175 = vld [vmem:[%s159 + $0x3c] sm:$0xf]
      %v176 = vld [vmem:[%s159 + $0x40] sm:$0xf]
      %v177 = vld [vmem:[%s159 + $0x44] sm:$0xf]
      %v178 = vld [vmem:[%s159 + $0x48] sm:$0xf]
      %v179 = vld [vmem:[%s159 + $0x4c] sm:$0xf]
      %v180 = vld [vmem:[%s159 + $0x50] sm:$0xf]
      %v181 = vld [vmem:[%s159 + $0x54] sm:$0xf]
      %v182 = vld [vmem:[%s159 + $0x58] sm:$0xf]
      %v183 = vld [vmem:[%s159 + $0x5c] sm:$0xf]
      %v184 = vld [vmem:[%s159 + $0x60] sm:$0xf]
      %v185 = vld [vmem:[%s159 + $0x64] sm:$0xf]
      %v186 = vld [vmem:[%s159 + $0x68] sm:$0xf]
      %v187 = vld [vmem:[%s159 + $0x6c] sm:$0xf]
      %v188 = vld [vmem:[%s159 + $0x70] sm:$0xf]
      %v189 = vld [vmem:[%s159 + $0x74] sm:$0xf]
      %v190 = vld [vmem:[%s159 + $0x78] sm:$0xf]
      %v191 = vld [vmem:[%s159 + $0x7c] sm:$0xf]
      %v194 = vunpack.c.l.b16 %v149
      %v195 = vunpack.c.h.b16 %v149
      %v196 = vunpack.c.l.b16 %v150
      %v197 = vunpack.c.h.b16 %v150
      %v198 = vpack.c.b16 %v196, %v194
      %v199 = vpack.c.b16 %v197, %v195
      %v234 = vunpack.c.l.b16 %v160
      %v235 = vunpack.c.l.b16 %v161
      %v236 = vunpack.c.l.b16 %v162
      %v237 = vunpack.c.l.b16 %v163
      %v238 = vunpack.c.l.b16 %v164
      %v239 = vunpack.c.l.b16 %v165
      %v240 = vunpack.c.l.b16 %v166
      %v241 = vunpack.c.l.b16 %v167
      %v242 = vunpack.c.l.b16 %v168
      %v243 = vunpack.c.l.b16 %v169
      %v244 = vunpack.c.l.b16 %v170
      %v245 = vunpack.c.l.b16 %v171
      %v246 = vunpack.c.l.b16 %v172
      %v247 = vunpack.c.l.b16 %v173
      %v248 = vunpack.c.l.b16 %v174
      %v249 = vunpack.c.l.b16 %v175
      %v250 = vunpack.c.l.b16 %v176
      %v251 = vunpack.c.l.b16 %v177
      %v252 = vunpack.c.l.b16 %v178
      %v253 = vunpack.c.l.b16 %v179
      %v254 = vunpack.c.l.b16 %v180
      %v255 = vunpack.c.l.b16 %v181
      %v256 = vunpack.c.l.b16 %v182
      %v257 = vunpack.c.l.b16 %v183
      %v258 = vunpack.c.l.b16 %v184
      %v259 = vunpack.c.l.b16 %v185
      %v260 = vunpack.c.l.b16 %v186
      %v261 = vunpack.c.l.b16 %v187
      %v262 = vunpack.c.l.b16 %v188
      %v263 = vunpack.c.l.b16 %v189
      %v264 = vunpack.c.l.b16 %v190
      %v265 = vunpack.c.l.b16 %v191
      %v266 = vpack.c.b16 %v235, %v234
      %v267 = vpack.c.b16 %v237, %v236
      %v268 = vpack.c.b16 %v239, %v238
      %v269 = vpack.c.b16 %v241, %v240
      %v270 = vpack.c.b16 %v243, %v242
      %v271 = vpack.c.b16 %v245, %v244
      %v272 = vpack.c.b16 %v247, %v246
      %v273 = vpack.c.b16 %v249, %v248
      %v274 = vpack.c.b16 %v251, %v250
      %v275 = vpack.c.b16 %v253, %v252
      %v276 = vpack.c.b16 %v255, %v254
      %v277 = vpack.c.b16 %v257, %v256
      %v278 = vpack.c.b16 %v259, %v258
      %v279 = vpack.c.b16 %v261, %v260
      %v280 = vpack.c.b16 %v263, %v262
      %v281 = vpack.c.b16 %v265, %v264
      %298 = vmatpush.bf16.msra.mxu0 %v273
      %299 = vmatpush.bf16.msra.mxu0 %v272
      %300 = vmatpush.bf16.msra.mxu0 %v271
      %301 = vmatpush.bf16.msra.mxu0 %v270
      %302 = vmatpush.bf16.msra.mxu0 %v269
      %303 = vmatpush.bf16.msra.mxu0 %v268
      %304 = vmatpush.bf16.msra.mxu0 %v267
      %305 = vmatpush.bf16.msra.mxu0 %v266
      %306 = vmatmul.bf16.gmra.mxu0 %v198
      %v307 = vpop.f32.mrf.mxu0
      %v308 = vadd.f32 0.0, %v307
      %v309 = vpop.f32.mrf.mxu0
      %v310 = vadd.f32 0.0, %v309
      %311 = vdwg.mxu0
      %312 = vmatpush.bf16.msra.mxu0 %v281
      %313 = vmatpush.bf16.msra.mxu0 %v280
      %314 = vmatpush.bf16.msra.mxu0 %v279
      %315 = vmatpush.bf16.msra.mxu0 %v278
      %316 = vmatpush.bf16.msra.mxu0 %v277
      %317 = vmatpush.bf16.msra.mxu0 %v276
      %318 = vmatpush.bf16.msra.mxu0 %v275
      %319 = vmatpush.bf16.msra.mxu0 %v274
      %320 = vmatmul.bf16.gmra.mxu0 %v199
      %v321 = vpop.f32.mrf.mxu0
      %v322 = vadd.f32 %v308, %v321
      %v323 = vpop.f32.mrf.mxu0
      %v324 = vadd.f32 %v310, %v323
      %325 = vdwg.mxu0
      %v326 = vpack.c.bf16 %v322, %v322
      %v327 = vpack.c.bf16 %v324, %v324
      %s328 = smul.u32 %s152, 2
      %s329 = smul.addr %s328, 4
      %s330 = scalar_lea.vmem [#allocation2], %s329
      %vm331 = vcmask 27648
      %332 = vst.msk [vmem:[%s330] sm:$0xf] %vm331, %v326
      %333 = vst.msk [vmem:[%s330 + $0x4] sm:$0xf] %vm331, %v327
    $region74: #{tpu_custom_call.1} parent=1 // loop_footer
      %s156 = sadd.s32 1, %s152
    $region75: #{tpu_custom_call.1} parent=1 // loop_footer_branch
      %151 = sbr.rel target = $region71
    $region76: #{tpu_custom_call.1} parent=1 // loop_exit
      _
    %v334 = vld [vmem:[#allocation2] sm:$0xf]
    %v335 = vld [vmem:[#allocation2 + $0x4] sm:$0xf]
    %v336 = vld [vmem:[#allocation2 + $0x8] sm:$0xf]
    %v337 = vld [vmem:[#allocation2 + $0xc] sm:$0xf]
    %v338 = vld [vmem:[#allocation6] sm:$0x3]
    %v343 = vunpack.c.l.b16 %v334
    %v344 = vunpack.c.l.b16 %v335
    %v345 = vunpack.c.l.b16 %v336
    %v346 = vunpack.c.l.b16 %v337
    %v347 = vpack.c.b16 %v344, %v343
    %v348 = vpack.c.b16 %v346, %v345
    %vm349 = vcmask 31744
    %v351 = vsel %vm349, %v347, 0
    %v354 = vsel %vm349, %v348, 0
    %vm356 = vcmask 1041408
    %v358 = vsel %vm356, %v338, 0
    %360 = vmatpush.bf16.msra.mxu0 0
    %361 = vmatpush.bf16.msra.mxu0 0
    %362 = vmatpush.bf16.msra.mxu0 0
    %363 = vmatpush.bf16.msra.mxu0 0
    %364 = vmatpush.bf16.msra.mxu0 0
    %365 = vmatpush.bf16.msra.mxu0 0
    %366 = vmatpush.bf16.msra.mxu0 0
    %367 = vmatpush.bf16.msra.mxu0 %v358
    %368 = vmatmul.bf16.gmra.mxu0 %v351
    %v369 = vpop.f32.mrf.mxu0
    %v370 = vadd.f32 0.0, %v369
    %v371 = vpop.f32.mrf.mxu0
    %v372 = vadd.f32 0.0, %v371
    %373 = vmatmul.bf16.gmra.mxu0 %v354
    %v374 = vpop.f32.mrf.mxu0
    %v375 = vadd.f32 0.0, %v374
    %v376 = vpop.f32.mrf.mxu0
    %v377 = vadd.f32 0.0, %v376
    %378 = vdwg.mxu0
    %v379 = vld [vmem:[#allocation8] sm:$0x1]
    %v381 = vperm.slane %v379, 0
    %v383 = vmul.f32 %v370, %v381
    %v384 = vmul.f32 %v372, %v381
    %v385 = vmul.f32 %v375, %v381
    %v386 = vmul.f32 %v377, %v381
    %v387 = vld [vmem:[#allocation9] sm:$0x1]
    %v389 = vperm.slane %v387, 0
    %v391 = vadd.f32 %v383, %v389
    %v392 = vadd.f32 %v384, %v389
    %v393 = vadd.f32 %v385, %v389
    %v394 = vadd.f32 %v386, %v389
    %v395 = vmax.f32 %v391, 0.0
    %v396 = vmax.f32 %v392, 0.0
    %v397 = vmax.f32 %v393, 0.0
    %v398 = vmax.f32 %v394, 0.0
    %v399 = vpack.c.bf16 %v395, %v395
    %v400 = vpack.c.bf16 %v396, %v396
    %v401 = vpack.c.bf16 %v397, %v397
    %v402 = vpack.c.bf16 %v398, %v398
    %v407 = vunpack.c.l.b16 %v399
    %v408 = vunpack.c.l.b16 %v400
    %v409 = vunpack.c.l.b16 %v401
    %v410 = vunpack.c.l.b16 %v402
    %v411 = vld [vmem:[#allocation11] sm:$0xff]
    %v412 = vld [vmem:[#allocation11 + $0x8] sm:$0xff]
    %v413 = vld [vmem:[#allocation11 + $0x10] sm:$0xff]
    %v414 = vld [vmem:[#allocation11 + $0x18] sm:$0xff]
    %v415 = vld [vmem:[#allocation11 + $0x20] sm:$0xff]
    %v416 = vld [vmem:[#allocation11 + $0x28] sm:$0xff]
    %v417 = vld [vmem:[#allocation11 + $0x30] sm:$0xff]
    %v418 = vld [vmem:[#allocation11 + $0x38] sm:$0xff]
    %v419 = vld [vmem:[#allocation11 + $0x40] sm:$0xff]
    %v420 = vld [vmem:[#allocation11 + $0x48] sm:$0xff]
    %v421 = vld [vmem:[#allocation11 + $0x50] sm:$0xff]
    %v422 = vld [vmem:[#allocation11 + $0x58] sm:$0xff]
    %v423 = vld [vmem:[#allocation11 + $0x60] sm:$0xff]
    %v424 = vld [vmem:[#allocation11 + $0x68] sm:$0xff]
    %v425 = vld [vmem:[#allocation11 + $0x70] sm:$0xff]
    %v426 = vld [vmem:[#allocation11 + $0x78] sm:$0xff]
    %v427 = vld [vmem:[#allocation11 + $0x80] sm:$0xff]
    %v428 = vld [vmem:[#allocation11 + $0x88] sm:$0xff]
    %v429 = vld [vmem:[#allocation11 + $0x90] sm:$0xff]
    %v430 = vld [vmem:[#allocation11 + $0x98] sm:$0xff]
    %v431 = vld [vmem:[#allocation11 + $0xa0] sm:$0xff]
    %v432 = vld [vmem:[#allocation11 + $0xa8] sm:$0xff]
    %v433 = vld [vmem:[#allocation11 + $0xb0] sm:$0xff]
    %v434 = vld [vmem:[#allocation11 + $0xb8] sm:$0xff]
    %v435 = vld [vmem:[#allocation11 + $0xc0] sm:$0xff]
    %v436 = vld [vmem:[#allocation11 + $0xc8] sm:$0xff]
    %v437 = vld [vmem:[#allocation11 + $0xd0] sm:$0xff]
    %v438 = vld [vmem:[#allocation11 + $0xd8] sm:$0xff]
    %v439 = vld [vmem:[#allocation11 + $0xe0] sm:$0xff]
    %v440 = vld [vmem:[#allocation11 + $0xe8] sm:$0xff]
    %v441 = vld [vmem:[#allocation11 + $0xf0] sm:$0xff]
    %v442 = vld [vmem:[#allocation11 + $0xf8] sm:$0xff]
    %v443 = vld [vmem:[#allocation11 + $0x100] sm:$0xff]
    %v444 = vld [vmem:[#allocation11 + $0x108] sm:$0xff]
    %v445 = vld [vmem:[#allocation11 + $0x110] sm:$0xff]
    %v446 = vld [vmem:[#allocation11 + $0x118] sm:$0xff]
    %v447 = vld [vmem:[#allocation11 + $0x120] sm:$0xff]
    %v448 = vld [vmem:[#allocation11 + $0x128] sm:$0xff]
    %v449 = vld [vmem:[#allocation11 + $0x130] sm:$0xff]
    %v450 = vld [vmem:[#allocation11 + $0x138] sm:$0xff]
    %v451 = vld [vmem:[#allocation11 + $0x140] sm:$0xff]
    %v452 = vld [vmem:[#allocation11 + $0x148] sm:$0xff]
    %v453 = vld [vmem:[#allocation11 + $0x150] sm:$0xff]
    %v454 = vld [vmem:[#allocation11 + $0x158] sm:$0xff]
    %v455 = vld [vmem:[#allocation11 + $0x160] sm:$0xff]
    %v456 = vld [vmem:[#allocation11 + $0x168] sm:$0xff]
    %v457 = vld [vmem:[#allocation11 + $0x170] sm:$0xff]
    %v458 = vld [vmem:[#allocation11 + $0x178] sm:$0xff]
    %v459 = vld [vmem:[#allocation11 + $0x180] sm:$0xff]
    %v460 = vld [vmem:[#allocation11 + $0x188] sm:$0xff]
    %v461 = vld [vmem:[#allocation11 + $0x190] sm:$0xff]
    %v462 = vld [vmem:[#allocation11 + $0x198] sm:$0xff]
    %v463 = vld [vmem:[#allocation11 + $0x1a0] sm:$0xff]
    %v464 = vld [vmem:[#allocation11 + $0x1a8] sm:$0xff]
    %v465 = vld [vmem:[#allocation11 + $0x1b0] sm:$0xff]
    %v466 = vld [vmem:[#allocation11 + $0x1b8] sm:$0xff]
    %v467 = vld [vmem:[#allocation11 + $0x1c0] sm:$0xff]
    %v468 = vld [vmem:[#allocation11 + $0x1c8] sm:$0xff]
    %v469 = vld [vmem:[#allocation11 + $0x1d0] sm:$0xff]
    %v470 = vld [vmem:[#allocation11 + $0x1d8] sm:$0xff]
    %v471 = vld [vmem:[#allocation11 + $0x1e0] sm:$0xff]
    %v472 = vld [vmem:[#allocation11 + $0x1e8] sm:$0xff]
    %v473 = vld [vmem:[#allocation11 + $0x1f0] sm:$0xff]
    %v474 = vld [vmem:[#allocation11 + $0x1f8] sm:$0xff]
    %v475 = vld [vmem:[#allocation11 + $0x200] sm:$0xff]
    %v476 = vld [vmem:[#allocation11 + $0x208] sm:$0xff]
    %v477 = vld [vmem:[#allocation11 + $0x210] sm:$0xff]
    %v478 = vld [vmem:[#allocation11 + $0x218] sm:$0xff]
    %v479 = vld [vmem:[#allocation11 + $0x220] sm:$0xff]
    %v480 = vld [vmem:[#allocation11 + $0x228] sm:$0xff]
    %v481 = vld [vmem:[#allocation11 + $0x230] sm:$0xff]
    %v482 = vld [vmem:[#allocation11 + $0x238] sm:$0xff]
    %v483 = vld [vmem:[#allocation11 + $0x240] sm:$0xff]
    %v484 = vld [vmem:[#allocation11 + $0x248] sm:$0xff]
    %v485 = vld [vmem:[#allocation11 + $0x250] sm:$0xff]
    %v486 = vld [vmem:[#allocation11 + $0x258] sm:$0xff]
    %v487 = vld [vmem:[#allocation11 + $0x260] sm:$0xff]
    %v488 = vld [vmem:[#allocation11 + $0x268] sm:$0xff]
    %v489 = vld [vmem:[#allocation11 + $0x270] sm:$0xff]
    %v490 = vld [vmem:[#allocation11 + $0x278] sm:$0xff]
    %v491 = vld [vmem:[#allocation11 + $0x280] sm:$0xff]
    %v492 = vld [vmem:[#allocation11 + $0x288] sm:$0xff]
    %v493 = vld [vmem:[#allocation11 + $0x290] sm:$0xff]
    %v494 = vld [vmem:[#allocation11 + $0x298] sm:$0xff]
    %v495 = vld [vmem:[#allocation11 + $0x2a0] sm:$0xff]
    %v496 = vld [vmem:[#allocation11 + $0x2a8] sm:$0xff]
    %v497 = vld [vmem:[#allocation11 + $0x2b0] sm:$0xff]
    %v498 = vld [vmem:[#allocation11 + $0x2b8] sm:$0xff]
    %v499 = vld [vmem:[#allocation11 + $0x2c0] sm:$0xff]
    %v500 = vld [vmem:[#allocation11 + $0x2c8] sm:$0xff]
    %v501 = vld [vmem:[#allocation11 + $0x2d0] sm:$0xff]
    %v502 = vld [vmem:[#allocation11 + $0x2d8] sm:$0xff]
    %v503 = vld [vmem:[#allocation11 + $0x2e0] sm:$0xff]
    %v504 = vld [vmem:[#allocation11 + $0x2e8] sm:$0xff]
    %v505 = vld [vmem:[#allocation11 + $0x2f0] sm:$0xff]
    %v506 = vld [vmem:[#allocation11 + $0x2f8] sm:$0xff]
    %v507 = vld [vmem:[#allocation11 + $0x300] sm:$0xff]
    %v508 = vld [vmem:[#allocation11 + $0x308] sm:$0xff]
    %v509 = vld [vmem:[#allocation11 + $0x310] sm:$0xff]
    %v510 = vld [vmem:[#allocation11 + $0x318] sm:$0xff]
    %v511 = vld [vmem:[#allocation11 + $0x320] sm:$0xff]
    %v512 = vld [vmem:[#allocation11 + $0x328] sm:$0xff]
    %v513 = vld [vmem:[#allocation11 + $0x330] sm:$0xff]
    %v514 = vld [vmem:[#allocation11 + $0x338] sm:$0xff]
    %v515 = vld [vmem:[#allocation11 + $0x340] sm:$0xff]
    %v516 = vld [vmem:[#allocation11 + $0x348] sm:$0xff]
    %v517 = vld [vmem:[#allocation11 + $0x350] sm:$0xff]
    %v518 = vld [vmem:[#allocation11 + $0x358] sm:$0xff]
    %v519 = vld [vmem:[#allocation11 + $0x360] sm:$0xff]
    %v520 = vld [vmem:[#allocation11 + $0x368] sm:$0xff]
    %v521 = vld [vmem:[#allocation11 + $0x370] sm:$0xff]
    %v522 = vld [vmem:[#allocation11 + $0x378] sm:$0xff]
    %v523 = vld [vmem:[#allocation11 + $0x380] sm:$0xff]
    %v524 = vld [vmem:[#allocation11 + $0x388] sm:$0xff]
    %v525 = vld [vmem:[#allocation11 + $0x390] sm:$0xff]
    %v526 = vld [vmem:[#allocation11 + $0x398] sm:$0xff]
    %v527 = vld [vmem:[#allocation11 + $0x3a0] sm:$0xff]
    %v528 = vld [vmem:[#allocation11 + $0x3a8] sm:$0xff]
    %v529 = vld [vmem:[#allocation11 + $0x3b0] sm:$0xff]
    %v530 = vld [vmem:[#allocation11 + $0x3b8] sm:$0xff]
    %v531 = vld [vmem:[#allocation11 + $0x3c0] sm:$0xff]
    %v532 = vld [vmem:[#allocation11 + $0x3c8] sm:$0xff]
    %v533 = vld [vmem:[#allocation11 + $0x3d0] sm:$0xff]
    %v534 = vld [vmem:[#allocation11 + $0x3d8] sm:$0xff]
    %v535 = vld [vmem:[#allocation11 + $0x3e0] sm:$0xff]
    %v536 = vld [vmem:[#allocation11 + $0x3e8] sm:$0xff]
    %v537 = vld [vmem:[#allocation11 + $0x3f0] sm:$0xff]
    %v538 = vld [vmem:[#allocation11 + $0x3f8] sm:$0xff]
    %v539 = vld [vmem:[#allocation11 + $0x400] sm:$0xff]
    %v540 = vld [vmem:[#allocation11 + $0x408] sm:$0xff]
    %v541 = vld [vmem:[#allocation11 + $0x410] sm:$0xff]
    %v542 = vld [vmem:[#allocation11 + $0x418] sm:$0xff]
    %v543 = vld [vmem:[#allocation11 + $0x420] sm:$0xff]
    %v544 = vld [vmem:[#allocation11 + $0x428] sm:$0xff]
    %v545 = vld [vmem:[#allocation11 + $0x430] sm:$0xff]
    %v546 = vld [vmem:[#allocation11 + $0x438] sm:$0xff]
    %v547 = vld [vmem:[#allocation11 + $0x440] sm:$0xff]
    %v548 = vld [vmem:[#allocation11 + $0x448] sm:$0xff]
    %v549 = vld [vmem:[#allocation11 + $0x450] sm:$0xff]
    %v550 = vld [vmem:[#allocation11 + $0x458] sm:$0xff]
    %v551 = vld [vmem:[#allocation11 + $0x460] sm:$0xff]
    %v552 = vld [vmem:[#allocation11 + $0x468] sm:$0xff]
    %v553 = vld [vmem:[#allocation11 + $0x470] sm:$0xff]
    %v554 = vld [vmem:[#allocation11 + $0x478] sm:$0xff]
    %v555 = vld [vmem:[#allocation11 + $0x480] sm:$0xff]
    %v556 = vld [vmem:[#allocation11 + $0x488] sm:$0xff]
    %v557 = vld [vmem:[#allocation11 + $0x490] sm:$0xff]
    %v558 = vld [vmem:[#allocation11 + $0x498] sm:$0xff]
    %v559 = vld [vmem:[#allocation11 + $0x4a0] sm:$0xff]
    %v560 = vld [vmem:[#allocation11 + $0x4a8] sm:$0xff]
    %v561 = vld [vmem:[#allocation11 + $0x4b0] sm:$0xff]
    %v562 = vld [vmem:[#allocation11 + $0x4b8] sm:$0xff]
    %v563 = vld [vmem:[#allocation11 + $0x4c0] sm:$0xff]
    %v564 = vld [vmem:[#allocation11 + $0x4c8] sm:$0xff]
    %v565 = vld [vmem:[#allocation11 + $0x4d0] sm:$0xff]
    %v566 = vld [vmem:[#allocation11 + $0x4d8] sm:$0xff]
    %v567 = vld [vmem:[#allocation11 + $0x4e0] sm:$0xff]
    %v568 = vld [vmem:[#allocation11 + $0x4e8] sm:$0xff]
    %v569 = vld [vmem:[#allocation11 + $0x4f0] sm:$0xff]
    %v570 = vld [vmem:[#allocation11 + $0x4f8] sm:$0xff]
    %v571 = vld [vmem:[#allocation11 + $0x500] sm:$0xff]
    %v572 = vld [vmem:[#allocation11 + $0x508] sm:$0xff]
    %v573 = vld [vmem:[#allocation11 + $0x510] sm:$0xff]
    %v574 = vld [vmem:[#allocation11 + $0x518] sm:$0xff]
    %v575 = vld [vmem:[#allocation11 + $0x520] sm:$0xff]
    %v576 = vld [vmem:[#allocation11 + $0x528] sm:$0xff]
    %v577 = vld [vmem:[#allocation11 + $0x530] sm:$0xff]
    %v578 = vld [vmem:[#allocation11 + $0x538] sm:$0xff]
    %v579 = vld [vmem:[#allocation11 + $0x540] sm:$0xff]
    %v580 = vld [vmem:[#allocation11 + $0x548] sm:$0xff]
    %v581 = vld [vmem:[#allocation11 + $0x550] sm:$0xff]
    %v582 = vld [vmem:[#allocation11 + $0x558] sm:$0xff]
    %v583 = vld [vmem:[#allocation11 + $0x560] sm:$0xff]
    %v584 = vld [vmem:[#allocation11 + $0x568] sm:$0xff]
    %v585 = vld [vmem:[#allocation11 + $0x570] sm:$0xff]
    %v586 = vld [vmem:[#allocation11 + $0x578] sm:$0xff]
    %v587 = vld [vmem:[#allocation11 + $0x580] sm:$0xff]
    %v588 = vld [vmem:[#allocation11 + $0x588] sm:$0xff]
    %v589 = vld [vmem:[#allocation11 + $0x590] sm:$0xff]
    %v590 = vld [vmem:[#allocation11 + $0x598] sm:$0xff]
    %v591 = vld [vmem:[#allocation11 + $0x5a0] sm:$0xff]
    %v592 = vld [vmem:[#allocation11 + $0x5a8] sm:$0xff]
    %v593 = vld [vmem:[#allocation11 + $0x5b0] sm:$0xff]
    %v594 = vld [vmem:[#allocation11 + $0x5b8] sm:$0xff]
    %v595 = vld [vmem:[#allocation11 + $0x5c0] sm:$0xff]
    %v596 = vld [vmem:[#allocation11 + $0x5c8] sm:$0xff]
    %v597 = vld [vmem:[#allocation11 + $0x5d0] sm:$0xff]
    %v598 = vld [vmem:[#allocation11 + $0x5d8] sm:$0xff]
    %v599 = vld [vmem:[#allocation11 + $0x5e0] sm:$0xff]
    %v600 = vld [vmem:[#allocation11 + $0x5e8] sm:$0xff]
    %v601 = vld [vmem:[#allocation11 + $0x5f0] sm:$0xff]
    %v602 = vld [vmem:[#allocation11 + $0x5f8] sm:$0xff]
    %v603 = vld [vmem:[#allocation11 + $0x600] sm:$0xff]
    %v604 = vld [vmem:[#allocation11 + $0x608] sm:$0xff]
    %v605 = vld [vmem:[#allocation11 + $0x610] sm:$0xff]
    %v606 = vld [vmem:[#allocation11 + $0x618] sm:$0xff]
    %v607 = vld [vmem:[#allocation11 + $0x620] sm:$0xff]
    %v608 = vld [vmem:[#allocation11 + $0x628] sm:$0xff]
    %v609 = vld [vmem:[#allocation11 + $0x630] sm:$0xff]
    %v610 = vld [vmem:[#allocation11 + $0x638] sm:$0xff]
    %v611 = vld [vmem:[#allocation11 + $0x640] sm:$0xff]
    %v612 = vld [vmem:[#allocation11 + $0x648] sm:$0xff]
    %v613 = vld [vmem:[#allocation11 + $0x650] sm:$0xff]
    %v614 = vld [vmem:[#allocation11 + $0x658] sm:$0xff]
    %v615 = vld [vmem:[#allocation11 + $0x660] sm:$0xff]
    %v616 = vld [vmem:[#allocation11 + $0x668] sm:$0xff]
    %v617 = vld [vmem:[#allocation11 + $0x670] sm:$0xff]
    %v618 = vld [vmem:[#allocation11 + $0x678] sm:$0xff]
    %v619 = vld [vmem:[#allocation11 + $0x680] sm:$0xff]
    %v620 = vld [vmem:[#allocation11 + $0x688] sm:$0xff]
    %v621 = vld [vmem:[#allocation11 + $0x690] sm:$0xff]
    %v622 = vld [vmem:[#allocation11 + $0x698] sm:$0xff]
    %v623 = vld [vmem:[#allocation11 + $0x6a0] sm:$0xff]
    %v624 = vld [vmem:[#allocation11 + $0x6a8] sm:$0xff]
    %v625 = vld [vmem:[#allocation11 + $0x6b0] sm:$0xff]
    %v626 = vld [vmem:[#allocation11 + $0x6b8] sm:$0xff]
    %v627 = vld [vmem:[#allocation11 + $0x6c0] sm:$0xff]
    %v628 = vld [vmem:[#allocation11 + $0x6c8] sm:$0xff]
    %v629 = vld [vmem:[#allocation11 + $0x6d0] sm:$0xff]
    %v630 = vld [vmem:[#allocation11 + $0x6d8] sm:$0xff]
    %v631 = vld [vmem:[#allocation11 + $0x6e0] sm:$0xff]
    %v632 = vld [vmem:[#allocation11 + $0x6e8] sm:$0xff]
    %v633 = vld [vmem:[#allocation11 + $0x6f0] sm:$0xff]
    %v634 = vld [vmem:[#allocation11 + $0x6f8] sm:$0xff]
    %v635 = vld [vmem:[#allocation11 + $0x700] sm:$0xff]
    %v636 = vld [vmem:[#allocation11 + $0x708] sm:$0xff]
    %v637 = vld [vmem:[#allocation11 + $0x710] sm:$0xff]
    %v638 = vld [vmem:[#allocation11 + $0x718] sm:$0xff]
    %v639 = vld [vmem:[#allocation11 + $0x720] sm:$0xff]
    %v640 = vld [vmem:[#allocation11 + $0x728] sm:$0xff]
    %v641 = vld [vmem:[#allocation11 + $0x730] sm:$0xff]
    %v642 = vld [vmem:[#allocation11 + $0x738] sm:$0xff]
    %v643 = vld [vmem:[#allocation11 + $0x740] sm:$0xff]
    %v644 = vld [vmem:[#allocation11 + $0x748] sm:$0xff]
    %v645 = vld [vmem:[#allocation11 + $0x750] sm:$0xff]
    %v646 = vld [vmem:[#allocation11 + $0x758] sm:$0xff]
    %v647 = vld [vmem:[#allocation11 + $0x760] sm:$0xff]
    %v648 = vld [vmem:[#allocation11 + $0x768] sm:$0xff]
    %v649 = vld [vmem:[#allocation11 + $0x770] sm:$0xff]
    %v650 = vld [vmem:[#allocation11 + $0x778] sm:$0xff]
    %v651 = vld [vmem:[#allocation11 + $0x780] sm:$0xff]
    %v652 = vld [vmem:[#allocation11 + $0x788] sm:$0xff]
    %v653 = vld [vmem:[#allocation11 + $0x790] sm:$0xff]
    %v654 = vld [vmem:[#allocation11 + $0x798] sm:$0xff]
    %v655 = vld [vmem:[#allocation11 + $0x7a0] sm:$0xff]
    %v656 = vld [vmem:[#allocation11 + $0x7a8] sm:$0xff]
    %v657 = vld [vmem:[#allocation11 + $0x7b0] sm:$0xff]
    %v658 = vld [vmem:[#allocation11 + $0x7b8] sm:$0xff]
    %v659 = vld [vmem:[#allocation11 + $0x7c0] sm:$0xff]
    %v660 = vld [vmem:[#allocation11 + $0x7c8] sm:$0xff]
    %v661 = vld [vmem:[#allocation11 + $0x7d0] sm:$0xff]
    %v662 = vld [vmem:[#allocation11 + $0x7d8] sm:$0xff]
    %v663 = vld [vmem:[#allocation11 + $0x7e0] sm:$0xff]
    %v664 = vld [vmem:[#allocation11 + $0x7e8] sm:$0xff]
    %v665 = vld [vmem:[#allocation11 + $0x7f0] sm:$0xff]
    %v666 = vld [vmem:[#allocation11 + $0x7f8] sm:$0xff]
    %v667 = vld [vmem:[#allocation11 + $0x800] sm:$0xff]
    %v668 = vld [vmem:[#allocation11 + $0x808] sm:$0xff]
    %v669 = vld [vmem:[#allocation11 + $0x810] sm:$0xff]
    %v670 = vld [vmem:[#allocation11 + $0x818] sm:$0xff]
    %v671 = vld [vmem:[#allocation11 + $0x820] sm:$0xff]
    %v672 = vld [vmem:[#allocation11 + $0x828] sm:$0xff]
    %v673 = vld [vmem:[#allocation11 + $0x830] sm:$0xff]
    %v674 = vld [vmem:[#allocation11 + $0x838] sm:$0xff]
    %v675 = vld [vmem:[#allocation11 + $0x840] sm:$0xff]
    %v676 = vld [vmem:[#allocation11 + $0x848] sm:$0xff]
    %v677 = vld [vmem:[#allocation11 + $0x850] sm:$0xff]
    %v678 = vld [vmem:[#allocation11 + $0x858] sm:$0xff]
    %v679 = vld [vmem:[#allocation11 + $0x860] sm:$0xff]
    %v680 = vld [vmem:[#allocation11 + $0x868] sm:$0xff]
    %v681 = vld [vmem:[#allocation11 + $0x870] sm:$0xff]
    %v682 = vld [vmem:[#allocation11 + $0x878] sm:$0xff]
    %v683 = vld [vmem:[#allocation11 + $0x880] sm:$0xff]
    %v684 = vld [vmem:[#allocation11 + $0x888] sm:$0xff]
    %v685 = vld [vmem:[#allocation11 + $0x890] sm:$0xff]
    %v686 = vld [vmem:[#allocation11 + $0x898] sm:$0xff]
    %v687 = vld [vmem:[#allocation11 + $0x8a0] sm:$0xff]
    %v688 = vld [vmem:[#allocation11 + $0x8a8] sm:$0xff]
    %v689 = vld [vmem:[#allocation11 + $0x8b0] sm:$0xff]
    %v690 = vld [vmem:[#allocation11 + $0x8b8] sm:$0xff]
    %v691 = vld [vmem:[#allocation11 + $0x8c0] sm:$0xff]
    %v692 = vld [vmem:[#allocation11 + $0x8c8] sm:$0xff]
    %v693 = vld [vmem:[#allocation11 + $0x8d0] sm:$0xff]
    %v694 = vld [vmem:[#allocation11 + $0x8d8] sm:$0xff]
    %v695 = vld [vmem:[#allocation11 + $0x8e0] sm:$0xff]
    %v696 = vld [vmem:[#allocation11 + $0x8e8] sm:$0xff]
    %v697 = vld [vmem:[#allocation11 + $0x8f0] sm:$0xff]
    %v698 = vld [vmem:[#allocation11 + $0x8f8] sm:$0xff]
    %v699 = vld [vmem:[#allocation11 + $0x900] sm:$0xff]
    %v700 = vld [vmem:[#allocation11 + $0x908] sm:$0xff]
    %v701 = vld [vmem:[#allocation11 + $0x910] sm:$0xff]
    %v702 = vld [vmem:[#allocation11 + $0x918] sm:$0xff]
    %v703 = vld [vmem:[#allocation11 + $0x920] sm:$0xff]
    %v704 = vld [vmem:[#allocation11 + $0x928] sm:$0xff]
    %v705 = vld [vmem:[#allocation11 + $0x930] sm:$0xff]
    %v706 = vld [vmem:[#allocation11 + $0x938] sm:$0xff]
    %v707 = vld [vmem:[#allocation11 + $0x940] sm:$0xff]
    %v708 = vld [vmem:[#allocation11 + $0x948] sm:$0xff]
    %v709 = vld [vmem:[#allocation11 + $0x950] sm:$0xff]
    %v710 = vld [vmem:[#allocation11 + $0x958] sm:$0xff]
    %v711 = vld [vmem:[#allocation11 + $0x960] sm:$0xff]
    %v712 = vld [vmem:[#allocation11 + $0x968] sm:$0xff]
    %v713 = vld [vmem:[#allocation11 + $0x970] sm:$0xff]
    %v714 = vld [vmem:[#allocation11 + $0x978] sm:$0xff]
    %v715 = vld [vmem:[#allocation11 + $0x980] sm:$0xff]
    %v716 = vld [vmem:[#allocation11 + $0x988] sm:$0xff]
    %v717 = vld [vmem:[#allocation11 + $0x990] sm:$0xff]
    %v718 = vld [vmem:[#allocation11 + $0x998] sm:$0xff]
    %v719 = vld [vmem:[#allocation11 + $0x9a0] sm:$0xff]
    %v720 = vld [vmem:[#allocation11 + $0x9a8] sm:$0xff]
    %v721 = vld [vmem:[#allocation11 + $0x9b0] sm:$0xff]
    %v722 = vld [vmem:[#allocation11 + $0x9b8] sm:$0xff]
    %v723 = vld [vmem:[#allocation11 + $0x9c0] sm:$0xff]
    %v724 = vld [vmem:[#allocation11 + $0x9c8] sm:$0xff]
    %v725 = vld [vmem:[#allocation11 + $0x9d0] sm:$0xff]
    %v726 = vld [vmem:[#allocation11 + $0x9d8] sm:$0xff]
    %v727 = vld [vmem:[#allocation11 + $0x9e0] sm:$0xff]
    %v728 = vld [vmem:[#allocation11 + $0x9e8] sm:$0xff]
    %v729 = vld [vmem:[#allocation11 + $0x9f0] sm:$0xff]
    %v730 = vld [vmem:[#allocation11 + $0x9f8] sm:$0xff]
    %v731 = vld [vmem:[#allocation11 + $0xa00] sm:$0xff]
    %v732 = vld [vmem:[#allocation11 + $0xa08] sm:$0xff]
    %v733 = vld [vmem:[#allocation11 + $0xa10] sm:$0xff]
    %v734 = vld [vmem:[#allocation11 + $0xa18] sm:$0xff]
    %v735 = vld [vmem:[#allocation11 + $0xa20] sm:$0xff]
    %v736 = vld [vmem:[#allocation11 + $0xa28] sm:$0xff]
    %v737 = vld [vmem:[#allocation11 + $0xa30] sm:$0xff]
    %v738 = vld [vmem:[#allocation11 + $0xa38] sm:$0xff]
    %v739 = vld [vmem:[#allocation11 + $0xa40] sm:$0xff]
    %v740 = vld [vmem:[#allocation11 + $0xa48] sm:$0xff]
    %v741 = vld [vmem:[#allocation11 + $0xa50] sm:$0xff]
    %v742 = vld [vmem:[#allocation11 + $0xa58] sm:$0xff]
    %v743 = vld [vmem:[#allocation11 + $0xa60] sm:$0xff]
    %v744 = vld [vmem:[#allocation11 + $0xa68] sm:$0xff]
    %v745 = vld [vmem:[#allocation11 + $0xa70] sm:$0xff]
    %v746 = vld [vmem:[#allocation11 + $0xa78] sm:$0xff]
    %v747 = vld [vmem:[#allocation11 + $0xa80] sm:$0xff]
    %v748 = vld [vmem:[#allocation11 + $0xa88] sm:$0xff]
    %v749 = vld [vmem:[#allocation11 + $0xa90] sm:$0xff]
    %v750 = vld [vmem:[#allocation11 + $0xa98] sm:$0xff]
    %v751 = vld [vmem:[#allocation11 + $0xaa0] sm:$0xff]
    %v752 = vld [vmem:[#allocation11 + $0xaa8] sm:$0xff]
    %v753 = vld [vmem:[#allocation11 + $0xab0] sm:$0xff]
    %v754 = vld [vmem:[#allocation11 + $0xab8] sm:$0xff]
    %v755 = vld [vmem:[#allocation11 + $0xac0] sm:$0xff]
    %v756 = vld [vmem:[#allocation11 + $0xac8] sm:$0xff]
    %v757 = vld [vmem:[#allocation11 + $0xad0] sm:$0xff]
    %v758 = vld [vmem:[#allocation11 + $0xad8] sm:$0xff]
    %v759 = vld [vmem:[#allocation11 + $0xae0] sm:$0xff]
    %v760 = vld [vmem:[#allocation11 + $0xae8] sm:$0xff]
    %v761 = vld [vmem:[#allocation11 + $0xaf0] sm:$0xff]
    %v762 = vld [vmem:[#allocation11 + $0xaf8] sm:$0xff]
    %v763 = vld [vmem:[#allocation11 + $0xb00] sm:$0xff]
    %v764 = vld [vmem:[#allocation11 + $0xb08] sm:$0xff]
    %v765 = vld [vmem:[#allocation11 + $0xb10] sm:$0xff]
    %v766 = vld [vmem:[#allocation11 + $0xb18] sm:$0xff]
    %v767 = vld [vmem:[#allocation11 + $0xb20] sm:$0xff]
    %v768 = vld [vmem:[#allocation11 + $0xb28] sm:$0xff]
    %v769 = vld [vmem:[#allocation11 + $0xb30] sm:$0xff]
    %v770 = vld [vmem:[#allocation11 + $0xb38] sm:$0xff]
    %v771 = vld [vmem:[#allocation11 + $0xb40] sm:$0xff]
    %v772 = vld [vmem:[#allocation11 + $0xb48] sm:$0xff]
    %v773 = vld [vmem:[#allocation11 + $0xb50] sm:$0xff]
    %v774 = vld [vmem:[#allocation11 + $0xb58] sm:$0xff]
    %v775 = vld [vmem:[#allocation11 + $0xb60] sm:$0xff]
    %v776 = vld [vmem:[#allocation11 + $0xb68] sm:$0xff]
    %v777 = vld [vmem:[#allocation11 + $0xb70] sm:$0xff]
    %v778 = vld [vmem:[#allocation11 + $0xb78] sm:$0xff]
    %v779 = vld [vmem:[#allocation11 + $0xb80] sm:$0xff]
    %v780 = vld [vmem:[#allocation11 + $0xb88] sm:$0xff]
    %v781 = vld [vmem:[#allocation11 + $0xb90] sm:$0xff]
    %v782 = vld [vmem:[#allocation11 + $0xb98] sm:$0xff]
    %v783 = vld [vmem:[#allocation11 + $0xba0] sm:$0xff]
    %v784 = vld [vmem:[#allocation11 + $0xba8] sm:$0xff]
    %v785 = vld [vmem:[#allocation11 + $0xbb0] sm:$0xff]
    %v786 = vld [vmem:[#allocation11 + $0xbb8] sm:$0xff]
    %v787 = vld [vmem:[#allocation11 + $0xbc0] sm:$0xff]
    %v788 = vld [vmem:[#allocation11 + $0xbc8] sm:$0xff]
    %v789 = vld [vmem:[#allocation11 + $0xbd0] sm:$0xff]
    %v790 = vld [vmem:[#allocation11 + $0xbd8] sm:$0xff]
    %v791 = vld [vmem:[#allocation11 + $0xbe0] sm:$0xff]
    %v792 = vld [vmem:[#allocation11 + $0xbe8] sm:$0xff]
    %v793 = vld [vmem:[#allocation11 + $0xbf0] sm:$0xff]
    %v794 = vld [vmem:[#allocation11 + $0xbf8] sm:$0xff]
    %v795 = vld [vmem:[#allocation11 + $0xc00] sm:$0xff]
    %v796 = vld [vmem:[#allocation11 + $0xc08] sm:$0xff]
    %v797 = vld [vmem:[#allocation11 + $0xc10] sm:$0xff]
    %v798 = vld [vmem:[#allocation11 + $0xc18] sm:$0xff]
    %v799 = vld [vmem:[#allocation11 + $0xc20] sm:$0xff]
    %v800 = vld [vmem:[#allocation11 + $0xc28] sm:$0xff]
    %v801 = vld [vmem:[#allocation11 + $0xc30] sm:$0xff]
    %v802 = vld [vmem:[#allocation11 + $0xc38] sm:$0xff]
    %v803 = vld [vmem:[#allocation11 + $0xc40] sm:$0xff]
    %v804 = vld [vmem:[#allocation11 + $0xc48] sm:$0xff]
    %v805 = vld [vmem:[#allocation11 + $0xc50] sm:$0xff]
    %v806 = vld [vmem:[#allocation11 + $0xc58] sm:$0xff]
    %v807 = vld [vmem:[#allocation11 + $0xc60] sm:$0xff]
    %v808 = vld [vmem:[#allocation11 + $0xc68] sm:$0xff]
    %v809 = vld [vmem:[#allocation11 + $0xc70] sm:$0xff]
    %v810 = vld [vmem:[#allocation11 + $0xc78] sm:$0xff]
    %v811 = vld [vmem:[#allocation11 + $0xc80] sm:$0xff]
    %v812 = vld [vmem:[#allocation11 + $0xc88] sm:$0xff]
    %v813 = vld [vmem:[#allocation11 + $0xc90] sm:$0xff]
    %v814 = vld [vmem:[#allocation11 + $0xc98] sm:$0xff]
    %v815 = vld [vmem:[#allocation11 + $0xca0] sm:$0xff]
    %v816 = vld [vmem:[#allocation11 + $0xca8] sm:$0xff]
    %v817 = vld [vmem:[#allocation11 + $0xcb0] sm:$0xff]
    %v818 = vld [vmem:[#allocation11 + $0xcb8] sm:$0xff]
    %v819 = vld [vmem:[#allocation11 + $0xcc0] sm:$0xff]
    %v820 = vld [vmem:[#allocation11 + $0xcc8] sm:$0xff]
    %v821 = vld [vmem:[#allocation11 + $0xcd0] sm:$0xff]
    %v822 = vld [vmem:[#allocation11 + $0xcd8] sm:$0xff]
    %v823 = vld [vmem:[#allocation11 + $0xce0] sm:$0xff]
    %v824 = vld [vmem:[#allocation11 + $0xce8] sm:$0xff]
    %v825 = vld [vmem:[#allocation11 + $0xcf0] sm:$0xff]
    %v826 = vld [vmem:[#allocation11 + $0xcf8] sm:$0xff]
    %v827 = vld [vmem:[#allocation11 + $0xd00] sm:$0xff]
    %v828 = vld [vmem:[#allocation11 + $0xd08] sm:$0xff]
    %v829 = vld [vmem:[#allocation11 + $0xd10] sm:$0xff]
    %v830 = vld [vmem:[#allocation11 + $0xd18] sm:$0xff]
    %v831 = vld [vmem:[#allocation11 + $0xd20] sm:$0xff]
    %v832 = vld [vmem:[#allocation11 + $0xd28] sm:$0xff]
    %v833 = vld [vmem:[#allocation11 + $0xd30] sm:$0xff]
    %v834 = vld [vmem:[#allocation11 + $0xd38] sm:$0xff]
    %v835 = vld [vmem:[#allocation11 + $0xd40] sm:$0xff]
    %v836 = vld [vmem:[#allocation11 + $0xd48] sm:$0xff]
    %v837 = vld [vmem:[#allocation11 + $0xd50] sm:$0xff]
    %v838 = vld [vmem:[#allocation11 + $0xd58] sm:$0xff]
    %v839 = vld [vmem:[#allocation11 + $0xd60] sm:$0xff]
    %v840 = vld [vmem:[#allocation11 + $0xd68] sm:$0xff]
    %v841 = vld [vmem:[#allocation11 + $0xd70] sm:$0xff]
    %v842 = vld [vmem:[#allocation11 + $0xd78] sm:$0xff]
    %v843 = vld [vmem:[#allocation11 + $0xd80] sm:$0xff]
    %v844 = vld [vmem:[#allocation11 + $0xd88] sm:$0xff]
    %v845 = vld [vmem:[#allocation11 + $0xd90] sm:$0xff]
    %v846 = vld [vmem:[#allocation11 + $0xd98] sm:$0xff]
    %v847 = vld [vmem:[#allocation11 + $0xda0] sm:$0xff]
    %v848 = vld [vmem:[#allocation11 + $0xda8] sm:$0xff]
    %v849 = vld [vmem:[#allocation11 + $0xdb0] sm:$0xff]
    %v850 = vld [vmem:[#allocation11 + $0xdb8] sm:$0xff]
    %v851 = vld [vmem:[#allocation11 + $0xdc0] sm:$0xff]
    %v852 = vld [vmem:[#allocation11 + $0xdc8] sm:$0xff]
    %v853 = vld [vmem:[#allocation11 + $0xdd0] sm:$0xff]
    %v854 = vld [vmem:[#allocation11 + $0xdd8] sm:$0xff]
    %v855 = vld [vmem:[#allocation11 + $0xde0] sm:$0xff]
    %v856 = vld [vmem:[#allocation11 + $0xde8] sm:$0xff]
    %v857 = vld [vmem:[#allocation11 + $0xdf0] sm:$0xff]
    %v858 = vld [vmem:[#allocation11 + $0xdf8] sm:$0xff]
    %v859 = vld [vmem:[#allocation11 + $0xe00] sm:$0xff]
    %v860 = vld [vmem:[#allocation11 + $0xe08] sm:$0xff]
    %v861 = vld [vmem:[#allocation11 + $0xe10] sm:$0xff]
    %v862 = vld [vmem:[#allocation11 + $0xe18] sm:$0xff]
    %v863 = vld [vmem:[#allocation11 + $0xe20] sm:$0xff]
    %v864 = vld [vmem:[#allocation11 + $0xe28] sm:$0xff]
    %v865 = vld [vmem:[#allocation11 + $0xe30] sm:$0xff]
    %v866 = vld [vmem:[#allocation11 + $0xe38] sm:$0xff]
    %v867 = vld [vmem:[#allocation11 + $0xe40] sm:$0xff]
    %v868 = vld [vmem:[#allocation11 + $0xe48] sm:$0xff]
    %v869 = vld [vmem:[#allocation11 + $0xe50] sm:$0xff]
    %v870 = vld [vmem:[#allocation11 + $0xe58] sm:$0xff]
    %v871 = vld [vmem:[#allocation11 + $0xe60] sm:$0xff]
    %v872 = vld [vmem:[#allocation11 + $0xe68] sm:$0xff]
    %v873 = vld [vmem:[#allocation11 + $0xe70] sm:$0xff]
    %v874 = vld [vmem:[#allocation11 + $0xe78] sm:$0xff]
    %v875 = vld [vmem:[#allocation11 + $0xe80] sm:$0xff]
    %v876 = vld [vmem:[#allocation11 + $0xe88] sm:$0xff]
    %v877 = vld [vmem:[#allocation11 + $0xe90] sm:$0xff]
    %v878 = vld [vmem:[#allocation11 + $0xe98] sm:$0xff]
    %v879 = vld [vmem:[#allocation11 + $0xea0] sm:$0xff]
    %v880 = vld [vmem:[#allocation11 + $0xea8] sm:$0xff]
    %v881 = vld [vmem:[#allocation11 + $0xeb0] sm:$0xff]
    %v882 = vld [vmem:[#allocation11 + $0xeb8] sm:$0xff]
    %v883 = vld [vmem:[#allocation11 + $0xec0] sm:$0xff]
    %v884 = vld [vmem:[#allocation11 + $0xec8] sm:$0xff]
    %v885 = vld [vmem:[#allocation11 + $0xed0] sm:$0xff]
    %v886 = vld [vmem:[#allocation11 + $0xed8] sm:$0xff]
    %v887 = vld [vmem:[#allocation11 + $0xee0] sm:$0xff]
    %v888 = vld [vmem:[#allocation11 + $0xee8] sm:$0xff]
    %v889 = vld [vmem:[#allocation11 + $0xef0] sm:$0xff]
    %v890 = vld [vmem:[#allocation11 + $0xef8] sm:$0xff]
    %v891 = vld [vmem:[#allocation11 + $0xf00] sm:$0xff]
    %v892 = vld [vmem:[#allocation11 + $0xf08] sm:$0xff]
    %v893 = vld [vmem:[#allocation11 + $0xf10] sm:$0xff]
    %v894 = vld [vmem:[#allocation11 + $0xf18] sm:$0xff]
    %v895 = vld [vmem:[#allocation11 + $0xf20] sm:$0xff]
    %v896 = vld [vmem:[#allocation11 + $0xf28] sm:$0xff]
    %v897 = vld [vmem:[#allocation11 + $0xf30] sm:$0xff]
    %v898 = vld [vmem:[#allocation11 + $0xf38] sm:$0xff]
    %v899 = vld [vmem:[#allocation11 + $0xf40] sm:$0xff]
    %v900 = vld [vmem:[#allocation11 + $0xf48] sm:$0xff]
    %v901 = vld [vmem:[#allocation11 + $0xf50] sm:$0xff]
    %v902 = vld [vmem:[#allocation11 + $0xf58] sm:$0xff]
    %v903 = vld [vmem:[#allocation11 + $0xf60] sm:$0xff]
    %v904 = vld [vmem:[#allocation11 + $0xf68] sm:$0xff]
    %v905 = vld [vmem:[#allocation11 + $0xf70] sm:$0xff]
    %v906 = vld [vmem:[#allocation11 + $0xf78] sm:$0xff]
    %v907 = vld [vmem:[#allocation11 + $0xf80] sm:$0xff]
    %v908 = vld [vmem:[#allocation11 + $0xf88] sm:$0xff]
    %v909 = vld [vmem:[#allocation11 + $0xf90] sm:$0xff]
    %v910 = vld [vmem:[#allocation11 + $0xf98] sm:$0xff]
    %v911 = vld [vmem:[#allocation11 + $0xfa0] sm:$0xff]
    %v912 = vld [vmem:[#allocation11 + $0xfa8] sm:$0xff]
    %v913 = vld [vmem:[#allocation11 + $0xfb0] sm:$0xff]
    %v914 = vld [vmem:[#allocation11 + $0xfb8] sm:$0xff]
    %v915 = vld [vmem:[#allocation11 + $0xfc0] sm:$0xff]
    %v916 = vld [vmem:[#allocation11 + $0xfc8] sm:$0xff]
    %v917 = vld [vmem:[#allocation11 + $0xfd0] sm:$0xff]
    %v918 = vld [vmem:[#allocation11 + $0xfd8] sm:$0xff]
    %v919 = vld [vmem:[#allocation11 + $0xfe0] sm:$0xff]
    %v920 = vld [vmem:[#allocation11 + $0xfe8] sm:$0xff]
    %v921 = vld [vmem:[#allocation11 + $0xff0] sm:$0xff]
    %v922 = vld [vmem:[#allocation11 + $0xff8] sm:$0xff]
    %v923 = vld [vmem:[#allocation11 + $0x1000] sm:$0xff]
    %v924 = vld [vmem:[#allocation11 + $0x1008] sm:$0xff]
    %v925 = vld [vmem:[#allocation11 + $0x1010] sm:$0xff]
    %v926 = vld [vmem:[#allocation11 + $0x1018] sm:$0xff]
    %v927 = vld [vmem:[#allocation11 + $0x1020] sm:$0xff]
    %v928 = vld [vmem:[#allocation11 + $0x1028] sm:$0xff]
    %v929 = vld [vmem:[#allocation11 + $0x1030] sm:$0xff]
    %v930 = vld [vmem:[#allocation11 + $0x1038] sm:$0xff]
    %v931 = vld [vmem:[#allocation11 + $0x1040] sm:$0xff]
    %v932 = vld [vmem:[#allocation11 + $0x1048] sm:$0xff]
    %v933 = vld [vmem:[#allocation11 + $0x1050] sm:$0xff]
    %v934 = vld [vmem:[#allocation11 + $0x1058] sm:$0xff]
    %v935 = vld [vmem:[#allocation11 + $0x1060] sm:$0xff]
    %v936 = vld [vmem:[#allocation11 + $0x1068] sm:$0xff]
    %v937 = vld [vmem:[#allocation11 + $0x1070] sm:$0xff]
    %v938 = vld [vmem:[#allocation11 + $0x1078] sm:$0xff]
    %v939 = vld [vmem:[#allocation11 + $0x1080] sm:$0xff]
    %v940 = vld [vmem:[#allocation11 + $0x1088] sm:$0xff]
    %v941 = vld [vmem:[#allocation11 + $0x1090] sm:$0xff]
    %v942 = vld [vmem:[#allocation11 + $0x1098] sm:$0xff]
    %v943 = vld [vmem:[#allocation11 + $0x10a0] sm:$0xff]
    %v944 = vld [vmem:[#allocation11 + $0x10a8] sm:$0xff]
    %v945 = vld [vmem:[#allocation11 + $0x10b0] sm:$0xff]
    %v946 = vld [vmem:[#allocation11 + $0x10b8] sm:$0xff]
    %v947 = vld [vmem:[#allocation11 + $0x10c0] sm:$0xff]
    %v948 = vld [vmem:[#allocation11 + $0x10c8] sm:$0xff]
    %v949 = vld [vmem:[#allocation11 + $0x10d0] sm:$0xff]
    %v950 = vld [vmem:[#allocation11 + $0x10d8] sm:$0xff]
    %v951 = vld [vmem:[#allocation11 + $0x10e0] sm:$0xff]
    %v952 = vld [vmem:[#allocation11 + $0x10e8] sm:$0xff]
    %v953 = vld [vmem:[#allocation11 + $0x10f0] sm:$0xff]
    %v954 = vld [vmem:[#allocation11 + $0x10f8] sm:$0xff]
    %v955 = vld [vmem:[#allocation11 + $0x1100] sm:$0xff]
    %v956 = vld [vmem:[#allocation11 + $0x1108] sm:$0xff]
    %v957 = vld [vmem:[#allocation11 + $0x1110] sm:$0xff]
    %v958 = vld [vmem:[#allocation11 + $0x1118] sm:$0xff]
    %v959 = vld [vmem:[#allocation11 + $0x1120] sm:$0xff]
    %v960 = vld [vmem:[#allocation11 + $0x1128] sm:$0xff]
    %v961 = vld [vmem:[#allocation11 + $0x1130] sm:$0xff]
    %v962 = vld [vmem:[#allocation11 + $0x1138] sm:$0xff]
    %v963 = vld [vmem:[#allocation11 + $0x1140] sm:$0xff]
    %v964 = vld [vmem:[#allocation11 + $0x1148] sm:$0xff]
    %v965 = vld [vmem:[#allocation11 + $0x1150] sm:$0xff]
    %v966 = vld [vmem:[#allocation11 + $0x1158] sm:$0xff]
    %v967 = vld [vmem:[#allocation11 + $0x1160] sm:$0xff]
    %v968 = vld [vmem:[#allocation11 + $0x1168] sm:$0xff]
    %v969 = vld [vmem:[#allocation11 + $0x1170] sm:$0xff]
    %v970 = vld [vmem:[#allocation11 + $0x1178] sm:$0xff]
    %v971 = vld [vmem:[#allocation11 + $0x1180] sm:$0xff]
    %v972 = vld [vmem:[#allocation11 + $0x1188] sm:$0xff]
    %v973 = vld [vmem:[#allocation11 + $0x1190] sm:$0xff]
    %v974 = vld [vmem:[#allocation11 + $0x1198] sm:$0xff]
    %v975 = vld [vmem:[#allocation11 + $0x11a0] sm:$0xff]
    %v976 = vld [vmem:[#allocation11 + $0x11a8] sm:$0xff]
    %v977 = vld [vmem:[#allocation11 + $0x11b0] sm:$0xff]
    %v978 = vld [vmem:[#allocation11 + $0x11b8] sm:$0xff]
    %v979 = vld [vmem:[#allocation11 + $0x11c0] sm:$0xff]
    %v980 = vld [vmem:[#allocation11 + $0x11c8] sm:$0xff]
    %v981 = vld [vmem:[#allocation11 + $0x11d0] sm:$0xff]
    %v982 = vld [vmem:[#allocation11 + $0x11d8] sm:$0xff]
    %v983 = vld [vmem:[#allocation11 + $0x11e0] sm:$0xff]
    %v984 = vld [vmem:[#allocation11 + $0x11e8] sm:$0xff]
    %v985 = vld [vmem:[#allocation11 + $0x11f0] sm:$0xff]
    %v986 = vld [vmem:[#allocation11 + $0x11f8] sm:$0xff]
    %v987 = vld [vmem:[#allocation11 + $0x1200] sm:$0xff]
    %v988 = vld [vmem:[#allocation11 + $0x1208] sm:$0xff]
    %v989 = vld [vmem:[#allocation11 + $0x1210] sm:$0xff]
    %v990 = vld [vmem:[#allocation11 + $0x1218] sm:$0xff]
    %v991 = vld [vmem:[#allocation11 + $0x1220] sm:$0xff]
    %v992 = vld [vmem:[#allocation11 + $0x1228] sm:$0xff]
    %v993 = vld [vmem:[#allocation11 + $0x1230] sm:$0xff]
    %v994 = vld [vmem:[#allocation11 + $0x1238] sm:$0xff]
    %v995 = vld [vmem:[#allocation11 + $0x1240] sm:$0xff]
    %v996 = vld [vmem:[#allocation11 + $0x1248] sm:$0xff]
    %v997 = vld [vmem:[#allocation11 + $0x1250] sm:$0xff]
    %v998 = vld [vmem:[#allocation11 + $0x1258] sm:$0xff]
    %v999 = vld [vmem:[#allocation11 + $0x1260] sm:$0xff]
    %v1000 = vld [vmem:[#allocation11 + $0x1268] sm:$0xff]
    %v1001 = vld [vmem:[#allocation11 + $0x1270] sm:$0xff]
    %v1002 = vld [vmem:[#allocation11 + $0x1278] sm:$0xff]
    %v1003 = vld [vmem:[#allocation11 + $0x1280] sm:$0xff]
    %v1004 = vld [vmem:[#allocation11 + $0x1288] sm:$0xff]
    %v1005 = vld [vmem:[#allocation11 + $0x1290] sm:$0xff]
    %v1006 = vld [vmem:[#allocation11 + $0x1298] sm:$0xff]
    %v1007 = vld [vmem:[#allocation11 + $0x12a0] sm:$0xff]
    %v1008 = vld [vmem:[#allocation11 + $0x12a8] sm:$0xff]
    %v1009 = vld [vmem:[#allocation11 + $0x12b0] sm:$0xff]
    %v1010 = vld [vmem:[#allocation11 + $0x12b8] sm:$0xff]
    %v1011 = vld [vmem:[#allocation11 + $0x12c0] sm:$0xff]
    %v1012 = vld [vmem:[#allocation11 + $0x12c8] sm:$0xff]
    %v1013 = vld [vmem:[#allocation11 + $0x12d0] sm:$0xff]
    %v1014 = vld [vmem:[#allocation11 + $0x12d8] sm:$0xff]
    %v1015 = vld [vmem:[#allocation11 + $0x12e0] sm:$0xff]
    %v1016 = vld [vmem:[#allocation11 + $0x12e8] sm:$0xff]
    %v1017 = vld [vmem:[#allocation11 + $0x12f0] sm:$0xff]
    %v1018 = vld [vmem:[#allocation11 + $0x12f8] sm:$0xff]
    %v1019 = vld [vmem:[#allocation11 + $0x1300] sm:$0xff]
    %v1020 = vld [vmem:[#allocation11 + $0x1308] sm:$0xff]
    %v1021 = vld [vmem:[#allocation11 + $0x1310] sm:$0xff]
    %v1022 = vld [vmem:[#allocation11 + $0x1318] sm:$0xff]
    %v1023 = vld [vmem:[#allocation11 + $0x1320] sm:$0xff]
    %v1024 = vld [vmem:[#allocation11 + $0x1328] sm:$0xff]
    %v1025 = vld [vmem:[#allocation11 + $0x1330] sm:$0xff]
    %v1026 = vld [vmem:[#allocation11 + $0x1338] sm:$0xff]
    %v1027 = vld [vmem:[#allocation11 + $0x1340] sm:$0xff]
    %v1028 = vld [vmem:[#allocation11 + $0x1348] sm:$0xff]
    %v1029 = vld [vmem:[#allocation11 + $0x1350] sm:$0xff]
    %v1030 = vld [vmem:[#allocation11 + $0x1358] sm:$0xff]
    %v1031 = vld [vmem:[#allocation11 + $0x1360] sm:$0xff]
    %v1032 = vld [vmem:[#allocation11 + $0x1368] sm:$0xff]
    %v1033 = vld [vmem:[#allocation11 + $0x1370] sm:$0xff]
    %v1034 = vld [vmem:[#allocation11 + $0x1378] sm:$0xff]
    %v1035 = vld [vmem:[#allocation11 + $0x1380] sm:$0xff]
    %v1036 = vld [vmem:[#allocation11 + $0x1388] sm:$0xff]
    %v1037 = vld [vmem:[#allocation11 + $0x1390] sm:$0xff]
    %v1038 = vld [vmem:[#allocation11 + $0x1398] sm:$0xff]
    %v1039 = vld [vmem:[#allocation11 + $0x13a0] sm:$0xff]
    %v1040 = vld [vmem:[#allocation11 + $0x13a8] sm:$0xff]
    %v1041 = vld [vmem:[#allocation11 + $0x13b0] sm:$0xff]
    %v1042 = vld [vmem:[#allocation11 + $0x13b8] sm:$0xff]
    %v1043 = vld [vmem:[#allocation11 + $0x13c0] sm:$0xff]
    %v1044 = vld [vmem:[#allocation11 + $0x13c8] sm:$0xff]
    %v1045 = vld [vmem:[#allocation11 + $0x13d0] sm:$0xff]
    %v1046 = vld [vmem:[#allocation11 + $0x13d8] sm:$0xff]
    %v1047 = vld [vmem:[#allocation11 + $0x13e0] sm:$0xff]
    %v1048 = vld [vmem:[#allocation11 + $0x13e8] sm:$0xff]
    %v1049 = vld [vmem:[#allocation11 + $0x13f0] sm:$0xff]
    %v1050 = vld [vmem:[#allocation11 + $0x13f8] sm:$0xff]
    %v1051 = vld [vmem:[#allocation11 + $0x1400] sm:$0xff]
    %v1052 = vld [vmem:[#allocation11 + $0x1408] sm:$0xff]
    %v1053 = vld [vmem:[#allocation11 + $0x1410] sm:$0xff]
    %v1054 = vld [vmem:[#allocation11 + $0x1418] sm:$0xff]
    %v1055 = vld [vmem:[#allocation11 + $0x1420] sm:$0xff]
    %v1056 = vld [vmem:[#allocation11 + $0x1428] sm:$0xff]
    %v1057 = vld [vmem:[#allocation11 + $0x1430] sm:$0xff]
    %v1058 = vld [vmem:[#allocation11 + $0x1438] sm:$0xff]
    %v1059 = vld [vmem:[#allocation11 + $0x1440] sm:$0xff]
    %v1060 = vld [vmem:[#allocation11 + $0x1448] sm:$0xff]
    %v1061 = vld [vmem:[#allocation11 + $0x1450] sm:$0xff]
    %v1062 = vld [vmem:[#allocation11 + $0x1458] sm:$0xff]
    %v1063 = vld [vmem:[#allocation11 + $0x1460] sm:$0xff]
    %v1064 = vld [vmem:[#allocation11 + $0x1468] sm:$0xff]
    %v1065 = vld [vmem:[#allocation11 + $0x1470] sm:$0xff]
    %v1066 = vld [vmem:[#allocation11 + $0x1478] sm:$0xff]
    %v1067 = vld [vmem:[#allocation11 + $0x1480] sm:$0xff]
    %v1068 = vld [vmem:[#allocation11 + $0x1488] sm:$0xff]
    %v1069 = vld [vmem:[#allocation11 + $0x1490] sm:$0xff]
    %v1070 = vld [vmem:[#allocation11 + $0x1498] sm:$0xff]
    %v1071 = vld [vmem:[#allocation11 + $0x14a0] sm:$0xff]
    %v1072 = vld [vmem:[#allocation11 + $0x14a8] sm:$0xff]
    %v1073 = vld [vmem:[#allocation11 + $0x14b0] sm:$0xff]
    %v1074 = vld [vmem:[#allocation11 + $0x14b8] sm:$0xff]
    %v1075 = vld [vmem:[#allocation11 + $0x14c0] sm:$0xff]
    %v1076 = vld [vmem:[#allocation11 + $0x14c8] sm:$0xff]
    %v1077 = vld [vmem:[#allocation11 + $0x14d0] sm:$0xff]
    %v1078 = vld [vmem:[#allocation11 + $0x14d8] sm:$0xff]
    %v1079 = vld [vmem:[#allocation11 + $0x14e0] sm:$0xff]
    %v1080 = vld [vmem:[#allocation11 + $0x14e8] sm:$0xff]
    %v1081 = vld [vmem:[#allocation11 + $0x14f0] sm:$0xff]
    %v1082 = vld [vmem:[#allocation11 + $0x14f8] sm:$0xff]
    %v1083 = vld [vmem:[#allocation11 + $0x1500] sm:$0xff]
    %v1084 = vld [vmem:[#allocation11 + $0x1508] sm:$0xff]
    %v1085 = vld [vmem:[#allocation11 + $0x1510] sm:$0xff]
    %v1086 = vld [vmem:[#allocation11 + $0x1518] sm:$0xff]
    %v1087 = vld [vmem:[#allocation11 + $0x1520] sm:$0xff]
    %v1088 = vld [vmem:[#allocation11 + $0x1528] sm:$0xff]
    %v1089 = vld [vmem:[#allocation11 + $0x1530] sm:$0xff]
    %v1090 = vld [vmem:[#allocation11 + $0x1538] sm:$0xff]
    %v1091 = vld [vmem:[#allocation11 + $0x1540] sm:$0xff]
    %v1092 = vld [vmem:[#allocation11 + $0x1548] sm:$0xff]
    %v1093 = vld [vmem:[#allocation11 + $0x1550] sm:$0xff]
    %v1094 = vld [vmem:[#allocation11 + $0x1558] sm:$0xff]
    %v1095 = vld [vmem:[#allocation11 + $0x1560] sm:$0xff]
    %v1096 = vld [vmem:[#allocation11 + $0x1568] sm:$0xff]
    %v1097 = vld [vmem:[#allocation11 + $0x1570] sm:$0xff]
    %v1098 = vld [vmem:[#allocation11 + $0x1578] sm:$0xff]
    %v1099 = vld [vmem:[#allocation11 + $0x1580] sm:$0xff]
    %v1100 = vld [vmem:[#allocation11 + $0x1588] sm:$0xff]
    %v1101 = vld [vmem:[#allocation11 + $0x1590] sm:$0xff]
    %v1102 = vld [vmem:[#allocation11 + $0x1598] sm:$0xff]
    %v1103 = vld [vmem:[#allocation11 + $0x15a0] sm:$0xff]
    %v1104 = vld [vmem:[#allocation11 + $0x15a8] sm:$0xff]
    %v1105 = vld [vmem:[#allocation11 + $0x15b0] sm:$0xff]
    %v1106 = vld [vmem:[#allocation11 + $0x15b8] sm:$0xff]
    %v1107 = vld [vmem:[#allocation11 + $0x15c0] sm:$0xff]
    %v1108 = vld [vmem:[#allocation11 + $0x15c8] sm:$0xff]
    %v1109 = vld [vmem:[#allocation11 + $0x15d0] sm:$0xff]
    %v1110 = vld [vmem:[#allocation11 + $0x15d8] sm:$0xff]
    %v1111 = vld [vmem:[#allocation11 + $0x15e0] sm:$0xff]
    %v1112 = vld [vmem:[#allocation11 + $0x15e8] sm:$0xff]
    %v1113 = vld [vmem:[#allocation11 + $0x15f0] sm:$0xff]
    %v1114 = vld [vmem:[#allocation11 + $0x15f8] sm:$0xff]
    %v1115 = vld [vmem:[#allocation11 + $0x1600] sm:$0xff]
    %v1116 = vld [vmem:[#allocation11 + $0x1608] sm:$0xff]
    %v1117 = vld [vmem:[#allocation11 + $0x1610] sm:$0xff]
    %v1118 = vld [vmem:[#allocation11 + $0x1618] sm:$0xff]
    %v1119 = vld [vmem:[#allocation11 + $0x1620] sm:$0xff]
    %v1120 = vld [vmem:[#allocation11 + $0x1628] sm:$0xff]
    %v1121 = vld [vmem:[#allocation11 + $0x1630] sm:$0xff]
    %v1122 = vld [vmem:[#allocation11 + $0x1638] sm:$0xff]
    %v1123 = vld [vmem:[#allocation11 + $0x1640] sm:$0xff]
    %v1124 = vld [vmem:[#allocation11 + $0x1648] sm:$0xff]
    %v1125 = vld [vmem:[#allocation11 + $0x1650] sm:$0xff]
    %v1126 = vld [vmem:[#allocation11 + $0x1658] sm:$0xff]
    %v1127 = vld [vmem:[#allocation11 + $0x1660] sm:$0xff]
    %v1128 = vld [vmem:[#allocation11 + $0x1668] sm:$0xff]
    %v1129 = vld [vmem:[#allocation11 + $0x1670] sm:$0xff]
    %v1130 = vld [vmem:[#allocation11 + $0x1678] sm:$0xff]
    %v1131 = vld [vmem:[#allocation11 + $0x1680] sm:$0xff]
    %v1132 = vld [vmem:[#allocation11 + $0x1688] sm:$0xff]
    %v1133 = vld [vmem:[#allocation11 + $0x1690] sm:$0xff]
    %v1134 = vld [vmem:[#allocation11 + $0x1698] sm:$0xff]
    %v1135 = vld [vmem:[#allocation11 + $0x16a0] sm:$0xff]
    %v1136 = vld [vmem:[#allocation11 + $0x16a8] sm:$0xff]
    %v1137 = vld [vmem:[#allocation11 + $0x16b0] sm:$0xff]
    %v1138 = vld [vmem:[#allocation11 + $0x16b8] sm:$0xff]
    %v1139 = vld [vmem:[#allocation11 + $0x16c0] sm:$0xff]
    %v1140 = vld [vmem:[#allocation11 + $0x16c8] sm:$0xff]
    %v1141 = vld [vmem:[#allocation11 + $0x16d0] sm:$0xff]
    %v1142 = vld [vmem:[#allocation11 + $0x16d8] sm:$0xff]
    %v1143 = vld [vmem:[#allocation11 + $0x16e0] sm:$0xff]
    %v1144 = vld [vmem:[#allocation11 + $0x16e8] sm:$0xff]
    %v1145 = vld [vmem:[#allocation11 + $0x16f0] sm:$0xff]
    %v1146 = vld [vmem:[#allocation11 + $0x16f8] sm:$0xff]
    %v1147 = vld [vmem:[#allocation11 + $0x1700] sm:$0xff]
    %v1148 = vld [vmem:[#allocation11 + $0x1708] sm:$0xff]
    %v1149 = vld [vmem:[#allocation11 + $0x1710] sm:$0xff]
    %v1150 = vld [vmem:[#allocation11 + $0x1718] sm:$0xff]
    %v1151 = vld [vmem:[#allocation11 + $0x1720] sm:$0xff]
    %v1152 = vld [vmem:[#allocation11 + $0x1728] sm:$0xff]
    %v1153 = vld [vmem:[#allocation11 + $0x1730] sm:$0xff]
    %v1154 = vld [vmem:[#allocation11 + $0x1738] sm:$0xff]
    %v1155 = vld [vmem:[#allocation11 + $0x1740] sm:$0xff]
    %v1156 = vld [vmem:[#allocation11 + $0x1748] sm:$0xff]
    %v1157 = vld [vmem:[#allocation11 + $0x1750] sm:$0xff]
    %v1158 = vld [vmem:[#allocation11 + $0x1758] sm:$0xff]
    %v1159 = vld [vmem:[#allocation11 + $0x1760] sm:$0xff]
    %v1160 = vld [vmem:[#allocation11 + $0x1768] sm:$0xff]
    %v1161 = vld [vmem:[#allocation11 + $0x1770] sm:$0xff]
    %v1162 = vld [vmem:[#allocation11 + $0x1778] sm:$0xff]
    %v1163 = vld [vmem:[#allocation11 + $0x1780] sm:$0xff]
    %v1164 = vld [vmem:[#allocation11 + $0x1788] sm:$0xff]
    %v1165 = vld [vmem:[#allocation11 + $0x1790] sm:$0xff]
    %v1166 = vld [vmem:[#allocation11 + $0x1798] sm:$0xff]
    %v1167 = vld [vmem:[#allocation11 + $0x17a0] sm:$0xff]
    %v1168 = vld [vmem:[#allocation11 + $0x17a8] sm:$0xff]
    %v1169 = vld [vmem:[#allocation11 + $0x17b0] sm:$0xff]
    %v1170 = vld [vmem:[#allocation11 + $0x17b8] sm:$0xff]
    %v1171 = vld [vmem:[#allocation11 + $0x17c0] sm:$0xff]
    %v1172 = vld [vmem:[#allocation11 + $0x17c8] sm:$0xff]
    %v1173 = vld [vmem:[#allocation11 + $0x17d0] sm:$0xff]
    %v1174 = vld [vmem:[#allocation11 + $0x17d8] sm:$0xff]
    %v1175 = vld [vmem:[#allocation11 + $0x17e0] sm:$0xff]
    %v1176 = vld [vmem:[#allocation11 + $0x17e8] sm:$0xff]
    %v1177 = vld [vmem:[#allocation11 + $0x17f0] sm:$0xff]
    %v1178 = vld [vmem:[#allocation11 + $0x17f8] sm:$0xff]
    %v1179 = vld [vmem:[#allocation11 + $0x1800] sm:$0xff]
    %v1180 = vld [vmem:[#allocation11 + $0x1808] sm:$0xff]
    %v1181 = vld [vmem:[#allocation11 + $0x1810] sm:$0xff]
    %v1182 = vld [vmem:[#allocation11 + $0x1818] sm:$0xff]
    %v1183 = vld [vmem:[#allocation11 + $0x1820] sm:$0xff]
    %v1184 = vld [vmem:[#allocation11 + $0x1828] sm:$0xff]
    %v1185 = vld [vmem:[#allocation11 + $0x1830] sm:$0xff]
    %v1186 = vld [vmem:[#allocation11 + $0x1838] sm:$0xff]
    %v1187 = vld [vmem:[#allocation11 + $0x1840] sm:$0xff]
    %v1188 = vld [vmem:[#allocation11 + $0x1848] sm:$0xff]
    %v1189 = vld [vmem:[#allocation11 + $0x1850] sm:$0xff]
    %v1190 = vld [vmem:[#allocation11 + $0x1858] sm:$0xff]
    %v1191 = vld [vmem:[#allocation11 + $0x1860] sm:$0xff]
    %v1192 = vld [vmem:[#allocation11 + $0x1868] sm:$0xff]
    %v1193 = vld [vmem:[#allocation11 + $0x1870] sm:$0xff]
    %v1194 = vld [vmem:[#allocation11 + $0x1878] sm:$0xff]
    %v1195 = vld [vmem:[#allocation11 + $0x1880] sm:$0xff]
    %v1196 = vld [vmem:[#allocation11 + $0x1888] sm:$0xff]
    %v1197 = vld [vmem:[#allocation11 + $0x1890] sm:$0xff]
    %v1198 = vld [vmem:[#allocation11 + $0x1898] sm:$0xff]
    %v1199 = vld [vmem:[#allocation11 + $0x18a0] sm:$0xff]
    %v1200 = vld [vmem:[#allocation11 + $0x18a8] sm:$0xff]
    %v1201 = vld [vmem:[#allocation11 + $0x18b0] sm:$0xff]
    %v1202 = vld [vmem:[#allocation11 + $0x18b8] sm:$0xff]
    %v1203 = vld [vmem:[#allocation11 + $0x18c0] sm:$0xff]
    %v1204 = vld [vmem:[#allocation11 + $0x18c8] sm:$0xff]
    %v1205 = vld [vmem:[#allocation11 + $0x18d0] sm:$0xff]
    %v1206 = vld [vmem:[#allocation11 + $0x18d8] sm:$0xff]
    %v1207 = vld [vmem:[#allocation11 + $0x18e0] sm:$0xff]
    %v1208 = vld [vmem:[#allocation11 + $0x18e8] sm:$0xff]
    %v1209 = vld [vmem:[#allocation11 + $0x18f0] sm:$0xff]
    %v1210 = vld [vmem:[#allocation11 + $0x18f8] sm:$0xff]
    %v1211 = vld [vmem:[#allocation11 + $0x1900] sm:$0xff]
    %v1212 = vld [vmem:[#allocation11 + $0x1908] sm:$0xff]
    %v1213 = vld [vmem:[#allocation11 + $0x1910] sm:$0xff]
    %v1214 = vld [vmem:[#allocation11 + $0x1918] sm:$0xff]
    %v1215 = vld [vmem:[#allocation11 + $0x1920] sm:$0xff]
    %v1216 = vld [vmem:[#allocation11 + $0x1928] sm:$0xff]
    %v1217 = vld [vmem:[#allocation11 + $0x1930] sm:$0xff]
    %v1218 = vld [vmem:[#allocation11 + $0x1938] sm:$0xff]
    %v1219 = vld [vmem:[#allocation11 + $0x1940] sm:$0xff]
    %v1220 = vld [vmem:[#allocation11 + $0x1948] sm:$0xff]
    %v1221 = vld [vmem:[#allocation11 + $0x1950] sm:$0xff]
    %v1222 = vld [vmem:[#allocation11 + $0x1958] sm:$0xff]
    %v1223 = vld [vmem:[#allocation11 + $0x1960] sm:$0xff]
    %v1224 = vld [vmem:[#allocation11 + $0x1968] sm:$0xff]
    %v1225 = vld [vmem:[#allocation11 + $0x1970] sm:$0xff]
    %v1226 = vld [vmem:[#allocation11 + $0x1978] sm:$0xff]
    %v1227 = vld [vmem:[#allocation11 + $0x1980] sm:$0xff]
    %v1228 = vld [vmem:[#allocation11 + $0x1988] sm:$0xff]
    %v1229 = vld [vmem:[#allocation11 + $0x1990] sm:$0xff]
    %v1230 = vld [vmem:[#allocation11 + $0x1998] sm:$0xff]
    %v1231 = vld [vmem:[#allocation11 + $0x19a0] sm:$0xff]
    %v1232 = vld [vmem:[#allocation11 + $0x19a8] sm:$0xff]
    %v1233 = vld [vmem:[#allocation11 + $0x19b0] sm:$0xff]
    %v1234 = vld [vmem:[#allocation11 + $0x19b8] sm:$0xff]
    %v1235 = vld [vmem:[#allocation11 + $0x19c0] sm:$0xff]
    %v1236 = vld [vmem:[#allocation11 + $0x19c8] sm:$0xff]
    %v1237 = vld [vmem:[#allocation11 + $0x19d0] sm:$0xff]
    %v1238 = vld [vmem:[#allocation11 + $0x19d8] sm:$0xff]
    %v1239 = vld [vmem:[#allocation11 + $0x19e0] sm:$0xff]
    %v1240 = vld [vmem:[#allocation11 + $0x19e8] sm:$0xff]
    %v1241 = vld [vmem:[#allocation11 + $0x19f0] sm:$0xff]
    %v1242 = vld [vmem:[#allocation11 + $0x19f8] sm:$0xff]
    %v1243 = vld [vmem:[#allocation11 + $0x1a00] sm:$0xff]
    %v1244 = vld [vmem:[#allocation11 + $0x1a08] sm:$0xff]
    %v1245 = vld [vmem:[#allocation11 + $0x1a10] sm:$0xff]
    %v1246 = vld [vmem:[#allocation11 + $0x1a18] sm:$0xff]
    %v1247 = vld [vmem:[#allocation11 + $0x1a20] sm:$0xff]
    %v1248 = vld [vmem:[#allocation11 + $0x1a28] sm:$0xff]
    %v1249 = vld [vmem:[#allocation11 + $0x1a30] sm:$0xff]
    %v1250 = vld [vmem:[#allocation11 + $0x1a38] sm:$0xff]
    %v1251 = vld [vmem:[#allocation11 + $0x1a40] sm:$0xff]
    %v1252 = vld [vmem:[#allocation11 + $0x1a48] sm:$0xff]
    %v1253 = vld [vmem:[#allocation11 + $0x1a50] sm:$0xff]
    %v1254 = vld [vmem:[#allocation11 + $0x1a58] sm:$0xff]
    %v1255 = vld [vmem:[#allocation11 + $0x1a60] sm:$0xff]
    %v1256 = vld [vmem:[#allocation11 + $0x1a68] sm:$0xff]
    %v1257 = vld [vmem:[#allocation11 + $0x1a70] sm:$0xff]
    %v1258 = vld [vmem:[#allocation11 + $0x1a78] sm:$0xff]
    %v1259 = vld [vmem:[#allocation11 + $0x1a80] sm:$0xff]
    %v1260 = vld [vmem:[#allocation11 + $0x1a88] sm:$0xff]
    %v1261 = vld [vmem:[#allocation11 + $0x1a90] sm:$0xff]
    %v1262 = vld [vmem:[#allocation11 + $0x1a98] sm:$0xff]
    %v1263 = vld [vmem:[#allocation11 + $0x1aa0] sm:$0xff]
    %v1264 = vld [vmem:[#allocation11 + $0x1aa8] sm:$0xff]
    %v1265 = vld [vmem:[#allocation11 + $0x1ab0] sm:$0xff]
    %v1266 = vld [vmem:[#allocation11 + $0x1ab8] sm:$0xff]
    %v1267 = vld [vmem:[#allocation11 + $0x1ac0] sm:$0xff]
    %v1268 = vld [vmem:[#allocation11 + $0x1ac8] sm:$0xff]
    %v1269 = vld [vmem:[#allocation11 + $0x1ad0] sm:$0xff]
    %v1270 = vld [vmem:[#allocation11 + $0x1ad8] sm:$0xff]
    %v1271 = vld [vmem:[#allocation11 + $0x1ae0] sm:$0xff]
    %v1272 = vld [vmem:[#allocation11 + $0x1ae8] sm:$0xff]
    %v1273 = vld [vmem:[#allocation11 + $0x1af0] sm:$0xff]
    %v1274 = vld [vmem:[#allocation11 + $0x1af8] sm:$0xff]
    %v1275 = vld [vmem:[#allocation11 + $0x1b00] sm:$0xff]
    %v1276 = vld [vmem:[#allocation11 + $0x1b08] sm:$0xff]
    %v1277 = vld [vmem:[#allocation11 + $0x1b10] sm:$0xff]
    %v1278 = vld [vmem:[#allocation11 + $0x1b18] sm:$0xff]
    %v1279 = vld [vmem:[#allocation11 + $0x1b20] sm:$0xff]
    %v1280 = vld [vmem:[#allocation11 + $0x1b28] sm:$0xff]
    %v1281 = vld [vmem:[#allocation11 + $0x1b30] sm:$0xff]
    %v1282 = vld [vmem:[#allocation11 + $0x1b38] sm:$0xff]
    %v1283 = vld [vmem:[#allocation11 + $0x1b40] sm:$0xff]
    %v1284 = vld [vmem:[#allocation11 + $0x1b48] sm:$0xff]
    %v1285 = vld [vmem:[#allocation11 + $0x1b50] sm:$0xff]
    %v1286 = vld [vmem:[#allocation11 + $0x1b58] sm:$0xff]
    %v1287 = vld [vmem:[#allocation11 + $0x1b60] sm:$0xff]
    %v1288 = vld [vmem:[#allocation11 + $0x1b68] sm:$0xff]
    %v1289 = vld [vmem:[#allocation11 + $0x1b70] sm:$0xff]
    %v1290 = vld [vmem:[#allocation11 + $0x1b78] sm:$0xff]
    %v1291 = vld [vmem:[#allocation11 + $0x1b80] sm:$0xff]
    %v1292 = vld [vmem:[#allocation11 + $0x1b88] sm:$0xff]
    %v1293 = vld [vmem:[#allocation11 + $0x1b90] sm:$0xff]
    %v1294 = vld [vmem:[#allocation11 + $0x1b98] sm:$0xff]
    %v1295 = vld [vmem:[#allocation11 + $0x1ba0] sm:$0xff]
    %v1296 = vld [vmem:[#allocation11 + $0x1ba8] sm:$0xff]
    %v1297 = vld [vmem:[#allocation11 + $0x1bb0] sm:$0xff]
    %v1298 = vld [vmem:[#allocation11 + $0x1bb8] sm:$0xff]
    %v1299 = vld [vmem:[#allocation11 + $0x1bc0] sm:$0xff]
    %v1300 = vld [vmem:[#allocation11 + $0x1bc8] sm:$0xff]
    %v1301 = vld [vmem:[#allocation11 + $0x1bd0] sm:$0xff]
    %v1302 = vld [vmem:[#allocation11 + $0x1bd8] sm:$0xff]
    %v1303 = vld [vmem:[#allocation11 + $0x1be0] sm:$0xff]
    %v1304 = vld [vmem:[#allocation11 + $0x1be8] sm:$0xff]
    %v1305 = vld [vmem:[#allocation11 + $0x1bf0] sm:$0xff]
    %v1306 = vld [vmem:[#allocation11 + $0x1bf8] sm:$0xff]
    %v1307 = vld [vmem:[#allocation11 + $0x1c00] sm:$0xff]
    %v1308 = vld [vmem:[#allocation11 + $0x1c08] sm:$0xff]
    %v1309 = vld [vmem:[#allocation11 + $0x1c10] sm:$0xff]
    %v1310 = vld [vmem:[#allocation11 + $0x1c18] sm:$0xff]
    %v1311 = vld [vmem:[#allocation11 + $0x1c20] sm:$0xff]
    %v1312 = vld [vmem:[#allocation11 + $0x1c28] sm:$0xff]
    %v1313 = vld [vmem:[#allocation11 + $0x1c30] sm:$0xff]
    %v1314 = vld [vmem:[#allocation11 + $0x1c38] sm:$0xff]
    %v1315 = vld [vmem:[#allocation11 + $0x1c40] sm:$0xff]
    %v1316 = vld [vmem:[#allocation11 + $0x1c48] sm:$0xff]
    %v1317 = vld [vmem:[#allocation11 + $0x1c50] sm:$0xff]
    %v1318 = vld [vmem:[#allocation11 + $0x1c58] sm:$0xff]
    %v1319 = vld [vmem:[#allocation11 + $0x1c60] sm:$0xff]
    %v1320 = vld [vmem:[#allocation11 + $0x1c68] sm:$0xff]
    %v1321 = vld [vmem:[#allocation11 + $0x1c70] sm:$0xff]
    %v1322 = vld [vmem:[#allocation11 + $0x1c78] sm:$0xff]
    %v1323 = vld [vmem:[#allocation11 + $0x1c80] sm:$0xff]
    %v1324 = vld [vmem:[#allocation11 + $0x1c88] sm:$0xff]
    %v1325 = vld [vmem:[#allocation11 + $0x1c90] sm:$0xff]
    %v1326 = vld [vmem:[#allocation11 + $0x1c98] sm:$0xff]
    %v1327 = vld [vmem:[#allocation11 + $0x1ca0] sm:$0xff]
    %v1328 = vld [vmem:[#allocation11 + $0x1ca8] sm:$0xff]
    %v1329 = vld [vmem:[#allocation11 + $0x1cb0] sm:$0xff]
    %v1330 = vld [vmem:[#allocation11 + $0x1cb8] sm:$0xff]
    %v1331 = vld [vmem:[#allocation11 + $0x1cc0] sm:$0xff]
    %v1332 = vld [vmem:[#allocation11 + $0x1cc8] sm:$0xff]
    %v1333 = vld [vmem:[#allocation11 + $0x1cd0] sm:$0xff]
    %v1334 = vld [vmem:[#allocation11 + $0x1cd8] sm:$0xff]
    %v1335 = vld [vmem:[#allocation11 + $0x1ce0] sm:$0xff]
    %v1336 = vld [vmem:[#allocation11 + $0x1ce8] sm:$0xff]
    %v1337 = vld [vmem:[#allocation11 + $0x1cf0] sm:$0xff]
    %v1338 = vld [vmem:[#allocation11 + $0x1cf8] sm:$0xff]
    %v1339 = vld [vmem:[#allocation11 + $0x1d00] sm:$0xff]
    %v1340 = vld [vmem:[#allocation11 + $0x1d08] sm:$0xff]
    %v1341 = vld [vmem:[#allocation11 + $0x1d10] sm:$0xff]
    %v1342 = vld [vmem:[#allocation11 + $0x1d18] sm:$0xff]
    %v1343 = vld [vmem:[#allocation11 + $0x1d20] sm:$0xff]
    %v1344 = vld [vmem:[#allocation11 + $0x1d28] sm:$0xff]
    %v1345 = vld [vmem:[#allocation11 + $0x1d30] sm:$0xff]
    %v1346 = vld [vmem:[#allocation11 + $0x1d38] sm:$0xff]
    %v1347 = vld [vmem:[#allocation11 + $0x1d40] sm:$0xff]
    %v1348 = vld [vmem:[#allocation11 + $0x1d48] sm:$0xff]
    %v1349 = vld [vmem:[#allocation11 + $0x1d50] sm:$0xff]
    %v1350 = vld [vmem:[#allocation11 + $0x1d58] sm:$0xff]
    %v1351 = vld [vmem:[#allocation11 + $0x1d60] sm:$0xff]
    %v1352 = vld [vmem:[#allocation11 + $0x1d68] sm:$0xff]
    %v1353 = vld [vmem:[#allocation11 + $0x1d70] sm:$0xff]
    %v1354 = vld [vmem:[#allocation11 + $0x1d78] sm:$0xff]
    %v1355 = vld [vmem:[#allocation11 + $0x1d80] sm:$0xff]
    %v1356 = vld [vmem:[#allocation11 + $0x1d88] sm:$0xff]
    %v1357 = vld [vmem:[#allocation11 + $0x1d90] sm:$0xff]
    %v1358 = vld [vmem:[#allocation11 + $0x1d98] sm:$0xff]
    %v1359 = vld [vmem:[#allocation11 + $0x1da0] sm:$0xff]
    %v1360 = vld [vmem:[#allocation11 + $0x1da8] sm:$0xff]
    %v1361 = vld [vmem:[#allocation11 + $0x1db0] sm:$0xff]
    %v1362 = vld [vmem:[#allocation11 + $0x1db8] sm:$0xff]
    %v1363 = vld [vmem:[#allocation11 + $0x1dc0] sm:$0xff]
    %v1364 = vld [vmem:[#allocation11 + $0x1dc8] sm:$0xff]
    %v1365 = vld [vmem:[#allocation11 + $0x1dd0] sm:$0xff]
    %v1366 = vld [vmem:[#allocation11 + $0x1dd8] sm:$0xff]
    %v1367 = vld [vmem:[#allocation11 + $0x1de0] sm:$0xff]
    %v1368 = vld [vmem:[#allocation11 + $0x1de8] sm:$0xff]
    %v1369 = vld [vmem:[#allocation11 + $0x1df0] sm:$0xff]
    %v1370 = vld [vmem:[#allocation11 + $0x1df8] sm:$0xff]
    %v1371 = vld [vmem:[#allocation11 + $0x1e00] sm:$0xff]
    %v1372 = vld [vmem:[#allocation11 + $0x1e08] sm:$0xff]
    %v1373 = vld [vmem:[#allocation11 + $0x1e10] sm:$0xff]
    %v1374 = vld [vmem:[#allocation11 + $0x1e18] sm:$0xff]
    %v1375 = vld [vmem:[#allocation11 + $0x1e20] sm:$0xff]
    %v1376 = vld [vmem:[#allocation11 + $0x1e28] sm:$0xff]
    %v1377 = vld [vmem:[#allocation11 + $0x1e30] sm:$0xff]
    %v1378 = vld [vmem:[#allocation11 + $0x1e38] sm:$0xff]
    %v1379 = vld [vmem:[#allocation11 + $0x1e40] sm:$0xff]
    %v1380 = vld [vmem:[#allocation11 + $0x1e48] sm:$0xff]
    %v1381 = vld [vmem:[#allocation11 + $0x1e50] sm:$0xff]
    %v1382 = vld [vmem:[#allocation11 + $0x1e58] sm:$0xff]
    %v1383 = vld [vmem:[#allocation11 + $0x1e60] sm:$0xff]
    %v1384 = vld [vmem:[#allocation11 + $0x1e68] sm:$0xff]
    %v1385 = vld [vmem:[#allocation11 + $0x1e70] sm:$0xff]
    %v1386 = vld [vmem:[#allocation11 + $0x1e78] sm:$0xff]
    %v1387 = vld [vmem:[#allocation11 + $0x1e80] sm:$0xff]
    %v1388 = vld [vmem:[#allocation11 + $0x1e88] sm:$0xff]
    %v1389 = vld [vmem:[#allocation11 + $0x1e90] sm:$0xff]
    %v1390 = vld [vmem:[#allocation11 + $0x1e98] sm:$0xff]
    %v1391 = vld [vmem:[#allocation11 + $0x1ea0] sm:$0xff]
    %v1392 = vld [vmem:[#allocation11 + $0x1ea8] sm:$0xff]
    %v1393 = vld [vmem:[#allocation11 + $0x1eb0] sm:$0xff]
    %v1394 = vld [vmem:[#allocation11 + $0x1eb8] sm:$0xff]
    %v1395 = vld [vmem:[#allocation11 + $0x1ec0] sm:$0xff]
    %v1396 = vld [vmem:[#allocation11 + $0x1ec8] sm:$0xff]
    %v1397 = vld [vmem:[#allocation11 + $0x1ed0] sm:$0xff]
    %v1398 = vld [vmem:[#allocation11 + $0x1ed8] sm:$0xff]
    %v1399 = vld [vmem:[#allocation11 + $0x1ee0] sm:$0xff]
    %v1400 = vld [vmem:[#allocation11 + $0x1ee8] sm:$0xff]
    %v1401 = vld [vmem:[#allocation11 + $0x1ef0] sm:$0xff]
    %v1402 = vld [vmem:[#allocation11 + $0x1ef8] sm:$0xff]
    %v1403 = vld [vmem:[#allocation11 + $0x1f00] sm:$0xff]
    %v1404 = vld [vmem:[#allocation11 + $0x1f08] sm:$0xff]
    %v1405 = vld [vmem:[#allocation11 + $0x1f10] sm:$0xff]
    %v1406 = vld [vmem:[#allocation11 + $0x1f18] sm:$0xff]
    %v1407 = vld [vmem:[#allocation11 + $0x1f20] sm:$0xff]
    %v1408 = vld [vmem:[#allocation11 + $0x1f28] sm:$0xff]
    %v1409 = vld [vmem:[#allocation11 + $0x1f30] sm:$0xff]
    %v1410 = vld [vmem:[#allocation11 + $0x1f38] sm:$0xff]
    %v1411 = vld [vmem:[#allocation11 + $0x1f40] sm:$0xff]
    %v1412 = vld [vmem:[#allocation11 + $0x1f48] sm:$0xff]
    %v1413 = vld [vmem:[#allocation11 + $0x1f50] sm:$0xff]
    %v1414 = vld [vmem:[#allocation11 + $0x1f58] sm:$0xff]
    %v1415 = vld [vmem:[#allocation11 + $0x1f60] sm:$0xff]
    %v1416 = vld [vmem:[#allocation11 + $0x1f68] sm:$0xff]
    %v1417 = vld [vmem:[#allocation11 + $0x1f70] sm:$0xff]
    %v1418 = vld [vmem:[#allocation11 + $0x1f78] sm:$0xff]
    %v1419 = vld [vmem:[#allocation11 + $0x1f80] sm:$0xff]
    %v1420 = vld [vmem:[#allocation11 + $0x1f88] sm:$0xff]
    %v1421 = vld [vmem:[#allocation11 + $0x1f90] sm:$0xff]
    %v1422 = vld [vmem:[#allocation11 + $0x1f98] sm:$0xff]
    %v1423 = vld [vmem:[#allocation11 + $0x1fa0] sm:$0xff]
    %v1424 = vld [vmem:[#allocation11 + $0x1fa8] sm:$0xff]
    %v1425 = vld [vmem:[#allocation11 + $0x1fb0] sm:$0xff]
    %v1426 = vld [vmem:[#allocation11 + $0x1fb8] sm:$0xff]
    %v1427 = vld [vmem:[#allocation11 + $0x1fc0] sm:$0xff]
    %v1428 = vld [vmem:[#allocation11 + $0x1fc8] sm:$0xff]
    %v1429 = vld [vmem:[#allocation11 + $0x1fd0] sm:$0xff]
    %v1430 = vld [vmem:[#allocation11 + $0x1fd8] sm:$0xff]
    %v1431 = vld [vmem:[#allocation11 + $0x1fe0] sm:$0xff]
    %v1432 = vld [vmem:[#allocation11 + $0x1fe8] sm:$0xff]
    %v1433 = vld [vmem:[#allocation11 + $0x1ff0] sm:$0xff]
    %v1434 = vld [vmem:[#allocation11 + $0x1ff8] sm:$0xff]
    %v1435 = vld [vmem:[#allocation12] sm:$0xff]
    %v1437 = vperm.slane %v1435, 0
    %v1438 = vperm.slane %v1435, 1
    %v1439 = vperm.slane %v1435, 2
    %v1440 = vperm.slane %v1435, 3
    %v1441 = vperm.slane %v1435, 4
    %v1442 = vperm.slane %v1435, 5
    %v1443 = vperm.slane %v1435, 6
    %v1444 = vperm.slane %v1435, 7
    %v1453 = vpack.i.b16 %v409, %v407
    %v1454 = vpack.i.b16 %v410, %v408
    %1456 = vst [vmem:[#allocation1] ss:$9 sm:$0xff] %v1453
    %v1457 = vld [vmem:[#allocation1] sm:$0xff]
    %v1458 = vld [vmem:[#allocation1 + $0x9] sm:$0xff]
    %v1459 = vld [vmem:[#allocation1 + $0x12] sm:$0xff]
    %v1460 = vld [vmem:[#allocation1 + $0x1b] sm:$0xff]
    %v1461 = vld [vmem:[#allocation1 + $0x24] sm:$0xff]
    %v1462 = vld [vmem:[#allocation1 + $0x2d] sm:$0xff]
    %v1463 = vld [vmem:[#allocation1 + $0x36] sm:$0xff]
    %v1464 = vld [vmem:[#allocation1 + $0x3f] sm:$0xff]
    %1466 = vst [vmem:[#allocation1] ss:$9 sm:$0xff] %v1454
    %v1467 = vld [vmem:[#allocation1] sm:$0xff]
    %v1468 = vld [vmem:[#allocation1 + $0x9] sm:$0xff]
    %v1469 = vld [vmem:[#allocation1 + $0x12] sm:$0xff]
    %v1470 = vld [vmem:[#allocation1 + $0x1b] sm:$0xff]
    %v1471 = vld [vmem:[#allocation1 + $0x24] sm:$0xff]
    %v1472 = vld [vmem:[#allocation1 + $0x2d] sm:$0xff]
    %v1473 = vld [vmem:[#allocation1 + $0x36] sm:$0xff]
    %v1474 = vld [vmem:[#allocation1 + $0x3f] sm:$0xff]
    %v2515 = vunpack.c.l.b16 %v411
    %v2516 = vunpack.c.h.b16 %v411
    %v2517 = vunpack.c.l.b16 %v412
    %v2518 = vunpack.c.h.b16 %v412
    %v2519 = vunpack.c.l.b16 %v413
    %v2520 = vunpack.c.h.b16 %v413
    %v2521 = vunpack.c.l.b16 %v414
    %v2522 = vunpack.c.h.b16 %v414
    %v2523 = vunpack.c.l.b16 %v415
    %v2524 = vunpack.c.h.b16 %v415
    %v2525 = vunpack.c.l.b16 %v416
    %v2526 = vunpack.c.h.b16 %v416
    %v2527 = vunpack.c.l.b16 %v417
    %v2528 = vunpack.c.h.b16 %v417
    %v2529 = vunpack.c.l.b16 %v418
    %v2530 = vunpack.c.h.b16 %v418
    %v2531 = vunpack.c.l.b16 %v419
    %v2532 = vunpack.c.h.b16 %v419
    %v2533 = vunpack.c.l.b16 %v420
    %v2534 = vunpack.c.h.b16 %v420
    %v2535 = vunpack.c.l.b16 %v421
    %v2536 = vunpack.c.h.b16 %v421
    %v2537 = vunpack.c.l.b16 %v422
    %v2538 = vunpack.c.h.b16 %v422
    %v2539 = vunpack.c.l.b16 %v423
    %v2540 = vunpack.c.h.b16 %v423
    %v2541 = vunpack.c.l.b16 %v424
    %v2542 = vunpack.c.h.b16 %v424
    %v2543 = vunpack.c.l.b16 %v425
    %v2544 = vunpack.c.h.b16 %v425
    %v2545 = vunpack.c.l.b16 %v426
    %v2546 = vunpack.c.h.b16 %v426
    %v2547 = vunpack.c.l.b16 %v427
    %v2548 = vunpack.c.h.b16 %v427
    %v2549 = vunpack.c.l.b16 %v428
    %v2550 = vunpack.c.h.b16 %v428
    %v2551 = vunpack.c.l.b16 %v429
    %v2552 = vunpack.c.h.b16 %v429
    %v2553 = vunpack.c.l.b16 %v430
    %v2554 = vunpack.c.h.b16 %v430
    %v2555 = vunpack.c.l.b16 %v431
    %v2556 = vunpack.c.h.b16 %v431
    %v2557 = vunpack.c.l.b16 %v432
    %v2558 = vunpack.c.h.b16 %v432
    %v2559 = vunpack.c.l.b16 %v433
    %v2560 = vunpack.c.h.b16 %v433
    %v2561 = vunpack.c.l.b16 %v434
    %v2562 = vunpack.c.h.b16 %v434
    %v2563 = vunpack.c.l.b16 %v435
    %v2564 = vunpack.c.h.b16 %v435
    %v2565 = vunpack.c.l.b16 %v436
    %v2566 = vunpack.c.h.b16 %v436
    %v2567 = vunpack.c.l.b16 %v437
    %v2568 = vunpack.c.h.b16 %v437
    %v2569 = vunpack.c.l.b16 %v438
    %v2570 = vunpack.c.h.b16 %v438
    %v2571 = vunpack.c.l.b16 %v439
    %v2572 = vunpack.c.h.b16 %v439
    %v2573 = vunpack.c.l.b16 %v440
    %v2574 = vunpack.c.h.b16 %v440
    %v2575 = vunpack.c.l.b16 %v441
    %v2576 = vunpack.c.h.b16 %v441
    %v2577 = vunpack.c.l.b16 %v442
    %v2578 = vunpack.c.h.b16 %v442
    %v2579 = vunpack.c.l.b16 %v443
    %v2580 = vunpack.c.h.b16 %v443
    %v2581 = vunpack.c.l.b16 %v444
    %v2582 = vunpack.c.h.b16 %v444
    %v2583 = vunpack.c.l.b16 %v445
    %v2584 = vunpack.c.h.b16 %v445
    %v2585 = vunpack.c.l.b16 %v446
    %v2586 = vunpack.c.h.b16 %v446
    %v2587 = vunpack.c.l.b16 %v447
    %v2588 = vunpack.c.h.b16 %v447
    %v2589 = vunpack.c.l.b16 %v448
    %v2590 = vunpack.c.h.b16 %v448
    %v2591 = vunpack.c.l.b16 %v449
    %v2592 = vunpack.c.h.b16 %v449
    %v2593 = vunpack.c.l.b16 %v450
    %v2594 = vunpack.c.h.b16 %v450
    %v2595 = vunpack.c.l.b16 %v451
    %v2596 = vunpack.c.h.b16 %v451
    %v2597 = vunpack.c.l.b16 %v452
    %v2598 = vunpack.c.h.b16 %v452
    %v2599 = vunpack.c.l.b16 %v453
    %v2600 = vunpack.c.h.b16 %v453
    %v2601 = vunpack.c.l.b16 %v454
    %v2602 = vunpack.c.h.b16 %v454
    %v2603 = vunpack.c.l.b16 %v455
    %v2604 = vunpack.c.h.b16 %v455
    %v2605 = vunpack.c.l.b16 %v456
    %v2606 = vunpack.c.h.b16 %v456
    %v2607 = vunpack.c.l.b16 %v457
    %v2608 = vunpack.c.h.b16 %v457
    %v2609 = vunpack.c.l.b16 %v458
    %v2610 = vunpack.c.h.b16 %v458
    %v2611 = vunpack.c.l.b16 %v459
    %v2612 = vunpack.c.h.b16 %v459
    %v2613 = vunpack.c.l.b16 %v460
    %v2614 = vunpack.c.h.b16 %v460
    %v2615 = vunpack.c.l.b16 %v461
    %v2616 = vunpack.c.h.b16 %v461
    %v2617 = vunpack.c.l.b16 %v462
    %v2618 = vunpack.c.h.b16 %v462
    %v2619 = vunpack.c.l.b16 %v463
    %v2620 = vunpack.c.h.b16 %v463
    %v2621 = vunpack.c.l.b16 %v464
    %v2622 = vunpack.c.h.b16 %v464
    %v2623 = vunpack.c.l.b16 %v465
    %v2624 = vunpack.c.h.b16 %v465
    %v2625 = vunpack.c.l.b16 %v466
    %v2626 = vunpack.c.h.b16 %v466
    %v2627 = vunpack.c.l.b16 %v467
    %v2628 = vunpack.c.h.b16 %v467
    %v2629 = vunpack.c.l.b16 %v468
    %v2630 = vunpack.c.h.b16 %v468
    %v2631 = vunpack.c.l.b16 %v469
    %v2632 = vunpack.c.h.b16 %v469
    %v2633 = vunpack.c.l.b16 %v470
    %v2634 = vunpack.c.h.b16 %v470
    %v2635 = vunpack.c.l.b16 %v471
    %v2636 = vunpack.c.h.b16 %v471
    %v2637 = vunpack.c.l.b16 %v472
    %v2638 = vunpack.c.h.b16 %v472
    %v2639 = vunpack.c.l.b16 %v473
    %v2640 = vunpack.c.h.b16 %v473
    %v2641 = vunpack.c.l.b16 %v474
    %v2642 = vunpack.c.h.b16 %v474
    %v2643 = vunpack.c.l.b16 %v475
    %v2644 = vunpack.c.h.b16 %v475
    %v2645 = vunpack.c.l.b16 %v476
    %v2646 = vunpack.c.h.b16 %v476
    %v2647 = vunpack.c.l.b16 %v477
    %v2648 = vunpack.c.h.b16 %v477
    %v2649 = vunpack.c.l.b16 %v478
    %v2650 = vunpack.c.h.b16 %v478
    %v2651 = vunpack.c.l.b16 %v479
    %v2652 = vunpack.c.h.b16 %v479
    %v2653 = vunpack.c.l.b16 %v480
    %v2654 = vunpack.c.h.b16 %v480
    %v2655 = vunpack.c.l.b16 %v481
    %v2656 = vunpack.c.h.b16 %v481
    %v2657 = vunpack.c.l.b16 %v482
    %v2658 = vunpack.c.h.b16 %v482
    %v2659 = vunpack.c.l.b16 %v483
    %v2660 = vunpack.c.h.b16 %v483
    %v2661 = vunpack.c.l.b16 %v484
    %v2662 = vunpack.c.h.b16 %v484
    %v2663 = vunpack.c.l.b16 %v485
    %v2664 = vunpack.c.h.b16 %v485
    %v2665 = vunpack.c.l.b16 %v486
    %v2666 = vunpack.c.h.b16 %v486
    %v2667 = vunpack.c.l.b16 %v487
    %v2668 = vunpack.c.h.b16 %v487
    %v2669 = vunpack.c.l.b16 %v488
    %v2670 = vunpack.c.h.b16 %v488
    %v2671 = vunpack.c.l.b16 %v489
    %v2672 = vunpack.c.h.b16 %v489
    %v2673 = vunpack.c.l.b16 %v490
    %v2674 = vunpack.c.h.b16 %v490
    %v2675 = vunpack.c.l.b16 %v491
    %v2676 = vunpack.c.h.b16 %v491
    %v2677 = vunpack.c.l.b16 %v492
    %v2678 = vunpack.c.h.b16 %v492
    %v2679 = vunpack.c.l.b16 %v493
    %v2680 = vunpack.c.h.b16 %v493
    %v2681 = vunpack.c.l.b16 %v494
    %v2682 = vunpack.c.h.b16 %v494
    %v2683 = vunpack.c.l.b16 %v495
    %v2684 = vunpack.c.h.b16 %v495
    %v2685 = vunpack.c.l.b16 %v496
    %v2686 = vunpack.c.h.b16 %v496
    %v2687 = vunpack.c.l.b16 %v497
    %v2688 = vunpack.c.h.b16 %v497
    %v2689 = vunpack.c.l.b16 %v498
    %v2690 = vunpack.c.h.b16 %v498
    %v2691 = vunpack.c.l.b16 %v499
    %v2692 = vunpack.c.h.b16 %v499
    %v2693 = vunpack.c.l.b16 %v500
    %v2694 = vunpack.c.h.b16 %v500
    %v2695 = vunpack.c.l.b16 %v501
    %v2696 = vunpack.c.h.b16 %v501
    %v2697 = vunpack.c.l.b16 %v502
    %v2698 = vunpack.c.h.b16 %v502
    %v2699 = vunpack.c.l.b16 %v503
    %v2700 = vunpack.c.h.b16 %v503
    %v2701 = vunpack.c.l.b16 %v504
    %v2702 = vunpack.c.h.b16 %v504
    %v2703 = vunpack.c.l.b16 %v505
    %v2704 = vunpack.c.h.b16 %v505
    %v2705 = vunpack.c.l.b16 %v506
    %v2706 = vunpack.c.h.b16 %v506
    %v2707 = vunpack.c.l.b16 %v507
    %v2708 = vunpack.c.h.b16 %v507
    %v2709 = vunpack.c.l.b16 %v508
    %v2710 = vunpack.c.h.b16 %v508
    %v2711 = vunpack.c.l.b16 %v509
    %v2712 = vunpack.c.h.b16 %v509
    %v2713 = vunpack.c.l.b16 %v510
    %v2714 = vunpack.c.h.b16 %v510
    %v2715 = vunpack.c.l.b16 %v511
    %v2716 = vunpack.c.h.b16 %v511
    %v2717 = vunpack.c.l.b16 %v512
    %v2718 = vunpack.c.h.b16 %v512
    %v2719 = vunpack.c.l.b16 %v513
    %v2720 = vunpack.c.h.b16 %v513
    %v2721 = vunpack.c.l.b16 %v514
    %v2722 = vunpack.c.h.b16 %v514
    %v2723 = vunpack.c.l.b16 %v515
    %v2724 = vunpack.c.h.b16 %v515
    %v2725 = vunpack.c.l.b16 %v516
    %v2726 = vunpack.c.h.b16 %v516
    %v2727 = vunpack.c.l.b16 %v517
    %v2728 = vunpack.c.h.b16 %v517
    %v2729 = vunpack.c.l.b16 %v518
    %v2730 = vunpack.c.h.b16 %v518
    %v2731 = vunpack.c.l.b16 %v519
    %v2732 = vunpack.c.h.b16 %v519
    %v2733 = vunpack.c.l.b16 %v520
    %v2734 = vunpack.c.h.b16 %v520
    %v2735 = vunpack.c.l.b16 %v521
    %v2736 = vunpack.c.h.b16 %v521
    %v2737 = vunpack.c.l.b16 %v522
    %v2738 = vunpack.c.h.b16 %v522
    %v2739 = vunpack.c.l.b16 %v523
    %v2740 = vunpack.c.h.b16 %v523
    %v2741 = vunpack.c.l.b16 %v524
    %v2742 = vunpack.c.h.b16 %v524
    %v2743 = vunpack.c.l.b16 %v525
    %v2744 = vunpack.c.h.b16 %v525
    %v2745 = vunpack.c.l.b16 %v526
    %v2746 = vunpack.c.h.b16 %v526
    %v2747 = vunpack.c.l.b16 %v527
    %v2748 = vunpack.c.h.b16 %v527
    %v2749 = vunpack.c.l.b16 %v528
    %v2750 = vunpack.c.h.b16 %v528
    %v2751 = vunpack.c.l.b16 %v529
    %v2752 = vunpack.c.h.b16 %v529
    %v2753 = vunpack.c.l.b16 %v530
    %v2754 = vunpack.c.h.b16 %v530
    %v2755 = vunpack.c.l.b16 %v531
    %v2756 = vunpack.c.h.b16 %v531
    %v2757 = vunpack.c.l.b16 %v532
    %v2758 = vunpack.c.h.b16 %v532
    %v2759 = vunpack.c.l.b16 %v533
    %v2760 = vunpack.c.h.b16 %v533
    %v2761 = vunpack.c.l.b16 %v534
    %v2762 = vunpack.c.h.b16 %v534
    %v2763 = vunpack.c.l.b16 %v535
    %v2764 = vunpack.c.h.b16 %v535
    %v2765 = vunpack.c.l.b16 %v536
    %v2766 = vunpack.c.h.b16 %v536
    %v2767 = vunpack.c.l.b16 %v537
    %v2768 = vunpack.c.h.b16 %v537
    %v2769 = vunpack.c.l.b16 %v538
    %v2770 = vunpack.c.h.b16 %v538
    %v2771 = vunpack.c.l.b16 %v539
    %v2772 = vunpack.c.h.b16 %v539
    %v2773 = vunpack.c.l.b16 %v540
    %v2774 = vunpack.c.h.b16 %v540
    %v2775 = vunpack.c.l.b16 %v541
    %v2776 = vunpack.c.h.b16 %v541
    %v2777 = vunpack.c.l.b16 %v542
    %v2778 = vunpack.c.h.b16 %v542
    %v2779 = vunpack.c.l.b16 %v543
    %v2780 = vunpack.c.h.b16 %v543
    %v2781 = vunpack.c.l.b16 %v544
    %v2782 = vunpack.c.h.b16 %v544
    %v2783 = vunpack.c.l.b16 %v545
    %v2784 = vunpack.c.h.b16 %v545
    %v2785 = vunpack.c.l.b16 %v546
    %v2786 = vunpack.c.h.b16 %v546
    %v2787 = vunpack.c.l.b16 %v547
    %v2788 = vunpack.c.h.b16 %v547
    %v2789 = vunpack.c.l.b16 %v548
    %v2790 = vunpack.c.h.b16 %v548
    %v2791 = vunpack.c.l.b16 %v549
    %v2792 = vunpack.c.h.b16 %v549
    %v2793 = vunpack.c.l.b16 %v550
    %v2794 = vunpack.c.h.b16 %v550
    %v2795 = vunpack.c.l.b16 %v551
    %v2796 = vunpack.c.h.b16 %v551
    %v2797 = vunpack.c.l.b16 %v552
    %v2798 = vunpack.c.h.b16 %v552
    %v2799 = vunpack.c.l.b16 %v553
    %v2800 = vunpack.c.h.b16 %v553
    %v2801 = vunpack.c.l.b16 %v554
    %v2802 = vunpack.c.h.b16 %v554
    %v2803 = vunpack.c.l.b16 %v555
    %v2804 = vunpack.c.h.b16 %v555
    %v2805 = vunpack.c.l.b16 %v556
    %v2806 = vunpack.c.h.b16 %v556
    %v2807 = vunpack.c.l.b16 %v557
    %v2808 = vunpack.c.h.b16 %v557
    %v2809 = vunpack.c.l.b16 %v558
    %v2810 = vunpack.c.h.b16 %v558
    %v2811 = vunpack.c.l.b16 %v559
    %v2812 = vunpack.c.h.b16 %v559
    %v2813 = vunpack.c.l.b16 %v560
    %v2814 = vunpack.c.h.b16 %v560
    %v2815 = vunpack.c.l.b16 %v561
    %v2816 = vunpack.c.h.b16 %v561
    %v2817 = vunpack.c.l.b16 %v562
    %v2818 = vunpack.c.h.b16 %v562
    %v2819 = vunpack.c.l.b16 %v563
    %v2820 = vunpack.c.h.b16 %v563
    %v2821 = vunpack.c.l.b16 %v564
    %v2822 = vunpack.c.h.b16 %v564
    %v2823 = vunpack.c.l.b16 %v565
    %v2824 = vunpack.c.h.b16 %v565
    %v2825 = vunpack.c.l.b16 %v566
    %v2826 = vunpack.c.h.b16 %v566
    %v2827 = vunpack.c.l.b16 %v567
    %v2828 = vunpack.c.h.b16 %v567
    %v2829 = vunpack.c.l.b16 %v568
    %v2830 = vunpack.c.h.b16 %v568
    %v2831 = vunpack.c.l.b16 %v569
    %v2832 = vunpack.c.h.b16 %v569
    %v2833 = vunpack.c.l.b16 %v570
    %v2834 = vunpack.c.h.b16 %v570
    %v2835 = vunpack.c.l.b16 %v571
    %v2836 = vunpack.c.h.b16 %v571
    %v2837 = vunpack.c.l.b16 %v572
    %v2838 = vunpack.c.h.b16 %v572
    %v2839 = vunpack.c.l.b16 %v573
    %v2840 = vunpack.c.h.b16 %v573
    %v2841 = vunpack.c.l.b16 %v574
    %v2842 = vunpack.c.h.b16 %v574
    %v2843 = vunpack.c.l.b16 %v575
    %v2844 = vunpack.c.h.b16 %v575
    %v2845 = vunpack.c.l.b16 %v576
    %v2846 = vunpack.c.h.b16 %v576
    %v2847 = vunpack.c.l.b16 %v577
    %v2848 = vunpack.c.h.b16 %v577
    %v2849 = vunpack.c.l.b16 %v578
    %v2850 = vunpack.c.h.b16 %v578
    %v2851 = vunpack.c.l.b16 %v579
    %v2852 = vunpack.c.h.b16 %v579
    %v2853 = vunpack.c.l.b16 %v580
    %v2854 = vunpack.c.h.b16 %v580
    %v2855 = vunpack.c.l.b16 %v581
    %v2856 = vunpack.c.h.b16 %v581
    %v2857 = vunpack.c.l.b16 %v582
    %v2858 = vunpack.c.h.b16 %v582
    %v2859 = vunpack.c.l.b16 %v583
    %v2860 = vunpack.c.h.b16 %v583
    %v2861 = vunpack.c.l.b16 %v584
    %v2862 = vunpack.c.h.b16 %v584
    %v2863 = vunpack.c.l.b16 %v585
    %v2864 = vunpack.c.h.b16 %v585
    %v2865 = vunpack.c.l.b16 %v586
    %v2866 = vunpack.c.h.b16 %v586
    %v2867 = vunpack.c.l.b16 %v587
    %v2868 = vunpack.c.h.b16 %v587
    %v2869 = vunpack.c.l.b16 %v588
    %v2870 = vunpack.c.h.b16 %v588
    %v2871 = vunpack.c.l.b16 %v589
    %v2872 = vunpack.c.h.b16 %v589
    %v2873 = vunpack.c.l.b16 %v590
    %v2874 = vunpack.c.h.b16 %v590
    %v2875 = vunpack.c.l.b16 %v591
    %v2876 = vunpack.c.h.b16 %v591
    %v2877 = vunpack.c.l.b16 %v592
    %v2878 = vunpack.c.h.b16 %v592
    %v2879 = vunpack.c.l.b16 %v593
    %v2880 = vunpack.c.h.b16 %v593
    %v2881 = vunpack.c.l.b16 %v594
    %v2882 = vunpack.c.h.b16 %v594
    %v2883 = vunpack.c.l.b16 %v595
    %v2884 = vunpack.c.h.b16 %v595
    %v2885 = vunpack.c.l.b16 %v596
    %v2886 = vunpack.c.h.b16 %v596
    %v2887 = vunpack.c.l.b16 %v597
    %v2888 = vunpack.c.h.b16 %v597
    %v2889 = vunpack.c.l.b16 %v598
    %v2890 = vunpack.c.h.b16 %v598
    %v2891 = vunpack.c.l.b16 %v599
    %v2892 = vunpack.c.h.b16 %v599
    %v2893 = vunpack.c.l.b16 %v600
    %v2894 = vunpack.c.h.b16 %v600
    %v2895 = vunpack.c.l.b16 %v601
    %v2896 = vunpack.c.h.b16 %v601
    %v2897 = vunpack.c.l.b16 %v602
    %v2898 = vunpack.c.h.b16 %v602
    %v2899 = vunpack.c.l.b16 %v603
    %v2900 = vunpack.c.h.b16 %v603
    %v2901 = vunpack.c.l.b16 %v604
    %v2902 = vunpack.c.h.b16 %v604
    %v2903 = vunpack.c.l.b16 %v605
    %v2904 = vunpack.c.h.b16 %v605
    %v2905 = vunpack.c.l.b16 %v606
    %v2906 = vunpack.c.h.b16 %v606
    %v2907 = vunpack.c.l.b16 %v607
    %v2908 = vunpack.c.h.b16 %v607
    %v2909 = vunpack.c.l.b16 %v608
    %v2910 = vunpack.c.h.b16 %v608
    %v2911 = vunpack.c.l.b16 %v609
    %v2912 = vunpack.c.h.b16 %v609
    %v2913 = vunpack.c.l.b16 %v610
    %v2914 = vunpack.c.h.b16 %v610
    %v2915 = vunpack.c.l.b16 %v611
    %v2916 = vunpack.c.h.b16 %v611
    %v2917 = vunpack.c.l.b16 %v612
    %v2918 = vunpack.c.h.b16 %v612
    %v2919 = vunpack.c.l.b16 %v613
    %v2920 = vunpack.c.h.b16 %v613
    %v2921 = vunpack.c.l.b16 %v614
    %v2922 = vunpack.c.h.b16 %v614
    %v2923 = vunpack.c.l.b16 %v615
    %v2924 = vunpack.c.h.b16 %v615
    %v2925 = vunpack.c.l.b16 %v616
    %v2926 = vunpack.c.h.b16 %v616
    %v2927 = vunpack.c.l.b16 %v617
    %v2928 = vunpack.c.h.b16 %v617
    %v2929 = vunpack.c.l.b16 %v618
    %v2930 = vunpack.c.h.b16 %v618
    %v2931 = vunpack.c.l.b16 %v619
    %v2932 = vunpack.c.h.b16 %v619
    %v2933 = vunpack.c.l.b16 %v620
    %v2934 = vunpack.c.h.b16 %v620
    %v2935 = vunpack.c.l.b16 %v621
    %v2936 = vunpack.c.h.b16 %v621
    %v2937 = vunpack.c.l.b16 %v622
    %v2938 = vunpack.c.h.b16 %v622
    %v2939 = vunpack.c.l.b16 %v623
    %v2940 = vunpack.c.h.b16 %v623
    %v2941 = vunpack.c.l.b16 %v624
    %v2942 = vunpack.c.h.b16 %v624
    %v2943 = vunpack.c.l.b16 %v625
    %v2944 = vunpack.c.h.b16 %v625
    %v2945 = vunpack.c.l.b16 %v626
    %v2946 = vunpack.c.h.b16 %v626
    %v2947 = vunpack.c.l.b16 %v627
    %v2948 = vunpack.c.h.b16 %v627
    %v2949 = vunpack.c.l.b16 %v628
    %v2950 = vunpack.c.h.b16 %v628
    %v2951 = vunpack.c.l.b16 %v629
    %v2952 = vunpack.c.h.b16 %v629
    %v2953 = vunpack.c.l.b16 %v630
    %v2954 = vunpack.c.h.b16 %v630
    %v2955 = vunpack.c.l.b16 %v631
    %v2956 = vunpack.c.h.b16 %v631
    %v2957 = vunpack.c.l.b16 %v632
    %v2958 = vunpack.c.h.b16 %v632
    %v2959 = vunpack.c.l.b16 %v633
    %v2960 = vunpack.c.h.b16 %v633
    %v2961 = vunpack.c.l.b16 %v634
    %v2962 = vunpack.c.h.b16 %v634
    %v2963 = vunpack.c.l.b16 %v635
    %v2964 = vunpack.c.h.b16 %v635
    %v2965 = vunpack.c.l.b16 %v636
    %v2966 = vunpack.c.h.b16 %v636
    %v2967 = vunpack.c.l.b16 %v637
    %v2968 = vunpack.c.h.b16 %v637
    %v2969 = vunpack.c.l.b16 %v638
    %v2970 = vunpack.c.h.b16 %v638
    %v2971 = vunpack.c.l.b16 %v639
    %v2972 = vunpack.c.h.b16 %v639
    %v2973 = vunpack.c.l.b16 %v640
    %v2974 = vunpack.c.h.b16 %v640
    %v2975 = vunpack.c.l.b16 %v641
    %v2976 = vunpack.c.h.b16 %v641
    %v2977 = vunpack.c.l.b16 %v642
    %v2978 = vunpack.c.h.b16 %v642
    %v2979 = vunpack.c.l.b16 %v643
    %v2980 = vunpack.c.h.b16 %v643
    %v2981 = vunpack.c.l.b16 %v644
    %v2982 = vunpack.c.h.b16 %v644
    %v2983 = vunpack.c.l.b16 %v645
    %v2984 = vunpack.c.h.b16 %v645
    %v2985 = vunpack.c.l.b16 %v646
    %v2986 = vunpack.c.h.b16 %v646
    %v2987 = vunpack.c.l.b16 %v647
    %v2988 = vunpack.c.h.b16 %v647
    %v2989 = vunpack.c.l.b16 %v648
    %v2990 = vunpack.c.h.b16 %v648
    %v2991 = vunpack.c.l.b16 %v649
    %v2992 = vunpack.c.h.b16 %v649
    %v2993 = vunpack.c.l.b16 %v650
    %v2994 = vunpack.c.h.b16 %v650
    %v2995 = vunpack.c.l.b16 %v651
    %v2996 = vunpack.c.h.b16 %v651
    %v2997 = vunpack.c.l.b16 %v652
    %v2998 = vunpack.c.h.b16 %v652
    %v2999 = vunpack.c.l.b16 %v653
    %v3000 = vunpack.c.h.b16 %v653
    %v3001 = vunpack.c.l.b16 %v654
    %v3002 = vunpack.c.h.b16 %v654
    %v3003 = vunpack.c.l.b16 %v655
    %v3004 = vunpack.c.h.b16 %v655
    %v3005 = vunpack.c.l.b16 %v656
    %v3006 = vunpack.c.h.b16 %v656
    %v3007 = vunpack.c.l.b16 %v657
    %v3008 = vunpack.c.h.b16 %v657
    %v3009 = vunpack.c.l.b16 %v658
    %v3010 = vunpack.c.h.b16 %v658
    %v3011 = vunpack.c.l.b16 %v659
    %v3012 = vunpack.c.h.b16 %v659
    %v3013 = vunpack.c.l.b16 %v660
    %v3014 = vunpack.c.h.b16 %v660
    %v3015 = vunpack.c.l.b16 %v661
    %v3016 = vunpack.c.h.b16 %v661
    %v3017 = vunpack.c.l.b16 %v662
    %v3018 = vunpack.c.h.b16 %v662
    %v3019 = vunpack.c.l.b16 %v663
    %v3020 = vunpack.c.h.b16 %v663
    %v3021 = vunpack.c.l.b16 %v664
    %v3022 = vunpack.c.h.b16 %v664
    %v3023 = vunpack.c.l.b16 %v665
    %v3024 = vunpack.c.h.b16 %v665
    %v3025 = vunpack.c.l.b16 %v666
    %v3026 = vunpack.c.h.b16 %v666
    %v3027 = vunpack.c.l.b16 %v667
    %v3028 = vunpack.c.h.b16 %v667
    %v3029 = vunpack.c.l.b16 %v668
    %v3030 = vunpack.c.h.b16 %v668
    %v3031 = vunpack.c.l.b16 %v669
    %v3032 = vunpack.c.h.b16 %v669
    %v3033 = vunpack.c.l.b16 %v670
    %v3034 = vunpack.c.h.b16 %v670
    %v3035 = vunpack.c.l.b16 %v671
    %v3036 = vunpack.c.h.b16 %v671
    %v3037 = vunpack.c.l.b16 %v672
    %v3038 = vunpack.c.h.b16 %v672
    %v3039 = vunpack.c.l.b16 %v673
    %v3040 = vunpack.c.h.b16 %v673
    %v3041 = vunpack.c.l.b16 %v674
    %v3042 = vunpack.c.h.b16 %v674
    %v3043 = vunpack.c.l.b16 %v675
    %v3044 = vunpack.c.h.b16 %v675
    %v3045 = vunpack.c.l.b16 %v676
    %v3046 = vunpack.c.h.b16 %v676
    %v3047 = vunpack.c.l.b16 %v677
    %v3048 = vunpack.c.h.b16 %v677
    %v3049 = vunpack.c.l.b16 %v678
    %v3050 = vunpack.c.h.b16 %v678
    %v3051 = vunpack.c.l.b16 %v679
    %v3052 = vunpack.c.h.b16 %v679
    %v3053 = vunpack.c.l.b16 %v680
    %v3054 = vunpack.c.h.b16 %v680
    %v3055 = vunpack.c.l.b16 %v681
    %v3056 = vunpack.c.h.b16 %v681
    %v3057 = vunpack.c.l.b16 %v682
    %v3058 = vunpack.c.h.b16 %v682
    %v3059 = vunpack.c.l.b16 %v683
    %v3060 = vunpack.c.h.b16 %v683
    %v3061 = vunpack.c.l.b16 %v684
    %v3062 = vunpack.c.h.b16 %v684
    %v3063 = vunpack.c.l.b16 %v685
    %v3064 = vunpack.c.h.b16 %v685
    %v3065 = vunpack.c.l.b16 %v686
    %v3066 = vunpack.c.h.b16 %v686
    %v3067 = vunpack.c.l.b16 %v687
    %v3068 = vunpack.c.h.b16 %v687
    %v3069 = vunpack.c.l.b16 %v688
    %v3070 = vunpack.c.h.b16 %v688
    %v3071 = vunpack.c.l.b16 %v689
    %v3072 = vunpack.c.h.b16 %v689
    %v3073 = vunpack.c.l.b16 %v690
    %v3074 = vunpack.c.h.b16 %v690
    %v3075 = vunpack.c.l.b16 %v691
    %v3076 = vunpack.c.h.b16 %v691
    %v3077 = vunpack.c.l.b16 %v692
    %v3078 = vunpack.c.h.b16 %v692
    %v3079 = vunpack.c.l.b16 %v693
    %v3080 = vunpack.c.h.b16 %v693
    %v3081 = vunpack.c.l.b16 %v694
    %v3082 = vunpack.c.h.b16 %v694
    %v3083 = vunpack.c.l.b16 %v695
    %v3084 = vunpack.c.h.b16 %v695
    %v3085 = vunpack.c.l.b16 %v696
    %v3086 = vunpack.c.h.b16 %v696
    %v3087 = vunpack.c.l.b16 %v697
    %v3088 = vunpack.c.h.b16 %v697
    %v3089 = vunpack.c.l.b16 %v698
    %v3090 = vunpack.c.h.b16 %v698
    %v3091 = vunpack.c.l.b16 %v699
    %v3092 = vunpack.c.h.b16 %v699
    %v3093 = vunpack.c.l.b16 %v700
    %v3094 = vunpack.c.h.b16 %v700
    %v3095 = vunpack.c.l.b16 %v701
    %v3096 = vunpack.c.h.b16 %v701
    %v3097 = vunpack.c.l.b16 %v702
    %v3098 = vunpack.c.h.b16 %v702
    %v3099 = vunpack.c.l.b16 %v703
    %v3100 = vunpack.c.h.b16 %v703
    %v3101 = vunpack.c.l.b16 %v704
    %v3102 = vunpack.c.h.b16 %v704
    %v3103 = vunpack.c.l.b16 %v705
    %v3104 = vunpack.c.h.b16 %v705
    %v3105 = vunpack.c.l.b16 %v706
    %v3106 = vunpack.c.h.b16 %v706
    %v3107 = vunpack.c.l.b16 %v707
    %v3108 = vunpack.c.h.b16 %v707
    %v3109 = vunpack.c.l.b16 %v708
    %v3110 = vunpack.c.h.b16 %v708
    %v3111 = vunpack.c.l.b16 %v709
    %v3112 = vunpack.c.h.b16 %v709
    %v3113 = vunpack.c.l.b16 %v710
    %v3114 = vunpack.c.h.b16 %v710
    %v3115 = vunpack.c.l.b16 %v711
    %v3116 = vunpack.c.h.b16 %v711
    %v3117 = vunpack.c.l.b16 %v712
    %v3118 = vunpack.c.h.b16 %v712
    %v3119 = vunpack.c.l.b16 %v713
    %v3120 = vunpack.c.h.b16 %v713
    %v3121 = vunpack.c.l.b16 %v714
    %v3122 = vunpack.c.h.b16 %v714
    %v3123 = vunpack.c.l.b16 %v715
    %v3124 = vunpack.c.h.b16 %v715
    %v3125 = vunpack.c.l.b16 %v716
    %v3126 = vunpack.c.h.b16 %v716
    %v3127 = vunpack.c.l.b16 %v717
    %v3128 = vunpack.c.h.b16 %v717
    %v3129 = vunpack.c.l.b16 %v718
    %v3130 = vunpack.c.h.b16 %v718
    %v3131 = vunpack.c.l.b16 %v719
    %v3132 = vunpack.c.h.b16 %v719
    %v3133 = vunpack.c.l.b16 %v720
    %v3134 = vunpack.c.h.b16 %v720
    %v3135 = vunpack.c.l.b16 %v721
    %v3136 = vunpack.c.h.b16 %v721
    %v3137 = vunpack.c.l.b16 %v722
    %v3138 = vunpack.c.h.b16 %v722
    %v3139 = vunpack.c.l.b16 %v723
    %v3140 = vunpack.c.h.b16 %v723
    %v3141 = vunpack.c.l.b16 %v724
    %v3142 = vunpack.c.h.b16 %v724
    %v3143 = vunpack.c.l.b16 %v725
    %v3144 = vunpack.c.h.b16 %v725
    %v3145 = vunpack.c.l.b16 %v726
    %v3146 = vunpack.c.h.b16 %v726
    %v3147 = vunpack.c.l.b16 %v727
    %v3148 = vunpack.c.h.b16 %v727
    %v3149 = vunpack.c.l.b16 %v728
    %v3150 = vunpack.c.h.b16 %v728
    %v3151 = vunpack.c.l.b16 %v729
    %v3152 = vunpack.c.h.b16 %v729
    %v3153 = vunpack.c.l.b16 %v730
    %v3154 = vunpack.c.h.b16 %v730
    %v3155 = vunpack.c.l.b16 %v731
    %v3156 = vunpack.c.h.b16 %v731
    %v3157 = vunpack.c.l.b16 %v732
    %v3158 = vunpack.c.h.b16 %v732
    %v3159 = vunpack.c.l.b16 %v733
    %v3160 = vunpack.c.h.b16 %v733
    %v3161 = vunpack.c.l.b16 %v734
    %v3162 = vunpack.c.h.b16 %v734
    %v3163 = vunpack.c.l.b16 %v735
    %v3164 = vunpack.c.h.b16 %v735
    %v3165 = vunpack.c.l.b16 %v736
    %v3166 = vunpack.c.h.b16 %v736
    %v3167 = vunpack.c.l.b16 %v737
    %v3168 = vunpack.c.h.b16 %v737
    %v3169 = vunpack.c.l.b16 %v738
    %v3170 = vunpack.c.h.b16 %v738
    %v3171 = vunpack.c.l.b16 %v739
    %v3172 = vunpack.c.h.b16 %v739
    %v3173 = vunpack.c.l.b16 %v740
    %v3174 = vunpack.c.h.b16 %v740
    %v3175 = vunpack.c.l.b16 %v741
    %v3176 = vunpack.c.h.b16 %v741
    %v3177 = vunpack.c.l.b16 %v742
    %v3178 = vunpack.c.h.b16 %v742
    %v3179 = vunpack.c.l.b16 %v743
    %v3180 = vunpack.c.h.b16 %v743
    %v3181 = vunpack.c.l.b16 %v744
    %v3182 = vunpack.c.h.b16 %v744
    %v3183 = vunpack.c.l.b16 %v745
    %v3184 = vunpack.c.h.b16 %v745
    %v3185 = vunpack.c.l.b16 %v746
    %v3186 = vunpack.c.h.b16 %v746
    %v3187 = vunpack.c.l.b16 %v747
    %v3188 = vunpack.c.h.b16 %v747
    %v3189 = vunpack.c.l.b16 %v748
    %v3190 = vunpack.c.h.b16 %v748
    %v3191 = vunpack.c.l.b16 %v749
    %v3192 = vunpack.c.h.b16 %v749
    %v3193 = vunpack.c.l.b16 %v750
    %v3194 = vunpack.c.h.b16 %v750
    %v3195 = vunpack.c.l.b16 %v751
    %v3196 = vunpack.c.h.b16 %v751
    %v3197 = vunpack.c.l.b16 %v752
    %v3198 = vunpack.c.h.b16 %v752
    %v3199 = vunpack.c.l.b16 %v753
    %v3200 = vunpack.c.h.b16 %v753
    %v3201 = vunpack.c.l.b16 %v754
    %v3202 = vunpack.c.h.b16 %v754
    %v3203 = vunpack.c.l.b16 %v755
    %v3204 = vunpack.c.h.b16 %v755
    %v3205 = vunpack.c.l.b16 %v756
    %v3206 = vunpack.c.h.b16 %v756
    %v3207 = vunpack.c.l.b16 %v757
    %v3208 = vunpack.c.h.b16 %v757
    %v3209 = vunpack.c.l.b16 %v758
    %v3210 = vunpack.c.h.b16 %v758
    %v3211 = vunpack.c.l.b16 %v759
    %v3212 = vunpack.c.h.b16 %v759
    %v3213 = vunpack.c.l.b16 %v760
    %v3214 = vunpack.c.h.b16 %v760
    %v3215 = vunpack.c.l.b16 %v761
    %v3216 = vunpack.c.h.b16 %v761
    %v3217 = vunpack.c.l.b16 %v762
    %v3218 = vunpack.c.h.b16 %v762
    %v3219 = vunpack.c.l.b16 %v763
    %v3220 = vunpack.c.h.b16 %v763
    %v3221 = vunpack.c.l.b16 %v764
    %v3222 = vunpack.c.h.b16 %v764
    %v3223 = vunpack.c.l.b16 %v765
    %v3224 = vunpack.c.h.b16 %v765
    %v3225 = vunpack.c.l.b16 %v766
    %v3226 = vunpack.c.h.b16 %v766
    %v3227 = vunpack.c.l.b16 %v767
    %v3228 = vunpack.c.h.b16 %v767
    %v3229 = vunpack.c.l.b16 %v768
    %v3230 = vunpack.c.h.b16 %v768
    %v3231 = vunpack.c.l.b16 %v769
    %v3232 = vunpack.c.h.b16 %v769
    %v3233 = vunpack.c.l.b16 %v770
    %v3234 = vunpack.c.h.b16 %v770
    %v3235 = vunpack.c.l.b16 %v771
    %v3236 = vunpack.c.h.b16 %v771
    %v3237 = vunpack.c.l.b16 %v772
    %v3238 = vunpack.c.h.b16 %v772
    %v3239 = vunpack.c.l.b16 %v773
    %v3240 = vunpack.c.h.b16 %v773
    %v3241 = vunpack.c.l.b16 %v774
    %v3242 = vunpack.c.h.b16 %v774
    %v3243 = vunpack.c.l.b16 %v775
    %v3244 = vunpack.c.h.b16 %v775
    %v3245 = vunpack.c.l.b16 %v776
    %v3246 = vunpack.c.h.b16 %v776
    %v3247 = vunpack.c.l.b16 %v777
    %v3248 = vunpack.c.h.b16 %v777
    %v3249 = vunpack.c.l.b16 %v778
    %v3250 = vunpack.c.h.b16 %v778
    %v3251 = vunpack.c.l.b16 %v779
    %v3252 = vunpack.c.h.b16 %v779
    %v3253 = vunpack.c.l.b16 %v780
    %v3254 = vunpack.c.h.b16 %v780
    %v3255 = vunpack.c.l.b16 %v781
    %v3256 = vunpack.c.h.b16 %v781
    %v3257 = vunpack.c.l.b16 %v782
    %v3258 = vunpack.c.h.b16 %v782
    %v3259 = vunpack.c.l.b16 %v783
    %v3260 = vunpack.c.h.b16 %v783
    %v3261 = vunpack.c.l.b16 %v784
    %v3262 = vunpack.c.h.b16 %v784
    %v3263 = vunpack.c.l.b16 %v785
    %v3264 = vunpack.c.h.b16 %v785
    %v3265 = vunpack.c.l.b16 %v786
    %v3266 = vunpack.c.h.b16 %v786
    %v3267 = vunpack.c.l.b16 %v787
    %v3268 = vunpack.c.h.b16 %v787
    %v3269 = vunpack.c.l.b16 %v788
    %v3270 = vunpack.c.h.b16 %v788
    %v3271 = vunpack.c.l.b16 %v789
    %v3272 = vunpack.c.h.b16 %v789
    %v3273 = vunpack.c.l.b16 %v790
    %v3274 = vunpack.c.h.b16 %v790
    %v3275 = vunpack.c.l.b16 %v791
    %v3276 = vunpack.c.h.b16 %v791
    %v3277 = vunpack.c.l.b16 %v792
    %v3278 = vunpack.c.h.b16 %v792
    %v3279 = vunpack.c.l.b16 %v793
    %v3280 = vunpack.c.h.b16 %v793
    %v3281 = vunpack.c.l.b16 %v794
    %v3282 = vunpack.c.h.b16 %v794
    %v3283 = vunpack.c.l.b16 %v795
    %v3284 = vunpack.c.h.b16 %v795
    %v3285 = vunpack.c.l.b16 %v796
    %v3286 = vunpack.c.h.b16 %v796
    %v3287 = vunpack.c.l.b16 %v797
    %v3288 = vunpack.c.h.b16 %v797
    %v3289 = vunpack.c.l.b16 %v798
    %v3290 = vunpack.c.h.b16 %v798
    %v3291 = vunpack.c.l.b16 %v799
    %v3292 = vunpack.c.h.b16 %v799
    %v3293 = vunpack.c.l.b16 %v800
    %v3294 = vunpack.c.h.b16 %v800
    %v3295 = vunpack.c.l.b16 %v801
    %v3296 = vunpack.c.h.b16 %v801
    %v3297 = vunpack.c.l.b16 %v802
    %v3298 = vunpack.c.h.b16 %v802
    %v3299 = vunpack.c.l.b16 %v803
    %v3300 = vunpack.c.h.b16 %v803
    %v3301 = vunpack.c.l.b16 %v804
    %v3302 = vunpack.c.h.b16 %v804
    %v3303 = vunpack.c.l.b16 %v805
    %v3304 = vunpack.c.h.b16 %v805
    %v3305 = vunpack.c.l.b16 %v806
    %v3306 = vunpack.c.h.b16 %v806
    %v3307 = vunpack.c.l.b16 %v807
    %v3308 = vunpack.c.h.b16 %v807
    %v3309 = vunpack.c.l.b16 %v808
    %v3310 = vunpack.c.h.b16 %v808
    %v3311 = vunpack.c.l.b16 %v809
    %v3312 = vunpack.c.h.b16 %v809
    %v3313 = vunpack.c.l.b16 %v810
    %v3314 = vunpack.c.h.b16 %v810
    %v3315 = vunpack.c.l.b16 %v811
    %v3316 = vunpack.c.h.b16 %v811
    %v3317 = vunpack.c.l.b16 %v812
    %v3318 = vunpack.c.h.b16 %v812
    %v3319 = vunpack.c.l.b16 %v813
    %v3320 = vunpack.c.h.b16 %v813
    %v3321 = vunpack.c.l.b16 %v814
    %v3322 = vunpack.c.h.b16 %v814
    %v3323 = vunpack.c.l.b16 %v815
    %v3324 = vunpack.c.h.b16 %v815
    %v3325 = vunpack.c.l.b16 %v816
    %v3326 = vunpack.c.h.b16 %v816
    %v3327 = vunpack.c.l.b16 %v817
    %v3328 = vunpack.c.h.b16 %v817
    %v3329 = vunpack.c.l.b16 %v818
    %v3330 = vunpack.c.h.b16 %v818
    %v3331 = vunpack.c.l.b16 %v819
    %v3332 = vunpack.c.h.b16 %v819
    %v3333 = vunpack.c.l.b16 %v820
    %v3334 = vunpack.c.h.b16 %v820
    %v3335 = vunpack.c.l.b16 %v821
    %v3336 = vunpack.c.h.b16 %v821
    %v3337 = vunpack.c.l.b16 %v822
    %v3338 = vunpack.c.h.b16 %v822
    %v3339 = vunpack.c.l.b16 %v823
    %v3340 = vunpack.c.h.b16 %v823
    %v3341 = vunpack.c.l.b16 %v824
    %v3342 = vunpack.c.h.b16 %v824
    %v3343 = vunpack.c.l.b16 %v825
    %v3344 = vunpack.c.h.b16 %v825
    %v3345 = vunpack.c.l.b16 %v826
    %v3346 = vunpack.c.h.b16 %v826
    %v3347 = vunpack.c.l.b16 %v827
    %v3348 = vunpack.c.h.b16 %v827
    %v3349 = vunpack.c.l.b16 %v828
    %v3350 = vunpack.c.h.b16 %v828
    %v3351 = vunpack.c.l.b16 %v829
    %v3352 = vunpack.c.h.b16 %v829
    %v3353 = vunpack.c.l.b16 %v830
    %v3354 = vunpack.c.h.b16 %v830
    %v3355 = vunpack.c.l.b16 %v831
    %v3356 = vunpack.c.h.b16 %v831
    %v3357 = vunpack.c.l.b16 %v832
    %v3358 = vunpack.c.h.b16 %v832
    %v3359 = vunpack.c.l.b16 %v833
    %v3360 = vunpack.c.h.b16 %v833
    %v3361 = vunpack.c.l.b16 %v834
    %v3362 = vunpack.c.h.b16 %v834
    %v3363 = vunpack.c.l.b16 %v835
    %v3364 = vunpack.c.h.b16 %v835
    %v3365 = vunpack.c.l.b16 %v836
    %v3366 = vunpack.c.h.b16 %v836
    %v3367 = vunpack.c.l.b16 %v837
    %v3368 = vunpack.c.h.b16 %v837
    %v3369 = vunpack.c.l.b16 %v838
    %v3370 = vunpack.c.h.b16 %v838
    %v3371 = vunpack.c.l.b16 %v839
    %v3372 = vunpack.c.h.b16 %v839
    %v3373 = vunpack.c.l.b16 %v840
    %v3374 = vunpack.c.h.b16 %v840
    %v3375 = vunpack.c.l.b16 %v841
    %v3376 = vunpack.c.h.b16 %v841
    %v3377 = vunpack.c.l.b16 %v842
    %v3378 = vunpack.c.h.b16 %v842
    %v3379 = vunpack.c.l.b16 %v843
    %v3380 = vunpack.c.h.b16 %v843
    %v3381 = vunpack.c.l.b16 %v844
    %v3382 = vunpack.c.h.b16 %v844
    %v3383 = vunpack.c.l.b16 %v845
    %v3384 = vunpack.c.h.b16 %v845
    %v3385 = vunpack.c.l.b16 %v846
    %v3386 = vunpack.c.h.b16 %v846
    %v3387 = vunpack.c.l.b16 %v847
    %v3388 = vunpack.c.h.b16 %v847
    %v3389 = vunpack.c.l.b16 %v848
    %v3390 = vunpack.c.h.b16 %v848
    %v3391 = vunpack.c.l.b16 %v849
    %v3392 = vunpack.c.h.b16 %v849
    %v3393 = vunpack.c.l.b16 %v850
    %v3394 = vunpack.c.h.b16 %v850
    %v3395 = vunpack.c.l.b16 %v851
    %v3396 = vunpack.c.h.b16 %v851
    %v3397 = vunpack.c.l.b16 %v852
    %v3398 = vunpack.c.h.b16 %v852
    %v3399 = vunpack.c.l.b16 %v853
    %v3400 = vunpack.c.h.b16 %v853
    %v3401 = vunpack.c.l.b16 %v854
    %v3402 = vunpack.c.h.b16 %v854
    %v3403 = vunpack.c.l.b16 %v855
    %v3404 = vunpack.c.h.b16 %v855
    %v3405 = vunpack.c.l.b16 %v856
    %v3406 = vunpack.c.h.b16 %v856
    %v3407 = vunpack.c.l.b16 %v857
    %v3408 = vunpack.c.h.b16 %v857
    %v3409 = vunpack.c.l.b16 %v858
    %v3410 = vunpack.c.h.b16 %v858
    %v3411 = vunpack.c.l.b16 %v859
    %v3412 = vunpack.c.h.b16 %v859
    %v3413 = vunpack.c.l.b16 %v860
    %v3414 = vunpack.c.h.b16 %v860
    %v3415 = vunpack.c.l.b16 %v861
    %v3416 = vunpack.c.h.b16 %v861
    %v3417 = vunpack.c.l.b16 %v862
    %v3418 = vunpack.c.h.b16 %v862
    %v3419 = vunpack.c.l.b16 %v863
    %v3420 = vunpack.c.h.b16 %v863
    %v3421 = vunpack.c.l.b16 %v864
    %v3422 = vunpack.c.h.b16 %v864
    %v3423 = vunpack.c.l.b16 %v865
    %v3424 = vunpack.c.h.b16 %v865
    %v3425 = vunpack.c.l.b16 %v866
    %v3426 = vunpack.c.h.b16 %v866
    %v3427 = vunpack.c.l.b16 %v867
    %v3428 = vunpack.c.h.b16 %v867
    %v3429 = vunpack.c.l.b16 %v868
    %v3430 = vunpack.c.h.b16 %v868
    %v3431 = vunpack.c.l.b16 %v869
    %v3432 = vunpack.c.h.b16 %v869
    %v3433 = vunpack.c.l.b16 %v870
    %v3434 = vunpack.c.h.b16 %v870
    %v3435 = vunpack.c.l.b16 %v871
    %v3436 = vunpack.c.h.b16 %v871
    %v3437 = vunpack.c.l.b16 %v872
    %v3438 = vunpack.c.h.b16 %v872
    %v3439 = vunpack.c.l.b16 %v873
    %v3440 = vunpack.c.h.b16 %v873
    %v3441 = vunpack.c.l.b16 %v874
    %v3442 = vunpack.c.h.b16 %v874
    %v3443 = vunpack.c.l.b16 %v875
    %v3444 = vunpack.c.h.b16 %v875
    %v3445 = vunpack.c.l.b16 %v876
    %v3446 = vunpack.c.h.b16 %v876
    %v3447 = vunpack.c.l.b16 %v877
    %v3448 = vunpack.c.h.b16 %v877
    %v3449 = vunpack.c.l.b16 %v878
    %v3450 = vunpack.c.h.b16 %v878
    %v3451 = vunpack.c.l.b16 %v879
    %v3452 = vunpack.c.h.b16 %v879
    %v3453 = vunpack.c.l.b16 %v880
    %v3454 = vunpack.c.h.b16 %v880
    %v3455 = vunpack.c.l.b16 %v881
    %v3456 = vunpack.c.h.b16 %v881
    %v3457 = vunpack.c.l.b16 %v882
    %v3458 = vunpack.c.h.b16 %v882
    %v3459 = vunpack.c.l.b16 %v883
    %v3460 = vunpack.c.h.b16 %v883
    %v3461 = vunpack.c.l.b16 %v884
    %v3462 = vunpack.c.h.b16 %v884
    %v3463 = vunpack.c.l.b16 %v885
    %v3464 = vunpack.c.h.b16 %v885
    %v3465 = vunpack.c.l.b16 %v886
    %v3466 = vunpack.c.h.b16 %v886
    %v3467 = vunpack.c.l.b16 %v887
    %v3468 = vunpack.c.h.b16 %v887
    %v3469 = vunpack.c.l.b16 %v888
    %v3470 = vunpack.c.h.b16 %v888
    %v3471 = vunpack.c.l.b16 %v889
    %v3472 = vunpack.c.h.b16 %v889
    %v3473 = vunpack.c.l.b16 %v890
    %v3474 = vunpack.c.h.b16 %v890
    %v3475 = vunpack.c.l.b16 %v891
    %v3476 = vunpack.c.h.b16 %v891
    %v3477 = vunpack.c.l.b16 %v892
    %v3478 = vunpack.c.h.b16 %v892
    %v3479 = vunpack.c.l.b16 %v893
    %v3480 = vunpack.c.h.b16 %v893
    %v3481 = vunpack.c.l.b16 %v894
    %v3482 = vunpack.c.h.b16 %v894
    %v3483 = vunpack.c.l.b16 %v895
    %v3484 = vunpack.c.h.b16 %v895
    %v3485 = vunpack.c.l.b16 %v896
    %v3486 = vunpack.c.h.b16 %v896
    %v3487 = vunpack.c.l.b16 %v897
    %v3488 = vunpack.c.h.b16 %v897
    %v3489 = vunpack.c.l.b16 %v898
    %v3490 = vunpack.c.h.b16 %v898
    %v3491 = vunpack.c.l.b16 %v899
    %v3492 = vunpack.c.h.b16 %v899
    %v3493 = vunpack.c.l.b16 %v900
    %v3494 = vunpack.c.h.b16 %v900
    %v3495 = vunpack.c.l.b16 %v901
    %v3496 = vunpack.c.h.b16 %v901
    %v3497 = vunpack.c.l.b16 %v902
    %v3498 = vunpack.c.h.b16 %v902
    %v3499 = vunpack.c.l.b16 %v903
    %v3500 = vunpack.c.h.b16 %v903
    %v3501 = vunpack.c.l.b16 %v904
    %v3502 = vunpack.c.h.b16 %v904
    %v3503 = vunpack.c.l.b16 %v905
    %v3504 = vunpack.c.h.b16 %v905
    %v3505 = vunpack.c.l.b16 %v906
    %v3506 = vunpack.c.h.b16 %v906
    %v3507 = vunpack.c.l.b16 %v907
    %v3508 = vunpack.c.h.b16 %v907
    %v3509 = vunpack.c.l.b16 %v908
    %v3510 = vunpack.c.h.b16 %v908
    %v3511 = vunpack.c.l.b16 %v909
    %v3512 = vunpack.c.h.b16 %v909
    %v3513 = vunpack.c.l.b16 %v910
    %v3514 = vunpack.c.h.b16 %v910
    %v3515 = vunpack.c.l.b16 %v911
    %v3516 = vunpack.c.h.b16 %v911
    %v3517 = vunpack.c.l.b16 %v912
    %v3518 = vunpack.c.h.b16 %v912
    %v3519 = vunpack.c.l.b16 %v913
    %v3520 = vunpack.c.h.b16 %v913
    %v3521 = vunpack.c.l.b16 %v914
    %v3522 = vunpack.c.h.b16 %v914
    %v3523 = vunpack.c.l.b16 %v915
    %v3524 = vunpack.c.h.b16 %v915
    %v3525 = vunpack.c.l.b16 %v916
    %v3526 = vunpack.c.h.b16 %v916
    %v3527 = vunpack.c.l.b16 %v917
    %v3528 = vunpack.c.h.b16 %v917
    %v3529 = vunpack.c.l.b16 %v918
    %v3530 = vunpack.c.h.b16 %v918
    %v3531 = vunpack.c.l.b16 %v919
    %v3532 = vunpack.c.h.b16 %v919
    %v3533 = vunpack.c.l.b16 %v920
    %v3534 = vunpack.c.h.b16 %v920
    %v3535 = vunpack.c.l.b16 %v921
    %v3536 = vunpack.c.h.b16 %v921
    %v3537 = vunpack.c.l.b16 %v922
    %v3538 = vunpack.c.h.b16 %v922
    %v3539 = vunpack.c.l.b16 %v923
    %v3540 = vunpack.c.h.b16 %v923
    %v3541 = vunpack.c.l.b16 %v924
    %v3542 = vunpack.c.h.b16 %v924
    %v3543 = vunpack.c.l.b16 %v925
    %v3544 = vunpack.c.h.b16 %v925
    %v3545 = vunpack.c.l.b16 %v926
    %v3546 = vunpack.c.h.b16 %v926
    %v3547 = vunpack.c.l.b16 %v927
    %v3548 = vunpack.c.h.b16 %v927
    %v3549 = vunpack.c.l.b16 %v928
    %v3550 = vunpack.c.h.b16 %v928
    %v3551 = vunpack.c.l.b16 %v929
    %v3552 = vunpack.c.h.b16 %v929
    %v3553 = vunpack.c.l.b16 %v930
    %v3554 = vunpack.c.h.b16 %v930
    %v3555 = vunpack.c.l.b16 %v931
    %v3556 = vunpack.c.h.b16 %v931
    %v3557 = vunpack.c.l.b16 %v932
    %v3558 = vunpack.c.h.b16 %v932
    %v3559 = vunpack.c.l.b16 %v933
    %v3560 = vunpack.c.h.b16 %v933
    %v3561 = vunpack.c.l.b16 %v934
    %v3562 = vunpack.c.h.b16 %v934
    %v3563 = vunpack.c.l.b16 %v935
    %v3564 = vunpack.c.h.b16 %v935
    %v3565 = vunpack.c.l.b16 %v936
    %v3566 = vunpack.c.h.b16 %v936
    %v3567 = vunpack.c.l.b16 %v937
    %v3568 = vunpack.c.h.b16 %v937
    %v3569 = vunpack.c.l.b16 %v938
    %v3570 = vunpack.c.h.b16 %v938
    %v3571 = vunpack.c.l.b16 %v939
    %v3572 = vunpack.c.h.b16 %v939
    %v3573 = vunpack.c.l.b16 %v940
    %v3574 = vunpack.c.h.b16 %v940
    %v3575 = vunpack.c.l.b16 %v941
    %v3576 = vunpack.c.h.b16 %v941
    %v3577 = vunpack.c.l.b16 %v942
    %v3578 = vunpack.c.h.b16 %v942
    %v3579 = vunpack.c.l.b16 %v943
    %v3580 = vunpack.c.h.b16 %v943
    %v3581 = vunpack.c.l.b16 %v944
    %v3582 = vunpack.c.h.b16 %v944
    %v3583 = vunpack.c.l.b16 %v945
    %v3584 = vunpack.c.h.b16 %v945
    %v3585 = vunpack.c.l.b16 %v946
    %v3586 = vunpack.c.h.b16 %v946
    %v3587 = vunpack.c.l.b16 %v947
    %v3588 = vunpack.c.h.b16 %v947
    %v3589 = vunpack.c.l.b16 %v948
    %v3590 = vunpack.c.h.b16 %v948
    %v3591 = vunpack.c.l.b16 %v949
    %v3592 = vunpack.c.h.b16 %v949
    %v3593 = vunpack.c.l.b16 %v950
    %v3594 = vunpack.c.h.b16 %v950
    %v3595 = vunpack.c.l.b16 %v951
    %v3596 = vunpack.c.h.b16 %v951
    %v3597 = vunpack.c.l.b16 %v952
    %v3598 = vunpack.c.h.b16 %v952
    %v3599 = vunpack.c.l.b16 %v953
    %v3600 = vunpack.c.h.b16 %v953
    %v3601 = vunpack.c.l.b16 %v954
    %v3602 = vunpack.c.h.b16 %v954
    %v3603 = vunpack.c.l.b16 %v955
    %v3604 = vunpack.c.h.b16 %v955
    %v3605 = vunpack.c.l.b16 %v956
    %v3606 = vunpack.c.h.b16 %v956
    %v3607 = vunpack.c.l.b16 %v957
    %v3608 = vunpack.c.h.b16 %v957
    %v3609 = vunpack.c.l.b16 %v958
    %v3610 = vunpack.c.h.b16 %v958
    %v3611 = vunpack.c.l.b16 %v959
    %v3612 = vunpack.c.h.b16 %v959
    %v3613 = vunpack.c.l.b16 %v960
    %v3614 = vunpack.c.h.b16 %v960
    %v3615 = vunpack.c.l.b16 %v961
    %v3616 = vunpack.c.h.b16 %v961
    %v3617 = vunpack.c.l.b16 %v962
    %v3618 = vunpack.c.h.b16 %v962
    %v3619 = vunpack.c.l.b16 %v963
    %v3620 = vunpack.c.h.b16 %v963
    %v3621 = vunpack.c.l.b16 %v964
    %v3622 = vunpack.c.h.b16 %v964
    %v3623 = vunpack.c.l.b16 %v965
    %v3624 = vunpack.c.h.b16 %v965
    %v3625 = vunpack.c.l.b16 %v966
    %v3626 = vunpack.c.h.b16 %v966
    %v3627 = vunpack.c.l.b16 %v967
    %v3628 = vunpack.c.h.b16 %v967
    %v3629 = vunpack.c.l.b16 %v968
    %v3630 = vunpack.c.h.b16 %v968
    %v3631 = vunpack.c.l.b16 %v969
    %v3632 = vunpack.c.h.b16 %v969
    %v3633 = vunpack.c.l.b16 %v970
    %v3634 = vunpack.c.h.b16 %v970
    %v3635 = vunpack.c.l.b16 %v971
    %v3636 = vunpack.c.h.b16 %v971
    %v3637 = vunpack.c.l.b16 %v972
    %v3638 = vunpack.c.h.b16 %v972
    %v3639 = vunpack.c.l.b16 %v973
    %v3640 = vunpack.c.h.b16 %v973
    %v3641 = vunpack.c.l.b16 %v974
    %v3642 = vunpack.c.h.b16 %v974
    %v3643 = vunpack.c.l.b16 %v975
    %v3644 = vunpack.c.h.b16 %v975
    %v3645 = vunpack.c.l.b16 %v976
    %v3646 = vunpack.c.h.b16 %v976
    %v3647 = vunpack.c.l.b16 %v977
    %v3648 = vunpack.c.h.b16 %v977
    %v3649 = vunpack.c.l.b16 %v978
    %v3650 = vunpack.c.h.b16 %v978
    %v3651 = vunpack.c.l.b16 %v979
    %v3652 = vunpack.c.h.b16 %v979
    %v3653 = vunpack.c.l.b16 %v980
    %v3654 = vunpack.c.h.b16 %v980
    %v3655 = vunpack.c.l.b16 %v981
    %v3656 = vunpack.c.h.b16 %v981
    %v3657 = vunpack.c.l.b16 %v982
    %v3658 = vunpack.c.h.b16 %v982
    %v3659 = vunpack.c.l.b16 %v983
    %v3660 = vunpack.c.h.b16 %v983
    %v3661 = vunpack.c.l.b16 %v984
    %v3662 = vunpack.c.h.b16 %v984
    %v3663 = vunpack.c.l.b16 %v985
    %v3664 = vunpack.c.h.b16 %v985
    %v3665 = vunpack.c.l.b16 %v986
    %v3666 = vunpack.c.h.b16 %v986
    %v3667 = vunpack.c.l.b16 %v987
    %v3668 = vunpack.c.h.b16 %v987
    %v3669 = vunpack.c.l.b16 %v988
    %v3670 = vunpack.c.h.b16 %v988
    %v3671 = vunpack.c.l.b16 %v989
    %v3672 = vunpack.c.h.b16 %v989
    %v3673 = vunpack.c.l.b16 %v990
    %v3674 = vunpack.c.h.b16 %v990
    %v3675 = vunpack.c.l.b16 %v991
    %v3676 = vunpack.c.h.b16 %v991
    %v3677 = vunpack.c.l.b16 %v992
    %v3678 = vunpack.c.h.b16 %v992
    %v3679 = vunpack.c.l.b16 %v993
    %v3680 = vunpack.c.h.b16 %v993
    %v3681 = vunpack.c.l.b16 %v994
    %v3682 = vunpack.c.h.b16 %v994
    %v3683 = vunpack.c.l.b16 %v995
    %v3684 = vunpack.c.h.b16 %v995
    %v3685 = vunpack.c.l.b16 %v996
    %v3686 = vunpack.c.h.b16 %v996
    %v3687 = vunpack.c.l.b16 %v997
    %v3688 = vunpack.c.h.b16 %v997
    %v3689 = vunpack.c.l.b16 %v998
    %v3690 = vunpack.c.h.b16 %v998
    %v3691 = vunpack.c.l.b16 %v999
    %v3692 = vunpack.c.h.b16 %v999
    %v3693 = vunpack.c.l.b16 %v1000
    %v3694 = vunpack.c.h.b16 %v1000
    %v3695 = vunpack.c.l.b16 %v1001
    %v3696 = vunpack.c.h.b16 %v1001
    %v3697 = vunpack.c.l.b16 %v1002
    %v3698 = vunpack.c.h.b16 %v1002
    %v3699 = vunpack.c.l.b16 %v1003
    %v3700 = vunpack.c.h.b16 %v1003
    %v3701 = vunpack.c.l.b16 %v1004
    %v3702 = vunpack.c.h.b16 %v1004
    %v3703 = vunpack.c.l.b16 %v1005
    %v3704 = vunpack.c.h.b16 %v1005
    %v3705 = vunpack.c.l.b16 %v1006
    %v3706 = vunpack.c.h.b16 %v1006
    %v3707 = vunpack.c.l.b16 %v1007
    %v3708 = vunpack.c.h.b16 %v1007
    %v3709 = vunpack.c.l.b16 %v1008
    %v3710 = vunpack.c.h.b16 %v1008
    %v3711 = vunpack.c.l.b16 %v1009
    %v3712 = vunpack.c.h.b16 %v1009
    %v3713 = vunpack.c.l.b16 %v1010
    %v3714 = vunpack.c.h.b16 %v1010
    %v3715 = vunpack.c.l.b16 %v1011
    %v3716 = vunpack.c.h.b16 %v1011
    %v3717 = vunpack.c.l.b16 %v1012
    %v3718 = vunpack.c.h.b16 %v1012
    %v3719 = vunpack.c.l.b16 %v1013
    %v3720 = vunpack.c.h.b16 %v1013
    %v3721 = vunpack.c.l.b16 %v1014
    %v3722 = vunpack.c.h.b16 %v1014
    %v3723 = vunpack.c.l.b16 %v1015
    %v3724 = vunpack.c.h.b16 %v1015
    %v3725 = vunpack.c.l.b16 %v1016
    %v3726 = vunpack.c.h.b16 %v1016
    %v3727 = vunpack.c.l.b16 %v1017
    %v3728 = vunpack.c.h.b16 %v1017
    %v3729 = vunpack.c.l.b16 %v1018
    %v3730 = vunpack.c.h.b16 %v1018
    %v3731 = vunpack.c.l.b16 %v1019
    %v3732 = vunpack.c.h.b16 %v1019
    %v3733 = vunpack.c.l.b16 %v1020
    %v3734 = vunpack.c.h.b16 %v1020
    %v3735 = vunpack.c.l.b16 %v1021
    %v3736 = vunpack.c.h.b16 %v1021
    %v3737 = vunpack.c.l.b16 %v1022
    %v3738 = vunpack.c.h.b16 %v1022
    %v3739 = vunpack.c.l.b16 %v1023
    %v3740 = vunpack.c.h.b16 %v1023
    %v3741 = vunpack.c.l.b16 %v1024
    %v3742 = vunpack.c.h.b16 %v1024
    %v3743 = vunpack.c.l.b16 %v1025
    %v3744 = vunpack.c.h.b16 %v1025
    %v3745 = vunpack.c.l.b16 %v1026
    %v3746 = vunpack.c.h.b16 %v1026
    %v3747 = vunpack.c.l.b16 %v1027
    %v3748 = vunpack.c.h.b16 %v1027
    %v3749 = vunpack.c.l.b16 %v1028
    %v3750 = vunpack.c.h.b16 %v1028
    %v3751 = vunpack.c.l.b16 %v1029
    %v3752 = vunpack.c.h.b16 %v1029
    %v3753 = vunpack.c.l.b16 %v1030
    %v3754 = vunpack.c.h.b16 %v1030
    %v3755 = vunpack.c.l.b16 %v1031
    %v3756 = vunpack.c.h.b16 %v1031
    %v3757 = vunpack.c.l.b16 %v1032
    %v3758 = vunpack.c.h.b16 %v1032
    %v3759 = vunpack.c.l.b16 %v1033
    %v3760 = vunpack.c.h.b16 %v1033
    %v3761 = vunpack.c.l.b16 %v1034
    %v3762 = vunpack.c.h.b16 %v1034
    %v3763 = vunpack.c.l.b16 %v1035
    %v3764 = vunpack.c.h.b16 %v1035
    %v3765 = vunpack.c.l.b16 %v1036
    %v3766 = vunpack.c.h.b16 %v1036
    %v3767 = vunpack.c.l.b16 %v1037
    %v3768 = vunpack.c.h.b16 %v1037
    %v3769 = vunpack.c.l.b16 %v1038
    %v3770 = vunpack.c.h.b16 %v1038
    %v3771 = vunpack.c.l.b16 %v1039
    %v3772 = vunpack.c.h.b16 %v1039
    %v3773 = vunpack.c.l.b16 %v1040
    %v3774 = vunpack.c.h.b16 %v1040
    %v3775 = vunpack.c.l.b16 %v1041
    %v3776 = vunpack.c.h.b16 %v1041
    %v3777 = vunpack.c.l.b16 %v1042
    %v3778 = vunpack.c.h.b16 %v1042
    %v3779 = vunpack.c.l.b16 %v1043
    %v3780 = vunpack.c.h.b16 %v1043
    %v3781 = vunpack.c.l.b16 %v1044
    %v3782 = vunpack.c.h.b16 %v1044
    %v3783 = vunpack.c.l.b16 %v1045
    %v3784 = vunpack.c.h.b16 %v1045
    %v3785 = vunpack.c.l.b16 %v1046
    %v3786 = vunpack.c.h.b16 %v1046
    %v3787 = vunpack.c.l.b16 %v1047
    %v3788 = vunpack.c.h.b16 %v1047
    %v3789 = vunpack.c.l.b16 %v1048
    %v3790 = vunpack.c.h.b16 %v1048
    %v3791 = vunpack.c.l.b16 %v1049
    %v3792 = vunpack.c.h.b16 %v1049
    %v3793 = vunpack.c.l.b16 %v1050
    %v3794 = vunpack.c.h.b16 %v1050
    %v3795 = vunpack.c.l.b16 %v1051
    %v3796 = vunpack.c.h.b16 %v1051
    %v3797 = vunpack.c.l.b16 %v1052
    %v3798 = vunpack.c.h.b16 %v1052
    %v3799 = vunpack.c.l.b16 %v1053
    %v3800 = vunpack.c.h.b16 %v1053
    %v3801 = vunpack.c.l.b16 %v1054
    %v3802 = vunpack.c.h.b16 %v1054
    %v3803 = vunpack.c.l.b16 %v1055
    %v3804 = vunpack.c.h.b16 %v1055
    %v3805 = vunpack.c.l.b16 %v1056
    %v3806 = vunpack.c.h.b16 %v1056
    %v3807 = vunpack.c.l.b16 %v1057
    %v3808 = vunpack.c.h.b16 %v1057
    %v3809 = vunpack.c.l.b16 %v1058
    %v3810 = vunpack.c.h.b16 %v1058
    %v3811 = vunpack.c.l.b16 %v1059
    %v3812 = vunpack.c.h.b16 %v1059
    %v3813 = vunpack.c.l.b16 %v1060
    %v3814 = vunpack.c.h.b16 %v1060
    %v3815 = vunpack.c.l.b16 %v1061
    %v3816 = vunpack.c.h.b16 %v1061
    %v3817 = vunpack.c.l.b16 %v1062
    %v3818 = vunpack.c.h.b16 %v1062
    %v3819 = vunpack.c.l.b16 %v1063
    %v3820 = vunpack.c.h.b16 %v1063
    %v3821 = vunpack.c.l.b16 %v1064
    %v3822 = vunpack.c.h.b16 %v1064
    %v3823 = vunpack.c.l.b16 %v1065
    %v3824 = vunpack.c.h.b16 %v1065
    %v3825 = vunpack.c.l.b16 %v1066
    %v3826 = vunpack.c.h.b16 %v1066
    %v3827 = vunpack.c.l.b16 %v1067
    %v3828 = vunpack.c.h.b16 %v1067
    %v3829 = vunpack.c.l.b16 %v1068
    %v3830 = vunpack.c.h.b16 %v1068
    %v3831 = vunpack.c.l.b16 %v1069
    %v3832 = vunpack.c.h.b16 %v1069
    %v3833 = vunpack.c.l.b16 %v1070
    %v3834 = vunpack.c.h.b16 %v1070
    %v3835 = vunpack.c.l.b16 %v1071
    %v3836 = vunpack.c.h.b16 %v1071
    %v3837 = vunpack.c.l.b16 %v1072
    %v3838 = vunpack.c.h.b16 %v1072
    %v3839 = vunpack.c.l.b16 %v1073
    %v3840 = vunpack.c.h.b16 %v1073
    %v3841 = vunpack.c.l.b16 %v1074
    %v3842 = vunpack.c.h.b16 %v1074
    %v3843 = vunpack.c.l.b16 %v1075
    %v3844 = vunpack.c.h.b16 %v1075
    %v3845 = vunpack.c.l.b16 %v1076
    %v3846 = vunpack.c.h.b16 %v1076
    %v3847 = vunpack.c.l.b16 %v1077
    %v3848 = vunpack.c.h.b16 %v1077
    %v3849 = vunpack.c.l.b16 %v1078
    %v3850 = vunpack.c.h.b16 %v1078
    %v3851 = vunpack.c.l.b16 %v1079
    %v3852 = vunpack.c.h.b16 %v1079
    %v3853 = vunpack.c.l.b16 %v1080
    %v3854 = vunpack.c.h.b16 %v1080
    %v3855 = vunpack.c.l.b16 %v1081
    %v3856 = vunpack.c.h.b16 %v1081
    %v3857 = vunpack.c.l.b16 %v1082
    %v3858 = vunpack.c.h.b16 %v1082
    %v3859 = vunpack.c.l.b16 %v1083
    %v3860 = vunpack.c.h.b16 %v1083
    %v3861 = vunpack.c.l.b16 %v1084
    %v3862 = vunpack.c.h.b16 %v1084
    %v3863 = vunpack.c.l.b16 %v1085
    %v3864 = vunpack.c.h.b16 %v1085
    %v3865 = vunpack.c.l.b16 %v1086
    %v3866 = vunpack.c.h.b16 %v1086
    %v3867 = vunpack.c.l.b16 %v1087
    %v3868 = vunpack.c.h.b16 %v1087
    %v3869 = vunpack.c.l.b16 %v1088
    %v3870 = vunpack.c.h.b16 %v1088
    %v3871 = vunpack.c.l.b16 %v1089
    %v3872 = vunpack.c.h.b16 %v1089
    %v3873 = vunpack.c.l.b16 %v1090
    %v3874 = vunpack.c.h.b16 %v1090
    %v3875 = vunpack.c.l.b16 %v1091
    %v3876 = vunpack.c.h.b16 %v1091
    %v3877 = vunpack.c.l.b16 %v1092
    %v3878 = vunpack.c.h.b16 %v1092
    %v3879 = vunpack.c.l.b16 %v1093
    %v3880 = vunpack.c.h.b16 %v1093
    %v3881 = vunpack.c.l.b16 %v1094
    %v3882 = vunpack.c.h.b16 %v1094
    %v3883 = vunpack.c.l.b16 %v1095
    %v3884 = vunpack.c.h.b16 %v1095
    %v3885 = vunpack.c.l.b16 %v1096
    %v3886 = vunpack.c.h.b16 %v1096
    %v3887 = vunpack.c.l.b16 %v1097
    %v3888 = vunpack.c.h.b16 %v1097
    %v3889 = vunpack.c.l.b16 %v1098
    %v3890 = vunpack.c.h.b16 %v1098
    %v3891 = vunpack.c.l.b16 %v1099
    %v3892 = vunpack.c.h.b16 %v1099
    %v3893 = vunpack.c.l.b16 %v1100
    %v3894 = vunpack.c.h.b16 %v1100
    %v3895 = vunpack.c.l.b16 %v1101
    %v3896 = vunpack.c.h.b16 %v1101
    %v3897 = vunpack.c.l.b16 %v1102
    %v3898 = vunpack.c.h.b16 %v1102
    %v3899 = vunpack.c.l.b16 %v1103
    %v3900 = vunpack.c.h.b16 %v1103
    %v3901 = vunpack.c.l.b16 %v1104
    %v3902 = vunpack.c.h.b16 %v1104
    %v3903 = vunpack.c.l.b16 %v1105
    %v3904 = vunpack.c.h.b16 %v1105
    %v3905 = vunpack.c.l.b16 %v1106
    %v3906 = vunpack.c.h.b16 %v1106
    %v3907 = vunpack.c.l.b16 %v1107
    %v3908 = vunpack.c.h.b16 %v1107
    %v3909 = vunpack.c.l.b16 %v1108
    %v3910 = vunpack.c.h.b16 %v1108
    %v3911 = vunpack.c.l.b16 %v1109
    %v3912 = vunpack.c.h.b16 %v1109
    %v3913 = vunpack.c.l.b16 %v1110
    %v3914 = vunpack.c.h.b16 %v1110
    %v3915 = vunpack.c.l.b16 %v1111
    %v3916 = vunpack.c.h.b16 %v1111
    %v3917 = vunpack.c.l.b16 %v1112
    %v3918 = vunpack.c.h.b16 %v1112
    %v3919 = vunpack.c.l.b16 %v1113
    %v3920 = vunpack.c.h.b16 %v1113
    %v3921 = vunpack.c.l.b16 %v1114
    %v3922 = vunpack.c.h.b16 %v1114
    %v3923 = vunpack.c.l.b16 %v1115
    %v3924 = vunpack.c.h.b16 %v1115
    %v3925 = vunpack.c.l.b16 %v1116
    %v3926 = vunpack.c.h.b16 %v1116
    %v3927 = vunpack.c.l.b16 %v1117
    %v3928 = vunpack.c.h.b16 %v1117
    %v3929 = vunpack.c.l.b16 %v1118
    %v3930 = vunpack.c.h.b16 %v1118
    %v3931 = vunpack.c.l.b16 %v1119
    %v3932 = vunpack.c.h.b16 %v1119
    %v3933 = vunpack.c.l.b16 %v1120
    %v3934 = vunpack.c.h.b16 %v1120
    %v3935 = vunpack.c.l.b16 %v1121
    %v3936 = vunpack.c.h.b16 %v1121
    %v3937 = vunpack.c.l.b16 %v1122
    %v3938 = vunpack.c.h.b16 %v1122
    %v3939 = vunpack.c.l.b16 %v1123
    %v3940 = vunpack.c.h.b16 %v1123
    %v3941 = vunpack.c.l.b16 %v1124
    %v3942 = vunpack.c.h.b16 %v1124
    %v3943 = vunpack.c.l.b16 %v1125
    %v3944 = vunpack.c.h.b16 %v1125
    %v3945 = vunpack.c.l.b16 %v1126
    %v3946 = vunpack.c.h.b16 %v1126
    %v3947 = vunpack.c.l.b16 %v1127
    %v3948 = vunpack.c.h.b16 %v1127
    %v3949 = vunpack.c.l.b16 %v1128
    %v3950 = vunpack.c.h.b16 %v1128
    %v3951 = vunpack.c.l.b16 %v1129
    %v3952 = vunpack.c.h.b16 %v1129
    %v3953 = vunpack.c.l.b16 %v1130
    %v3954 = vunpack.c.h.b16 %v1130
    %v3955 = vunpack.c.l.b16 %v1131
    %v3956 = vunpack.c.h.b16 %v1131
    %v3957 = vunpack.c.l.b16 %v1132
    %v3958 = vunpack.c.h.b16 %v1132
    %v3959 = vunpack.c.l.b16 %v1133
    %v3960 = vunpack.c.h.b16 %v1133
    %v3961 = vunpack.c.l.b16 %v1134
    %v3962 = vunpack.c.h.b16 %v1134
    %v3963 = vunpack.c.l.b16 %v1135
    %v3964 = vunpack.c.h.b16 %v1135
    %v3965 = vunpack.c.l.b16 %v1136
    %v3966 = vunpack.c.h.b16 %v1136
    %v3967 = vunpack.c.l.b16 %v1137
    %v3968 = vunpack.c.h.b16 %v1137
    %v3969 = vunpack.c.l.b16 %v1138
    %v3970 = vunpack.c.h.b16 %v1138
    %v3971 = vunpack.c.l.b16 %v1139
    %v3972 = vunpack.c.h.b16 %v1139
    %v3973 = vunpack.c.l.b16 %v1140
    %v3974 = vunpack.c.h.b16 %v1140
    %v3975 = vunpack.c.l.b16 %v1141
    %v3976 = vunpack.c.h.b16 %v1141
    %v3977 = vunpack.c.l.b16 %v1142
    %v3978 = vunpack.c.h.b16 %v1142
    %v3979 = vunpack.c.l.b16 %v1143
    %v3980 = vunpack.c.h.b16 %v1143
    %v3981 = vunpack.c.l.b16 %v1144
    %v3982 = vunpack.c.h.b16 %v1144
    %v3983 = vunpack.c.l.b16 %v1145
    %v3984 = vunpack.c.h.b16 %v1145
    %v3985 = vunpack.c.l.b16 %v1146
    %v3986 = vunpack.c.h.b16 %v1146
    %v3987 = vunpack.c.l.b16 %v1147
    %v3988 = vunpack.c.h.b16 %v1147
    %v3989 = vunpack.c.l.b16 %v1148
    %v3990 = vunpack.c.h.b16 %v1148
    %v3991 = vunpack.c.l.b16 %v1149
    %v3992 = vunpack.c.h.b16 %v1149
    %v3993 = vunpack.c.l.b16 %v1150
    %v3994 = vunpack.c.h.b16 %v1150
    %v3995 = vunpack.c.l.b16 %v1151
    %v3996 = vunpack.c.h.b16 %v1151
    %v3997 = vunpack.c.l.b16 %v1152
    %v3998 = vunpack.c.h.b16 %v1152
    %v3999 = vunpack.c.l.b16 %v1153
    %v4000 = vunpack.c.h.b16 %v1153
    %v4001 = vunpack.c.l.b16 %v1154
    %v4002 = vunpack.c.h.b16 %v1154
    %v4003 = vunpack.c.l.b16 %v1155
    %v4004 = vunpack.c.h.b16 %v1155
    %v4005 = vunpack.c.l.b16 %v1156
    %v4006 = vunpack.c.h.b16 %v1156
    %v4007 = vunpack.c.l.b16 %v1157
    %v4008 = vunpack.c.h.b16 %v1157
    %v4009 = vunpack.c.l.b16 %v1158
    %v4010 = vunpack.c.h.b16 %v1158
    %v4011 = vunpack.c.l.b16 %v1159
    %v4012 = vunpack.c.h.b16 %v1159
    %v4013 = vunpack.c.l.b16 %v1160
    %v4014 = vunpack.c.h.b16 %v1160
    %v4015 = vunpack.c.l.b16 %v1161
    %v4016 = vunpack.c.h.b16 %v1161
    %v4017 = vunpack.c.l.b16 %v1162
    %v4018 = vunpack.c.h.b16 %v1162
    %v4019 = vunpack.c.l.b16 %v1163
    %v4020 = vunpack.c.h.b16 %v1163
    %v4021 = vunpack.c.l.b16 %v1164
    %v4022 = vunpack.c.h.b16 %v1164
    %v4023 = vunpack.c.l.b16 %v1165
    %v4024 = vunpack.c.h.b16 %v1165
    %v4025 = vunpack.c.l.b16 %v1166
    %v4026 = vunpack.c.h.b16 %v1166
    %v4027 = vunpack.c.l.b16 %v1167
    %v4028 = vunpack.c.h.b16 %v1167
    %v4029 = vunpack.c.l.b16 %v1168
    %v4030 = vunpack.c.h.b16 %v1168
    %v4031 = vunpack.c.l.b16 %v1169
    %v4032 = vunpack.c.h.b16 %v1169
    %v4033 = vunpack.c.l.b16 %v1170
    %v4034 = vunpack.c.h.b16 %v1170
    %v4035 = vunpack.c.l.b16 %v1171
    %v4036 = vunpack.c.h.b16 %v1171
    %v4037 = vunpack.c.l.b16 %v1172
    %v4038 = vunpack.c.h.b16 %v1172
    %v4039 = vunpack.c.l.b16 %v1173
    %v4040 = vunpack.c.h.b16 %v1173
    %v4041 = vunpack.c.l.b16 %v1174
    %v4042 = vunpack.c.h.b16 %v1174
    %v4043 = vunpack.c.l.b16 %v1175
    %v4044 = vunpack.c.h.b16 %v1175
    %v4045 = vunpack.c.l.b16 %v1176
    %v4046 = vunpack.c.h.b16 %v1176
    %v4047 = vunpack.c.l.b16 %v1177
    %v4048 = vunpack.c.h.b16 %v1177
    %v4049 = vunpack.c.l.b16 %v1178
    %v4050 = vunpack.c.h.b16 %v1178
    %v4051 = vunpack.c.l.b16 %v1179
    %v4052 = vunpack.c.h.b16 %v1179
    %v4053 = vunpack.c.l.b16 %v1180
    %v4054 = vunpack.c.h.b16 %v1180
    %v4055 = vunpack.c.l.b16 %v1181
    %v4056 = vunpack.c.h.b16 %v1181
    %v4057 = vunpack.c.l.b16 %v1182
    %v4058 = vunpack.c.h.b16 %v1182
    %v4059 = vunpack.c.l.b16 %v1183
    %v4060 = vunpack.c.h.b16 %v1183
    %v4061 = vunpack.c.l.b16 %v1184
    %v4062 = vunpack.c.h.b16 %v1184
    %v4063 = vunpack.c.l.b16 %v1185
    %v4064 = vunpack.c.h.b16 %v1185
    %v4065 = vunpack.c.l.b16 %v1186
    %v4066 = vunpack.c.h.b16 %v1186
    %v4067 = vunpack.c.l.b16 %v1187
    %v4068 = vunpack.c.h.b16 %v1187
    %v4069 = vunpack.c.l.b16 %v1188
    %v4070 = vunpack.c.h.b16 %v1188
    %v4071 = vunpack.c.l.b16 %v1189
    %v4072 = vunpack.c.h.b16 %v1189
    %v4073 = vunpack.c.l.b16 %v1190
    %v4074 = vunpack.c.h.b16 %v1190
    %v4075 = vunpack.c.l.b16 %v1191
    %v4076 = vunpack.c.h.b16 %v1191
    %v4077 = vunpack.c.l.b16 %v1192
    %v4078 = vunpack.c.h.b16 %v1192
    %v4079 = vunpack.c.l.b16 %v1193
    %v4080 = vunpack.c.h.b16 %v1193
    %v4081 = vunpack.c.l.b16 %v1194
    %v4082 = vunpack.c.h.b16 %v1194
    %v4083 = vunpack.c.l.b16 %v1195
    %v4084 = vunpack.c.h.b16 %v1195
    %v4085 = vunpack.c.l.b16 %v1196
    %v4086 = vunpack.c.h.b16 %v1196
    %v4087 = vunpack.c.l.b16 %v1197
    %v4088 = vunpack.c.h.b16 %v1197
    %v4089 = vunpack.c.l.b16 %v1198
    %v4090 = vunpack.c.h.b16 %v1198
    %v4091 = vunpack.c.l.b16 %v1199
    %v4092 = vunpack.c.h.b16 %v1199
    %v4093 = vunpack.c.l.b16 %v1200
    %v4094 = vunpack.c.h.b16 %v1200
    %v4095 = vunpack.c.l.b16 %v1201
    %v4096 = vunpack.c.h.b16 %v1201
    %v4097 = vunpack.c.l.b16 %v1202
    %v4098 = vunpack.c.h.b16 %v1202
    %v4099 = vunpack.c.l.b16 %v1203
    %v4100 = vunpack.c.h.b16 %v1203
    %v4101 = vunpack.c.l.b16 %v1204
    %v4102 = vunpack.c.h.b16 %v1204
    %v4103 = vunpack.c.l.b16 %v1205
    %v4104 = vunpack.c.h.b16 %v1205
    %v4105 = vunpack.c.l.b16 %v1206
    %v4106 = vunpack.c.h.b16 %v1206
    %v4107 = vunpack.c.l.b16 %v1207
    %v4108 = vunpack.c.h.b16 %v1207
    %v4109 = vunpack.c.l.b16 %v1208
    %v4110 = vunpack.c.h.b16 %v1208
    %v4111 = vunpack.c.l.b16 %v1209
    %v4112 = vunpack.c.h.b16 %v1209
    %v4113 = vunpack.c.l.b16 %v1210
    %v4114 = vunpack.c.h.b16 %v1210
    %v4115 = vunpack.c.l.b16 %v1211
    %v4116 = vunpack.c.h.b16 %v1211
    %v4117 = vunpack.c.l.b16 %v1212
    %v4118 = vunpack.c.h.b16 %v1212
    %v4119 = vunpack.c.l.b16 %v1213
    %v4120 = vunpack.c.h.b16 %v1213
    %v4121 = vunpack.c.l.b16 %v1214
    %v4122 = vunpack.c.h.b16 %v1214
    %v4123 = vunpack.c.l.b16 %v1215
    %v4124 = vunpack.c.h.b16 %v1215
    %v4125 = vunpack.c.l.b16 %v1216
    %v4126 = vunpack.c.h.b16 %v1216
    %v4127 = vunpack.c.l.b16 %v1217
    %v4128 = vunpack.c.h.b16 %v1217
    %v4129 = vunpack.c.l.b16 %v1218
    %v4130 = vunpack.c.h.b16 %v1218
    %v4131 = vunpack.c.l.b16 %v1219
    %v4132 = vunpack.c.h.b16 %v1219
    %v4133 = vunpack.c.l.b16 %v1220
    %v4134 = vunpack.c.h.b16 %v1220
    %v4135 = vunpack.c.l.b16 %v1221
    %v4136 = vunpack.c.h.b16 %v1221
    %v4137 = vunpack.c.l.b16 %v1222
    %v4138 = vunpack.c.h.b16 %v1222
    %v4139 = vunpack.c.l.b16 %v1223
    %v4140 = vunpack.c.h.b16 %v1223
    %v4141 = vunpack.c.l.b16 %v1224
    %v4142 = vunpack.c.h.b16 %v1224
    %v4143 = vunpack.c.l.b16 %v1225
    %v4144 = vunpack.c.h.b16 %v1225
    %v4145 = vunpack.c.l.b16 %v1226
    %v4146 = vunpack.c.h.b16 %v1226
    %v4147 = vunpack.c.l.b16 %v1227
    %v4148 = vunpack.c.h.b16 %v1227
    %v4149 = vunpack.c.l.b16 %v1228
    %v4150 = vunpack.c.h.b16 %v1228
    %v4151 = vunpack.c.l.b16 %v1229
    %v4152 = vunpack.c.h.b16 %v1229
    %v4153 = vunpack.c.l.b16 %v1230
    %v4154 = vunpack.c.h.b16 %v1230
    %v4155 = vunpack.c.l.b16 %v1231
    %v4156 = vunpack.c.h.b16 %v1231
    %v4157 = vunpack.c.l.b16 %v1232
    %v4158 = vunpack.c.h.b16 %v1232
    %v4159 = vunpack.c.l.b16 %v1233
    %v4160 = vunpack.c.h.b16 %v1233
    %v4161 = vunpack.c.l.b16 %v1234
    %v4162 = vunpack.c.h.b16 %v1234
    %v4163 = vunpack.c.l.b16 %v1235
    %v4164 = vunpack.c.h.b16 %v1235
    %v4165 = vunpack.c.l.b16 %v1236
    %v4166 = vunpack.c.h.b16 %v1236
    %v4167 = vunpack.c.l.b16 %v1237
    %v4168 = vunpack.c.h.b16 %v1237
    %v4169 = vunpack.c.l.b16 %v1238
    %v4170 = vunpack.c.h.b16 %v1238
    %v4171 = vunpack.c.l.b16 %v1239
    %v4172 = vunpack.c.h.b16 %v1239
    %v4173 = vunpack.c.l.b16 %v1240
    %v4174 = vunpack.c.h.b16 %v1240
    %v4175 = vunpack.c.l.b16 %v1241
    %v4176 = vunpack.c.h.b16 %v1241
    %v4177 = vunpack.c.l.b16 %v1242
    %v4178 = vunpack.c.h.b16 %v1242
    %v4179 = vunpack.c.l.b16 %v1243
    %v4180 = vunpack.c.h.b16 %v1243
    %v4181 = vunpack.c.l.b16 %v1244
    %v4182 = vunpack.c.h.b16 %v1244
    %v4183 = vunpack.c.l.b16 %v1245
    %v4184 = vunpack.c.h.b16 %v1245
    %v4185 = vunpack.c.l.b16 %v1246
    %v4186 = vunpack.c.h.b16 %v1246
    %v4187 = vunpack.c.l.b16 %v1247
    %v4188 = vunpack.c.h.b16 %v1247
    %v4189 = vunpack.c.l.b16 %v1248
    %v4190 = vunpack.c.h.b16 %v1248
    %v4191 = vunpack.c.l.b16 %v1249
    %v4192 = vunpack.c.h.b16 %v1249
    %v4193 = vunpack.c.l.b16 %v1250
    %v4194 = vunpack.c.h.b16 %v1250
    %v4195 = vunpack.c.l.b16 %v1251
    %v4196 = vunpack.c.h.b16 %v1251
    %v4197 = vunpack.c.l.b16 %v1252
    %v4198 = vunpack.c.h.b16 %v1252
    %v4199 = vunpack.c.l.b16 %v1253
    %v4200 = vunpack.c.h.b16 %v1253
    %v4201 = vunpack.c.l.b16 %v1254
    %v4202 = vunpack.c.h.b16 %v1254
    %v4203 = vunpack.c.l.b16 %v1255
    %v4204 = vunpack.c.h.b16 %v1255
    %v4205 = vunpack.c.l.b16 %v1256
    %v4206 = vunpack.c.h.b16 %v1256
    %v4207 = vunpack.c.l.b16 %v1257
    %v4208 = vunpack.c.h.b16 %v1257
    %v4209 = vunpack.c.l.b16 %v1258
    %v4210 = vunpack.c.h.b16 %v1258
    %v4211 = vunpack.c.l.b16 %v1259
    %v4212 = vunpack.c.h.b16 %v1259
    %v4213 = vunpack.c.l.b16 %v1260
    %v4214 = vunpack.c.h.b16 %v1260
    %v4215 = vunpack.c.l.b16 %v1261
    %v4216 = vunpack.c.h.b16 %v1261
    %v4217 = vunpack.c.l.b16 %v1262
    %v4218 = vunpack.c.h.b16 %v1262
    %v4219 = vunpack.c.l.b16 %v1263
    %v4220 = vunpack.c.h.b16 %v1263
    %v4221 = vunpack.c.l.b16 %v1264
    %v4222 = vunpack.c.h.b16 %v1264
    %v4223 = vunpack.c.l.b16 %v1265
    %v4224 = vunpack.c.h.b16 %v1265
    %v4225 = vunpack.c.l.b16 %v1266
    %v4226 = vunpack.c.h.b16 %v1266
    %v4227 = vunpack.c.l.b16 %v1267
    %v4228 = vunpack.c.h.b16 %v1267
    %v4229 = vunpack.c.l.b16 %v1268
    %v4230 = vunpack.c.h.b16 %v1268
    %v4231 = vunpack.c.l.b16 %v1269
    %v4232 = vunpack.c.h.b16 %v1269
    %v4233 = vunpack.c.l.b16 %v1270
    %v4234 = vunpack.c.h.b16 %v1270
    %v4235 = vunpack.c.l.b16 %v1271
    %v4236 = vunpack.c.h.b16 %v1271
    %v4237 = vunpack.c.l.b16 %v1272
    %v4238 = vunpack.c.h.b16 %v1272
    %v4239 = vunpack.c.l.b16 %v1273
    %v4240 = vunpack.c.h.b16 %v1273
    %v4241 = vunpack.c.l.b16 %v1274
    %v4242 = vunpack.c.h.b16 %v1274
    %v4243 = vunpack.c.l.b16 %v1275
    %v4244 = vunpack.c.h.b16 %v1275
    %v4245 = vunpack.c.l.b16 %v1276
    %v4246 = vunpack.c.h.b16 %v1276
    %v4247 = vunpack.c.l.b16 %v1277
    %v4248 = vunpack.c.h.b16 %v1277
    %v4249 = vunpack.c.l.b16 %v1278
    %v4250 = vunpack.c.h.b16 %v1278
    %v4251 = vunpack.c.l.b16 %v1279
    %v4252 = vunpack.c.h.b16 %v1279
    %v4253 = vunpack.c.l.b16 %v1280
    %v4254 = vunpack.c.h.b16 %v1280
    %v4255 = vunpack.c.l.b16 %v1281
    %v4256 = vunpack.c.h.b16 %v1281
    %v4257 = vunpack.c.l.b16 %v1282
    %v4258 = vunpack.c.h.b16 %v1282
    %v4259 = vunpack.c.l.b16 %v1283
    %v4260 = vunpack.c.h.b16 %v1283
    %v4261 = vunpack.c.l.b16 %v1284
    %v4262 = vunpack.c.h.b16 %v1284
    %v4263 = vunpack.c.l.b16 %v1285
    %v4264 = vunpack.c.h.b16 %v1285
    %v4265 = vunpack.c.l.b16 %v1286
    %v4266 = vunpack.c.h.b16 %v1286
    %v4267 = vunpack.c.l.b16 %v1287
    %v4268 = vunpack.c.h.b16 %v1287
    %v4269 = vunpack.c.l.b16 %v1288
    %v4270 = vunpack.c.h.b16 %v1288
    %v4271 = vunpack.c.l.b16 %v1289
    %v4272 = vunpack.c.h.b16 %v1289
    %v4273 = vunpack.c.l.b16 %v1290
    %v4274 = vunpack.c.h.b16 %v1290
    %v4275 = vunpack.c.l.b16 %v1291
    %v4276 = vunpack.c.h.b16 %v1291
    %v4277 = vunpack.c.l.b16 %v1292
    %v4278 = vunpack.c.h.b16 %v1292
    %v4279 = vunpack.c.l.b16 %v1293
    %v4280 = vunpack.c.h.b16 %v1293
    %v4281 = vunpack.c.l.b16 %v1294
    %v4282 = vunpack.c.h.b16 %v1294
    %v4283 = vunpack.c.l.b16 %v1295
    %v4284 = vunpack.c.h.b16 %v1295
    %v4285 = vunpack.c.l.b16 %v1296
    %v4286 = vunpack.c.h.b16 %v1296
    %v4287 = vunpack.c.l.b16 %v1297
    %v4288 = vunpack.c.h.b16 %v1297
    %v4289 = vunpack.c.l.b16 %v1298
    %v4290 = vunpack.c.h.b16 %v1298
    %v4291 = vunpack.c.l.b16 %v1299
    %v4292 = vunpack.c.h.b16 %v1299
    %v4293 = vunpack.c.l.b16 %v1300
    %v4294 = vunpack.c.h.b16 %v1300
    %v4295 = vunpack.c.l.b16 %v1301
    %v4296 = vunpack.c.h.b16 %v1301
    %v4297 = vunpack.c.l.b16 %v1302
    %v4298 = vunpack.c.h.b16 %v1302
    %v4299 = vunpack.c.l.b16 %v1303
    %v4300 = vunpack.c.h.b16 %v1303
    %v4301 = vunpack.c.l.b16 %v1304
    %v4302 = vunpack.c.h.b16 %v1304
    %v4303 = vunpack.c.l.b16 %v1305
    %v4304 = vunpack.c.h.b16 %v1305
    %v4305 = vunpack.c.l.b16 %v1306
    %v4306 = vunpack.c.h.b16 %v1306
    %v4307 = vunpack.c.l.b16 %v1307
    %v4308 = vunpack.c.h.b16 %v1307
    %v4309 = vunpack.c.l.b16 %v1308
    %v4310 = vunpack.c.h.b16 %v1308
    %v4311 = vunpack.c.l.b16 %v1309
    %v4312 = vunpack.c.h.b16 %v1309
    %v4313 = vunpack.c.l.b16 %v1310
    %v4314 = vunpack.c.h.b16 %v1310
    %v4315 = vunpack.c.l.b16 %v1311
    %v4316 = vunpack.c.h.b16 %v1311
    %v4317 = vunpack.c.l.b16 %v1312
    %v4318 = vunpack.c.h.b16 %v1312
    %v4319 = vunpack.c.l.b16 %v1313
    %v4320 = vunpack.c.h.b16 %v1313
    %v4321 = vunpack.c.l.b16 %v1314
    %v4322 = vunpack.c.h.b16 %v1314
    %v4323 = vunpack.c.l.b16 %v1315
    %v4324 = vunpack.c.h.b16 %v1315
    %v4325 = vunpack.c.l.b16 %v1316
    %v4326 = vunpack.c.h.b16 %v1316
    %v4327 = vunpack.c.l.b16 %v1317
    %v4328 = vunpack.c.h.b16 %v1317
    %v4329 = vunpack.c.l.b16 %v1318
    %v4330 = vunpack.c.h.b16 %v1318
    %v4331 = vunpack.c.l.b16 %v1319
    %v4332 = vunpack.c.h.b16 %v1319
    %v4333 = vunpack.c.l.b16 %v1320
    %v4334 = vunpack.c.h.b16 %v1320
    %v4335 = vunpack.c.l.b16 %v1321
    %v4336 = vunpack.c.h.b16 %v1321
    %v4337 = vunpack.c.l.b16 %v1322
    %v4338 = vunpack.c.h.b16 %v1322
    %v4339 = vunpack.c.l.b16 %v1323
    %v4340 = vunpack.c.h.b16 %v1323
    %v4341 = vunpack.c.l.b16 %v1324
    %v4342 = vunpack.c.h.b16 %v1324
    %v4343 = vunpack.c.l.b16 %v1325
    %v4344 = vunpack.c.h.b16 %v1325
    %v4345 = vunpack.c.l.b16 %v1326
    %v4346 = vunpack.c.h.b16 %v1326
    %v4347 = vunpack.c.l.b16 %v1327
    %v4348 = vunpack.c.h.b16 %v1327
    %v4349 = vunpack.c.l.b16 %v1328
    %v4350 = vunpack.c.h.b16 %v1328
    %v4351 = vunpack.c.l.b16 %v1329
    %v4352 = vunpack.c.h.b16 %v1329
    %v4353 = vunpack.c.l.b16 %v1330
    %v4354 = vunpack.c.h.b16 %v1330
    %v4355 = vunpack.c.l.b16 %v1331
    %v4356 = vunpack.c.h.b16 %v1331
    %v4357 = vunpack.c.l.b16 %v1332
    %v4358 = vunpack.c.h.b16 %v1332
    %v4359 = vunpack.c.l.b16 %v1333
    %v4360 = vunpack.c.h.b16 %v1333
    %v4361 = vunpack.c.l.b16 %v1334
    %v4362 = vunpack.c.h.b16 %v1334
    %v4363 = vunpack.c.l.b16 %v1335
    %v4364 = vunpack.c.h.b16 %v1335
    %v4365 = vunpack.c.l.b16 %v1336
    %v4366 = vunpack.c.h.b16 %v1336
    %v4367 = vunpack.c.l.b16 %v1337
    %v4368 = vunpack.c.h.b16 %v1337
    %v4369 = vunpack.c.l.b16 %v1338
    %v4370 = vunpack.c.h.b16 %v1338
    %v4371 = vunpack.c.l.b16 %v1339
    %v4372 = vunpack.c.h.b16 %v1339
    %v4373 = vunpack.c.l.b16 %v1340
    %v4374 = vunpack.c.h.b16 %v1340
    %v4375 = vunpack.c.l.b16 %v1341
    %v4376 = vunpack.c.h.b16 %v1341
    %v4377 = vunpack.c.l.b16 %v1342
    %v4378 = vunpack.c.h.b16 %v1342
    %v4379 = vunpack.c.l.b16 %v1343
    %v4380 = vunpack.c.h.b16 %v1343
    %v4381 = vunpack.c.l.b16 %v1344
    %v4382 = vunpack.c.h.b16 %v1344
    %v4383 = vunpack.c.l.b16 %v1345
    %v4384 = vunpack.c.h.b16 %v1345
    %v4385 = vunpack.c.l.b16 %v1346
    %v4386 = vunpack.c.h.b16 %v1346
    %v4387 = vunpack.c.l.b16 %v1347
    %v4388 = vunpack.c.h.b16 %v1347
    %v4389 = vunpack.c.l.b16 %v1348
    %v4390 = vunpack.c.h.b16 %v1348
    %v4391 = vunpack.c.l.b16 %v1349
    %v4392 = vunpack.c.h.b16 %v1349
    %v4393 = vunpack.c.l.b16 %v1350
    %v4394 = vunpack.c.h.b16 %v1350
    %v4395 = vunpack.c.l.b16 %v1351
    %v4396 = vunpack.c.h.b16 %v1351
    %v4397 = vunpack.c.l.b16 %v1352
    %v4398 = vunpack.c.h.b16 %v1352
    %v4399 = vunpack.c.l.b16 %v1353
    %v4400 = vunpack.c.h.b16 %v1353
    %v4401 = vunpack.c.l.b16 %v1354
    %v4402 = vunpack.c.h.b16 %v1354
    %v4403 = vunpack.c.l.b16 %v1355
    %v4404 = vunpack.c.h.b16 %v1355
    %v4405 = vunpack.c.l.b16 %v1356
    %v4406 = vunpack.c.h.b16 %v1356
    %v4407 = vunpack.c.l.b16 %v1357
    %v4408 = vunpack.c.h.b16 %v1357
    %v4409 = vunpack.c.l.b16 %v1358
    %v4410 = vunpack.c.h.b16 %v1358
    %v4411 = vunpack.c.l.b16 %v1359
    %v4412 = vunpack.c.h.b16 %v1359
    %v4413 = vunpack.c.l.b16 %v1360
    %v4414 = vunpack.c.h.b16 %v1360
    %v4415 = vunpack.c.l.b16 %v1361
    %v4416 = vunpack.c.h.b16 %v1361
    %v4417 = vunpack.c.l.b16 %v1362
    %v4418 = vunpack.c.h.b16 %v1362
    %v4419 = vunpack.c.l.b16 %v1363
    %v4420 = vunpack.c.h.b16 %v1363
    %v4421 = vunpack.c.l.b16 %v1364
    %v4422 = vunpack.c.h.b16 %v1364
    %v4423 = vunpack.c.l.b16 %v1365
    %v4424 = vunpack.c.h.b16 %v1365
    %v4425 = vunpack.c.l.b16 %v1366
    %v4426 = vunpack.c.h.b16 %v1366
    %v4427 = vunpack.c.l.b16 %v1367
    %v4428 = vunpack.c.h.b16 %v1367
    %v4429 = vunpack.c.l.b16 %v1368
    %v4430 = vunpack.c.h.b16 %v1368
    %v4431 = vunpack.c.l.b16 %v1369
    %v4432 = vunpack.c.h.b16 %v1369
    %v4433 = vunpack.c.l.b16 %v1370
    %v4434 = vunpack.c.h.b16 %v1370
    %v4435 = vunpack.c.l.b16 %v1371
    %v4436 = vunpack.c.h.b16 %v1371
    %v4437 = vunpack.c.l.b16 %v1372
    %v4438 = vunpack.c.h.b16 %v1372
    %v4439 = vunpack.c.l.b16 %v1373
    %v4440 = vunpack.c.h.b16 %v1373
    %v4441 = vunpack.c.l.b16 %v1374
    %v4442 = vunpack.c.h.b16 %v1374
    %v4443 = vunpack.c.l.b16 %v1375
    %v4444 = vunpack.c.h.b16 %v1375
    %v4445 = vunpack.c.l.b16 %v1376
    %v4446 = vunpack.c.h.b16 %v1376
    %v4447 = vunpack.c.l.b16 %v1377
    %v4448 = vunpack.c.h.b16 %v1377
    %v4449 = vunpack.c.l.b16 %v1378
    %v4450 = vunpack.c.h.b16 %v1378
    %v4451 = vunpack.c.l.b16 %v1379
    %v4452 = vunpack.c.h.b16 %v1379
    %v4453 = vunpack.c.l.b16 %v1380
    %v4454 = vunpack.c.h.b16 %v1380
    %v4455 = vunpack.c.l.b16 %v1381
    %v4456 = vunpack.c.h.b16 %v1381
    %v4457 = vunpack.c.l.b16 %v1382
    %v4458 = vunpack.c.h.b16 %v1382
    %v4459 = vunpack.c.l.b16 %v1383
    %v4460 = vunpack.c.h.b16 %v1383
    %v4461 = vunpack.c.l.b16 %v1384
    %v4462 = vunpack.c.h.b16 %v1384
    %v4463 = vunpack.c.l.b16 %v1385
    %v4464 = vunpack.c.h.b16 %v1385
    %v4465 = vunpack.c.l.b16 %v1386
    %v4466 = vunpack.c.h.b16 %v1386
    %v4467 = vunpack.c.l.b16 %v1387
    %v4468 = vunpack.c.h.b16 %v1387
    %v4469 = vunpack.c.l.b16 %v1388
    %v4470 = vunpack.c.h.b16 %v1388
    %v4471 = vunpack.c.l.b16 %v1389
    %v4472 = vunpack.c.h.b16 %v1389
    %v4473 = vunpack.c.l.b16 %v1390
    %v4474 = vunpack.c.h.b16 %v1390
    %v4475 = vunpack.c.l.b16 %v1391
    %v4476 = vunpack.c.h.b16 %v1391
    %v4477 = vunpack.c.l.b16 %v1392
    %v4478 = vunpack.c.h.b16 %v1392
    %v4479 = vunpack.c.l.b16 %v1393
    %v4480 = vunpack.c.h.b16 %v1393
    %v4481 = vunpack.c.l.b16 %v1394
    %v4482 = vunpack.c.h.b16 %v1394
    %v4483 = vunpack.c.l.b16 %v1395
    %v4484 = vunpack.c.h.b16 %v1395
    %v4485 = vunpack.c.l.b16 %v1396
    %v4486 = vunpack.c.h.b16 %v1396
    %v4487 = vunpack.c.l.b16 %v1397
    %v4488 = vunpack.c.h.b16 %v1397
    %v4489 = vunpack.c.l.b16 %v1398
    %v4490 = vunpack.c.h.b16 %v1398
    %v4491 = vunpack.c.l.b16 %v1399
    %v4492 = vunpack.c.h.b16 %v1399
    %v4493 = vunpack.c.l.b16 %v1400
    %v4494 = vunpack.c.h.b16 %v1400
    %v4495 = vunpack.c.l.b16 %v1401
    %v4496 = vunpack.c.h.b16 %v1401
    %v4497 = vunpack.c.l.b16 %v1402
    %v4498 = vunpack.c.h.b16 %v1402
    %v4499 = vunpack.c.l.b16 %v1403
    %v4500 = vunpack.c.h.b16 %v1403
    %v4501 = vunpack.c.l.b16 %v1404
    %v4502 = vunpack.c.h.b16 %v1404
    %v4503 = vunpack.c.l.b16 %v1405
    %v4504 = vunpack.c.h.b16 %v1405
    %v4505 = vunpack.c.l.b16 %v1406
    %v4506 = vunpack.c.h.b16 %v1406
    %v4507 = vunpack.c.l.b16 %v1407
    %v4508 = vunpack.c.h.b16 %v1407
    %v4509 = vunpack.c.l.b16 %v1408
    %v4510 = vunpack.c.h.b16 %v1408
    %v4511 = vunpack.c.l.b16 %v1409
    %v4512 = vunpack.c.h.b16 %v1409
    %v4513 = vunpack.c.l.b16 %v1410
    %v4514 = vunpack.c.h.b16 %v1410
    %v4515 = vunpack.c.l.b16 %v1411
    %v4516 = vunpack.c.h.b16 %v1411
    %v4517 = vunpack.c.l.b16 %v1412
    %v4518 = vunpack.c.h.b16 %v1412
    %v4519 = vunpack.c.l.b16 %v1413
    %v4520 = vunpack.c.h.b16 %v1413
    %v4521 = vunpack.c.l.b16 %v1414
    %v4522 = vunpack.c.h.b16 %v1414
    %v4523 = vunpack.c.l.b16 %v1415
    %v4524 = vunpack.c.h.b16 %v1415
    %v4525 = vunpack.c.l.b16 %v1416
    %v4526 = vunpack.c.h.b16 %v1416
    %v4527 = vunpack.c.l.b16 %v1417
    %v4528 = vunpack.c.h.b16 %v1417
    %v4529 = vunpack.c.l.b16 %v1418
    %v4530 = vunpack.c.h.b16 %v1418
    %v4531 = vunpack.c.l.b16 %v1419
    %v4532 = vunpack.c.h.b16 %v1419
    %v4533 = vunpack.c.l.b16 %v1420
    %v4534 = vunpack.c.h.b16 %v1420
    %v4535 = vunpack.c.l.b16 %v1421
    %v4536 = vunpack.c.h.b16 %v1421
    %v4537 = vunpack.c.l.b16 %v1422
    %v4538 = vunpack.c.h.b16 %v1422
    %v4539 = vunpack.c.l.b16 %v1423
    %v4540 = vunpack.c.h.b16 %v1423
    %v4541 = vunpack.c.l.b16 %v1424
    %v4542 = vunpack.c.h.b16 %v1424
    %v4543 = vunpack.c.l.b16 %v1425
    %v4544 = vunpack.c.h.b16 %v1425
    %v4545 = vunpack.c.l.b16 %v1426
    %v4546 = vunpack.c.h.b16 %v1426
    %v4547 = vunpack.c.l.b16 %v1427
    %v4548 = vunpack.c.h.b16 %v1427
    %v4549 = vunpack.c.l.b16 %v1428
    %v4550 = vunpack.c.h.b16 %v1428
    %v4551 = vunpack.c.l.b16 %v1429
    %v4552 = vunpack.c.h.b16 %v1429
    %v4553 = vunpack.c.l.b16 %v1430
    %v4554 = vunpack.c.h.b16 %v1430
    %v4555 = vunpack.c.l.b16 %v1431
    %v4556 = vunpack.c.h.b16 %v1431
    %v4557 = vunpack.c.l.b16 %v1432
    %v4558 = vunpack.c.h.b16 %v1432
    %v4559 = vunpack.c.l.b16 %v1433
    %v4560 = vunpack.c.h.b16 %v1433
    %v4561 = vunpack.c.l.b16 %v1434
    %v4562 = vunpack.c.h.b16 %v1434
    %v4563 = vpack.c.b16 %v2523, %v2515
    %v4564 = vpack.c.b16 %v2524, %v2516
    %v4565 = vpack.c.b16 %v2525, %v2517
    %v4566 = vpack.c.b16 %v2526, %v2518
    %v4567 = vpack.c.b16 %v2527, %v2519
    %v4568 = vpack.c.b16 %v2528, %v2520
    %v4569 = vpack.c.b16 %v2529, %v2521
    %v4570 = vpack.c.b16 %v2530, %v2522
    %v4571 = vpack.c.b16 %v2539, %v2531
    %v4572 = vpack.c.b16 %v2540, %v2532
    %v4573 = vpack.c.b16 %v2541, %v2533
    %v4574 = vpack.c.b16 %v2542, %v2534
    %v4575 = vpack.c.b16 %v2543, %v2535
    %v4576 = vpack.c.b16 %v2544, %v2536
    %v4577 = vpack.c.b16 %v2545, %v2537
    %v4578 = vpack.c.b16 %v2546, %v2538
    %v4579 = vpack.c.b16 %v2555, %v2547
    %v4580 = vpack.c.b16 %v2556, %v2548
    %v4581 = vpack.c.b16 %v2557, %v2549
    %v4582 = vpack.c.b16 %v2558, %v2550
    %v4583 = vpack.c.b16 %v2559, %v2551
    %v4584 = vpack.c.b16 %v2560, %v2552
    %v4585 = vpack.c.b16 %v2561, %v2553
    %v4586 = vpack.c.b16 %v2562, %v2554
    %v4587 = vpack.c.b16 %v2571, %v2563
    %v4588 = vpack.c.b16 %v2572, %v2564
    %v4589 = vpack.c.b16 %v2573, %v2565
    %v4590 = vpack.c.b16 %v2574, %v2566
    %v4591 = vpack.c.b16 %v2575, %v2567
    %v4592 = vpack.c.b16 %v2576, %v2568
    %v4593 = vpack.c.b16 %v2577, %v2569
    %v4594 = vpack.c.b16 %v2578, %v2570
    %v4595 = vpack.c.b16 %v2587, %v2579
    %v4596 = vpack.c.b16 %v2588, %v2580
    %v4597 = vpack.c.b16 %v2589, %v2581
    %v4598 = vpack.c.b16 %v2590, %v2582
    %v4599 = vpack.c.b16 %v2591, %v2583
    %v4600 = vpack.c.b16 %v2592, %v2584
    %v4601 = vpack.c.b16 %v2593, %v2585
    %v4602 = vpack.c.b16 %v2594, %v2586
    %v4603 = vpack.c.b16 %v2603, %v2595
    %v4604 = vpack.c.b16 %v2604, %v2596
    %v4605 = vpack.c.b16 %v2605, %v2597
    %v4606 = vpack.c.b16 %v2606, %v2598
    %v4607 = vpack.c.b16 %v2607, %v2599
    %v4608 = vpack.c.b16 %v2608, %v2600
    %v4609 = vpack.c.b16 %v2609, %v2601
    %v4610 = vpack.c.b16 %v2610, %v2602
    %v4611 = vpack.c.b16 %v2619, %v2611
    %v4612 = vpack.c.b16 %v2620, %v2612
    %v4613 = vpack.c.b16 %v2621, %v2613
    %v4614 = vpack.c.b16 %v2622, %v2614
    %v4615 = vpack.c.b16 %v2623, %v2615
    %v4616 = vpack.c.b16 %v2624, %v2616
    %v4617 = vpack.c.b16 %v2625, %v2617
    %v4618 = vpack.c.b16 %v2626, %v2618
    %v4619 = vpack.c.b16 %v2635, %v2627
    %v4620 = vpack.c.b16 %v2636, %v2628
    %v4621 = vpack.c.b16 %v2637, %v2629
    %v4622 = vpack.c.b16 %v2638, %v2630
    %v4623 = vpack.c.b16 %v2639, %v2631
    %v4624 = vpack.c.b16 %v2640, %v2632
    %v4625 = vpack.c.b16 %v2641, %v2633
    %v4626 = vpack.c.b16 %v2642, %v2634
    %v4627 = vpack.c.b16 %v2651, %v2643
    %v4628 = vpack.c.b16 %v2652, %v2644
    %v4629 = vpack.c.b16 %v2653, %v2645
    %v4630 = vpack.c.b16 %v2654, %v2646
    %v4631 = vpack.c.b16 %v2655, %v2647
    %v4632 = vpack.c.b16 %v2656, %v2648
    %v4633 = vpack.c.b16 %v2657, %v2649
    %v4634 = vpack.c.b16 %v2658, %v2650
    %v4635 = vpack.c.b16 %v2667, %v2659
    %v4636 = vpack.c.b16 %v2668, %v2660
    %v4637 = vpack.c.b16 %v2669, %v2661
    %v4638 = vpack.c.b16 %v2670, %v2662
    %v4639 = vpack.c.b16 %v2671, %v2663
    %v4640 = vpack.c.b16 %v2672, %v2664
    %v4641 = vpack.c.b16 %v2673, %v2665
    %v4642 = vpack.c.b16 %v2674, %v2666
    %v4643 = vpack.c.b16 %v2683, %v2675
    %v4644 = vpack.c.b16 %v2684, %v2676
    %v4645 = vpack.c.b16 %v2685, %v2677
    %v4646 = vpack.c.b16 %v2686, %v2678
    %v4647 = vpack.c.b16 %v2687, %v2679
    %v4648 = vpack.c.b16 %v2688, %v2680
    %v4649 = vpack.c.b16 %v2689, %v2681
    %v4650 = vpack.c.b16 %v2690, %v2682
    %v4651 = vpack.c.b16 %v2699, %v2691
    %v4652 = vpack.c.b16 %v2700, %v2692
    %v4653 = vpack.c.b16 %v2701, %v2693
    %v4654 = vpack.c.b16 %v2702, %v2694
    %v4655 = vpack.c.b16 %v2703, %v2695
    %v4656 = vpack.c.b16 %v2704, %v2696
    %v4657 = vpack.c.b16 %v2705, %v2697
    %v4658 = vpack.c.b16 %v2706, %v2698
    %v4659 = vpack.c.b16 %v2715, %v2707
    %v4660 = vpack.c.b16 %v2716, %v2708
    %v4661 = vpack.c.b16 %v2717, %v2709
    %v4662 = vpack.c.b16 %v2718, %v2710
    %v4663 = vpack.c.b16 %v2719, %v2711
    %v4664 = vpack.c.b16 %v2720, %v2712
    %v4665 = vpack.c.b16 %v2721, %v2713
    %v4666 = vpack.c.b16 %v2722, %v2714
    %v4667 = vpack.c.b16 %v2731, %v2723
    %v4668 = vpack.c.b16 %v2732, %v2724
    %v4669 = vpack.c.b16 %v2733, %v2725
    %v4670 = vpack.c.b16 %v2734, %v2726
    %v4671 = vpack.c.b16 %v2735, %v2727
    %v4672 = vpack.c.b16 %v2736, %v2728
    %v4673 = vpack.c.b16 %v2737, %v2729
    %v4674 = vpack.c.b16 %v2738, %v2730
    %v4675 = vpack.c.b16 %v2747, %v2739
    %v4676 = vpack.c.b16 %v2748, %v2740
    %v4677 = vpack.c.b16 %v2749, %v2741
    %v4678 = vpack.c.b16 %v2750, %v2742
    %v4679 = vpack.c.b16 %v2751, %v2743
    %v4680 = vpack.c.b16 %v2752, %v2744
    %v4681 = vpack.c.b16 %v2753, %v2745
    %v4682 = vpack.c.b16 %v2754, %v2746
    %v4683 = vpack.c.b16 %v2763, %v2755
    %v4684 = vpack.c.b16 %v2764, %v2756
    %v4685 = vpack.c.b16 %v2765, %v2757
    %v4686 = vpack.c.b16 %v2766, %v2758
    %v4687 = vpack.c.b16 %v2767, %v2759
    %v4688 = vpack.c.b16 %v2768, %v2760
    %v4689 = vpack.c.b16 %v2769, %v2761
    %v4690 = vpack.c.b16 %v2770, %v2762
    %v4691 = vpack.c.b16 %v2779, %v2771
    %v4692 = vpack.c.b16 %v2780, %v2772
    %v4693 = vpack.c.b16 %v2781, %v2773
    %v4694 = vpack.c.b16 %v2782, %v2774
    %v4695 = vpack.c.b16 %v2783, %v2775
    %v4696 = vpack.c.b16 %v2784, %v2776
    %v4697 = vpack.c.b16 %v2785, %v2777
    %v4698 = vpack.c.b16 %v2786, %v2778
    %v4699 = vpack.c.b16 %v2795, %v2787
    %v4700 = vpack.c.b16 %v2796, %v2788
    %v4701 = vpack.c.b16 %v2797, %v2789
    %v4702 = vpack.c.b16 %v2798, %v2790
    %v4703 = vpack.c.b16 %v2799, %v2791
    %v4704 = vpack.c.b16 %v2800, %v2792
    %v4705 = vpack.c.b16 %v2801, %v2793
    %v4706 = vpack.c.b16 %v2802, %v2794
    %v4707 = vpack.c.b16 %v2811, %v2803
    %v4708 = vpack.c.b16 %v2812, %v2804
    %v4709 = vpack.c.b16 %v2813, %v2805
    %v4710 = vpack.c.b16 %v2814, %v2806
    %v4711 = vpack.c.b16 %v2815, %v2807
    %v4712 = vpack.c.b16 %v2816, %v2808
    %v4713 = vpack.c.b16 %v2817, %v2809
    %v4714 = vpack.c.b16 %v2818, %v2810
    %v4715 = vpack.c.b16 %v2827, %v2819
    %v4716 = vpack.c.b16 %v2828, %v2820
    %v4717 = vpack.c.b16 %v2829, %v2821
    %v4718 = vpack.c.b16 %v2830, %v2822
    %v4719 = vpack.c.b16 %v2831, %v2823
    %v4720 = vpack.c.b16 %v2832, %v2824
    %v4721 = vpack.c.b16 %v2833, %v2825
    %v4722 = vpack.c.b16 %v2834, %v2826
    %v4723 = vpack.c.b16 %v2843, %v2835
    %v4724 = vpack.c.b16 %v2844, %v2836
    %v4725 = vpack.c.b16 %v2845, %v2837
    %v4726 = vpack.c.b16 %v2846, %v2838
    %v4727 = vpack.c.b16 %v2847, %v2839
    %v4728 = vpack.c.b16 %v2848, %v2840
    %v4729 = vpack.c.b16 %v2849, %v2841
    %v4730 = vpack.c.b16 %v2850, %v2842
    %v4731 = vpack.c.b16 %v2859, %v2851
    %v4732 = vpack.c.b16 %v2860, %v2852
    %v4733 = vpack.c.b16 %v2861, %v2853
    %v4734 = vpack.c.b16 %v2862, %v2854
    %v4735 = vpack.c.b16 %v2863, %v2855
    %v4736 = vpack.c.b16 %v2864, %v2856
    %v4737 = vpack.c.b16 %v2865, %v2857
    %v4738 = vpack.c.b16 %v2866, %v2858
    %v4739 = vpack.c.b16 %v2875, %v2867
    %v4740 = vpack.c.b16 %v2876, %v2868
    %v4741 = vpack.c.b16 %v2877, %v2869
    %v4742 = vpack.c.b16 %v2878, %v2870
    %v4743 = vpack.c.b16 %v2879, %v2871
    %v4744 = vpack.c.b16 %v2880, %v2872
    %v4745 = vpack.c.b16 %v2881, %v2873
    %v4746 = vpack.c.b16 %v2882, %v2874
    %v4747 = vpack.c.b16 %v2891, %v2883
    %v4748 = vpack.c.b16 %v2892, %v2884
    %v4749 = vpack.c.b16 %v2893, %v2885
    %v4750 = vpack.c.b16 %v2894, %v2886
    %v4751 = vpack.c.b16 %v2895, %v2887
    %v4752 = vpack.c.b16 %v2896, %v2888
    %v4753 = vpack.c.b16 %v2897, %v2889
    %v4754 = vpack.c.b16 %v2898, %v2890
    %v4755 = vpack.c.b16 %v2907, %v2899
    %v4756 = vpack.c.b16 %v2908, %v2900
    %v4757 = vpack.c.b16 %v2909, %v2901
    %v4758 = vpack.c.b16 %v2910, %v2902
    %v4759 = vpack.c.b16 %v2911, %v2903
    %v4760 = vpack.c.b16 %v2912, %v2904
    %v4761 = vpack.c.b16 %v2913, %v2905
    %v4762 = vpack.c.b16 %v2914, %v2906
    %v4763 = vpack.c.b16 %v2923, %v2915
    %v4764 = vpack.c.b16 %v2924, %v2916
    %v4765 = vpack.c.b16 %v2925, %v2917
    %v4766 = vpack.c.b16 %v2926, %v2918
    %v4767 = vpack.c.b16 %v2927, %v2919
    %v4768 = vpack.c.b16 %v2928, %v2920
    %v4769 = vpack.c.b16 %v2929, %v2921
    %v4770 = vpack.c.b16 %v2930, %v2922
    %v4771 = vpack.c.b16 %v2939, %v2931
    %v4772 = vpack.c.b16 %v2940, %v2932
    %v4773 = vpack.c.b16 %v2941, %v2933
    %v4774 = vpack.c.b16 %v2942, %v2934
    %v4775 = vpack.c.b16 %v2943, %v2935
    %v4776 = vpack.c.b16 %v2944, %v2936
    %v4777 = vpack.c.b16 %v2945, %v2937
    %v4778 = vpack.c.b16 %v2946, %v2938
    %v4779 = vpack.c.b16 %v2955, %v2947
    %v4780 = vpack.c.b16 %v2956, %v2948
    %v4781 = vpack.c.b16 %v2957, %v2949
    %v4782 = vpack.c.b16 %v2958, %v2950
    %v4783 = vpack.c.b16 %v2959, %v2951
    %v4784 = vpack.c.b16 %v2960, %v2952
    %v4785 = vpack.c.b16 %v2961, %v2953
    %v4786 = vpack.c.b16 %v2962, %v2954
    %v4787 = vpack.c.b16 %v2971, %v2963
    %v4788 = vpack.c.b16 %v2972, %v2964
    %v4789 = vpack.c.b16 %v2973, %v2965
    %v4790 = vpack.c.b16 %v2974, %v2966
    %v4791 = vpack.c.b16 %v2975, %v2967
    %v4792 = vpack.c.b16 %v2976, %v2968
    %v4793 = vpack.c.b16 %v2977, %v2969
    %v4794 = vpack.c.b16 %v2978, %v2970
    %v4795 = vpack.c.b16 %v2987, %v2979
    %v4796 = vpack.c.b16 %v2988, %v2980
    %v4797 = vpack.c.b16 %v2989, %v2981
    %v4798 = vpack.c.b16 %v2990, %v2982
    %v4799 = vpack.c.b16 %v2991, %v2983
    %v4800 = vpack.c.b16 %v2992, %v2984
    %v4801 = vpack.c.b16 %v2993, %v2985
    %v4802 = vpack.c.b16 %v2994, %v2986
    %v4803 = vpack.c.b16 %v3003, %v2995
    %v4804 = vpack.c.b16 %v3004, %v2996
    %v4805 = vpack.c.b16 %v3005, %v2997
    %v4806 = vpack.c.b16 %v3006, %v2998
    %v4807 = vpack.c.b16 %v3007, %v2999
    %v4808 = vpack.c.b16 %v3008, %v3000
    %v4809 = vpack.c.b16 %v3009, %v3001
    %v4810 = vpack.c.b16 %v3010, %v3002
    %v4811 = vpack.c.b16 %v3019, %v3011
    %v4812 = vpack.c.b16 %v3020, %v3012
    %v4813 = vpack.c.b16 %v3021, %v3013
    %v4814 = vpack.c.b16 %v3022, %v3014
    %v4815 = vpack.c.b16 %v3023, %v3015
    %v4816 = vpack.c.b16 %v3024, %v3016
    %v4817 = vpack.c.b16 %v3025, %v3017
    %v4818 = vpack.c.b16 %v3026, %v3018
    %v4819 = vpack.c.b16 %v3035, %v3027
    %v4820 = vpack.c.b16 %v3036, %v3028
    %v4821 = vpack.c.b16 %v3037, %v3029
    %v4822 = vpack.c.b16 %v3038, %v3030
    %v4823 = vpack.c.b16 %v3039, %v3031
    %v4824 = vpack.c.b16 %v3040, %v3032
    %v4825 = vpack.c.b16 %v3041, %v3033
    %v4826 = vpack.c.b16 %v3042, %v3034
    %v4827 = vpack.c.b16 %v3051, %v3043
    %v4828 = vpack.c.b16 %v3052, %v3044
    %v4829 = vpack.c.b16 %v3053, %v3045
    %v4830 = vpack.c.b16 %v3054, %v3046
    %v4831 = vpack.c.b16 %v3055, %v3047
    %v4832 = vpack.c.b16 %v3056, %v3048
    %v4833 = vpack.c.b16 %v3057, %v3049
    %v4834 = vpack.c.b16 %v3058, %v3050
    %v4835 = vpack.c.b16 %v3067, %v3059
    %v4836 = vpack.c.b16 %v3068, %v3060
    %v4837 = vpack.c.b16 %v3069, %v3061
    %v4838 = vpack.c.b16 %v3070, %v3062
    %v4839 = vpack.c.b16 %v3071, %v3063
    %v4840 = vpack.c.b16 %v3072, %v3064
    %v4841 = vpack.c.b16 %v3073, %v3065
    %v4842 = vpack.c.b16 %v3074, %v3066
    %v4843 = vpack.c.b16 %v3083, %v3075
    %v4844 = vpack.c.b16 %v3084, %v3076
    %v4845 = vpack.c.b16 %v3085, %v3077
    %v4846 = vpack.c.b16 %v3086, %v3078
    %v4847 = vpack.c.b16 %v3087, %v3079
    %v4848 = vpack.c.b16 %v3088, %v3080
    %v4849 = vpack.c.b16 %v3089, %v3081
    %v4850 = vpack.c.b16 %v3090, %v3082
    %v4851 = vpack.c.b16 %v3099, %v3091
    %v4852 = vpack.c.b16 %v3100, %v3092
    %v4853 = vpack.c.b16 %v3101, %v3093
    %v4854 = vpack.c.b16 %v3102, %v3094
    %v4855 = vpack.c.b16 %v3103, %v3095
    %v4856 = vpack.c.b16 %v3104, %v3096
    %v4857 = vpack.c.b16 %v3105, %v3097
    %v4858 = vpack.c.b16 %v3106, %v3098
    %v4859 = vpack.c.b16 %v3115, %v3107
    %v4860 = vpack.c.b16 %v3116, %v3108
    %v4861 = vpack.c.b16 %v3117, %v3109
    %v4862 = vpack.c.b16 %v3118, %v3110
    %v4863 = vpack.c.b16 %v3119, %v3111
    %v4864 = vpack.c.b16 %v3120, %v3112
    %v4865 = vpack.c.b16 %v3121, %v3113
    %v4866 = vpack.c.b16 %v3122, %v3114
    %v4867 = vpack.c.b16 %v3131, %v3123
    %v4868 = vpack.c.b16 %v3132, %v3124
    %v4869 = vpack.c.b16 %v3133, %v3125
    %v4870 = vpack.c.b16 %v3134, %v3126
    %v4871 = vpack.c.b16 %v3135, %v3127
    %v4872 = vpack.c.b16 %v3136, %v3128
    %v4873 = vpack.c.b16 %v3137, %v3129
    %v4874 = vpack.c.b16 %v3138, %v3130
    %v4875 = vpack.c.b16 %v3147, %v3139
    %v4876 = vpack.c.b16 %v3148, %v3140
    %v4877 = vpack.c.b16 %v3149, %v3141
    %v4878 = vpack.c.b16 %v3150, %v3142
    %v4879 = vpack.c.b16 %v3151, %v3143
    %v4880 = vpack.c.b16 %v3152, %v3144
    %v4881 = vpack.c.b16 %v3153, %v3145
    %v4882 = vpack.c.b16 %v3154, %v3146
    %v4883 = vpack.c.b16 %v3163, %v3155
    %v4884 = vpack.c.b16 %v3164, %v3156
    %v4885 = vpack.c.b16 %v3165, %v3157
    %v4886 = vpack.c.b16 %v3166, %v3158
    %v4887 = vpack.c.b16 %v3167, %v3159
    %v4888 = vpack.c.b16 %v3168, %v3160
    %v4889 = vpack.c.b16 %v3169, %v3161
    %v4890 = vpack.c.b16 %v3170, %v3162
    %v4891 = vpack.c.b16 %v3179, %v3171
    %v4892 = vpack.c.b16 %v3180, %v3172
    %v4893 = vpack.c.b16 %v3181, %v3173
    %v4894 = vpack.c.b16 %v3182, %v3174
    %v4895 = vpack.c.b16 %v3183, %v3175
    %v4896 = vpack.c.b16 %v3184, %v3176
    %v4897 = vpack.c.b16 %v3185, %v3177
    %v4898 = vpack.c.b16 %v3186, %v3178
    %v4899 = vpack.c.b16 %v3195, %v3187
    %v4900 = vpack.c.b16 %v3196, %v3188
    %v4901 = vpack.c.b16 %v3197, %v3189
    %v4902 = vpack.c.b16 %v3198, %v3190
    %v4903 = vpack.c.b16 %v3199, %v3191
    %v4904 = vpack.c.b16 %v3200, %v3192
    %v4905 = vpack.c.b16 %v3201, %v3193
    %v4906 = vpack.c.b16 %v3202, %v3194
    %v4907 = vpack.c.b16 %v3211, %v3203
    %v4908 = vpack.c.b16 %v3212, %v3204
    %v4909 = vpack.c.b16 %v3213, %v3205
    %v4910 = vpack.c.b16 %v3214, %v3206
    %v4911 = vpack.c.b16 %v3215, %v3207
    %v4912 = vpack.c.b16 %v3216, %v3208
    %v4913 = vpack.c.b16 %v3217, %v3209
    %v4914 = vpack.c.b16 %v3218, %v3210
    %v4915 = vpack.c.b16 %v3227, %v3219
    %v4916 = vpack.c.b16 %v3228, %v3220
    %v4917 = vpack.c.b16 %v3229, %v3221
    %v4918 = vpack.c.b16 %v3230, %v3222
    %v4919 = vpack.c.b16 %v3231, %v3223
    %v4920 = vpack.c.b16 %v3232, %v3224
    %v4921 = vpack.c.b16 %v3233, %v3225
    %v4922 = vpack.c.b16 %v3234, %v3226
    %v4923 = vpack.c.b16 %v3243, %v3235
    %v4924 = vpack.c.b16 %v3244, %v3236
    %v4925 = vpack.c.b16 %v3245, %v3237
    %v4926 = vpack.c.b16 %v3246, %v3238
    %v4927 = vpack.c.b16 %v3247, %v3239
    %v4928 = vpack.c.b16 %v3248, %v3240
    %v4929 = vpack.c.b16 %v3249, %v3241
    %v4930 = vpack.c.b16 %v3250, %v3242
    %v4931 = vpack.c.b16 %v3259, %v3251
    %v4932 = vpack.c.b16 %v3260, %v3252
    %v4933 = vpack.c.b16 %v3261, %v3253
    %v4934 = vpack.c.b16 %v3262, %v3254
    %v4935 = vpack.c.b16 %v3263, %v3255
    %v4936 = vpack.c.b16 %v3264, %v3256
    %v4937 = vpack.c.b16 %v3265, %v3257
    %v4938 = vpack.c.b16 %v3266, %v3258
    %v4939 = vpack.c.b16 %v3275, %v3267
    %v4940 = vpack.c.b16 %v3276, %v3268
    %v4941 = vpack.c.b16 %v3277, %v3269
    %v4942 = vpack.c.b16 %v3278, %v3270
    %v4943 = vpack.c.b16 %v3279, %v3271
    %v4944 = vpack.c.b16 %v3280, %v3272
    %v4945 = vpack.c.b16 %v3281, %v3273
    %v4946 = vpack.c.b16 %v3282, %v3274
    %v4947 = vpack.c.b16 %v3291, %v3283
    %v4948 = vpack.c.b16 %v3292, %v3284
    %v4949 = vpack.c.b16 %v3293, %v3285
    %v4950 = vpack.c.b16 %v3294, %v3286
    %v4951 = vpack.c.b16 %v3295, %v3287
    %v4952 = vpack.c.b16 %v3296, %v3288
    %v4953 = vpack.c.b16 %v3297, %v3289
    %v4954 = vpack.c.b16 %v3298, %v3290
    %v4955 = vpack.c.b16 %v3307, %v3299
    %v4956 = vpack.c.b16 %v3308, %v3300
    %v4957 = vpack.c.b16 %v3309, %v3301
    %v4958 = vpack.c.b16 %v3310, %v3302
    %v4959 = vpack.c.b16 %v3311, %v3303
    %v4960 = vpack.c.b16 %v3312, %v3304
    %v4961 = vpack.c.b16 %v3313, %v3305
    %v4962 = vpack.c.b16 %v3314, %v3306
    %v4963 = vpack.c.b16 %v3323, %v3315
    %v4964 = vpack.c.b16 %v3324, %v3316
    %v4965 = vpack.c.b16 %v3325, %v3317
    %v4966 = vpack.c.b16 %v3326, %v3318
    %v4967 = vpack.c.b16 %v3327, %v3319
    %v4968 = vpack.c.b16 %v3328, %v3320
    %v4969 = vpack.c.b16 %v3329, %v3321
    %v4970 = vpack.c.b16 %v3330, %v3322
    %v4971 = vpack.c.b16 %v3339, %v3331
    %v4972 = vpack.c.b16 %v3340, %v3332
    %v4973 = vpack.c.b16 %v3341, %v3333
    %v4974 = vpack.c.b16 %v3342, %v3334
    %v4975 = vpack.c.b16 %v3343, %v3335
    %v4976 = vpack.c.b16 %v3344, %v3336
    %v4977 = vpack.c.b16 %v3345, %v3337
    %v4978 = vpack.c.b16 %v3346, %v3338
    %v4979 = vpack.c.b16 %v3355, %v3347
    %v4980 = vpack.c.b16 %v3356, %v3348
    %v4981 = vpack.c.b16 %v3357, %v3349
    %v4982 = vpack.c.b16 %v3358, %v3350
    %v4983 = vpack.c.b16 %v3359, %v3351
    %v4984 = vpack.c.b16 %v3360, %v3352
    %v4985 = vpack.c.b16 %v3361, %v3353
    %v4986 = vpack.c.b16 %v3362, %v3354
    %v4987 = vpack.c.b16 %v3371, %v3363
    %v4988 = vpack.c.b16 %v3372, %v3364
    %v4989 = vpack.c.b16 %v3373, %v3365
    %v4990 = vpack.c.b16 %v3374, %v3366
    %v4991 = vpack.c.b16 %v3375, %v3367
    %v4992 = vpack.c.b16 %v3376, %v3368
    %v4993 = vpack.c.b16 %v3377, %v3369
    %v4994 = vpack.c.b16 %v3378, %v3370
    %v4995 = vpack.c.b16 %v3387, %v3379
    %v4996 = vpack.c.b16 %v3388, %v3380
    %v4997 = vpack.c.b16 %v3389, %v3381
    %v4998 = vpack.c.b16 %v3390, %v3382
    %v4999 = vpack.c.b16 %v3391, %v3383
    %v5000 = vpack.c.b16 %v3392, %v3384
    %v5001 = vpack.c.b16 %v3393, %v3385
    %v5002 = vpack.c.b16 %v3394, %v3386
    %v5003 = vpack.c.b16 %v3403, %v3395
    %v5004 = vpack.c.b16 %v3404, %v3396
    %v5005 = vpack.c.b16 %v3405, %v3397
    %v5006 = vpack.c.b16 %v3406, %v3398
    %v5007 = vpack.c.b16 %v3407, %v3399
    %v5008 = vpack.c.b16 %v3408, %v3400
    %v5009 = vpack.c.b16 %v3409, %v3401
    %v5010 = vpack.c.b16 %v3410, %v3402
    %v5011 = vpack.c.b16 %v3419, %v3411
    %v5012 = vpack.c.b16 %v3420, %v3412
    %v5013 = vpack.c.b16 %v3421, %v3413
    %v5014 = vpack.c.b16 %v3422, %v3414
    %v5015 = vpack.c.b16 %v3423, %v3415
    %v5016 = vpack.c.b16 %v3424, %v3416
    %v5017 = vpack.c.b16 %v3425, %v3417
    %v5018 = vpack.c.b16 %v3426, %v3418
    %v5019 = vpack.c.b16 %v3435, %v3427
    %v5020 = vpack.c.b16 %v3436, %v3428
    %v5021 = vpack.c.b16 %v3437, %v3429
    %v5022 = vpack.c.b16 %v3438, %v3430
    %v5023 = vpack.c.b16 %v3439, %v3431
    %v5024 = vpack.c.b16 %v3440, %v3432
    %v5025 = vpack.c.b16 %v3441, %v3433
    %v5026 = vpack.c.b16 %v3442, %v3434
    %v5027 = vpack.c.b16 %v3451, %v3443
    %v5028 = vpack.c.b16 %v3452, %v3444
    %v5029 = vpack.c.b16 %v3453, %v3445
    %v5030 = vpack.c.b16 %v3454, %v3446
    %v5031 = vpack.c.b16 %v3455, %v3447
    %v5032 = vpack.c.b16 %v3456, %v3448
    %v5033 = vpack.c.b16 %v3457, %v3449
    %v5034 = vpack.c.b16 %v3458, %v3450
    %v5035 = vpack.c.b16 %v3467, %v3459
    %v5036 = vpack.c.b16 %v3468, %v3460
    %v5037 = vpack.c.b16 %v3469, %v3461
    %v5038 = vpack.c.b16 %v3470, %v3462
    %v5039 = vpack.c.b16 %v3471, %v3463
    %v5040 = vpack.c.b16 %v3472, %v3464
    %v5041 = vpack.c.b16 %v3473, %v3465
    %v5042 = vpack.c.b16 %v3474, %v3466
    %v5043 = vpack.c.b16 %v3483, %v3475
    %v5044 = vpack.c.b16 %v3484, %v3476
    %v5045 = vpack.c.b16 %v3485, %v3477
    %v5046 = vpack.c.b16 %v3486, %v3478
    %v5047 = vpack.c.b16 %v3487, %v3479
    %v5048 = vpack.c.b16 %v3488, %v3480
    %v5049 = vpack.c.b16 %v3489, %v3481
    %v5050 = vpack.c.b16 %v3490, %v3482
    %v5051 = vpack.c.b16 %v3499, %v3491
    %v5052 = vpack.c.b16 %v3500, %v3492
    %v5053 = vpack.c.b16 %v3501, %v3493
    %v5054 = vpack.c.b16 %v3502, %v3494
    %v5055 = vpack.c.b16 %v3503, %v3495
    %v5056 = vpack.c.b16 %v3504, %v3496
    %v5057 = vpack.c.b16 %v3505, %v3497
    %v5058 = vpack.c.b16 %v3506, %v3498
    %v5059 = vpack.c.b16 %v3515, %v3507
    %v5060 = vpack.c.b16 %v3516, %v3508
    %v5061 = vpack.c.b16 %v3517, %v3509
    %v5062 = vpack.c.b16 %v3518, %v3510
    %v5063 = vpack.c.b16 %v3519, %v3511
    %v5064 = vpack.c.b16 %v3520, %v3512
    %v5065 = vpack.c.b16 %v3521, %v3513
    %v5066 = vpack.c.b16 %v3522, %v3514
    %v5067 = vpack.c.b16 %v3531, %v3523
    %v5068 = vpack.c.b16 %v3532, %v3524
    %v5069 = vpack.c.b16 %v3533, %v3525
    %v5070 = vpack.c.b16 %v3534, %v3526
    %v5071 = vpack.c.b16 %v3535, %v3527
    %v5072 = vpack.c.b16 %v3536, %v3528
    %v5073 = vpack.c.b16 %v3537, %v3529
    %v5074 = vpack.c.b16 %v3538, %v3530
    %v5075 = vpack.c.b16 %v3547, %v3539
    %v5076 = vpack.c.b16 %v3548, %v3540
    %v5077 = vpack.c.b16 %v3549, %v3541
    %v5078 = vpack.c.b16 %v3550, %v3542
    %v5079 = vpack.c.b16 %v3551, %v3543
    %v5080 = vpack.c.b16 %v3552, %v3544
    %v5081 = vpack.c.b16 %v3553, %v3545
    %v5082 = vpack.c.b16 %v3554, %v3546
    %v5083 = vpack.c.b16 %v3563, %v3555
    %v5084 = vpack.c.b16 %v3564, %v3556
    %v5085 = vpack.c.b16 %v3565, %v3557
    %v5086 = vpack.c.b16 %v3566, %v3558
    %v5087 = vpack.c.b16 %v3567, %v3559
    %v5088 = vpack.c.b16 %v3568, %v3560
    %v5089 = vpack.c.b16 %v3569, %v3561
    %v5090 = vpack.c.b16 %v3570, %v3562
    %v5091 = vpack.c.b16 %v3579, %v3571
    %v5092 = vpack.c.b16 %v3580, %v3572
    %v5093 = vpack.c.b16 %v3581, %v3573
    %v5094 = vpack.c.b16 %v3582, %v3574
    %v5095 = vpack.c.b16 %v3583, %v3575
    %v5096 = vpack.c.b16 %v3584, %v3576
    %v5097 = vpack.c.b16 %v3585, %v3577
    %v5098 = vpack.c.b16 %v3586, %v3578
    %v5099 = vpack.c.b16 %v3595, %v3587
    %v5100 = vpack.c.b16 %v3596, %v3588
    %v5101 = vpack.c.b16 %v3597, %v3589
    %v5102 = vpack.c.b16 %v3598, %v3590
    %v5103 = vpack.c.b16 %v3599, %v3591
    %v5104 = vpack.c.b16 %v3600, %v3592
    %v5105 = vpack.c.b16 %v3601, %v3593
    %v5106 = vpack.c.b16 %v3602, %v3594
    %v5107 = vpack.c.b16 %v3611, %v3603
    %v5108 = vpack.c.b16 %v3612, %v3604
    %v5109 = vpack.c.b16 %v3613, %v3605
    %v5110 = vpack.c.b16 %v3614, %v3606
    %v5111 = vpack.c.b16 %v3615, %v3607
    %v5112 = vpack.c.b16 %v3616, %v3608
    %v5113 = vpack.c.b16 %v3617, %v3609
    %v5114 = vpack.c.b16 %v3618, %v3610
    %v5115 = vpack.c.b16 %v3627, %v3619
    %v5116 = vpack.c.b16 %v3628, %v3620
    %v5117 = vpack.c.b16 %v3629, %v3621
    %v5118 = vpack.c.b16 %v3630, %v3622
    %v5119 = vpack.c.b16 %v3631, %v3623
    %v5120 = vpack.c.b16 %v3632, %v3624
    %v5121 = vpack.c.b16 %v3633, %v3625
    %v5122 = vpack.c.b16 %v3634, %v3626
    %v5123 = vpack.c.b16 %v3643, %v3635
    %v5124 = vpack.c.b16 %v3644, %v3636
    %v5125 = vpack.c.b16 %v3645, %v3637
    %v5126 = vpack.c.b16 %v3646, %v3638
    %v5127 = vpack.c.b16 %v3647, %v3639
    %v5128 = vpack.c.b16 %v3648, %v3640
    %v5129 = vpack.c.b16 %v3649, %v3641
    %v5130 = vpack.c.b16 %v3650, %v3642
    %v5131 = vpack.c.b16 %v3659, %v3651
    %v5132 = vpack.c.b16 %v3660, %v3652
    %v5133 = vpack.c.b16 %v3661, %v3653
    %v5134 = vpack.c.b16 %v3662, %v3654
    %v5135 = vpack.c.b16 %v3663, %v3655
    %v5136 = vpack.c.b16 %v3664, %v3656
    %v5137 = vpack.c.b16 %v3665, %v3657
    %v5138 = vpack.c.b16 %v3666, %v3658
    %v5139 = vpack.c.b16 %v3675, %v3667
    %v5140 = vpack.c.b16 %v3676, %v3668
    %v5141 = vpack.c.b16 %v3677, %v3669
    %v5142 = vpack.c.b16 %v3678, %v3670
    %v5143 = vpack.c.b16 %v3679, %v3671
    %v5144 = vpack.c.b16 %v3680, %v3672
    %v5145 = vpack.c.b16 %v3681, %v3673
    %v5146 = vpack.c.b16 %v3682, %v3674
    %v5147 = vpack.c.b16 %v3691, %v3683
    %v5148 = vpack.c.b16 %v3692, %v3684
    %v5149 = vpack.c.b16 %v3693, %v3685
    %v5150 = vpack.c.b16 %v3694, %v3686
    %v5151 = vpack.c.b16 %v3695, %v3687
    %v5152 = vpack.c.b16 %v3696, %v3688
    %v5153 = vpack.c.b16 %v3697, %v3689
    %v5154 = vpack.c.b16 %v3698, %v3690
    %v5155 = vpack.c.b16 %v3707, %v3699
    %v5156 = vpack.c.b16 %v3708, %v3700
    %v5157 = vpack.c.b16 %v3709, %v3701
    %v5158 = vpack.c.b16 %v3710, %v3702
    %v5159 = vpack.c.b16 %v3711, %v3703
    %v5160 = vpack.c.b16 %v3712, %v3704
    %v5161 = vpack.c.b16 %v3713, %v3705
    %v5162 = vpack.c.b16 %v3714, %v3706
    %v5163 = vpack.c.b16 %v3723, %v3715
    %v5164 = vpack.c.b16 %v3724, %v3716
    %v5165 = vpack.c.b16 %v3725, %v3717
    %v5166 = vpack.c.b16 %v3726, %v3718
    %v5167 = vpack.c.b16 %v3727, %v3719
    %v5168 = vpack.c.b16 %v3728, %v3720
    %v5169 = vpack.c.b16 %v3729, %v3721
    %v5170 = vpack.c.b16 %v3730, %v3722
    %v5171 = vpack.c.b16 %v3739, %v3731
    %v5172 = vpack.c.b16 %v3740, %v3732
    %v5173 = vpack.c.b16 %v3741, %v3733
    %v5174 = vpack.c.b16 %v3742, %v3734
    %v5175 = vpack.c.b16 %v3743, %v3735
    %v5176 = vpack.c.b16 %v3744, %v3736
    %v5177 = vpack.c.b16 %v3745, %v3737
    %v5178 = vpack.c.b16 %v3746, %v3738
    %v5179 = vpack.c.b16 %v3755, %v3747
    %v5180 = vpack.c.b16 %v3756, %v3748
    %v5181 = vpack.c.b16 %v3757, %v3749
    %v5182 = vpack.c.b16 %v3758, %v3750
    %v5183 = vpack.c.b16 %v3759, %v3751
    %v5184 = vpack.c.b16 %v3760, %v3752
    %v5185 = vpack.c.b16 %v3761, %v3753
    %v5186 = vpack.c.b16 %v3762, %v3754
    %v5187 = vpack.c.b16 %v3771, %v3763
    %v5188 = vpack.c.b16 %v3772, %v3764
    %v5189 = vpack.c.b16 %v3773, %v3765
    %v5190 = vpack.c.b16 %v3774, %v3766
    %v5191 = vpack.c.b16 %v3775, %v3767
    %v5192 = vpack.c.b16 %v3776, %v3768
    %v5193 = vpack.c.b16 %v3777, %v3769
    %v5194 = vpack.c.b16 %v3778, %v3770
    %v5195 = vpack.c.b16 %v3787, %v3779
    %v5196 = vpack.c.b16 %v3788, %v3780
    %v5197 = vpack.c.b16 %v3789, %v3781
    %v5198 = vpack.c.b16 %v3790, %v3782
    %v5199 = vpack.c.b16 %v3791, %v3783
    %v5200 = vpack.c.b16 %v3792, %v3784
    %v5201 = vpack.c.b16 %v3793, %v3785
    %v5202 = vpack.c.b16 %v3794, %v3786
    %v5203 = vpack.c.b16 %v3803, %v3795
    %v5204 = vpack.c.b16 %v3804, %v3796
    %v5205 = vpack.c.b16 %v3805, %v3797
    %v5206 = vpack.c.b16 %v3806, %v3798
    %v5207 = vpack.c.b16 %v3807, %v3799
    %v5208 = vpack.c.b16 %v3808, %v3800
    %v5209 = vpack.c.b16 %v3809, %v3801
    %v5210 = vpack.c.b16 %v3810, %v3802
    %v5211 = vpack.c.b16 %v3819, %v3811
    %v5212 = vpack.c.b16 %v3820, %v3812
    %v5213 = vpack.c.b16 %v3821, %v3813
    %v5214 = vpack.c.b16 %v3822, %v3814
    %v5215 = vpack.c.b16 %v3823, %v3815
    %v5216 = vpack.c.b16 %v3824, %v3816
    %v5217 = vpack.c.b16 %v3825, %v3817
    %v5218 = vpack.c.b16 %v3826, %v3818
    %v5219 = vpack.c.b16 %v3835, %v3827
    %v5220 = vpack.c.b16 %v3836, %v3828
    %v5221 = vpack.c.b16 %v3837, %v3829
    %v5222 = vpack.c.b16 %v3838, %v3830
    %v5223 = vpack.c.b16 %v3839, %v3831
    %v5224 = vpack.c.b16 %v3840, %v3832
    %v5225 = vpack.c.b16 %v3841, %v3833
    %v5226 = vpack.c.b16 %v3842, %v3834
    %v5227 = vpack.c.b16 %v3851, %v3843
    %v5228 = vpack.c.b16 %v3852, %v3844
    %v5229 = vpack.c.b16 %v3853, %v3845
    %v5230 = vpack.c.b16 %v3854, %v3846
    %v5231 = vpack.c.b16 %v3855, %v3847
    %v5232 = vpack.c.b16 %v3856, %v3848
    %v5233 = vpack.c.b16 %v3857, %v3849
    %v5234 = vpack.c.b16 %v3858, %v3850
    %v5235 = vpack.c.b16 %v3867, %v3859
    %v5236 = vpack.c.b16 %v3868, %v3860
    %v5237 = vpack.c.b16 %v3869, %v3861
    %v5238 = vpack.c.b16 %v3870, %v3862
    %v5239 = vpack.c.b16 %v3871, %v3863
    %v5240 = vpack.c.b16 %v3872, %v3864
    %v5241 = vpack.c.b16 %v3873, %v3865
    %v5242 = vpack.c.b16 %v3874, %v3866
    %v5243 = vpack.c.b16 %v3883, %v3875
    %v5244 = vpack.c.b16 %v3884, %v3876
    %v5245 = vpack.c.b16 %v3885, %v3877
    %v5246 = vpack.c.b16 %v3886, %v3878
    %v5247 = vpack.c.b16 %v3887, %v3879
    %v5248 = vpack.c.b16 %v3888, %v3880
    %v5249 = vpack.c.b16 %v3889, %v3881
    %v5250 = vpack.c.b16 %v3890, %v3882
    %v5251 = vpack.c.b16 %v3899, %v3891
    %v5252 = vpack.c.b16 %v3900, %v3892
    %v5253 = vpack.c.b16 %v3901, %v3893
    %v5254 = vpack.c.b16 %v3902, %v3894
    %v5255 = vpack.c.b16 %v3903, %v3895
    %v5256 = vpack.c.b16 %v3904, %v3896
    %v5257 = vpack.c.b16 %v3905, %v3897
    %v5258 = vpack.c.b16 %v3906, %v3898
    %v5259 = vpack.c.b16 %v3915, %v3907
    %v5260 = vpack.c.b16 %v3916, %v3908
    %v5261 = vpack.c.b16 %v3917, %v3909
    %v5262 = vpack.c.b16 %v3918, %v3910
    %v5263 = vpack.c.b16 %v3919, %v3911
    %v5264 = vpack.c.b16 %v3920, %v3912
    %v5265 = vpack.c.b16 %v3921, %v3913
    %v5266 = vpack.c.b16 %v3922, %v3914
    %v5267 = vpack.c.b16 %v3931, %v3923
    %v5268 = vpack.c.b16 %v3932, %v3924
    %v5269 = vpack.c.b16 %v3933, %v3925
    %v5270 = vpack.c.b16 %v3934, %v3926
    %v5271 = vpack.c.b16 %v3935, %v3927
    %v5272 = vpack.c.b16 %v3936, %v3928
    %v5273 = vpack.c.b16 %v3937, %v3929
    %v5274 = vpack.c.b16 %v3938, %v3930
    %v5275 = vpack.c.b16 %v3947, %v3939
    %v5276 = vpack.c.b16 %v3948, %v3940
    %v5277 = vpack.c.b16 %v3949, %v3941
    %v5278 = vpack.c.b16 %v3950, %v3942
    %v5279 = vpack.c.b16 %v3951, %v3943
    %v5280 = vpack.c.b16 %v3952, %v3944
    %v5281 = vpack.c.b16 %v3953, %v3945
    %v5282 = vpack.c.b16 %v3954, %v3946
    %v5283 = vpack.c.b16 %v3963, %v3955
    %v5284 = vpack.c.b16 %v3964, %v3956
    %v5285 = vpack.c.b16 %v3965, %v3957
    %v5286 = vpack.c.b16 %v3966, %v3958
    %v5287 = vpack.c.b16 %v3967, %v3959
    %v5288 = vpack.c.b16 %v3968, %v3960
    %v5289 = vpack.c.b16 %v3969, %v3961
    %v5290 = vpack.c.b16 %v3970, %v3962
    %v5291 = vpack.c.b16 %v3979, %v3971
    %v5292 = vpack.c.b16 %v3980, %v3972
    %v5293 = vpack.c.b16 %v3981, %v3973
    %v5294 = vpack.c.b16 %v3982, %v3974
    %v5295 = vpack.c.b16 %v3983, %v3975
    %v5296 = vpack.c.b16 %v3984, %v3976
    %v5297 = vpack.c.b16 %v3985, %v3977
    %v5298 = vpack.c.b16 %v3986, %v3978
    %v5299 = vpack.c.b16 %v3995, %v3987
    %v5300 = vpack.c.b16 %v3996, %v3988
    %v5301 = vpack.c.b16 %v3997, %v3989
    %v5302 = vpack.c.b16 %v3998, %v3990
    %v5303 = vpack.c.b16 %v3999, %v3991
    %v5304 = vpack.c.b16 %v4000, %v3992
    %v5305 = vpack.c.b16 %v4001, %v3993
    %v5306 = vpack.c.b16 %v4002, %v3994
    %v5307 = vpack.c.b16 %v4011, %v4003
    %v5308 = vpack.c.b16 %v4012, %v4004
    %v5309 = vpack.c.b16 %v4013, %v4005
    %v5310 = vpack.c.b16 %v4014, %v4006
    %v5311 = vpack.c.b16 %v4015, %v4007
    %v5312 = vpack.c.b16 %v4016, %v4008
    %v5313 = vpack.c.b16 %v4017, %v4009
    %v5314 = vpack.c.b16 %v4018, %v4010
    %v5315 = vpack.c.b16 %v4027, %v4019
    %v5316 = vpack.c.b16 %v4028, %v4020
    %v5317 = vpack.c.b16 %v4029, %v4021
    %v5318 = vpack.c.b16 %v4030, %v4022
    %v5319 = vpack.c.b16 %v4031, %v4023
    %v5320 = vpack.c.b16 %v4032, %v4024
    %v5321 = vpack.c.b16 %v4033, %v4025
    %v5322 = vpack.c.b16 %v4034, %v4026
    %v5323 = vpack.c.b16 %v4043, %v4035
    %v5324 = vpack.c.b16 %v4044, %v4036
    %v5325 = vpack.c.b16 %v4045, %v4037
    %v5326 = vpack.c.b16 %v4046, %v4038
    %v5327 = vpack.c.b16 %v4047, %v4039
    %v5328 = vpack.c.b16 %v4048, %v4040
    %v5329 = vpack.c.b16 %v4049, %v4041
    %v5330 = vpack.c.b16 %v4050, %v4042
    %v5331 = vpack.c.b16 %v4059, %v4051
    %v5332 = vpack.c.b16 %v4060, %v4052
    %v5333 = vpack.c.b16 %v4061, %v4053
    %v5334 = vpack.c.b16 %v4062, %v4054
    %v5335 = vpack.c.b16 %v4063, %v4055
    %v5336 = vpack.c.b16 %v4064, %v4056
    %v5337 = vpack.c.b16 %v4065, %v4057
    %v5338 = vpack.c.b16 %v4066, %v4058
    %v5339 = vpack.c.b16 %v4075, %v4067
    %v5340 = vpack.c.b16 %v4076, %v4068
    %v5341 = vpack.c.b16 %v4077, %v4069
    %v5342 = vpack.c.b16 %v4078, %v4070
    %v5343 = vpack.c.b16 %v4079, %v4071
    %v5344 = vpack.c.b16 %v4080, %v4072
    %v5345 = vpack.c.b16 %v4081, %v4073
    %v5346 = vpack.c.b16 %v4082, %v4074
    %v5347 = vpack.c.b16 %v4091, %v4083
    %v5348 = vpack.c.b16 %v4092, %v4084
    %v5349 = vpack.c.b16 %v4093, %v4085
    %v5350 = vpack.c.b16 %v4094, %v4086
    %v5351 = vpack.c.b16 %v4095, %v4087
    %v5352 = vpack.c.b16 %v4096, %v4088
    %v5353 = vpack.c.b16 %v4097, %v4089
    %v5354 = vpack.c.b16 %v4098, %v4090
    %v5355 = vpack.c.b16 %v4107, %v4099
    %v5356 = vpack.c.b16 %v4108, %v4100
    %v5357 = vpack.c.b16 %v4109, %v4101
    %v5358 = vpack.c.b16 %v4110, %v4102
    %v5359 = vpack.c.b16 %v4111, %v4103
    %v5360 = vpack.c.b16 %v4112, %v4104
    %v5361 = vpack.c.b16 %v4113, %v4105
    %v5362 = vpack.c.b16 %v4114, %v4106
    %v5363 = vpack.c.b16 %v4123, %v4115
    %v5364 = vpack.c.b16 %v4124, %v4116
    %v5365 = vpack.c.b16 %v4125, %v4117
    %v5366 = vpack.c.b16 %v4126, %v4118
    %v5367 = vpack.c.b16 %v4127, %v4119
    %v5368 = vpack.c.b16 %v4128, %v4120
    %v5369 = vpack.c.b16 %v4129, %v4121
    %v5370 = vpack.c.b16 %v4130, %v4122
    %v5371 = vpack.c.b16 %v4139, %v4131
    %v5372 = vpack.c.b16 %v4140, %v4132
    %v5373 = vpack.c.b16 %v4141, %v4133
    %v5374 = vpack.c.b16 %v4142, %v4134
    %v5375 = vpack.c.b16 %v4143, %v4135
    %v5376 = vpack.c.b16 %v4144, %v4136
    %v5377 = vpack.c.b16 %v4145, %v4137
    %v5378 = vpack.c.b16 %v4146, %v4138
    %v5379 = vpack.c.b16 %v4155, %v4147
    %v5380 = vpack.c.b16 %v4156, %v4148
    %v5381 = vpack.c.b16 %v4157, %v4149
    %v5382 = vpack.c.b16 %v4158, %v4150
    %v5383 = vpack.c.b16 %v4159, %v4151
    %v5384 = vpack.c.b16 %v4160, %v4152
    %v5385 = vpack.c.b16 %v4161, %v4153
    %v5386 = vpack.c.b16 %v4162, %v4154
    %v5387 = vpack.c.b16 %v4171, %v4163
    %v5388 = vpack.c.b16 %v4172, %v4164
    %v5389 = vpack.c.b16 %v4173, %v4165
    %v5390 = vpack.c.b16 %v4174, %v4166
    %v5391 = vpack.c.b16 %v4175, %v4167
    %v5392 = vpack.c.b16 %v4176, %v4168
    %v5393 = vpack.c.b16 %v4177, %v4169
    %v5394 = vpack.c.b16 %v4178, %v4170
    %v5395 = vpack.c.b16 %v4187, %v4179
    %v5396 = vpack.c.b16 %v4188, %v4180
    %v5397 = vpack.c.b16 %v4189, %v4181
    %v5398 = vpack.c.b16 %v4190, %v4182
    %v5399 = vpack.c.b16 %v4191, %v4183
    %v5400 = vpack.c.b16 %v4192, %v4184
    %v5401 = vpack.c.b16 %v4193, %v4185
    %v5402 = vpack.c.b16 %v4194, %v4186
    %v5403 = vpack.c.b16 %v4203, %v4195
    %v5404 = vpack.c.b16 %v4204, %v4196
    %v5405 = vpack.c.b16 %v4205, %v4197
    %v5406 = vpack.c.b16 %v4206, %v4198
    %v5407 = vpack.c.b16 %v4207, %v4199
    %v5408 = vpack.c.b16 %v4208, %v4200
    %v5409 = vpack.c.b16 %v4209, %v4201
    %v5410 = vpack.c.b16 %v4210, %v4202
    %v5411 = vpack.c.b16 %v4219, %v4211
    %v5412 = vpack.c.b16 %v4220, %v4212
    %v5413 = vpack.c.b16 %v4221, %v4213
    %v5414 = vpack.c.b16 %v4222, %v4214
    %v5415 = vpack.c.b16 %v4223, %v4215
    %v5416 = vpack.c.b16 %v4224, %v4216
    %v5417 = vpack.c.b16 %v4225, %v4217
    %v5418 = vpack.c.b16 %v4226, %v4218
    %v5419 = vpack.c.b16 %v4235, %v4227
    %v5420 = vpack.c.b16 %v4236, %v4228
    %v5421 = vpack.c.b16 %v4237, %v4229
    %v5422 = vpack.c.b16 %v4238, %v4230
    %v5423 = vpack.c.b16 %v4239, %v4231
    %v5424 = vpack.c.b16 %v4240, %v4232
    %v5425 = vpack.c.b16 %v4241, %v4233
    %v5426 = vpack.c.b16 %v4242, %v4234
    %v5427 = vpack.c.b16 %v4251, %v4243
    %v5428 = vpack.c.b16 %v4252, %v4244
    %v5429 = vpack.c.b16 %v4253, %v4245
    %v5430 = vpack.c.b16 %v4254, %v4246
    %v5431 = vpack.c.b16 %v4255, %v4247
    %v5432 = vpack.c.b16 %v4256, %v4248
    %v5433 = vpack.c.b16 %v4257, %v4249
    %v5434 = vpack.c.b16 %v4258, %v4250
    %v5435 = vpack.c.b16 %v4267, %v4259
    %v5436 = vpack.c.b16 %v4268, %v4260
    %v5437 = vpack.c.b16 %v4269, %v4261
    %v5438 = vpack.c.b16 %v4270, %v4262
    %v5439 = vpack.c.b16 %v4271, %v4263
    %v5440 = vpack.c.b16 %v4272, %v4264
    %v5441 = vpack.c.b16 %v4273, %v4265
    %v5442 = vpack.c.b16 %v4274, %v4266
    %v5443 = vpack.c.b16 %v4283, %v4275
    %v5444 = vpack.c.b16 %v4284, %v4276
    %v5445 = vpack.c.b16 %v4285, %v4277
    %v5446 = vpack.c.b16 %v4286, %v4278
    %v5447 = vpack.c.b16 %v4287, %v4279
    %v5448 = vpack.c.b16 %v4288, %v4280
    %v5449 = vpack.c.b16 %v4289, %v4281
    %v5450 = vpack.c.b16 %v4290, %v4282
    %v5451 = vpack.c.b16 %v4299, %v4291
    %v5452 = vpack.c.b16 %v4300, %v4292
    %v5453 = vpack.c.b16 %v4301, %v4293
    %v5454 = vpack.c.b16 %v4302, %v4294
    %v5455 = vpack.c.b16 %v4303, %v4295
    %v5456 = vpack.c.b16 %v4304, %v4296
    %v5457 = vpack.c.b16 %v4305, %v4297
    %v5458 = vpack.c.b16 %v4306, %v4298
    %v5459 = vpack.c.b16 %v4315, %v4307
    %v5460 = vpack.c.b16 %v4316, %v4308
    %v5461 = vpack.c.b16 %v4317, %v4309
    %v5462 = vpack.c.b16 %v4318, %v4310
    %v5463 = vpack.c.b16 %v4319, %v4311
    %v5464 = vpack.c.b16 %v4320, %v4312
    %v5465 = vpack.c.b16 %v4321, %v4313
    %v5466 = vpack.c.b16 %v4322, %v4314
    %v5467 = vpack.c.b16 %v4331, %v4323
    %v5468 = vpack.c.b16 %v4332, %v4324
    %v5469 = vpack.c.b16 %v4333, %v4325
    %v5470 = vpack.c.b16 %v4334, %v4326
    %v5471 = vpack.c.b16 %v4335, %v4327
    %v5472 = vpack.c.b16 %v4336, %v4328
    %v5473 = vpack.c.b16 %v4337, %v4329
    %v5474 = vpack.c.b16 %v4338, %v4330
    %v5475 = vpack.c.b16 %v4347, %v4339
    %v5476 = vpack.c.b16 %v4348, %v4340
    %v5477 = vpack.c.b16 %v4349, %v4341
    %v5478 = vpack.c.b16 %v4350, %v4342
    %v5479 = vpack.c.b16 %v4351, %v4343
    %v5480 = vpack.c.b16 %v4352, %v4344
    %v5481 = vpack.c.b16 %v4353, %v4345
    %v5482 = vpack.c.b16 %v4354, %v4346
    %v5483 = vpack.c.b16 %v4363, %v4355
    %v5484 = vpack.c.b16 %v4364, %v4356
    %v5485 = vpack.c.b16 %v4365, %v4357
    %v5486 = vpack.c.b16 %v4366, %v4358
    %v5487 = vpack.c.b16 %v4367, %v4359
    %v5488 = vpack.c.b16 %v4368, %v4360
    %v5489 = vpack.c.b16 %v4369, %v4361
    %v5490 = vpack.c.b16 %v4370, %v4362
    %v5491 = vpack.c.b16 %v4379, %v4371
    %v5492 = vpack.c.b16 %v4380, %v4372
    %v5493 = vpack.c.b16 %v4381, %v4373
    %v5494 = vpack.c.b16 %v4382, %v4374
    %v5495 = vpack.c.b16 %v4383, %v4375
    %v5496 = vpack.c.b16 %v4384, %v4376
    %v5497 = vpack.c.b16 %v4385, %v4377
    %v5498 = vpack.c.b16 %v4386, %v4378
    %v5499 = vpack.c.b16 %v4395, %v4387
    %v5500 = vpack.c.b16 %v4396, %v4388
    %v5501 = vpack.c.b16 %v4397, %v4389
    %v5502 = vpack.c.b16 %v4398, %v4390
    %v5503 = vpack.c.b16 %v4399, %v4391
    %v5504 = vpack.c.b16 %v4400, %v4392
    %v5505 = vpack.c.b16 %v4401, %v4393
    %v5506 = vpack.c.b16 %v4402, %v4394
    %v5507 = vpack.c.b16 %v4411, %v4403
    %v5508 = vpack.c.b16 %v4412, %v4404
    %v5509 = vpack.c.b16 %v4413, %v4405
    %v5510 = vpack.c.b16 %v4414, %v4406
    %v5511 = vpack.c.b16 %v4415, %v4407
    %v5512 = vpack.c.b16 %v4416, %v4408
    %v5513 = vpack.c.b16 %v4417, %v4409
    %v5514 = vpack.c.b16 %v4418, %v4410
    %v5515 = vpack.c.b16 %v4427, %v4419
    %v5516 = vpack.c.b16 %v4428, %v4420
    %v5517 = vpack.c.b16 %v4429, %v4421
    %v5518 = vpack.c.b16 %v4430, %v4422
    %v5519 = vpack.c.b16 %v4431, %v4423
    %v5520 = vpack.c.b16 %v4432, %v4424
    %v5521 = vpack.c.b16 %v4433, %v4425
    %v5522 = vpack.c.b16 %v4434, %v4426
    %v5523 = vpack.c.b16 %v4443, %v4435
    %v5524 = vpack.c.b16 %v4444, %v4436
    %v5525 = vpack.c.b16 %v4445, %v4437
    %v5526 = vpack.c.b16 %v4446, %v4438
    %v5527 = vpack.c.b16 %v4447, %v4439
    %v5528 = vpack.c.b16 %v4448, %v4440
    %v5529 = vpack.c.b16 %v4449, %v4441
    %v5530 = vpack.c.b16 %v4450, %v4442
    %v5531 = vpack.c.b16 %v4459, %v4451
    %v5532 = vpack.c.b16 %v4460, %v4452
    %v5533 = vpack.c.b16 %v4461, %v4453
    %v5534 = vpack.c.b16 %v4462, %v4454
    %v5535 = vpack.c.b16 %v4463, %v4455
    %v5536 = vpack.c.b16 %v4464, %v4456
    %v5537 = vpack.c.b16 %v4465, %v4457
    %v5538 = vpack.c.b16 %v4466, %v4458
    %v5539 = vpack.c.b16 %v4475, %v4467
    %v5540 = vpack.c.b16 %v4476, %v4468
    %v5541 = vpack.c.b16 %v4477, %v4469
    %v5542 = vpack.c.b16 %v4478, %v4470
    %v5543 = vpack.c.b16 %v4479, %v4471
    %v5544 = vpack.c.b16 %v4480, %v4472
    %v5545 = vpack.c.b16 %v4481, %v4473
    %v5546 = vpack.c.b16 %v4482, %v4474
    %v5547 = vpack.c.b16 %v4491, %v4483
    %v5548 = vpack.c.b16 %v4492, %v4484
    %v5549 = vpack.c.b16 %v4493, %v4485
    %v5550 = vpack.c.b16 %v4494, %v4486
    %v5551 = vpack.c.b16 %v4495, %v4487
    %v5552 = vpack.c.b16 %v4496, %v4488
    %v5553 = vpack.c.b16 %v4497, %v4489
    %v5554 = vpack.c.b16 %v4498, %v4490
    %v5555 = vpack.c.b16 %v4507, %v4499
    %v5556 = vpack.c.b16 %v4508, %v4500
    %v5557 = vpack.c.b16 %v4509, %v4501
    %v5558 = vpack.c.b16 %v4510, %v4502
    %v5559 = vpack.c.b16 %v4511, %v4503
    %v5560 = vpack.c.b16 %v4512, %v4504
    %v5561 = vpack.c.b16 %v4513, %v4505
    %v5562 = vpack.c.b16 %v4514, %v4506
    %v5563 = vpack.c.b16 %v4523, %v4515
    %v5564 = vpack.c.b16 %v4524, %v4516
    %v5565 = vpack.c.b16 %v4525, %v4517
    %v5566 = vpack.c.b16 %v4526, %v4518
    %v5567 = vpack.c.b16 %v4527, %v4519
    %v5568 = vpack.c.b16 %v4528, %v4520
    %v5569 = vpack.c.b16 %v4529, %v4521
    %v5570 = vpack.c.b16 %v4530, %v4522
    %v5571 = vpack.c.b16 %v4539, %v4531
    %v5572 = vpack.c.b16 %v4540, %v4532
    %v5573 = vpack.c.b16 %v4541, %v4533
    %v5574 = vpack.c.b16 %v4542, %v4534
    %v5575 = vpack.c.b16 %v4543, %v4535
    %v5576 = vpack.c.b16 %v4544, %v4536
    %v5577 = vpack.c.b16 %v4545, %v4537
    %v5578 = vpack.c.b16 %v4546, %v4538
    %v5579 = vpack.c.b16 %v4555, %v4547
    %v5580 = vpack.c.b16 %v4556, %v4548
    %v5581 = vpack.c.b16 %v4557, %v4549
    %v5582 = vpack.c.b16 %v4558, %v4550
    %v5583 = vpack.c.b16 %v4559, %v4551
    %v5584 = vpack.c.b16 %v4560, %v4552
    %v5585 = vpack.c.b16 %v4561, %v4553
    %v5586 = vpack.c.b16 %v4562, %v4554
    %6611 = vmatpush.bf16.msra.mxu0 %v4619
    %6612 = vmatpush.bf16.msra.mxu0 %v4611
    %6613 = vmatpush.bf16.msra.mxu0 %v4603
    %6614 = vmatpush.bf16.msra.mxu0 %v4595
    %6615 = vmatpush.bf16.msra.mxu0 %v4587
    %6616 = vmatpush.bf16.msra.mxu0 %v4579
    %6617 = vmatpush.bf16.msra.mxu0 %v4571
    %6618 = vmatpush.bf16.msra.mxu0 %v4563
    %6619 = vmatmul.bf16.gmra.mxu0 %v1457
    %v6620 = vpop.f32.mrf.mxu0
    %v6621 = vadd.f32 %v1437, %v6620
    %v6622 = vpop.f32.mrf.mxu0
    %6623 = vdwg.mxu0
    %6624 = vmatpush.bf16.msra.mxu0 %v4683
    %6625 = vmatpush.bf16.msra.mxu0 %v4675
    %6626 = vmatpush.bf16.msra.mxu0 %v4667
    %6627 = vmatpush.bf16.msra.mxu0 %v4659
    %6628 = vmatpush.bf16.msra.mxu0 %v4651
    %6629 = vmatpush.bf16.msra.mxu0 %v4643
    %6630 = vmatpush.bf16.msra.mxu0 %v4635
    %6631 = vmatpush.bf16.msra.mxu0 %v4627
    %6632 = vmatmul.bf16.gmra.mxu0 %v1458
    %v6633 = vpop.f32.mrf.mxu0
    %v6634 = vadd.f32 %v6621, %v6633
    %v6635 = vpop.f32.mrf.mxu0
    %6636 = vdwg.mxu0
    %6637 = vmatpush.bf16.msra.mxu0 %v4747
    %6638 = vmatpush.bf16.msra.mxu0 %v4739
    %6639 = vmatpush.bf16.msra.mxu0 %v4731
    %6640 = vmatpush.bf16.msra.mxu0 %v4723
    %6641 = vmatpush.bf16.msra.mxu0 %v4715
    %6642 = vmatpush.bf16.msra.mxu0 %v4707
    %6643 = vmatpush.bf16.msra.mxu0 %v4699
    %6644 = vmatpush.bf16.msra.mxu0 %v4691
    %6645 = vmatmul.bf16.gmra.mxu0 %v1459
    %v6646 = vpop.f32.mrf.mxu0
    %v6647 = vadd.f32 %v6634, %v6646
    %v6648 = vpop.f32.mrf.mxu0
    %6649 = vdwg.mxu0
    %6650 = vmatpush.bf16.msra.mxu0 %v4811
    %6651 = vmatpush.bf16.msra.mxu0 %v4803
    %6652 = vmatpush.bf16.msra.mxu0 %v4795
    %6653 = vmatpush.bf16.msra.mxu0 %v4787
    %6654 = vmatpush.bf16.msra.mxu0 %v4779
    %6655 = vmatpush.bf16.msra.mxu0 %v4771
    %6656 = vmatpush.bf16.msra.mxu0 %v4763
    %6657 = vmatpush.bf16.msra.mxu0 %v4755
    %6658 = vmatmul.bf16.gmra.mxu0 %v1460
    %v6659 = vpop.f32.mrf.mxu0
    %v6660 = vadd.f32 %v6647, %v6659
    %v6661 = vpop.f32.mrf.mxu0
    %6662 = vdwg.mxu0
    %6663 = vmatpush.bf16.msra.mxu0 %v4875
    %6664 = vmatpush.bf16.msra.mxu0 %v4867
    %6665 = vmatpush.bf16.msra.mxu0 %v4859
    %6666 = vmatpush.bf16.msra.mxu0 %v4851
    %6667 = vmatpush.bf16.msra.mxu0 %v4843
    %6668 = vmatpush.bf16.msra.mxu0 %v4835
    %6669 = vmatpush.bf16.msra.mxu0 %v4827
    %6670 = vmatpush.bf16.msra.mxu0 %v4819
    %6671 = vmatmul.bf16.gmra.mxu0 %v1461
    %v6672 = vpop.f32.mrf.mxu0
    %v6673 = vadd.f32 %v6660, %v6672
    %v6674 = vpop.f32.mrf.mxu0
    %6675 = vdwg.mxu0
    %6676 = vmatpush.bf16.msra.mxu0 %v4939
    %6677 = vmatpush.bf16.msra.mxu0 %v4931
    %6678 = vmatpush.bf16.msra.mxu0 %v4923
    %6679 = vmatpush.bf16.msra.mxu0 %v4915
    %6680 = vmatpush.bf16.msra.mxu0 %v4907
    %6681 = vmatpush.bf16.msra.mxu0 %v4899
    %6682 = vmatpush.bf16.msra.mxu0 %v4891
    %6683 = vmatpush.bf16.msra.mxu0 %v4883
    %6684 = vmatmul.bf16.gmra.mxu0 %v1462
    %v6685 = vpop.f32.mrf.mxu0
    %v6686 = vadd.f32 %v6673, %v6685
    %v6687 = vpop.f32.mrf.mxu0
    %6688 = vdwg.mxu0
    %6689 = vmatpush.bf16.msra.mxu0 %v5003
    %6690 = vmatpush.bf16.msra.mxu0 %v4995
    %6691 = vmatpush.bf16.msra.mxu0 %v4987
    %6692 = vmatpush.bf16.msra.mxu0 %v4979
    %6693 = vmatpush.bf16.msra.mxu0 %v4971
    %6694 = vmatpush.bf16.msra.mxu0 %v4963
    %6695 = vmatpush.bf16.msra.mxu0 %v4955
    %6696 = vmatpush.bf16.msra.mxu0 %v4947
    %6697 = vmatmul.bf16.gmra.mxu0 %v1463
    %v6698 = vpop.f32.mrf.mxu0
    %v6699 = vadd.f32 %v6686, %v6698
    %v6700 = vpop.f32.mrf.mxu0
    %6701 = vdwg.mxu0
    %6702 = vmatpush.bf16.msra.mxu0 %v5067
    %6703 = vmatpush.bf16.msra.mxu0 %v5059
    %6704 = vmatpush.bf16.msra.mxu0 %v5051
    %6705 = vmatpush.bf16.msra.mxu0 %v5043
    %6706 = vmatpush.bf16.msra.mxu0 %v5035
    %6707 = vmatpush.bf16.msra.mxu0 %v5027
    %6708 = vmatpush.bf16.msra.mxu0 %v5019
    %6709 = vmatpush.bf16.msra.mxu0 %v5011
    %6710 = vmatmul.bf16.gmra.mxu0 %v1464
    %v6711 = vpop.f32.mrf.mxu0
    %v6712 = vadd.f32 %v6699, %v6711
    %v6713 = vpop.f32.mrf.mxu0
    %6714 = vdwg.mxu0
    %6715 = vmatpush.bf16.msra.mxu0 %v5131
    %6716 = vmatpush.bf16.msra.mxu0 %v5123
    %6717 = vmatpush.bf16.msra.mxu0 %v5115
    %6718 = vmatpush.bf16.msra.mxu0 %v5107
    %6719 = vmatpush.bf16.msra.mxu0 %v5099
    %6720 = vmatpush.bf16.msra.mxu0 %v5091
    %6721 = vmatpush.bf16.msra.mxu0 %v5083
    %6722 = vmatpush.bf16.msra.mxu0 %v5075
    %6723 = vmatmul.bf16.gmra.mxu0 %v1467
    %v6724 = vpop.f32.mrf.mxu0
    %v6725 = vadd.f32 %v6712, %v6724
    %v6726 = vpop.f32.mrf.mxu0
    %6727 = vdwg.mxu0
    %6728 = vmatpush.bf16.msra.mxu0 %v5195
    %6729 = vmatpush.bf16.msra.mxu0 %v5187
    %6730 = vmatpush.bf16.msra.mxu0 %v5179
    %6731 = vmatpush.bf16.msra.mxu0 %v5171
    %6732 = vmatpush.bf16.msra.mxu0 %v5163
    %6733 = vmatpush.bf16.msra.mxu0 %v5155
    %6734 = vmatpush.bf16.msra.mxu0 %v5147
    %6735 = vmatpush.bf16.msra.mxu0 %v5139
    %6736 = vmatmul.bf16.gmra.mxu0 %v1468
    %v6737 = vpop.f32.mrf.mxu0
    %v6738 = vadd.f32 %v6725, %v6737
    %v6739 = vpop.f32.mrf.mxu0
    %6740 = vdwg.mxu0
    %6741 = vmatpush.bf16.msra.mxu0 %v5259
    %6742 = vmatpush.bf16.msra.mxu0 %v5251
    %6743 = vmatpush.bf16.msra.mxu0 %v5243
    %6744 = vmatpush.bf16.msra.mxu0 %v5235
    %6745 = vmatpush.bf16.msra.mxu0 %v5227
    %6746 = vmatpush.bf16.msra.mxu0 %v5219
    %6747 = vmatpush.bf16.msra.mxu0 %v5211
    %6748 = vmatpush.bf16.msra.mxu0 %v5203
    %6749 = vmatmul.bf16.gmra.mxu0 %v1469
    %v6750 = vpop.f32.mrf.mxu0
    %v6751 = vadd.f32 %v6738, %v6750
    %v6752 = vpop.f32.mrf.mxu0
    %6753 = vdwg.mxu0
    %6754 = vmatpush.bf16.msra.mxu0 %v5323
    %6755 = vmatpush.bf16.msra.mxu0 %v5315
    %6756 = vmatpush.bf16.msra.mxu0 %v5307
    %6757 = vmatpush.bf16.msra.mxu0 %v5299
    %6758 = vmatpush.bf16.msra.mxu0 %v5291
    %6759 = vmatpush.bf16.msra.mxu0 %v5283
    %6760 = vmatpush.bf16.msra.mxu0 %v5275
    %6761 = vmatpush.bf16.msra.mxu0 %v5267
    %6762 = vmatmul.bf16.gmra.mxu0 %v1470
    %v6763 = vpop.f32.mrf.mxu0
    %v6764 = vadd.f32 %v6751, %v6763
    %v6765 = vpop.f32.mrf.mxu0
    %6766 = vdwg.mxu0
    %6767 = vmatpush.bf16.msra.mxu0 %v5387
    %6768 = vmatpush.bf16.msra.mxu0 %v5379
    %6769 = vmatpush.bf16.msra.mxu0 %v5371
    %6770 = vmatpush.bf16.msra.mxu0 %v5363
    %6771 = vmatpush.bf16.msra.mxu0 %v5355
    %6772 = vmatpush.bf16.msra.mxu0 %v5347
    %6773 = vmatpush.bf16.msra.mxu0 %v5339
    %6774 = vmatpush.bf16.msra.mxu0 %v5331
    %6775 = vmatmul.bf16.gmra.mxu0 %v1471
    %v6776 = vpop.f32.mrf.mxu0
    %v6777 = vadd.f32 %v6764, %v6776
    %v6778 = vpop.f32.mrf.mxu0
    %6779 = vdwg.mxu0
    %6780 = vmatpush.bf16.msra.mxu0 %v5451
    %6781 = vmatpush.bf16.msra.mxu0 %v5443
    %6782 = vmatpush.bf16.msra.mxu0 %v5435
    %6783 = vmatpush.bf16.msra.mxu0 %v5427
    %6784 = vmatpush.bf16.msra.mxu0 %v5419
    %6785 = vmatpush.bf16.msra.mxu0 %v5411
    %6786 = vmatpush.bf16.msra.mxu0 %v5403
    %6787 = vmatpush.bf16.msra.mxu0 %v5395
    %6788 = vmatmul.bf16.gmra.mxu0 %v1472
    %v6789 = vpop.f32.mrf.mxu0
    %v6790 = vadd.f32 %v6777, %v6789
    %v6791 = vpop.f32.mrf.mxu0
    %6792 = vdwg.mxu0
    %6793 = vmatpush.bf16.msra.mxu0 %v5515
    %6794 = vmatpush.bf16.msra.mxu0 %v5507
    %6795 = vmatpush.bf16.msra.mxu0 %v5499
    %6796 = vmatpush.bf16.msra.mxu0 %v5491
    %6797 = vmatpush.bf16.msra.mxu0 %v5483
    %6798 = vmatpush.bf16.msra.mxu0 %v5475
    %6799 = vmatpush.bf16.msra.mxu0 %v5467
    %6800 = vmatpush.bf16.msra.mxu0 %v5459
    %6801 = vmatmul.bf16.gmra.mxu0 %v1473
    %v6802 = vpop.f32.mrf.mxu0
    %v6803 = vadd.f32 %v6790, %v6802
    %v6804 = vpop.f32.mrf.mxu0
    %6805 = vdwg.mxu0
    %6806 = vmatpush.bf16.msra.mxu0 %v5579
    %6807 = vmatpush.bf16.msra.mxu0 %v5571
    %6808 = vmatpush.bf16.msra.mxu0 %v5563
    %6809 = vmatpush.bf16.msra.mxu0 %v5555
    %6810 = vmatpush.bf16.msra.mxu0 %v5547
    %6811 = vmatpush.bf16.msra.mxu0 %v5539
    %6812 = vmatpush.bf16.msra.mxu0 %v5531
    %6813 = vmatpush.bf16.msra.mxu0 %v5523
    %6814 = vmatmul.bf16.gmra.mxu0 %v1474
    %v6815 = vpop.f32.mrf.mxu0
    %v6816 = vadd.f32 %v6803, %v6815
    %v6817 = vpop.f32.mrf.mxu0
    %6818 = vdwg.mxu0
    %6819 = vmatpush.bf16.msra.mxu0 %v4620
    %6820 = vmatpush.bf16.msra.mxu0 %v4612
    %6821 = vmatpush.bf16.msra.mxu0 %v4604
    %6822 = vmatpush.bf16.msra.mxu0 %v4596
    %6823 = vmatpush.bf16.msra.mxu0 %v4588
    %6824 = vmatpush.bf16.msra.mxu0 %v4580
    %6825 = vmatpush.bf16.msra.mxu0 %v4572
    %6826 = vmatpush.bf16.msra.mxu0 %v4564
    %6827 = vmatmul.bf16.gmra.mxu0 %v1457
    %v6828 = vpop.f32.mrf.mxu0
    %v6829 = vadd.f32 %v1438, %v6828
    %v6830 = vpop.f32.mrf.mxu0
    %6831 = vdwg.mxu0
    %6832 = vmatpush.bf16.msra.mxu0 %v4684
    %6833 = vmatpush.bf16.msra.mxu0 %v4676
    %6834 = vmatpush.bf16.msra.mxu0 %v4668
    %6835 = vmatpush.bf16.msra.mxu0 %v4660
    %6836 = vmatpush.bf16.msra.mxu0 %v4652
    %6837 = vmatpush.bf16.msra.mxu0 %v4644
    %6838 = vmatpush.bf16.msra.mxu0 %v4636
    %6839 = vmatpush.bf16.msra.mxu0 %v4628
    %6840 = vmatmul.bf16.gmra.mxu0 %v1458
    %v6841 = vpop.f32.mrf.mxu0
    %v6842 = vadd.f32 %v6829, %v6841
    %v6843 = vpop.f32.mrf.mxu0
    %6844 = vdwg.mxu0
    %6845 = vmatpush.bf16.msra.mxu0 %v4748
    %6846 = vmatpush.bf16.msra.mxu0 %v4740
    %6847 = vmatpush.bf16.msra.mxu0 %v4732
    %6848 = vmatpush.bf16.msra.mxu0 %v4724
    %6849 = vmatpush.bf16.msra.mxu0 %v4716
    %6850 = vmatpush.bf16.msra.mxu0 %v4708
    %6851 = vmatpush.bf16.msra.mxu0 %v4700
    %6852 = vmatpush.bf16.msra.mxu0 %v4692
    %6853 = vmatmul.bf16.gmra.mxu0 %v1459
    %v6854 = vpop.f32.mrf.mxu0
    %v6855 = vadd.f32 %v6842, %v6854
    %v6856 = vpop.f32.mrf.mxu0
    %6857 = vdwg.mxu0
    %6858 = vmatpush.bf16.msra.mxu0 %v4812
    %6859 = vmatpush.bf16.msra.mxu0 %v4804
    %6860 = vmatpush.bf16.msra.mxu0 %v4796
    %6861 = vmatpush.bf16.msra.mxu0 %v4788
    %6862 = vmatpush.bf16.msra.mxu0 %v4780
    %6863 = vmatpush.bf16.msra.mxu0 %v4772
    %6864 = vmatpush.bf16.msra.mxu0 %v4764
    %6865 = vmatpush.bf16.msra.mxu0 %v4756
    %6866 = vmatmul.bf16.gmra.mxu0 %v1460
    %v6867 = vpop.f32.mrf.mxu0
    %v6868 = vadd.f32 %v6855, %v6867
    %v6869 = vpop.f32.mrf.mxu0
    %6870 = vdwg.mxu0
    %6871 = vmatpush.bf16.msra.mxu0 %v4876
    %6872 = vmatpush.bf16.msra.mxu0 %v4868
    %6873 = vmatpush.bf16.msra.mxu0 %v4860
    %6874 = vmatpush.bf16.msra.mxu0 %v4852
    %6875 = vmatpush.bf16.msra.mxu0 %v4844
    %6876 = vmatpush.bf16.msra.mxu0 %v4836
    %6877 = vmatpush.bf16.msra.mxu0 %v4828
    %6878 = vmatpush.bf16.msra.mxu0 %v4820
    %6879 = vmatmul.bf16.gmra.mxu0 %v1461
    %v6880 = vpop.f32.mrf.mxu0
    %v6881 = vadd.f32 %v6868, %v6880
    %v6882 = vpop.f32.mrf.mxu0
    %6883 = vdwg.mxu0
    %6884 = vmatpush.bf16.msra.mxu0 %v4940
    %6885 = vmatpush.bf16.msra.mxu0 %v4932
    %6886 = vmatpush.bf16.msra.mxu0 %v4924
    %6887 = vmatpush.bf16.msra.mxu0 %v4916
    %6888 = vmatpush.bf16.msra.mxu0 %v4908
    %6889 = vmatpush.bf16.msra.mxu0 %v4900
    %6890 = vmatpush.bf16.msra.mxu0 %v4892
    %6891 = vmatpush.bf16.msra.mxu0 %v4884
    %6892 = vmatmul.bf16.gmra.mxu0 %v1462
    %v6893 = vpop.f32.mrf.mxu0
    %v6894 = vadd.f32 %v6881, %v6893
    %v6895 = vpop.f32.mrf.mxu0
    %6896 = vdwg.mxu0
    %6897 = vmatpush.bf16.msra.mxu0 %v5004
    %6898 = vmatpush.bf16.msra.mxu0 %v4996
    %6899 = vmatpush.bf16.msra.mxu0 %v4988
    %6900 = vmatpush.bf16.msra.mxu0 %v4980
    %6901 = vmatpush.bf16.msra.mxu0 %v4972
    %6902 = vmatpush.bf16.msra.mxu0 %v4964
    %6903 = vmatpush.bf16.msra.mxu0 %v4956
    %6904 = vmatpush.bf16.msra.mxu0 %v4948
    %6905 = vmatmul.bf16.gmra.mxu0 %v1463
    %v6906 = vpop.f32.mrf.mxu0
    %v6907 = vadd.f32 %v6894, %v6906
    %v6908 = vpop.f32.mrf.mxu0
    %6909 = vdwg.mxu0
    %6910 = vmatpush.bf16.msra.mxu0 %v5068
    %6911 = vmatpush.bf16.msra.mxu0 %v5060
    %6912 = vmatpush.bf16.msra.mxu0 %v5052
    %6913 = vmatpush.bf16.msra.mxu0 %v5044
    %6914 = vmatpush.bf16.msra.mxu0 %v5036
    %6915 = vmatpush.bf16.msra.mxu0 %v5028
    %6916 = vmatpush.bf16.msra.mxu0 %v5020
    %6917 = vmatpush.bf16.msra.mxu0 %v5012
    %6918 = vmatmul.bf16.gmra.mxu0 %v1464
    %v6919 = vpop.f32.mrf.mxu0
    %v6920 = vadd.f32 %v6907, %v6919
    %v6921 = vpop.f32.mrf.mxu0
    %6922 = vdwg.mxu0
    %6923 = vmatpush.bf16.msra.mxu0 %v5132
    %6924 = vmatpush.bf16.msra.mxu0 %v5124
    %6925 = vmatpush.bf16.msra.mxu0 %v5116
    %6926 = vmatpush.bf16.msra.mxu0 %v5108
    %6927 = vmatpush.bf16.msra.mxu0 %v5100
    %6928 = vmatpush.bf16.msra.mxu0 %v5092
    %6929 = vmatpush.bf16.msra.mxu0 %v5084
    %6930 = vmatpush.bf16.msra.mxu0 %v5076
    %6931 = vmatmul.bf16.gmra.mxu0 %v1467
    %v6932 = vpop.f32.mrf.mxu0
    %v6933 = vadd.f32 %v6920, %v6932
    %v6934 = vpop.f32.mrf.mxu0
    %6935 = vdwg.mxu0
    %6936 = vmatpush.bf16.msra.mxu0 %v5196
    %6937 = vmatpush.bf16.msra.mxu0 %v5188
    %6938 = vmatpush.bf16.msra.mxu0 %v5180
    %6939 = vmatpush.bf16.msra.mxu0 %v5172
    %6940 = vmatpush.bf16.msra.mxu0 %v5164
    %6941 = vmatpush.bf16.msra.mxu0 %v5156
    %6942 = vmatpush.bf16.msra.mxu0 %v5148
    %6943 = vmatpush.bf16.msra.mxu0 %v5140
    %6944 = vmatmul.bf16.gmra.mxu0 %v1468
    %v6945 = vpop.f32.mrf.mxu0
    %v6946 = vadd.f32 %v6933, %v6945
    %v6947 = vpop.f32.mrf.mxu0
    %6948 = vdwg.mxu0
    %6949 = vmatpush.bf16.msra.mxu0 %v5260
    %6950 = vmatpush.bf16.msra.mxu0 %v5252
    %6951 = vmatpush.bf16.msra.mxu0 %v5244
    %6952 = vmatpush.bf16.msra.mxu0 %v5236
    %6953 = vmatpush.bf16.msra.mxu0 %v5228
    %6954 = vmatpush.bf16.msra.mxu0 %v5220
    %6955 = vmatpush.bf16.msra.mxu0 %v5212
    %6956 = vmatpush.bf16.msra.mxu0 %v5204
    %6957 = vmatmul.bf16.gmra.mxu0 %v1469
    %v6958 = vpop.f32.mrf.mxu0
    %v6959 = vadd.f32 %v6946, %v6958
    %v6960 = vpop.f32.mrf.mxu0
    %6961 = vdwg.mxu0
    %6962 = vmatpush.bf16.msra.mxu0 %v5324
    %6963 = vmatpush.bf16.msra.mxu0 %v5316
    %6964 = vmatpush.bf16.msra.mxu0 %v5308
    %6965 = vmatpush.bf16.msra.mxu0 %v5300
    %6966 = vmatpush.bf16.msra.mxu0 %v5292
    %6967 = vmatpush.bf16.msra.mxu0 %v5284
    %6968 = vmatpush.bf16.msra.mxu0 %v5276
    %6969 = vmatpush.bf16.msra.mxu0 %v5268
    %6970 = vmatmul.bf16.gmra.mxu0 %v1470
    %v6971 = vpop.f32.mrf.mxu0
    %v6972 = vadd.f32 %v6959, %v6971
    %v6973 = vpop.f32.mrf.mxu0
    %6974 = vdwg.mxu0
    %6975 = vmatpush.bf16.msra.mxu0 %v5388
    %6976 = vmatpush.bf16.msra.mxu0 %v5380
    %6977 = vmatpush.bf16.msra.mxu0 %v5372
    %6978 = vmatpush.bf16.msra.mxu0 %v5364
    %6979 = vmatpush.bf16.msra.mxu0 %v5356
    %6980 = vmatpush.bf16.msra.mxu0 %v5348
    %6981 = vmatpush.bf16.msra.mxu0 %v5340
    %6982 = vmatpush.bf16.msra.mxu0 %v5332
    %6983 = vmatmul.bf16.gmra.mxu0 %v1471
    %v6984 = vpop.f32.mrf.mxu0
    %v6985 = vadd.f32 %v6972, %v6984
    %v6986 = vpop.f32.mrf.mxu0
    %6987 = vdwg.mxu0
    %6988 = vmatpush.bf16.msra.mxu0 %v5452
    %6989 = vmatpush.bf16.msra.mxu0 %v5444
    %6990 = vmatpush.bf16.msra.mxu0 %v5436
    %6991 = vmatpush.bf16.msra.mxu0 %v5428
    %6992 = vmatpush.bf16.msra.mxu0 %v5420
    %6993 = vmatpush.bf16.msra.mxu0 %v5412
    %6994 = vmatpush.bf16.msra.mxu0 %v5404
    %6995 = vmatpush.bf16.msra.mxu0 %v5396
    %6996 = vmatmul.bf16.gmra.mxu0 %v1472
    %v6997 = vpop.f32.mrf.mxu0
    %v6998 = vadd.f32 %v6985, %v6997
    %v6999 = vpop.f32.mrf.mxu0
    %7000 = vdwg.mxu0
    %7001 = vmatpush.bf16.msra.mxu0 %v5516
    %7002 = vmatpush.bf16.msra.mxu0 %v5508
    %7003 = vmatpush.bf16.msra.mxu0 %v5500
    %7004 = vmatpush.bf16.msra.mxu0 %v5492
    %7005 = vmatpush.bf16.msra.mxu0 %v5484
    %7006 = vmatpush.bf16.msra.mxu0 %v5476
    %7007 = vmatpush.bf16.msra.mxu0 %v5468
    %7008 = vmatpush.bf16.msra.mxu0 %v5460
    %7009 = vmatmul.bf16.gmra.mxu0 %v1473
    %v7010 = vpop.f32.mrf.mxu0
    %v7011 = vadd.f32 %v6998, %v7010
    %v7012 = vpop.f32.mrf.mxu0
    %7013 = vdwg.mxu0
    %7014 = vmatpush.bf16.msra.mxu0 %v5580
    %7015 = vmatpush.bf16.msra.mxu0 %v5572
    %7016 = vmatpush.bf16.msra.mxu0 %v5564
    %7017 = vmatpush.bf16.msra.mxu0 %v5556
    %7018 = vmatpush.bf16.msra.mxu0 %v5548
    %7019 = vmatpush.bf16.msra.mxu0 %v5540
    %7020 = vmatpush.bf16.msra.mxu0 %v5532
    %7021 = vmatpush.bf16.msra.mxu0 %v5524
    %7022 = vmatmul.bf16.gmra.mxu0 %v1474
    %v7023 = vpop.f32.mrf.mxu0
    %v7024 = vadd.f32 %v7011, %v7023
    %v7025 = vpop.f32.mrf.mxu0
    %7026 = vdwg.mxu0
    %7027 = vmatpush.bf16.msra.mxu0 %v4621
    %7028 = vmatpush.bf16.msra.mxu0 %v4613
    %7029 = vmatpush.bf16.msra.mxu0 %v4605
    %7030 = vmatpush.bf16.msra.mxu0 %v4597
    %7031 = vmatpush.bf16.msra.mxu0 %v4589
    %7032 = vmatpush.bf16.msra.mxu0 %v4581
    %7033 = vmatpush.bf16.msra.mxu0 %v4573
    %7034 = vmatpush.bf16.msra.mxu0 %v4565
    %7035 = vmatmul.bf16.gmra.mxu0 %v1457
    %v7036 = vpop.f32.mrf.mxu0
    %v7037 = vadd.f32 %v1439, %v7036
    %v7038 = vpop.f32.mrf.mxu0
    %7039 = vdwg.mxu0
    %7040 = vmatpush.bf16.msra.mxu0 %v4685
    %7041 = vmatpush.bf16.msra.mxu0 %v4677
    %7042 = vmatpush.bf16.msra.mxu0 %v4669
    %7043 = vmatpush.bf16.msra.mxu0 %v4661
    %7044 = vmatpush.bf16.msra.mxu0 %v4653
    %7045 = vmatpush.bf16.msra.mxu0 %v4645
    %7046 = vmatpush.bf16.msra.mxu0 %v4637
    %7047 = vmatpush.bf16.msra.mxu0 %v4629
    %7048 = vmatmul.bf16.gmra.mxu0 %v1458
    %v7049 = vpop.f32.mrf.mxu0
    %v7050 = vadd.f32 %v7037, %v7049
    %v7051 = vpop.f32.mrf.mxu0
    %7052 = vdwg.mxu0
    %7053 = vmatpush.bf16.msra.mxu0 %v4749
    %7054 = vmatpush.bf16.msra.mxu0 %v4741
    %7055 = vmatpush.bf16.msra.mxu0 %v4733
    %7056 = vmatpush.bf16.msra.mxu0 %v4725
    %7057 = vmatpush.bf16.msra.mxu0 %v4717
    %7058 = vmatpush.bf16.msra.mxu0 %v4709
    %7059 = vmatpush.bf16.msra.mxu0 %v4701
    %7060 = vmatpush.bf16.msra.mxu0 %v4693
    %7061 = vmatmul.bf16.gmra.mxu0 %v1459
    %v7062 = vpop.f32.mrf.mxu0
    %v7063 = vadd.f32 %v7050, %v7062
    %v7064 = vpop.f32.mrf.mxu0
    %7065 = vdwg.mxu0
    %7066 = vmatpush.bf16.msra.mxu0 %v4813
    %7067 = vmatpush.bf16.msra.mxu0 %v4805
    %7068 = vmatpush.bf16.msra.mxu0 %v4797
    %7069 = vmatpush.bf16.msra.mxu0 %v4789
    %7070 = vmatpush.bf16.msra.mxu0 %v4781
    %7071 = vmatpush.bf16.msra.mxu0 %v4773
    %7072 = vmatpush.bf16.msra.mxu0 %v4765
    %7073 = vmatpush.bf16.msra.mxu0 %v4757
    %7074 = vmatmul.bf16.gmra.mxu0 %v1460
    %v7075 = vpop.f32.mrf.mxu0
    %v7076 = vadd.f32 %v7063, %v7075
    %v7077 = vpop.f32.mrf.mxu0
    %7078 = vdwg.mxu0
    %7079 = vmatpush.bf16.msra.mxu0 %v4877
    %7080 = vmatpush.bf16.msra.mxu0 %v4869
    %7081 = vmatpush.bf16.msra.mxu0 %v4861
    %7082 = vmatpush.bf16.msra.mxu0 %v4853
    %7083 = vmatpush.bf16.msra.mxu0 %v4845
    %7084 = vmatpush.bf16.msra.mxu0 %v4837
    %7085 = vmatpush.bf16.msra.mxu0 %v4829
    %7086 = vmatpush.bf16.msra.mxu0 %v4821
    %7087 = vmatmul.bf16.gmra.mxu0 %v1461
    %v7088 = vpop.f32.mrf.mxu0
    %v7089 = vadd.f32 %v7076, %v7088
    %v7090 = vpop.f32.mrf.mxu0
    %7091 = vdwg.mxu0
    %7092 = vmatpush.bf16.msra.mxu0 %v4941
    %7093 = vmatpush.bf16.msra.mxu0 %v4933
    %7094 = vmatpush.bf16.msra.mxu0 %v4925
    %7095 = vmatpush.bf16.msra.mxu0 %v4917
    %7096 = vmatpush.bf16.msra.mxu0 %v4909
    %7097 = vmatpush.bf16.msra.mxu0 %v4901
    %7098 = vmatpush.bf16.msra.mxu0 %v4893
    %7099 = vmatpush.bf16.msra.mxu0 %v4885
    %7100 = vmatmul.bf16.gmra.mxu0 %v1462
    %v7101 = vpop.f32.mrf.mxu0
    %v7102 = vadd.f32 %v7089, %v7101
    %v7103 = vpop.f32.mrf.mxu0
    %7104 = vdwg.mxu0
    %7105 = vmatpush.bf16.msra.mxu0 %v5005
    %7106 = vmatpush.bf16.msra.mxu0 %v4997
    %7107 = vmatpush.bf16.msra.mxu0 %v4989
    %7108 = vmatpush.bf16.msra.mxu0 %v4981
    %7109 = vmatpush.bf16.msra.mxu0 %v4973
    %7110 = vmatpush.bf16.msra.mxu0 %v4965
    %7111 = vmatpush.bf16.msra.mxu0 %v4957
    %7112 = vmatpush.bf16.msra.mxu0 %v4949
    %7113 = vmatmul.bf16.gmra.mxu0 %v1463
    %v7114 = vpop.f32.mrf.mxu0
    %v7115 = vadd.f32 %v7102, %v7114
    %v7116 = vpop.f32.mrf.mxu0
    %7117 = vdwg.mxu0
    %7118 = vmatpush.bf16.msra.mxu0 %v5069
    %7119 = vmatpush.bf16.msra.mxu0 %v5061
    %7120 = vmatpush.bf16.msra.mxu0 %v5053
    %7121 = vmatpush.bf16.msra.mxu0 %v5045
    %7122 = vmatpush.bf16.msra.mxu0 %v5037
    %7123 = vmatpush.bf16.msra.mxu0 %v5029
    %7124 = vmatpush.bf16.msra.mxu0 %v5021
    %7125 = vmatpush.bf16.msra.mxu0 %v5013
    %7126 = vmatmul.bf16.gmra.mxu0 %v1464
    %v7127 = vpop.f32.mrf.mxu0
    %v7128 = vadd.f32 %v7115, %v7127
    %v7129 = vpop.f32.mrf.mxu0
    %7130 = vdwg.mxu0
    %7131 = vmatpush.bf16.msra.mxu0 %v5133
    %7132 = vmatpush.bf16.msra.mxu0 %v5125
    %7133 = vmatpush.bf16.msra.mxu0 %v5117
    %7134 = vmatpush.bf16.msra.mxu0 %v5109
    %7135 = vmatpush.bf16.msra.mxu0 %v5101
    %7136 = vmatpush.bf16.msra.mxu0 %v5093
    %7137 = vmatpush.bf16.msra.mxu0 %v5085
    %7138 = vmatpush.bf16.msra.mxu0 %v5077
    %7139 = vmatmul.bf16.gmra.mxu0 %v1467
    %v7140 = vpop.f32.mrf.mxu0
    %v7141 = vadd.f32 %v7128, %v7140
    %v7142 = vpop.f32.mrf.mxu0
    %7143 = vdwg.mxu0
    %7144 = vmatpush.bf16.msra.mxu0 %v5197
    %7145 = vmatpush.bf16.msra.mxu0 %v5189
    %7146 = vmatpush.bf16.msra.mxu0 %v5181
    %7147 = vmatpush.bf16.msra.mxu0 %v5173
    %7148 = vmatpush.bf16.msra.mxu0 %v5165
    %7149 = vmatpush.bf16.msra.mxu0 %v5157
    %7150 = vmatpush.bf16.msra.mxu0 %v5149
    %7151 = vmatpush.bf16.msra.mxu0 %v5141
    %7152 = vmatmul.bf16.gmra.mxu0 %v1468
    %v7153 = vpop.f32.mrf.mxu0
    %v7154 = vadd.f32 %v7141, %v7153
    %v7155 = vpop.f32.mrf.mxu0
    %7156 = vdwg.mxu0
    %7157 = vmatpush.bf16.msra.mxu0 %v5261
    %7158 = vmatpush.bf16.msra.mxu0 %v5253
    %7159 = vmatpush.bf16.msra.mxu0 %v5245
    %7160 = vmatpush.bf16.msra.mxu0 %v5237
    %7161 = vmatpush.bf16.msra.mxu0 %v5229
    %7162 = vmatpush.bf16.msra.mxu0 %v5221
    %7163 = vmatpush.bf16.msra.mxu0 %v5213
    %7164 = vmatpush.bf16.msra.mxu0 %v5205
    %7165 = vmatmul.bf16.gmra.mxu0 %v1469
    %v7166 = vpop.f32.mrf.mxu0
    %v7167 = vadd.f32 %v7154, %v7166
    %v7168 = vpop.f32.mrf.mxu0
    %7169 = vdwg.mxu0
    %7170 = vmatpush.bf16.msra.mxu0 %v5325
    %7171 = vmatpush.bf16.msra.mxu0 %v5317
    %7172 = vmatpush.bf16.msra.mxu0 %v5309
    %7173 = vmatpush.bf16.msra.mxu0 %v5301
    %7174 = vmatpush.bf16.msra.mxu0 %v5293
    %7175 = vmatpush.bf16.msra.mxu0 %v5285
    %7176 = vmatpush.bf16.msra.mxu0 %v5277
    %7177 = vmatpush.bf16.msra.mxu0 %v5269
    %7178 = vmatmul.bf16.gmra.mxu0 %v1470
    %v7179 = vpop.f32.mrf.mxu0
    %v7180 = vadd.f32 %v7167, %v7179
    %v7181 = vpop.f32.mrf.mxu0
    %7182 = vdwg.mxu0
    %7183 = vmatpush.bf16.msra.mxu0 %v5389
    %7184 = vmatpush.bf16.msra.mxu0 %v5381
    %7185 = vmatpush.bf16.msra.mxu0 %v5373
    %7186 = vmatpush.bf16.msra.mxu0 %v5365
    %7187 = vmatpush.bf16.msra.mxu0 %v5357
    %7188 = vmatpush.bf16.msra.mxu0 %v5349
    %7189 = vmatpush.bf16.msra.mxu0 %v5341
    %7190 = vmatpush.bf16.msra.mxu0 %v5333
    %7191 = vmatmul.bf16.gmra.mxu0 %v1471
    %v7192 = vpop.f32.mrf.mxu0
    %v7193 = vadd.f32 %v7180, %v7192
    %v7194 = vpop.f32.mrf.mxu0
    %7195 = vdwg.mxu0
    %7196 = vmatpush.bf16.msra.mxu0 %v5453
    %7197 = vmatpush.bf16.msra.mxu0 %v5445
    %7198 = vmatpush.bf16.msra.mxu0 %v5437
    %7199 = vmatpush.bf16.msra.mxu0 %v5429
    %7200 = vmatpush.bf16.msra.mxu0 %v5421
    %7201 = vmatpush.bf16.msra.mxu0 %v5413
    %7202 = vmatpush.bf16.msra.mxu0 %v5405
    %7203 = vmatpush.bf16.msra.mxu0 %v5397
    %7204 = vmatmul.bf16.gmra.mxu0 %v1472
    %v7205 = vpop.f32.mrf.mxu0
    %v7206 = vadd.f32 %v7193, %v7205
    %v7207 = vpop.f32.mrf.mxu0
    %7208 = vdwg.mxu0
    %7209 = vmatpush.bf16.msra.mxu0 %v5517
    %7210 = vmatpush.bf16.msra.mxu0 %v5509
    %7211 = vmatpush.bf16.msra.mxu0 %v5501
    %7212 = vmatpush.bf16.msra.mxu0 %v5493
    %7213 = vmatpush.bf16.msra.mxu0 %v5485
    %7214 = vmatpush.bf16.msra.mxu0 %v5477
    %7215 = vmatpush.bf16.msra.mxu0 %v5469
    %7216 = vmatpush.bf16.msra.mxu0 %v5461
    %7217 = vmatmul.bf16.gmra.mxu0 %v1473
    %v7218 = vpop.f32.mrf.mxu0
    %v7219 = vadd.f32 %v7206, %v7218
    %v7220 = vpop.f32.mrf.mxu0
    %7221 = vdwg.mxu0
    %7222 = vmatpush.bf16.msra.mxu0 %v5581
    %7223 = vmatpush.bf16.msra.mxu0 %v5573
    %7224 = vmatpush.bf16.msra.mxu0 %v5565
    %7225 = vmatpush.bf16.msra.mxu0 %v5557
    %7226 = vmatpush.bf16.msra.mxu0 %v5549
    %7227 = vmatpush.bf16.msra.mxu0 %v5541
    %7228 = vmatpush.bf16.msra.mxu0 %v5533
    %7229 = vmatpush.bf16.msra.mxu0 %v5525
    %7230 = vmatmul.bf16.gmra.mxu0 %v1474
    %v7231 = vpop.f32.mrf.mxu0
    %v7232 = vadd.f32 %v7219, %v7231
    %v7233 = vpop.f32.mrf.mxu0
    %7234 = vdwg.mxu0
    %7235 = vmatpush.bf16.msra.mxu0 %v4622
    %7236 = vmatpush.bf16.msra.mxu0 %v4614
    %7237 = vmatpush.bf16.msra.mxu0 %v4606
    %7238 = vmatpush.bf16.msra.mxu0 %v4598
    %7239 = vmatpush.bf16.msra.mxu0 %v4590
    %7240 = vmatpush.bf16.msra.mxu0 %v4582
    %7241 = vmatpush.bf16.msra.mxu0 %v4574
    %7242 = vmatpush.bf16.msra.mxu0 %v4566
    %7243 = vmatmul.bf16.gmra.mxu0 %v1457
    %v7244 = vpop.f32.mrf.mxu0
    %v7245 = vadd.f32 %v1440, %v7244
    %v7246 = vpop.f32.mrf.mxu0
    %7247 = vdwg.mxu0
    %7248 = vmatpush.bf16.msra.mxu0 %v4686
    %7249 = vmatpush.bf16.msra.mxu0 %v4678
    %7250 = vmatpush.bf16.msra.mxu0 %v4670
    %7251 = vmatpush.bf16.msra.mxu0 %v4662
    %7252 = vmatpush.bf16.msra.mxu0 %v4654
    %7253 = vmatpush.bf16.msra.mxu0 %v4646
    %7254 = vmatpush.bf16.msra.mxu0 %v4638
    %7255 = vmatpush.bf16.msra.mxu0 %v4630
    %7256 = vmatmul.bf16.gmra.mxu0 %v1458
    %v7257 = vpop.f32.mrf.mxu0
    %v7258 = vadd.f32 %v7245, %v7257
    %v7259 = vpop.f32.mrf.mxu0
    %7260 = vdwg.mxu0
    %7261 = vmatpush.bf16.msra.mxu0 %v4750
    %7262 = vmatpush.bf16.msra.mxu0 %v4742
    %7263 = vmatpush.bf16.msra.mxu0 %v4734
    %7264 = vmatpush.bf16.msra.mxu0 %v4726
    %7265 = vmatpush.bf16.msra.mxu0 %v4718
    %7266 = vmatpush.bf16.msra.mxu0 %v4710
    %7267 = vmatpush.bf16.msra.mxu0 %v4702
    %7268 = vmatpush.bf16.msra.mxu0 %v4694
    %7269 = vmatmul.bf16.gmra.mxu0 %v1459
    %v7270 = vpop.f32.mrf.mxu0
    %v7271 = vadd.f32 %v7258, %v7270
    %v7272 = vpop.f32.mrf.mxu0
    %7273 = vdwg.mxu0
    %7274 = vmatpush.bf16.msra.mxu0 %v4814
    %7275 = vmatpush.bf16.msra.mxu0 %v4806
    %7276 = vmatpush.bf16.msra.mxu0 %v4798
    %7277 = vmatpush.bf16.msra.mxu0 %v4790
    %7278 = vmatpush.bf16.msra.mxu0 %v4782
    %7279 = vmatpush.bf16.msra.mxu0 %v4774
    %7280 = vmatpush.bf16.msra.mxu0 %v4766
    %7281 = vmatpush.bf16.msra.mxu0 %v4758
    %7282 = vmatmul.bf16.gmra.mxu0 %v1460
    %v7283 = vpop.f32.mrf.mxu0
    %v7284 = vadd.f32 %v7271, %v7283
    %v7285 = vpop.f32.mrf.mxu0
    %7286 = vdwg.mxu0
    %7287 = vmatpush.bf16.msra.mxu0 %v4878
    %7288 = vmatpush.bf16.msra.mxu0 %v4870
    %7289 = vmatpush.bf16.msra.mxu0 %v4862
    %7290 = vmatpush.bf16.msra.mxu0 %v4854
    %7291 = vmatpush.bf16.msra.mxu0 %v4846
    %7292 = vmatpush.bf16.msra.mxu0 %v4838
    %7293 = vmatpush.bf16.msra.mxu0 %v4830
    %7294 = vmatpush.bf16.msra.mxu0 %v4822
    %7295 = vmatmul.bf16.gmra.mxu0 %v1461
    %v7296 = vpop.f32.mrf.mxu0
    %v7297 = vadd.f32 %v7284, %v7296
    %v7298 = vpop.f32.mrf.mxu0
    %7299 = vdwg.mxu0
    %7300 = vmatpush.bf16.msra.mxu0 %v4942
    %7301 = vmatpush.bf16.msra.mxu0 %v4934
    %7302 = vmatpush.bf16.msra.mxu0 %v4926
    %7303 = vmatpush.bf16.msra.mxu0 %v4918
    %7304 = vmatpush.bf16.msra.mxu0 %v4910
    %7305 = vmatpush.bf16.msra.mxu0 %v4902
    %7306 = vmatpush.bf16.msra.mxu0 %v4894
    %7307 = vmatpush.bf16.msra.mxu0 %v4886
    %7308 = vmatmul.bf16.gmra.mxu0 %v1462
    %v7309 = vpop.f32.mrf.mxu0
    %v7310 = vadd.f32 %v7297, %v7309
    %v7311 = vpop.f32.mrf.mxu0
    %7312 = vdwg.mxu0
    %7313 = vmatpush.bf16.msra.mxu0 %v5006
    %7314 = vmatpush.bf16.msra.mxu0 %v4998
    %7315 = vmatpush.bf16.msra.mxu0 %v4990
    %7316 = vmatpush.bf16.msra.mxu0 %v4982
    %7317 = vmatpush.bf16.msra.mxu0 %v4974
    %7318 = vmatpush.bf16.msra.mxu0 %v4966
    %7319 = vmatpush.bf16.msra.mxu0 %v4958
    %7320 = vmatpush.bf16.msra.mxu0 %v4950
    %7321 = vmatmul.bf16.gmra.mxu0 %v1463
    %v7322 = vpop.f32.mrf.mxu0
    %v7323 = vadd.f32 %v7310, %v7322
    %v7324 = vpop.f32.mrf.mxu0
    %7325 = vdwg.mxu0
    %7326 = vmatpush.bf16.msra.mxu0 %v5070
    %7327 = vmatpush.bf16.msra.mxu0 %v5062
    %7328 = vmatpush.bf16.msra.mxu0 %v5054
    %7329 = vmatpush.bf16.msra.mxu0 %v5046
    %7330 = vmatpush.bf16.msra.mxu0 %v5038
    %7331 = vmatpush.bf16.msra.mxu0 %v5030
    %7332 = vmatpush.bf16.msra.mxu0 %v5022
    %7333 = vmatpush.bf16.msra.mxu0 %v5014
    %7334 = vmatmul.bf16.gmra.mxu0 %v1464
    %v7335 = vpop.f32.mrf.mxu0
    %v7336 = vadd.f32 %v7323, %v7335
    %v7337 = vpop.f32.mrf.mxu0
    %7338 = vdwg.mxu0
    %7339 = vmatpush.bf16.msra.mxu0 %v5134
    %7340 = vmatpush.bf16.msra.mxu0 %v5126
    %7341 = vmatpush.bf16.msra.mxu0 %v5118
    %7342 = vmatpush.bf16.msra.mxu0 %v5110
    %7343 = vmatpush.bf16.msra.mxu0 %v5102
    %7344 = vmatpush.bf16.msra.mxu0 %v5094
    %7345 = vmatpush.bf16.msra.mxu0 %v5086
    %7346 = vmatpush.bf16.msra.mxu0 %v5078
    %7347 = vmatmul.bf16.gmra.mxu0 %v1467
    %v7348 = vpop.f32.mrf.mxu0
    %v7349 = vadd.f32 %v7336, %v7348
    %v7350 = vpop.f32.mrf.mxu0
    %7351 = vdwg.mxu0
    %7352 = vmatpush.bf16.msra.mxu0 %v5198
    %7353 = vmatpush.bf16.msra.mxu0 %v5190
    %7354 = vmatpush.bf16.msra.mxu0 %v5182
    %7355 = vmatpush.bf16.msra.mxu0 %v5174
    %7356 = vmatpush.bf16.msra.mxu0 %v5166
    %7357 = vmatpush.bf16.msra.mxu0 %v5158
    %7358 = vmatpush.bf16.msra.mxu0 %v5150
    %7359 = vmatpush.bf16.msra.mxu0 %v5142
    %7360 = vmatmul.bf16.gmra.mxu0 %v1468
    %v7361 = vpop.f32.mrf.mxu0
    %v7362 = vadd.f32 %v7349, %v7361
    %v7363 = vpop.f32.mrf.mxu0
    %7364 = vdwg.mxu0
    %7365 = vmatpush.bf16.msra.mxu0 %v5262
    %7366 = vmatpush.bf16.msra.mxu0 %v5254
    %7367 = vmatpush.bf16.msra.mxu0 %v5246
    %7368 = vmatpush.bf16.msra.mxu0 %v5238
    %7369 = vmatpush.bf16.msra.mxu0 %v5230
    %7370 = vmatpush.bf16.msra.mxu0 %v5222
    %7371 = vmatpush.bf16.msra.mxu0 %v5214
    %7372 = vmatpush.bf16.msra.mxu0 %v5206
    %7373 = vmatmul.bf16.gmra.mxu0 %v1469
    %v7374 = vpop.f32.mrf.mxu0
    %v7375 = vadd.f32 %v7362, %v7374
    %v7376 = vpop.f32.mrf.mxu0
    %7377 = vdwg.mxu0
    %7378 = vmatpush.bf16.msra.mxu0 %v5326
    %7379 = vmatpush.bf16.msra.mxu0 %v5318
    %7380 = vmatpush.bf16.msra.mxu0 %v5310
    %7381 = vmatpush.bf16.msra.mxu0 %v5302
    %7382 = vmatpush.bf16.msra.mxu0 %v5294
    %7383 = vmatpush.bf16.msra.mxu0 %v5286
    %7384 = vmatpush.bf16.msra.mxu0 %v5278
    %7385 = vmatpush.bf16.msra.mxu0 %v5270
    %7386 = vmatmul.bf16.gmra.mxu0 %v1470
    %v7387 = vpop.f32.mrf.mxu0
    %v7388 = vadd.f32 %v7375, %v7387
    %v7389 = vpop.f32.mrf.mxu0
    %7390 = vdwg.mxu0
    %7391 = vmatpush.bf16.msra.mxu0 %v5390
    %7392 = vmatpush.bf16.msra.mxu0 %v5382
    %7393 = vmatpush.bf16.msra.mxu0 %v5374
    %7394 = vmatpush.bf16.msra.mxu0 %v5366
    %7395 = vmatpush.bf16.msra.mxu0 %v5358
    %7396 = vmatpush.bf16.msra.mxu0 %v5350
    %7397 = vmatpush.bf16.msra.mxu0 %v5342
    %7398 = vmatpush.bf16.msra.mxu0 %v5334
    %7399 = vmatmul.bf16.gmra.mxu0 %v1471
    %v7400 = vpop.f32.mrf.mxu0
    %v7401 = vadd.f32 %v7388, %v7400
    %v7402 = vpop.f32.mrf.mxu0
    %7403 = vdwg.mxu0
    %7404 = vmatpush.bf16.msra.mxu0 %v5454
    %7405 = vmatpush.bf16.msra.mxu0 %v5446
    %7406 = vmatpush.bf16.msra.mxu0 %v5438
    %7407 = vmatpush.bf16.msra.mxu0 %v5430
    %7408 = vmatpush.bf16.msra.mxu0 %v5422
    %7409 = vmatpush.bf16.msra.mxu0 %v5414
    %7410 = vmatpush.bf16.msra.mxu0 %v5406
    %7411 = vmatpush.bf16.msra.mxu0 %v5398
    %7412 = vmatmul.bf16.gmra.mxu0 %v1472
    %v7413 = vpop.f32.mrf.mxu0
    %v7414 = vadd.f32 %v7401, %v7413
    %v7415 = vpop.f32.mrf.mxu0
    %7416 = vdwg.mxu0
    %7417 = vmatpush.bf16.msra.mxu0 %v5518
    %7418 = vmatpush.bf16.msra.mxu0 %v5510
    %7419 = vmatpush.bf16.msra.mxu0 %v5502
    %7420 = vmatpush.bf16.msra.mxu0 %v5494
    %7421 = vmatpush.bf16.msra.mxu0 %v5486
    %7422 = vmatpush.bf16.msra.mxu0 %v5478
    %7423 = vmatpush.bf16.msra.mxu0 %v5470
    %7424 = vmatpush.bf16.msra.mxu0 %v5462
    %7425 = vmatmul.bf16.gmra.mxu0 %v1473
    %v7426 = vpop.f32.mrf.mxu0
    %v7427 = vadd.f32 %v7414, %v7426
    %v7428 = vpop.f32.mrf.mxu0
    %7429 = vdwg.mxu0
    %7430 = vmatpush.bf16.msra.mxu0 %v5582
    %7431 = vmatpush.bf16.msra.mxu0 %v5574
    %7432 = vmatpush.bf16.msra.mxu0 %v5566
    %7433 = vmatpush.bf16.msra.mxu0 %v5558
    %7434 = vmatpush.bf16.msra.mxu0 %v5550
    %7435 = vmatpush.bf16.msra.mxu0 %v5542
    %7436 = vmatpush.bf16.msra.mxu0 %v5534
    %7437 = vmatpush.bf16.msra.mxu0 %v5526
    %7438 = vmatmul.bf16.gmra.mxu0 %v1474
    %v7439 = vpop.f32.mrf.mxu0
    %v7440 = vadd.f32 %v7427, %v7439
    %v7441 = vpop.f32.mrf.mxu0
    %7442 = vdwg.mxu0
    %7443 = vmatpush.bf16.msra.mxu0 %v4623
    %7444 = vmatpush.bf16.msra.mxu0 %v4615
    %7445 = vmatpush.bf16.msra.mxu0 %v4607
    %7446 = vmatpush.bf16.msra.mxu0 %v4599
    %7447 = vmatpush.bf16.msra.mxu0 %v4591
    %7448 = vmatpush.bf16.msra.mxu0 %v4583
    %7449 = vmatpush.bf16.msra.mxu0 %v4575
    %7450 = vmatpush.bf16.msra.mxu0 %v4567
    %7451 = vmatmul.bf16.gmra.mxu0 %v1457
    %v7452 = vpop.f32.mrf.mxu0
    %v7453 = vadd.f32 %v1441, %v7452
    %v7454 = vpop.f32.mrf.mxu0
    %7455 = vdwg.mxu0
    %7456 = vmatpush.bf16.msra.mxu0 %v4687
    %7457 = vmatpush.bf16.msra.mxu0 %v4679
    %7458 = vmatpush.bf16.msra.mxu0 %v4671
    %7459 = vmatpush.bf16.msra.mxu0 %v4663
    %7460 = vmatpush.bf16.msra.mxu0 %v4655
    %7461 = vmatpush.bf16.msra.mxu0 %v4647
    %7462 = vmatpush.bf16.msra.mxu0 %v4639
    %7463 = vmatpush.bf16.msra.mxu0 %v4631
    %7464 = vmatmul.bf16.gmra.mxu0 %v1458
    %v7465 = vpop.f32.mrf.mxu0
    %v7466 = vadd.f32 %v7453, %v7465
    %v7467 = vpop.f32.mrf.mxu0
    %7468 = vdwg.mxu0
    %7469 = vmatpush.bf16.msra.mxu0 %v4751
    %7470 = vmatpush.bf16.msra.mxu0 %v4743
    %7471 = vmatpush.bf16.msra.mxu0 %v4735
    %7472 = vmatpush.bf16.msra.mxu0 %v4727
    %7473 = vmatpush.bf16.msra.mxu0 %v4719
    %7474 = vmatpush.bf16.msra.mxu0 %v4711
    %7475 = vmatpush.bf16.msra.mxu0 %v4703
    %7476 = vmatpush.bf16.msra.mxu0 %v4695
    %7477 = vmatmul.bf16.gmra.mxu0 %v1459
    %v7478 = vpop.f32.mrf.mxu0
    %v7479 = vadd.f32 %v7466, %v7478
    %v7480 = vpop.f32.mrf.mxu0
    %7481 = vdwg.mxu0
    %7482 = vmatpush.bf16.msra.mxu0 %v4815
    %7483 = vmatpush.bf16.msra.mxu0 %v4807
    %7484 = vmatpush.bf16.msra.mxu0 %v4799
    %7485 = vmatpush.bf16.msra.mxu0 %v4791
    %7486 = vmatpush.bf16.msra.mxu0 %v4783
    %7487 = vmatpush.bf16.msra.mxu0 %v4775
    %7488 = vmatpush.bf16.msra.mxu0 %v4767
    %7489 = vmatpush.bf16.msra.mxu0 %v4759
    %7490 = vmatmul.bf16.gmra.mxu0 %v1460
    %v7491 = vpop.f32.mrf.mxu0
    %v7492 = vadd.f32 %v7479, %v7491
    %v7493 = vpop.f32.mrf.mxu0
    %7494 = vdwg.mxu0
    %7495 = vmatpush.bf16.msra.mxu0 %v4879
    %7496 = vmatpush.bf16.msra.mxu0 %v4871
    %7497 = vmatpush.bf16.msra.mxu0 %v4863
    %7498 = vmatpush.bf16.msra.mxu0 %v4855
    %7499 = vmatpush.bf16.msra.mxu0 %v4847
    %7500 = vmatpush.bf16.msra.mxu0 %v4839
    %7501 = vmatpush.bf16.msra.mxu0 %v4831
    %7502 = vmatpush.bf16.msra.mxu0 %v4823
    %7503 = vmatmul.bf16.gmra.mxu0 %v1461
    %v7504 = vpop.f32.mrf.mxu0
    %v7505 = vadd.f32 %v7492, %v7504
    %v7506 = vpop.f32.mrf.mxu0
    %7507 = vdwg.mxu0
    %7508 = vmatpush.bf16.msra.mxu0 %v4943
    %7509 = vmatpush.bf16.msra.mxu0 %v4935
    %7510 = vmatpush.bf16.msra.mxu0 %v4927
    %7511 = vmatpush.bf16.msra.mxu0 %v4919
    %7512 = vmatpush.bf16.msra.mxu0 %v4911
    %7513 = vmatpush.bf16.msra.mxu0 %v4903
    %7514 = vmatpush.bf16.msra.mxu0 %v4895
    %7515 = vmatpush.bf16.msra.mxu0 %v4887
    %7516 = vmatmul.bf16.gmra.mxu0 %v1462
    %v7517 = vpop.f32.mrf.mxu0
    %v7518 = vadd.f32 %v7505, %v7517
    %v7519 = vpop.f32.mrf.mxu0
    %7520 = vdwg.mxu0
    %7521 = vmatpush.bf16.msra.mxu0 %v5007
    %7522 = vmatpush.bf16.msra.mxu0 %v4999
    %7523 = vmatpush.bf16.msra.mxu0 %v4991
    %7524 = vmatpush.bf16.msra.mxu0 %v4983
    %7525 = vmatpush.bf16.msra.mxu0 %v4975
    %7526 = vmatpush.bf16.msra.mxu0 %v4967
    %7527 = vmatpush.bf16.msra.mxu0 %v4959
    %7528 = vmatpush.bf16.msra.mxu0 %v4951
    %7529 = vmatmul.bf16.gmra.mxu0 %v1463
    %v7530 = vpop.f32.mrf.mxu0
    %v7531 = vadd.f32 %v7518, %v7530
    %v7532 = vpop.f32.mrf.mxu0
    %7533 = vdwg.mxu0
    %7534 = vmatpush.bf16.msra.mxu0 %v5071
    %7535 = vmatpush.bf16.msra.mxu0 %v5063
    %7536 = vmatpush.bf16.msra.mxu0 %v5055
    %7537 = vmatpush.bf16.msra.mxu0 %v5047
    %7538 = vmatpush.bf16.msra.mxu0 %v5039
    %7539 = vmatpush.bf16.msra.mxu0 %v5031
    %7540 = vmatpush.bf16.msra.mxu0 %v5023
    %7541 = vmatpush.bf16.msra.mxu0 %v5015
    %7542 = vmatmul.bf16.gmra.mxu0 %v1464
    %v7543 = vpop.f32.mrf.mxu0
    %v7544 = vadd.f32 %v7531, %v7543
    %v7545 = vpop.f32.mrf.mxu0
    %7546 = vdwg.mxu0
    %7547 = vmatpush.bf16.msra.mxu0 %v5135
    %7548 = vmatpush.bf16.msra.mxu0 %v5127
    %7549 = vmatpush.bf16.msra.mxu0 %v5119
    %7550 = vmatpush.bf16.msra.mxu0 %v5111
    %7551 = vmatpush.bf16.msra.mxu0 %v5103
    %7552 = vmatpush.bf16.msra.mxu0 %v5095
    %7553 = vmatpush.bf16.msra.mxu0 %v5087
    %7554 = vmatpush.bf16.msra.mxu0 %v5079
    %7555 = vmatmul.bf16.gmra.mxu0 %v1467
    %v7556 = vpop.f32.mrf.mxu0
    %v7557 = vadd.f32 %v7544, %v7556
    %v7558 = vpop.f32.mrf.mxu0
    %7559 = vdwg.mxu0
    %7560 = vmatpush.bf16.msra.mxu0 %v5199
    %7561 = vmatpush.bf16.msra.mxu0 %v5191
    %7562 = vmatpush.bf16.msra.mxu0 %v5183
    %7563 = vmatpush.bf16.msra.mxu0 %v5175
    %7564 = vmatpush.bf16.msra.mxu0 %v5167
    %7565 = vmatpush.bf16.msra.mxu0 %v5159
    %7566 = vmatpush.bf16.msra.mxu0 %v5151
    %7567 = vmatpush.bf16.msra.mxu0 %v5143
    %7568 = vmatmul.bf16.gmra.mxu0 %v1468
    %v7569 = vpop.f32.mrf.mxu0
    %v7570 = vadd.f32 %v7557, %v7569
    %v7571 = vpop.f32.mrf.mxu0
    %7572 = vdwg.mxu0
    %7573 = vmatpush.bf16.msra.mxu0 %v5263
    %7574 = vmatpush.bf16.msra.mxu0 %v5255
    %7575 = vmatpush.bf16.msra.mxu0 %v5247
    %7576 = vmatpush.bf16.msra.mxu0 %v5239
    %7577 = vmatpush.bf16.msra.mxu0 %v5231
    %7578 = vmatpush.bf16.msra.mxu0 %v5223
    %7579 = vmatpush.bf16.msra.mxu0 %v5215
    %7580 = vmatpush.bf16.msra.mxu0 %v5207
    %7581 = vmatmul.bf16.gmra.mxu0 %v1469
    %v7582 = vpop.f32.mrf.mxu0
    %v7583 = vadd.f32 %v7570, %v7582
    %v7584 = vpop.f32.mrf.mxu0
    %7585 = vdwg.mxu0
    %7586 = vmatpush.bf16.msra.mxu0 %v5327
    %7587 = vmatpush.bf16.msra.mxu0 %v5319
    %7588 = vmatpush.bf16.msra.mxu0 %v5311
    %7589 = vmatpush.bf16.msra.mxu0 %v5303
    %7590 = vmatpush.bf16.msra.mxu0 %v5295
    %7591 = vmatpush.bf16.msra.mxu0 %v5287
    %7592 = vmatpush.bf16.msra.mxu0 %v5279
    %7593 = vmatpush.bf16.msra.mxu0 %v5271
    %7594 = vmatmul.bf16.gmra.mxu0 %v1470
    %v7595 = vpop.f32.mrf.mxu0
    %v7596 = vadd.f32 %v7583, %v7595
    %v7597 = vpop.f32.mrf.mxu0
    %7598 = vdwg.mxu0
    %7599 = vmatpush.bf16.msra.mxu0 %v5391
    %7600 = vmatpush.bf16.msra.mxu0 %v5383
    %7601 = vmatpush.bf16.msra.mxu0 %v5375
    %7602 = vmatpush.bf16.msra.mxu0 %v5367
    %7603 = vmatpush.bf16.msra.mxu0 %v5359
    %7604 = vmatpush.bf16.msra.mxu0 %v5351
    %7605 = vmatpush.bf16.msra.mxu0 %v5343
    %7606 = vmatpush.bf16.msra.mxu0 %v5335
    %7607 = vmatmul.bf16.gmra.mxu0 %v1471
    %v7608 = vpop.f32.mrf.mxu0
    %v7609 = vadd.f32 %v7596, %v7608
    %v7610 = vpop.f32.mrf.mxu0
    %7611 = vdwg.mxu0
    %7612 = vmatpush.bf16.msra.mxu0 %v5455
    %7613 = vmatpush.bf16.msra.mxu0 %v5447
    %7614 = vmatpush.bf16.msra.mxu0 %v5439
    %7615 = vmatpush.bf16.msra.mxu0 %v5431
    %7616 = vmatpush.bf16.msra.mxu0 %v5423
    %7617 = vmatpush.bf16.msra.mxu0 %v5415
    %7618 = vmatpush.bf16.msra.mxu0 %v5407
    %7619 = vmatpush.bf16.msra.mxu0 %v5399
    %7620 = vmatmul.bf16.gmra.mxu0 %v1472
    %v7621 = vpop.f32.mrf.mxu0
    %v7622 = vadd.f32 %v7609, %v7621
    %v7623 = vpop.f32.mrf.mxu0
    %7624 = vdwg.mxu0
    %7625 = vmatpush.bf16.msra.mxu0 %v5519
    %7626 = vmatpush.bf16.msra.mxu0 %v5511
    %7627 = vmatpush.bf16.msra.mxu0 %v5503
    %7628 = vmatpush.bf16.msra.mxu0 %v5495
    %7629 = vmatpush.bf16.msra.mxu0 %v5487
    %7630 = vmatpush.bf16.msra.mxu0 %v5479
    %7631 = vmatpush.bf16.msra.mxu0 %v5471
    %7632 = vmatpush.bf16.msra.mxu0 %v5463
    %7633 = vmatmul.bf16.gmra.mxu0 %v1473
    %v7634 = vpop.f32.mrf.mxu0
    %v7635 = vadd.f32 %v7622, %v7634
    %v7636 = vpop.f32.mrf.mxu0
    %7637 = vdwg.mxu0
    %7638 = vmatpush.bf16.msra.mxu0 %v5583
    %7639 = vmatpush.bf16.msra.mxu0 %v5575
    %7640 = vmatpush.bf16.msra.mxu0 %v5567
    %7641 = vmatpush.bf16.msra.mxu0 %v5559
    %7642 = vmatpush.bf16.msra.mxu0 %v5551
    %7643 = vmatpush.bf16.msra.mxu0 %v5543
    %7644 = vmatpush.bf16.msra.mxu0 %v5535
    %7645 = vmatpush.bf16.msra.mxu0 %v5527
    %7646 = vmatmul.bf16.gmra.mxu0 %v1474
    %v7647 = vpop.f32.mrf.mxu0
    %v7648 = vadd.f32 %v7635, %v7647
    %v7649 = vpop.f32.mrf.mxu0
    %7650 = vdwg.mxu0
    %7651 = vmatpush.bf16.msra.mxu0 %v4624
    %7652 = vmatpush.bf16.msra.mxu0 %v4616
    %7653 = vmatpush.bf16.msra.mxu0 %v4608
    %7654 = vmatpush.bf16.msra.mxu0 %v4600
    %7655 = vmatpush.bf16.msra.mxu0 %v4592
    %7656 = vmatpush.bf16.msra.mxu0 %v4584
    %7657 = vmatpush.bf16.msra.mxu0 %v4576
    %7658 = vmatpush.bf16.msra.mxu0 %v4568
    %7659 = vmatmul.bf16.gmra.mxu0 %v1457
    %v7660 = vpop.f32.mrf.mxu0
    %v7661 = vadd.f32 %v1442, %v7660
    %v7662 = vpop.f32.mrf.mxu0
    %7663 = vdwg.mxu0
    %7664 = vmatpush.bf16.msra.mxu0 %v4688
    %7665 = vmatpush.bf16.msra.mxu0 %v4680
    %7666 = vmatpush.bf16.msra.mxu0 %v4672
    %7667 = vmatpush.bf16.msra.mxu0 %v4664
    %7668 = vmatpush.bf16.msra.mxu0 %v4656
    %7669 = vmatpush.bf16.msra.mxu0 %v4648
    %7670 = vmatpush.bf16.msra.mxu0 %v4640
    %7671 = vmatpush.bf16.msra.mxu0 %v4632
    %7672 = vmatmul.bf16.gmra.mxu0 %v1458
    %v7673 = vpop.f32.mrf.mxu0
    %v7674 = vadd.f32 %v7661, %v7673
    %v7675 = vpop.f32.mrf.mxu0
    %7676 = vdwg.mxu0
    %7677 = vmatpush.bf16.msra.mxu0 %v4752
    %7678 = vmatpush.bf16.msra.mxu0 %v4744
    %7679 = vmatpush.bf16.msra.mxu0 %v4736
    %7680 = vmatpush.bf16.msra.mxu0 %v4728
    %7681 = vmatpush.bf16.msra.mxu0 %v4720
    %7682 = vmatpush.bf16.msra.mxu0 %v4712
    %7683 = vmatpush.bf16.msra.mxu0 %v4704
    %7684 = vmatpush.bf16.msra.mxu0 %v4696
    %7685 = vmatmul.bf16.gmra.mxu0 %v1459
    %v7686 = vpop.f32.mrf.mxu0
    %v7687 = vadd.f32 %v7674, %v7686
    %v7688 = vpop.f32.mrf.mxu0
    %7689 = vdwg.mxu0
    %7690 = vmatpush.bf16.msra.mxu0 %v4816
    %7691 = vmatpush.bf16.msra.mxu0 %v4808
    %7692 = vmatpush.bf16.msra.mxu0 %v4800
    %7693 = vmatpush.bf16.msra.mxu0 %v4792
    %7694 = vmatpush.bf16.msra.mxu0 %v4784
    %7695 = vmatpush.bf16.msra.mxu0 %v4776
    %7696 = vmatpush.bf16.msra.mxu0 %v4768
    %7697 = vmatpush.bf16.msra.mxu0 %v4760
    %7698 = vmatmul.bf16.gmra.mxu0 %v1460
    %v7699 = vpop.f32.mrf.mxu0
    %v7700 = vadd.f32 %v7687, %v7699
    %v7701 = vpop.f32.mrf.mxu0
    %7702 = vdwg.mxu0
    %7703 = vmatpush.bf16.msra.mxu0 %v4880
    %7704 = vmatpush.bf16.msra.mxu0 %v4872
    %7705 = vmatpush.bf16.msra.mxu0 %v4864
    %7706 = vmatpush.bf16.msra.mxu0 %v4856
    %7707 = vmatpush.bf16.msra.mxu0 %v4848
    %7708 = vmatpush.bf16.msra.mxu0 %v4840
    %7709 = vmatpush.bf16.msra.mxu0 %v4832
    %7710 = vmatpush.bf16.msra.mxu0 %v4824
    %7711 = vmatmul.bf16.gmra.mxu0 %v1461
    %v7712 = vpop.f32.mrf.mxu0
    %v7713 = vadd.f32 %v7700, %v7712
    %v7714 = vpop.f32.mrf.mxu0
    %7715 = vdwg.mxu0
    %7716 = vmatpush.bf16.msra.mxu0 %v4944
    %7717 = vmatpush.bf16.msra.mxu0 %v4936
    %7718 = vmatpush.bf16.msra.mxu0 %v4928
    %7719 = vmatpush.bf16.msra.mxu0 %v4920
    %7720 = vmatpush.bf16.msra.mxu0 %v4912
    %7721 = vmatpush.bf16.msra.mxu0 %v4904
    %7722 = vmatpush.bf16.msra.mxu0 %v4896
    %7723 = vmatpush.bf16.msra.mxu0 %v4888
    %7724 = vmatmul.bf16.gmra.mxu0 %v1462
    %v7725 = vpop.f32.mrf.mxu0
    %v7726 = vadd.f32 %v7713, %v7725
    %v7727 = vpop.f32.mrf.mxu0
    %7728 = vdwg.mxu0
    %7729 = vmatpush.bf16.msra.mxu0 %v5008
    %7730 = vmatpush.bf16.msra.mxu0 %v5000
    %7731 = vmatpush.bf16.msra.mxu0 %v4992
    %7732 = vmatpush.bf16.msra.mxu0 %v4984
    %7733 = vmatpush.bf16.msra.mxu0 %v4976
    %7734 = vmatpush.bf16.msra.mxu0 %v4968
    %7735 = vmatpush.bf16.msra.mxu0 %v4960
    %7736 = vmatpush.bf16.msra.mxu0 %v4952
    %7737 = vmatmul.bf16.gmra.mxu0 %v1463
    %v7738 = vpop.f32.mrf.mxu0
    %v7739 = vadd.f32 %v7726, %v7738
    %v7740 = vpop.f32.mrf.mxu0
    %7741 = vdwg.mxu0
    %7742 = vmatpush.bf16.msra.mxu0 %v5072
    %7743 = vmatpush.bf16.msra.mxu0 %v5064
    %7744 = vmatpush.bf16.msra.mxu0 %v5056
    %7745 = vmatpush.bf16.msra.mxu0 %v5048
    %7746 = vmatpush.bf16.msra.mxu0 %v5040
    %7747 = vmatpush.bf16.msra.mxu0 %v5032
    %7748 = vmatpush.bf16.msra.mxu0 %v5024
    %7749 = vmatpush.bf16.msra.mxu0 %v5016
    %7750 = vmatmul.bf16.gmra.mxu0 %v1464
    %v7751 = vpop.f32.mrf.mxu0
    %v7752 = vadd.f32 %v7739, %v7751
    %v7753 = vpop.f32.mrf.mxu0
    %7754 = vdwg.mxu0
    %7755 = vmatpush.bf16.msra.mxu0 %v5136
    %7756 = vmatpush.bf16.msra.mxu0 %v5128
    %7757 = vmatpush.bf16.msra.mxu0 %v5120
    %7758 = vmatpush.bf16.msra.mxu0 %v5112
    %7759 = vmatpush.bf16.msra.mxu0 %v5104
    %7760 = vmatpush.bf16.msra.mxu0 %v5096
    %7761 = vmatpush.bf16.msra.mxu0 %v5088
    %7762 = vmatpush.bf16.msra.mxu0 %v5080
    %7763 = vmatmul.bf16.gmra.mxu0 %v1467
    %v7764 = vpop.f32.mrf.mxu0
    %v7765 = vadd.f32 %v7752, %v7764
    %v7766 = vpop.f32.mrf.mxu0
    %7767 = vdwg.mxu0
    %7768 = vmatpush.bf16.msra.mxu0 %v5200
    %7769 = vmatpush.bf16.msra.mxu0 %v5192
    %7770 = vmatpush.bf16.msra.mxu0 %v5184
    %7771 = vmatpush.bf16.msra.mxu0 %v5176
    %7772 = vmatpush.bf16.msra.mxu0 %v5168
    %7773 = vmatpush.bf16.msra.mxu0 %v5160
    %7774 = vmatpush.bf16.msra.mxu0 %v5152
    %7775 = vmatpush.bf16.msra.mxu0 %v5144
    %7776 = vmatmul.bf16.gmra.mxu0 %v1468
    %v7777 = vpop.f32.mrf.mxu0
    %v7778 = vadd.f32 %v7765, %v7777
    %v7779 = vpop.f32.mrf.mxu0
    %7780 = vdwg.mxu0
    %7781 = vmatpush.bf16.msra.mxu0 %v5264
    %7782 = vmatpush.bf16.msra.mxu0 %v5256
    %7783 = vmatpush.bf16.msra.mxu0 %v5248
    %7784 = vmatpush.bf16.msra.mxu0 %v5240
    %7785 = vmatpush.bf16.msra.mxu0 %v5232
    %7786 = vmatpush.bf16.msra.mxu0 %v5224
    %7787 = vmatpush.bf16.msra.mxu0 %v5216
    %7788 = vmatpush.bf16.msra.mxu0 %v5208
    %7789 = vmatmul.bf16.gmra.mxu0 %v1469
    %v7790 = vpop.f32.mrf.mxu0
    %v7791 = vadd.f32 %v7778, %v7790
    %v7792 = vpop.f32.mrf.mxu0
    %7793 = vdwg.mxu0
    %7794 = vmatpush.bf16.msra.mxu0 %v5328
    %7795 = vmatpush.bf16.msra.mxu0 %v5320
    %7796 = vmatpush.bf16.msra.mxu0 %v5312
    %7797 = vmatpush.bf16.msra.mxu0 %v5304
    %7798 = vmatpush.bf16.msra.mxu0 %v5296
    %7799 = vmatpush.bf16.msra.mxu0 %v5288
    %7800 = vmatpush.bf16.msra.mxu0 %v5280
    %7801 = vmatpush.bf16.msra.mxu0 %v5272
    %7802 = vmatmul.bf16.gmra.mxu0 %v1470
    %v7803 = vpop.f32.mrf.mxu0
    %v7804 = vadd.f32 %v7791, %v7803
    %v7805 = vpop.f32.mrf.mxu0
    %7806 = vdwg.mxu0
    %7807 = vmatpush.bf16.msra.mxu0 %v5392
    %7808 = vmatpush.bf16.msra.mxu0 %v5384
    %7809 = vmatpush.bf16.msra.mxu0 %v5376
    %7810 = vmatpush.bf16.msra.mxu0 %v5368
    %7811 = vmatpush.bf16.msra.mxu0 %v5360
    %7812 = vmatpush.bf16.msra.mxu0 %v5352
    %7813 = vmatpush.bf16.msra.mxu0 %v5344
    %7814 = vmatpush.bf16.msra.mxu0 %v5336
    %7815 = vmatmul.bf16.gmra.mxu0 %v1471
    %v7816 = vpop.f32.mrf.mxu0
    %v7817 = vadd.f32 %v7804, %v7816
    %v7818 = vpop.f32.mrf.mxu0
    %7819 = vdwg.mxu0
    %7820 = vmatpush.bf16.msra.mxu0 %v5456
    %7821 = vmatpush.bf16.msra.mxu0 %v5448
    %7822 = vmatpush.bf16.msra.mxu0 %v5440
    %7823 = vmatpush.bf16.msra.mxu0 %v5432
    %7824 = vmatpush.bf16.msra.mxu0 %v5424
    %7825 = vmatpush.bf16.msra.mxu0 %v5416
    %7826 = vmatpush.bf16.msra.mxu0 %v5408
    %7827 = vmatpush.bf16.msra.mxu0 %v5400
    %7828 = vmatmul.bf16.gmra.mxu0 %v1472
    %v7829 = vpop.f32.mrf.mxu0
    %v7830 = vadd.f32 %v7817, %v7829
    %v7831 = vpop.f32.mrf.mxu0
    %7832 = vdwg.mxu0
    %7833 = vmatpush.bf16.msra.mxu0 %v5520
    %7834 = vmatpush.bf16.msra.mxu0 %v5512
    %7835 = vmatpush.bf16.msra.mxu0 %v5504
    %7836 = vmatpush.bf16.msra.mxu0 %v5496
    %7837 = vmatpush.bf16.msra.mxu0 %v5488
    %7838 = vmatpush.bf16.msra.mxu0 %v5480
    %7839 = vmatpush.bf16.msra.mxu0 %v5472
    %7840 = vmatpush.bf16.msra.mxu0 %v5464
    %7841 = vmatmul.bf16.gmra.mxu0 %v1473
    %v7842 = vpop.f32.mrf.mxu0
    %v7843 = vadd.f32 %v7830, %v7842
    %v7844 = vpop.f32.mrf.mxu0
    %7845 = vdwg.mxu0
    %7846 = vmatpush.bf16.msra.mxu0 %v5584
    %7847 = vmatpush.bf16.msra.mxu0 %v5576
    %7848 = vmatpush.bf16.msra.mxu0 %v5568
    %7849 = vmatpush.bf16.msra.mxu0 %v5560
    %7850 = vmatpush.bf16.msra.mxu0 %v5552
    %7851 = vmatpush.bf16.msra.mxu0 %v5544
    %7852 = vmatpush.bf16.msra.mxu0 %v5536
    %7853 = vmatpush.bf16.msra.mxu0 %v5528
    %7854 = vmatmul.bf16.gmra.mxu0 %v1474
    %v7855 = vpop.f32.mrf.mxu0
    %v7856 = vadd.f32 %v7843, %v7855
    %v7857 = vpop.f32.mrf.mxu0
    %7858 = vdwg.mxu0
    %7859 = vmatpush.bf16.msra.mxu0 %v4625
    %7860 = vmatpush.bf16.msra.mxu0 %v4617
    %7861 = vmatpush.bf16.msra.mxu0 %v4609
    %7862 = vmatpush.bf16.msra.mxu0 %v4601
    %7863 = vmatpush.bf16.msra.mxu0 %v4593
    %7864 = vmatpush.bf16.msra.mxu0 %v4585
    %7865 = vmatpush.bf16.msra.mxu0 %v4577
    %7866 = vmatpush.bf16.msra.mxu0 %v4569
    %7867 = vmatmul.bf16.gmra.mxu0 %v1457
    %v7868 = vpop.f32.mrf.mxu0
    %v7869 = vadd.f32 %v1443, %v7868
    %v7870 = vpop.f32.mrf.mxu0
    %7871 = vdwg.mxu0
    %7872 = vmatpush.bf16.msra.mxu0 %v4689
    %7873 = vmatpush.bf16.msra.mxu0 %v4681
    %7874 = vmatpush.bf16.msra.mxu0 %v4673
    %7875 = vmatpush.bf16.msra.mxu0 %v4665
    %7876 = vmatpush.bf16.msra.mxu0 %v4657
    %7877 = vmatpush.bf16.msra.mxu0 %v4649
    %7878 = vmatpush.bf16.msra.mxu0 %v4641
    %7879 = vmatpush.bf16.msra.mxu0 %v4633
    %7880 = vmatmul.bf16.gmra.mxu0 %v1458
    %v7881 = vpop.f32.mrf.mxu0
    %v7882 = vadd.f32 %v7869, %v7881
    %v7883 = vpop.f32.mrf.mxu0
    %7884 = vdwg.mxu0
    %7885 = vmatpush.bf16.msra.mxu0 %v4753
    %7886 = vmatpush.bf16.msra.mxu0 %v4745
    %7887 = vmatpush.bf16.msra.mxu0 %v4737
    %7888 = vmatpush.bf16.msra.mxu0 %v4729
    %7889 = vmatpush.bf16.msra.mxu0 %v4721
    %7890 = vmatpush.bf16.msra.mxu0 %v4713
    %7891 = vmatpush.bf16.msra.mxu0 %v4705
    %7892 = vmatpush.bf16.msra.mxu0 %v4697
    %7893 = vmatmul.bf16.gmra.mxu0 %v1459
    %v7894 = vpop.f32.mrf.mxu0
    %v7895 = vadd.f32 %v7882, %v7894
    %v7896 = vpop.f32.mrf.mxu0
    %7897 = vdwg.mxu0
    %7898 = vmatpush.bf16.msra.mxu0 %v4817
    %7899 = vmatpush.bf16.msra.mxu0 %v4809
    %7900 = vmatpush.bf16.msra.mxu0 %v4801
    %7901 = vmatpush.bf16.msra.mxu0 %v4793
    %7902 = vmatpush.bf16.msra.mxu0 %v4785
    %7903 = vmatpush.bf16.msra.mxu0 %v4777
    %7904 = vmatpush.bf16.msra.mxu0 %v4769
    %7905 = vmatpush.bf16.msra.mxu0 %v4761
    %7906 = vmatmul.bf16.gmra.mxu0 %v1460
    %v7907 = vpop.f32.mrf.mxu0
    %v7908 = vadd.f32 %v7895, %v7907
    %v7909 = vpop.f32.mrf.mxu0
    %7910 = vdwg.mxu0
    %7911 = vmatpush.bf16.msra.mxu0 %v4881
    %7912 = vmatpush.bf16.msra.mxu0 %v4873
    %7913 = vmatpush.bf16.msra.mxu0 %v4865
    %7914 = vmatpush.bf16.msra.mxu0 %v4857
    %7915 = vmatpush.bf16.msra.mxu0 %v4849
    %7916 = vmatpush.bf16.msra.mxu0 %v4841
    %7917 = vmatpush.bf16.msra.mxu0 %v4833
    %7918 = vmatpush.bf16.msra.mxu0 %v4825
    %7919 = vmatmul.bf16.gmra.mxu0 %v1461
    %v7920 = vpop.f32.mrf.mxu0
    %v7921 = vadd.f32 %v7908, %v7920
    %v7922 = vpop.f32.mrf.mxu0
    %7923 = vdwg.mxu0
    %7924 = vmatpush.bf16.msra.mxu0 %v4945
    %7925 = vmatpush.bf16.msra.mxu0 %v4937
    %7926 = vmatpush.bf16.msra.mxu0 %v4929
    %7927 = vmatpush.bf16.msra.mxu0 %v4921
    %7928 = vmatpush.bf16.msra.mxu0 %v4913
    %7929 = vmatpush.bf16.msra.mxu0 %v4905
    %7930 = vmatpush.bf16.msra.mxu0 %v4897
    %7931 = vmatpush.bf16.msra.mxu0 %v4889
    %7932 = vmatmul.bf16.gmra.mxu0 %v1462
    %v7933 = vpop.f32.mrf.mxu0
    %v7934 = vadd.f32 %v7921, %v7933
    %v7935 = vpop.f32.mrf.mxu0
    %7936 = vdwg.mxu0
    %7937 = vmatpush.bf16.msra.mxu0 %v5009
    %7938 = vmatpush.bf16.msra.mxu0 %v5001
    %7939 = vmatpush.bf16.msra.mxu0 %v4993
    %7940 = vmatpush.bf16.msra.mxu0 %v4985
    %7941 = vmatpush.bf16.msra.mxu0 %v4977
    %7942 = vmatpush.bf16.msra.mxu0 %v4969
    %7943 = vmatpush.bf16.msra.mxu0 %v4961
    %7944 = vmatpush.bf16.msra.mxu0 %v4953
    %7945 = vmatmul.bf16.gmra.mxu0 %v1463
    %v7946 = vpop.f32.mrf.mxu0
    %v7947 = vadd.f32 %v7934, %v7946
    %v7948 = vpop.f32.mrf.mxu0
    %7949 = vdwg.mxu0
    %7950 = vmatpush.bf16.msra.mxu0 %v5073
    %7951 = vmatpush.bf16.msra.mxu0 %v5065
    %7952 = vmatpush.bf16.msra.mxu0 %v5057
    %7953 = vmatpush.bf16.msra.mxu0 %v5049
    %7954 = vmatpush.bf16.msra.mxu0 %v5041
    %7955 = vmatpush.bf16.msra.mxu0 %v5033
    %7956 = vmatpush.bf16.msra.mxu0 %v5025
    %7957 = vmatpush.bf16.msra.mxu0 %v5017
    %7958 = vmatmul.bf16.gmra.mxu0 %v1464
    %v7959 = vpop.f32.mrf.mxu0
    %v7960 = vadd.f32 %v7947, %v7959
    %v7961 = vpop.f32.mrf.mxu0
    %7962 = vdwg.mxu0
    %7963 = vmatpush.bf16.msra.mxu0 %v5137
    %7964 = vmatpush.bf16.msra.mxu0 %v5129
    %7965 = vmatpush.bf16.msra.mxu0 %v5121
    %7966 = vmatpush.bf16.msra.mxu0 %v5113
    %7967 = vmatpush.bf16.msra.mxu0 %v5105
    %7968 = vmatpush.bf16.msra.mxu0 %v5097
    %7969 = vmatpush.bf16.msra.mxu0 %v5089
    %7970 = vmatpush.bf16.msra.mxu0 %v5081
    %7971 = vmatmul.bf16.gmra.mxu0 %v1467
    %v7972 = vpop.f32.mrf.mxu0
    %v7973 = vadd.f32 %v7960, %v7972
    %v7974 = vpop.f32.mrf.mxu0
    %7975 = vdwg.mxu0
    %7976 = vmatpush.bf16.msra.mxu0 %v5201
    %7977 = vmatpush.bf16.msra.mxu0 %v5193
    %7978 = vmatpush.bf16.msra.mxu0 %v5185
    %7979 = vmatpush.bf16.msra.mxu0 %v5177
    %7980 = vmatpush.bf16.msra.mxu0 %v5169
    %7981 = vmatpush.bf16.msra.mxu0 %v5161
    %7982 = vmatpush.bf16.msra.mxu0 %v5153
    %7983 = vmatpush.bf16.msra.mxu0 %v5145
    %7984 = vmatmul.bf16.gmra.mxu0 %v1468
    %v7985 = vpop.f32.mrf.mxu0
    %v7986 = vadd.f32 %v7973, %v7985
    %v7987 = vpop.f32.mrf.mxu0
    %7988 = vdwg.mxu0
    %7989 = vmatpush.bf16.msra.mxu0 %v5265
    %7990 = vmatpush.bf16.msra.mxu0 %v5257
    %7991 = vmatpush.bf16.msra.mxu0 %v5249
    %7992 = vmatpush.bf16.msra.mxu0 %v5241
    %7993 = vmatpush.bf16.msra.mxu0 %v5233
    %7994 = vmatpush.bf16.msra.mxu0 %v5225
    %7995 = vmatpush.bf16.msra.mxu0 %v5217
    %7996 = vmatpush.bf16.msra.mxu0 %v5209
    %7997 = vmatmul.bf16.gmra.mxu0 %v1469
    %v7998 = vpop.f32.mrf.mxu0
    %v7999 = vadd.f32 %v7986, %v7998
    %v8000 = vpop.f32.mrf.mxu0
    %8001 = vdwg.mxu0
    %8002 = vmatpush.bf16.msra.mxu0 %v5329
    %8003 = vmatpush.bf16.msra.mxu0 %v5321
    %8004 = vmatpush.bf16.msra.mxu0 %v5313
    %8005 = vmatpush.bf16.msra.mxu0 %v5305
    %8006 = vmatpush.bf16.msra.mxu0 %v5297
    %8007 = vmatpush.bf16.msra.mxu0 %v5289
    %8008 = vmatpush.bf16.msra.mxu0 %v5281
    %8009 = vmatpush.bf16.msra.mxu0 %v5273
    %8010 = vmatmul.bf16.gmra.mxu0 %v1470
    %v8011 = vpop.f32.mrf.mxu0
    %v8012 = vadd.f32 %v7999, %v8011
    %v8013 = vpop.f32.mrf.mxu0
    %8014 = vdwg.mxu0
    %8015 = vmatpush.bf16.msra.mxu0 %v5393
    %8016 = vmatpush.bf16.msra.mxu0 %v5385
    %8017 = vmatpush.bf16.msra.mxu0 %v5377
    %8018 = vmatpush.bf16.msra.mxu0 %v5369
    %8019 = vmatpush.bf16.msra.mxu0 %v5361
    %8020 = vmatpush.bf16.msra.mxu0 %v5353
    %8021 = vmatpush.bf16.msra.mxu0 %v5345
    %8022 = vmatpush.bf16.msra.mxu0 %v5337
    %8023 = vmatmul.bf16.gmra.mxu0 %v1471
    %v8024 = vpop.f32.mrf.mxu0
    %v8025 = vadd.f32 %v8012, %v8024
    %v8026 = vpop.f32.mrf.mxu0
    %8027 = vdwg.mxu0
    %8028 = vmatpush.bf16.msra.mxu0 %v5457
    %8029 = vmatpush.bf16.msra.mxu0 %v5449
    %8030 = vmatpush.bf16.msra.mxu0 %v5441
    %8031 = vmatpush.bf16.msra.mxu0 %v5433
    %8032 = vmatpush.bf16.msra.mxu0 %v5425
    %8033 = vmatpush.bf16.msra.mxu0 %v5417
    %8034 = vmatpush.bf16.msra.mxu0 %v5409
    %8035 = vmatpush.bf16.msra.mxu0 %v5401
    %8036 = vmatmul.bf16.gmra.mxu0 %v1472
    %v8037 = vpop.f32.mrf.mxu0
    %v8038 = vadd.f32 %v8025, %v8037
    %v8039 = vpop.f32.mrf.mxu0
    %8040 = vdwg.mxu0
    %8041 = vmatpush.bf16.msra.mxu0 %v5521
    %8042 = vmatpush.bf16.msra.mxu0 %v5513
    %8043 = vmatpush.bf16.msra.mxu0 %v5505
    %8044 = vmatpush.bf16.msra.mxu0 %v5497
    %8045 = vmatpush.bf16.msra.mxu0 %v5489
    %8046 = vmatpush.bf16.msra.mxu0 %v5481
    %8047 = vmatpush.bf16.msra.mxu0 %v5473
    %8048 = vmatpush.bf16.msra.mxu0 %v5465
    %8049 = vmatmul.bf16.gmra.mxu0 %v1473
    %v8050 = vpop.f32.mrf.mxu0
    %v8051 = vadd.f32 %v8038, %v8050
    %v8052 = vpop.f32.mrf.mxu0
    %8053 = vdwg.mxu0
    %8054 = vmatpush.bf16.msra.mxu0 %v5585
    %8055 = vmatpush.bf16.msra.mxu0 %v5577
    %8056 = vmatpush.bf16.msra.mxu0 %v5569
    %8057 = vmatpush.bf16.msra.mxu0 %v5561
    %8058 = vmatpush.bf16.msra.mxu0 %v5553
    %8059 = vmatpush.bf16.msra.mxu0 %v5545
    %8060 = vmatpush.bf16.msra.mxu0 %v5537
    %8061 = vmatpush.bf16.msra.mxu0 %v5529
    %8062 = vmatmul.bf16.gmra.mxu0 %v1474
    %v8063 = vpop.f32.mrf.mxu0
    %v8064 = vadd.f32 %v8051, %v8063
    %v8065 = vpop.f32.mrf.mxu0
    %8066 = vdwg.mxu0
    %8067 = vmatpush.bf16.msra.mxu0 %v4626
    %8068 = vmatpush.bf16.msra.mxu0 %v4618
    %8069 = vmatpush.bf16.msra.mxu0 %v4610
    %8070 = vmatpush.bf16.msra.mxu0 %v4602
    %8071 = vmatpush.bf16.msra.mxu0 %v4594
    %8072 = vmatpush.bf16.msra.mxu0 %v4586
    %8073 = vmatpush.bf16.msra.mxu0 %v4578
    %8074 = vmatpush.bf16.msra.mxu0 %v4570
    %8075 = vmatmul.bf16.gmra.mxu0 %v1457
    %v8076 = vpop.f32.mrf.mxu0
    %v8077 = vadd.f32 %v1444, %v8076
    %v8078 = vpop.f32.mrf.mxu0
    %8079 = vdwg.mxu0
    %8080 = vmatpush.bf16.msra.mxu0 %v4690
    %8081 = vmatpush.bf16.msra.mxu0 %v4682
    %8082 = vmatpush.bf16.msra.mxu0 %v4674
    %8083 = vmatpush.bf16.msra.mxu0 %v4666
    %8084 = vmatpush.bf16.msra.mxu0 %v4658
    %8085 = vmatpush.bf16.msra.mxu0 %v4650
    %8086 = vmatpush.bf16.msra.mxu0 %v4642
    %8087 = vmatpush.bf16.msra.mxu0 %v4634
    %8088 = vmatmul.bf16.gmra.mxu0 %v1458
    %v8089 = vpop.f32.mrf.mxu0
    %v8090 = vadd.f32 %v8077, %v8089
    %v8091 = vpop.f32.mrf.mxu0
    %8092 = vdwg.mxu0
    %8093 = vmatpush.bf16.msra.mxu0 %v4754
    %8094 = vmatpush.bf16.msra.mxu0 %v4746
    %8095 = vmatpush.bf16.msra.mxu0 %v4738
    %8096 = vmatpush.bf16.msra.mxu0 %v4730
    %8097 = vmatpush.bf16.msra.mxu0 %v4722
    %8098 = vmatpush.bf16.msra.mxu0 %v4714
    %8099 = vmatpush.bf16.msra.mxu0 %v4706
    %8100 = vmatpush.bf16.msra.mxu0 %v4698
    %8101 = vmatmul.bf16.gmra.mxu0 %v1459
    %v8102 = vpop.f32.mrf.mxu0
    %v8103 = vadd.f32 %v8090, %v8102
    %v8104 = vpop.f32.mrf.mxu0
    %8105 = vdwg.mxu0
    %8106 = vmatpush.bf16.msra.mxu0 %v4818
    %8107 = vmatpush.bf16.msra.mxu0 %v4810
    %8108 = vmatpush.bf16.msra.mxu0 %v4802
    %8109 = vmatpush.bf16.msra.mxu0 %v4794
    %8110 = vmatpush.bf16.msra.mxu0 %v4786
    %8111 = vmatpush.bf16.msra.mxu0 %v4778
    %8112 = vmatpush.bf16.msra.mxu0 %v4770
    %8113 = vmatpush.bf16.msra.mxu0 %v4762
    %8114 = vmatmul.bf16.gmra.mxu0 %v1460
    %v8115 = vpop.f32.mrf.mxu0
    %v8116 = vadd.f32 %v8103, %v8115
    %v8117 = vpop.f32.mrf.mxu0
    %8118 = vdwg.mxu0
    %8119 = vmatpush.bf16.msra.mxu0 %v4882
    %8120 = vmatpush.bf16.msra.mxu0 %v4874
    %8121 = vmatpush.bf16.msra.mxu0 %v4866
    %8122 = vmatpush.bf16.msra.mxu0 %v4858
    %8123 = vmatpush.bf16.msra.mxu0 %v4850
    %8124 = vmatpush.bf16.msra.mxu0 %v4842
    %8125 = vmatpush.bf16.msra.mxu0 %v4834
    %8126 = vmatpush.bf16.msra.mxu0 %v4826
    %8127 = vmatmul.bf16.gmra.mxu0 %v1461
    %v8128 = vpop.f32.mrf.mxu0
    %v8129 = vadd.f32 %v8116, %v8128
    %v8130 = vpop.f32.mrf.mxu0
    %8131 = vdwg.mxu0
    %8132 = vmatpush.bf16.msra.mxu0 %v4946
    %8133 = vmatpush.bf16.msra.mxu0 %v4938
    %8134 = vmatpush.bf16.msra.mxu0 %v4930
    %8135 = vmatpush.bf16.msra.mxu0 %v4922
    %8136 = vmatpush.bf16.msra.mxu0 %v4914
    %8137 = vmatpush.bf16.msra.mxu0 %v4906
    %8138 = vmatpush.bf16.msra.mxu0 %v4898
    %8139 = vmatpush.bf16.msra.mxu0 %v4890
    %8140 = vmatmul.bf16.gmra.mxu0 %v1462
    %v8141 = vpop.f32.mrf.mxu0
    %v8142 = vadd.f32 %v8129, %v8141
    %v8143 = vpop.f32.mrf.mxu0
    %8144 = vdwg.mxu0
    %8145 = vmatpush.bf16.msra.mxu0 %v5010
    %8146 = vmatpush.bf16.msra.mxu0 %v5002
    %8147 = vmatpush.bf16.msra.mxu0 %v4994
    %8148 = vmatpush.bf16.msra.mxu0 %v4986
    %8149 = vmatpush.bf16.msra.mxu0 %v4978
    %8150 = vmatpush.bf16.msra.mxu0 %v4970
    %8151 = vmatpush.bf16.msra.mxu0 %v4962
    %8152 = vmatpush.bf16.msra.mxu0 %v4954
    %8153 = vmatmul.bf16.gmra.mxu0 %v1463
    %v8154 = vpop.f32.mrf.mxu0
    %v8155 = vadd.f32 %v8142, %v8154
    %v8156 = vpop.f32.mrf.mxu0
    %8157 = vdwg.mxu0
    %8158 = vmatpush.bf16.msra.mxu0 %v5074
    %8159 = vmatpush.bf16.msra.mxu0 %v5066
    %8160 = vmatpush.bf16.msra.mxu0 %v5058
    %8161 = vmatpush.bf16.msra.mxu0 %v5050
    %8162 = vmatpush.bf16.msra.mxu0 %v5042
    %8163 = vmatpush.bf16.msra.mxu0 %v5034
    %8164 = vmatpush.bf16.msra.mxu0 %v5026
    %8165 = vmatpush.bf16.msra.mxu0 %v5018
    %8166 = vmatmul.bf16.gmra.mxu0 %v1464
    %v8167 = vpop.f32.mrf.mxu0
    %v8168 = vadd.f32 %v8155, %v8167
    %v8169 = vpop.f32.mrf.mxu0
    %8170 = vdwg.mxu0
    %8171 = vmatpush.bf16.msra.mxu0 %v5138
    %8172 = vmatpush.bf16.msra.mxu0 %v5130
    %8173 = vmatpush.bf16.msra.mxu0 %v5122
    %8174 = vmatpush.bf16.msra.mxu0 %v5114
    %8175 = vmatpush.bf16.msra.mxu0 %v5106
    %8176 = vmatpush.bf16.msra.mxu0 %v5098
    %8177 = vmatpush.bf16.msra.mxu0 %v5090
    %8178 = vmatpush.bf16.msra.mxu0 %v5082
    %8179 = vmatmul.bf16.gmra.mxu0 %v1467
    %v8180 = vpop.f32.mrf.mxu0
    %v8181 = vadd.f32 %v8168, %v8180
    %v8182 = vpop.f32.mrf.mxu0
    %8183 = vdwg.mxu0
    %8184 = vmatpush.bf16.msra.mxu0 %v5202
    %8185 = vmatpush.bf16.msra.mxu0 %v5194
    %8186 = vmatpush.bf16.msra.mxu0 %v5186
    %8187 = vmatpush.bf16.msra.mxu0 %v5178
    %8188 = vmatpush.bf16.msra.mxu0 %v5170
    %8189 = vmatpush.bf16.msra.mxu0 %v5162
    %8190 = vmatpush.bf16.msra.mxu0 %v5154
    %8191 = vmatpush.bf16.msra.mxu0 %v5146
    %8192 = vmatmul.bf16.gmra.mxu0 %v1468
    %v8193 = vpop.f32.mrf.mxu0
    %v8194 = vadd.f32 %v8181, %v8193
    %v8195 = vpop.f32.mrf.mxu0
    %8196 = vdwg.mxu0
    %8197 = vmatpush.bf16.msra.mxu0 %v5266
    %8198 = vmatpush.bf16.msra.mxu0 %v5258
    %8199 = vmatpush.bf16.msra.mxu0 %v5250
    %8200 = vmatpush.bf16.msra.mxu0 %v5242
    %8201 = vmatpush.bf16.msra.mxu0 %v5234
    %8202 = vmatpush.bf16.msra.mxu0 %v5226
    %8203 = vmatpush.bf16.msra.mxu0 %v5218
    %8204 = vmatpush.bf16.msra.mxu0 %v5210
    %8205 = vmatmul.bf16.gmra.mxu0 %v1469
    %v8206 = vpop.f32.mrf.mxu0
    %v8207 = vadd.f32 %v8194, %v8206
    %v8208 = vpop.f32.mrf.mxu0
    %8209 = vdwg.mxu0
    %8210 = vmatpush.bf16.msra.mxu0 %v5330
    %8211 = vmatpush.bf16.msra.mxu0 %v5322
    %8212 = vmatpush.bf16.msra.mxu0 %v5314
    %8213 = vmatpush.bf16.msra.mxu0 %v5306
    %8214 = vmatpush.bf16.msra.mxu0 %v5298
    %8215 = vmatpush.bf16.msra.mxu0 %v5290
    %8216 = vmatpush.bf16.msra.mxu0 %v5282
    %8217 = vmatpush.bf16.msra.mxu0 %v5274
    %8218 = vmatmul.bf16.gmra.mxu0 %v1470
    %v8219 = vpop.f32.mrf.mxu0
    %v8220 = vadd.f32 %v8207, %v8219
    %v8221 = vpop.f32.mrf.mxu0
    %8222 = vdwg.mxu0
    %8223 = vmatpush.bf16.msra.mxu0 %v5394
    %8224 = vmatpush.bf16.msra.mxu0 %v5386
    %8225 = vmatpush.bf16.msra.mxu0 %v5378
    %8226 = vmatpush.bf16.msra.mxu0 %v5370
    %8227 = vmatpush.bf16.msra.mxu0 %v5362
    %8228 = vmatpush.bf16.msra.mxu0 %v5354
    %8229 = vmatpush.bf16.msra.mxu0 %v5346
    %8230 = vmatpush.bf16.msra.mxu0 %v5338
    %8231 = vmatmul.bf16.gmra.mxu0 %v1471
    %v8232 = vpop.f32.mrf.mxu0
    %v8233 = vadd.f32 %v8220, %v8232
    %v8234 = vpop.f32.mrf.mxu0
    %8235 = vdwg.mxu0
    %8236 = vmatpush.bf16.msra.mxu0 %v5458
    %8237 = vmatpush.bf16.msra.mxu0 %v5450
    %8238 = vmatpush.bf16.msra.mxu0 %v5442
    %8239 = vmatpush.bf16.msra.mxu0 %v5434
    %8240 = vmatpush.bf16.msra.mxu0 %v5426
    %8241 = vmatpush.bf16.msra.mxu0 %v5418
    %8242 = vmatpush.bf16.msra.mxu0 %v5410
    %8243 = vmatpush.bf16.msra.mxu0 %v5402
    %8244 = vmatmul.bf16.gmra.mxu0 %v1472
    %v8245 = vpop.f32.mrf.mxu0
    %v8246 = vadd.f32 %v8233, %v8245
    %v8247 = vpop.f32.mrf.mxu0
    %8248 = vdwg.mxu0
    %8249 = vmatpush.bf16.msra.mxu0 %v5522
    %8250 = vmatpush.bf16.msra.mxu0 %v5514
    %8251 = vmatpush.bf16.msra.mxu0 %v5506
    %8252 = vmatpush.bf16.msra.mxu0 %v5498
    %8253 = vmatpush.bf16.msra.mxu0 %v5490
    %8254 = vmatpush.bf16.msra.mxu0 %v5482
    %8255 = vmatpush.bf16.msra.mxu0 %v5474
    %8256 = vmatpush.bf16.msra.mxu0 %v5466
    %8257 = vmatmul.bf16.gmra.mxu0 %v1473
    %v8258 = vpop.f32.mrf.mxu0
    %v8259 = vadd.f32 %v8246, %v8258
    %v8260 = vpop.f32.mrf.mxu0
    %8261 = vdwg.mxu0
    %8262 = vmatpush.bf16.msra.mxu0 %v5586
    %8263 = vmatpush.bf16.msra.mxu0 %v5578
    %8264 = vmatpush.bf16.msra.mxu0 %v5570
    %8265 = vmatpush.bf16.msra.mxu0 %v5562
    %8266 = vmatpush.bf16.msra.mxu0 %v5554
    %8267 = vmatpush.bf16.msra.mxu0 %v5546
    %8268 = vmatpush.bf16.msra.mxu0 %v5538
    %8269 = vmatpush.bf16.msra.mxu0 %v5530
    %8270 = vmatmul.bf16.gmra.mxu0 %v1474
    %v8271 = vpop.f32.mrf.mxu0
    %v8272 = vadd.f32 %v8259, %v8271
    %v8273 = vpop.f32.mrf.mxu0
    %8274 = vdwg.mxu0
    %v8275 = vmax.f32 %v6816, 0.0
    %v8276 = vmax.f32 %v7024, 0.0
    %v8277 = vmax.f32 %v7232, 0.0
    %v8278 = vmax.f32 %v7440, 0.0
    %v8279 = vmax.f32 %v7648, 0.0
    %v8280 = vmax.f32 %v7856, 0.0
    %v8281 = vmax.f32 %v8064, 0.0
    %v8282 = vmax.f32 %v8272, 0.0
    %v8283 = vpack.c.bf16 %v8275, %v8275
    %v8284 = vpack.c.bf16 %v8276, %v8276
    %v8285 = vpack.c.bf16 %v8277, %v8277
    %v8286 = vpack.c.bf16 %v8278, %v8278
    %v8287 = vpack.c.bf16 %v8279, %v8279
    %v8288 = vpack.c.bf16 %v8280, %v8280
    %v8289 = vpack.c.bf16 %v8281, %v8281
    %v8290 = vpack.c.bf16 %v8282, %v8282
    %v8291 = vld [vmem:[#allocation14] sm:$0xf]
    %v8292 = vld [vmem:[#allocation14 + $0x4] sm:$0xf]
    %v8293 = vld [vmem:[#allocation14 + $0x8] sm:$0xf]
    %v8294 = vld [vmem:[#allocation14 + $0xc] sm:$0xf]
    %v8295 = vld [vmem:[#allocation14 + $0x10] sm:$0xf]
    %v8296 = vld [vmem:[#allocation14 + $0x14] sm:$0xf]
    %v8297 = vld [vmem:[#allocation14 + $0x18] sm:$0xf]
    %v8298 = vld [vmem:[#allocation14 + $0x1c] sm:$0xf]
    %v8299 = vld [vmem:[#allocation14 + $0x20] sm:$0xf]
    %v8300 = vld [vmem:[#allocation14 + $0x24] sm:$0xf]
    %v8301 = vld [vmem:[#allocation14 + $0x28] sm:$0xf]
    %v8302 = vld [vmem:[#allocation14 + $0x2c] sm:$0xf]
    %v8303 = vld [vmem:[#allocation14 + $0x30] sm:$0xf]
    %v8304 = vld [vmem:[#allocation14 + $0x34] sm:$0xf]
    %v8305 = vld [vmem:[#allocation14 + $0x38] sm:$0xf]
    %v8306 = vld [vmem:[#allocation14 + $0x3c] sm:$0xf]
    %v8307 = vld [vmem:[#allocation14 + $0x40] sm:$0xf]
    %v8308 = vld [vmem:[#allocation14 + $0x44] sm:$0xf]
    %v8309 = vld [vmem:[#allocation14 + $0x48] sm:$0xf]
    %v8310 = vld [vmem:[#allocation14 + $0x4c] sm:$0xf]
    %v8311 = vld [vmem:[#allocation14 + $0x50] sm:$0xf]
    %v8312 = vld [vmem:[#allocation14 + $0x54] sm:$0xf]
    %v8313 = vld [vmem:[#allocation14 + $0x58] sm:$0xf]
    %v8314 = vld [vmem:[#allocation14 + $0x5c] sm:$0xf]
    %v8315 = vld [vmem:[#allocation14 + $0x60] sm:$0xf]
    %v8316 = vld [vmem:[#allocation14 + $0x64] sm:$0xf]
    %v8317 = vld [vmem:[#allocation14 + $0x68] sm:$0xf]
    %v8318 = vld [vmem:[#allocation14 + $0x6c] sm:$0xf]
    %v8319 = vld [vmem:[#allocation14 + $0x70] sm:$0xf]
    %v8320 = vld [vmem:[#allocation14 + $0x74] sm:$0xf]
    %v8321 = vld [vmem:[#allocation14 + $0x78] sm:$0xf]
    %v8322 = vld [vmem:[#allocation14 + $0x7c] sm:$0xf]
    %v8323 = vld [vmem:[#allocation14 + $0x80] sm:$0xf]
    %v8324 = vld [vmem:[#allocation14 + $0x84] sm:$0xf]
    %v8325 = vld [vmem:[#allocation14 + $0x88] sm:$0xf]
    %v8326 = vld [vmem:[#allocation14 + $0x8c] sm:$0xf]
    %v8327 = vld [vmem:[#allocation14 + $0x90] sm:$0xf]
    %v8328 = vld [vmem:[#allocation14 + $0x94] sm:$0xf]
    %v8329 = vld [vmem:[#allocation14 + $0x98] sm:$0xf]
    %v8330 = vld [vmem:[#allocation14 + $0x9c] sm:$0xf]
    %v8331 = vld [vmem:[#allocation14 + $0xa0] sm:$0xf]
    %v8332 = vld [vmem:[#allocation14 + $0xa4] sm:$0xf]
    %v8333 = vld [vmem:[#allocation14 + $0xa8] sm:$0xf]
    %v8334 = vld [vmem:[#allocation14 + $0xac] sm:$0xf]
    %v8335 = vld [vmem:[#allocation14 + $0xb0] sm:$0xf]
    %v8336 = vld [vmem:[#allocation14 + $0xb4] sm:$0xf]
    %v8337 = vld [vmem:[#allocation14 + $0xb8] sm:$0xf]
    %v8338 = vld [vmem:[#allocation14 + $0xbc] sm:$0xf]
    %v8339 = vld [vmem:[#allocation14 + $0xc0] sm:$0xf]
    %v8340 = vld [vmem:[#allocation14 + $0xc4] sm:$0xf]
    %v8341 = vld [vmem:[#allocation14 + $0xc8] sm:$0xf]
    %v8342 = vld [vmem:[#allocation14 + $0xcc] sm:$0xf]
    %v8343 = vld [vmem:[#allocation14 + $0xd0] sm:$0xf]
    %v8344 = vld [vmem:[#allocation14 + $0xd4] sm:$0xf]
    %v8345 = vld [vmem:[#allocation14 + $0xd8] sm:$0xf]
    %v8346 = vld [vmem:[#allocation14 + $0xdc] sm:$0xf]
    %v8347 = vld [vmem:[#allocation14 + $0xe0] sm:$0xf]
    %v8348 = vld [vmem:[#allocation14 + $0xe4] sm:$0xf]
    %v8349 = vld [vmem:[#allocation14 + $0xe8] sm:$0xf]
    %v8350 = vld [vmem:[#allocation14 + $0xec] sm:$0xf]
    %v8351 = vld [vmem:[#allocation14 + $0xf0] sm:$0xf]
    %v8352 = vld [vmem:[#allocation14 + $0xf4] sm:$0xf]
    %v8353 = vld [vmem:[#allocation14 + $0xf8] sm:$0xf]
    %v8354 = vld [vmem:[#allocation14 + $0xfc] sm:$0xf]
    %v8355 = vld [vmem:[#allocation14 + $0x100] sm:$0xf]
    %v8356 = vld [vmem:[#allocation14 + $0x104] sm:$0xf]
    %v8357 = vld [vmem:[#allocation14 + $0x108] sm:$0xf]
    %v8358 = vld [vmem:[#allocation14 + $0x10c] sm:$0xf]
    %v8359 = vld [vmem:[#allocation14 + $0x110] sm:$0xf]
    %v8360 = vld [vmem:[#allocation14 + $0x114] sm:$0xf]
    %v8361 = vld [vmem:[#allocation14 + $0x118] sm:$0xf]
    %v8362 = vld [vmem:[#allocation14 + $0x11c] sm:$0xf]
    %v8363 = vld [vmem:[#allocation14 + $0x120] sm:$0xf]
    %v8364 = vld [vmem:[#allocation14 + $0x124] sm:$0xf]
    %v8365 = vld [vmem:[#allocation14 + $0x128] sm:$0xf]
    %v8366 = vld [vmem:[#allocation14 + $0x12c] sm:$0xf]
    %v8367 = vld [vmem:[#allocation14 + $0x130] sm:$0xf]
    %v8368 = vld [vmem:[#allocation14 + $0x134] sm:$0xf]
    %v8369 = vld [vmem:[#allocation14 + $0x138] sm:$0xf]
    %v8370 = vld [vmem:[#allocation14 + $0x13c] sm:$0xf]
    %v8371 = vld [vmem:[#allocation14 + $0x140] sm:$0xf]
    %v8372 = vld [vmem:[#allocation14 + $0x144] sm:$0xf]
    %v8373 = vld [vmem:[#allocation14 + $0x148] sm:$0xf]
    %v8374 = vld [vmem:[#allocation14 + $0x14c] sm:$0xf]
    %v8375 = vld [vmem:[#allocation14 + $0x150] sm:$0xf]
    %v8376 = vld [vmem:[#allocation14 + $0x154] sm:$0xf]
    %v8377 = vld [vmem:[#allocation14 + $0x158] sm:$0xf]
    %v8378 = vld [vmem:[#allocation14 + $0x15c] sm:$0xf]
    %v8379 = vld [vmem:[#allocation14 + $0x160] sm:$0xf]
    %v8380 = vld [vmem:[#allocation14 + $0x164] sm:$0xf]
    %v8381 = vld [vmem:[#allocation14 + $0x168] sm:$0xf]
    %v8382 = vld [vmem:[#allocation14 + $0x16c] sm:$0xf]
    %v8383 = vld [vmem:[#allocation14 + $0x170] sm:$0xf]
    %v8384 = vld [vmem:[#allocation14 + $0x174] sm:$0xf]
    %v8385 = vld [vmem:[#allocation14 + $0x178] sm:$0xf]
    %v8386 = vld [vmem:[#allocation14 + $0x17c] sm:$0xf]
    %v8387 = vld [vmem:[#allocation14 + $0x180] sm:$0xf]
    %v8388 = vld [vmem:[#allocation14 + $0x184] sm:$0xf]
    %v8389 = vld [vmem:[#allocation14 + $0x188] sm:$0xf]
    %v8390 = vld [vmem:[#allocation14 + $0x18c] sm:$0xf]
    %v8391 = vld [vmem:[#allocation14 + $0x190] sm:$0xf]
    %v8392 = vld [vmem:[#allocation14 + $0x194] sm:$0xf]
    %v8393 = vld [vmem:[#allocation14 + $0x198] sm:$0xf]
    %v8394 = vld [vmem:[#allocation14 + $0x19c] sm:$0xf]
    %v8395 = vld [vmem:[#allocation14 + $0x1a0] sm:$0xf]
    %v8396 = vld [vmem:[#allocation14 + $0x1a4] sm:$0xf]
    %v8397 = vld [vmem:[#allocation14 + $0x1a8] sm:$0xf]
    %v8398 = vld [vmem:[#allocation14 + $0x1ac] sm:$0xf]
    %v8399 = vld [vmem:[#allocation14 + $0x1b0] sm:$0xf]
    %v8400 = vld [vmem:[#allocation14 + $0x1b4] sm:$0xf]
    %v8401 = vld [vmem:[#allocation14 + $0x1b8] sm:$0xf]
    %v8402 = vld [vmem:[#allocation14 + $0x1bc] sm:$0xf]
    %v8403 = vld [vmem:[#allocation14 + $0x1c0] sm:$0xf]
    %v8404 = vld [vmem:[#allocation14 + $0x1c4] sm:$0xf]
    %v8405 = vld [vmem:[#allocation14 + $0x1c8] sm:$0xf]
    %v8406 = vld [vmem:[#allocation14 + $0x1cc] sm:$0xf]
    %v8407 = vld [vmem:[#allocation14 + $0x1d0] sm:$0xf]
    %v8408 = vld [vmem:[#allocation14 + $0x1d4] sm:$0xf]
    %v8409 = vld [vmem:[#allocation14 + $0x1d8] sm:$0xf]
    %v8410 = vld [vmem:[#allocation14 + $0x1dc] sm:$0xf]
    %v8411 = vld [vmem:[#allocation14 + $0x1e0] sm:$0xf]
    %v8412 = vld [vmem:[#allocation14 + $0x1e4] sm:$0xf]
    %v8413 = vld [vmem:[#allocation14 + $0x1e8] sm:$0xf]
    %v8414 = vld [vmem:[#allocation14 + $0x1ec] sm:$0xf]
    %v8415 = vld [vmem:[#allocation14 + $0x1f0] sm:$0xf]
    %v8416 = vld [vmem:[#allocation14 + $0x1f4] sm:$0xf]
    %v8417 = vld [vmem:[#allocation14 + $0x1f8] sm:$0xf]
    %v8418 = vld [vmem:[#allocation14 + $0x1fc] sm:$0xf]
    %v8419 = vld [vmem:[#allocation15] sm:$0x1]
    %v8421 = vperm.slane %v8419, 0
    %v8551 = vunpack.c.l.b16 %v8291
    %v8552 = vunpack.c.l.b16 %v8292
    %v8553 = vunpack.c.l.b16 %v8293
    %v8554 = vunpack.c.l.b16 %v8294
    %v8555 = vunpack.c.l.b16 %v8295
    %v8556 = vunpack.c.l.b16 %v8296
    %v8557 = vunpack.c.l.b16 %v8297
    %v8558 = vunpack.c.l.b16 %v8298
    %v8559 = vunpack.c.l.b16 %v8299
    %v8560 = vunpack.c.l.b16 %v8300
    %v8561 = vunpack.c.l.b16 %v8301
    %v8562 = vunpack.c.l.b16 %v8302
    %v8563 = vunpack.c.l.b16 %v8303
    %v8564 = vunpack.c.l.b16 %v8304
    %v8565 = vunpack.c.l.b16 %v8305
    %v8566 = vunpack.c.l.b16 %v8306
    %v8567 = vunpack.c.l.b16 %v8307
    %v8568 = vunpack.c.l.b16 %v8308
    %v8569 = vunpack.c.l.b16 %v8309
    %v8570 = vunpack.c.l.b16 %v8310
    %v8571 = vunpack.c.l.b16 %v8311
    %v8572 = vunpack.c.l.b16 %v8312
    %v8573 = vunpack.c.l.b16 %v8313
    %v8574 = vunpack.c.l.b16 %v8314
    %v8575 = vunpack.c.l.b16 %v8315
    %v8576 = vunpack.c.l.b16 %v8316
    %v8577 = vunpack.c.l.b16 %v8317
    %v8578 = vunpack.c.l.b16 %v8318
    %v8579 = vunpack.c.l.b16 %v8319
    %v8580 = vunpack.c.l.b16 %v8320
    %v8581 = vunpack.c.l.b16 %v8321
    %v8582 = vunpack.c.l.b16 %v8322
    %v8583 = vunpack.c.l.b16 %v8323
    %v8584 = vunpack.c.l.b16 %v8324
    %v8585 = vunpack.c.l.b16 %v8325
    %v8586 = vunpack.c.l.b16 %v8326
    %v8587 = vunpack.c.l.b16 %v8327
    %v8588 = vunpack.c.l.b16 %v8328
    %v8589 = vunpack.c.l.b16 %v8329
    %v8590 = vunpack.c.l.b16 %v8330
    %v8591 = vunpack.c.l.b16 %v8331
    %v8592 = vunpack.c.l.b16 %v8332
    %v8593 = vunpack.c.l.b16 %v8333
    %v8594 = vunpack.c.l.b16 %v8334
    %v8595 = vunpack.c.l.b16 %v8335
    %v8596 = vunpack.c.l.b16 %v8336
    %v8597 = vunpack.c.l.b16 %v8337
    %v8598 = vunpack.c.l.b16 %v8338
    %v8599 = vunpack.c.l.b16 %v8339
    %v8600 = vunpack.c.l.b16 %v8340
    %v8601 = vunpack.c.l.b16 %v8341
    %v8602 = vunpack.c.l.b16 %v8342
    %v8603 = vunpack.c.l.b16 %v8343
    %v8604 = vunpack.c.l.b16 %v8344
    %v8605 = vunpack.c.l.b16 %v8345
    %v8606 = vunpack.c.l.b16 %v8346
    %v8607 = vunpack.c.l.b16 %v8347
    %v8608 = vunpack.c.l.b16 %v8348
    %v8609 = vunpack.c.l.b16 %v8349
    %v8610 = vunpack.c.l.b16 %v8350
    %v8611 = vunpack.c.l.b16 %v8351
    %v8612 = vunpack.c.l.b16 %v8352
    %v8613 = vunpack.c.l.b16 %v8353
    %v8614 = vunpack.c.l.b16 %v8354
    %v8615 = vunpack.c.l.b16 %v8355
    %v8616 = vunpack.c.l.b16 %v8356
    %v8617 = vunpack.c.l.b16 %v8357
    %v8618 = vunpack.c.l.b16 %v8358
    %v8619 = vunpack.c.l.b16 %v8359
    %v8620 = vunpack.c.l.b16 %v8360
    %v8621 = vunpack.c.l.b16 %v8361
    %v8622 = vunpack.c.l.b16 %v8362
    %v8623 = vunpack.c.l.b16 %v8363
    %v8624 = vunpack.c.l.b16 %v8364
    %v8625 = vunpack.c.l.b16 %v8365
    %v8626 = vunpack.c.l.b16 %v8366
    %v8627 = vunpack.c.l.b16 %v8367
    %v8628 = vunpack.c.l.b16 %v8368
    %v8629 = vunpack.c.l.b16 %v8369
    %v8630 = vunpack.c.l.b16 %v8370
    %v8631 = vunpack.c.l.b16 %v8371
    %v8632 = vunpack.c.l.b16 %v8372
    %v8633 = vunpack.c.l.b16 %v8373
    %v8634 = vunpack.c.l.b16 %v8374
    %v8635 = vunpack.c.l.b16 %v8375
    %v8636 = vunpack.c.l.b16 %v8376
    %v8637 = vunpack.c.l.b16 %v8377
    %v8638 = vunpack.c.l.b16 %v8378
    %v8639 = vunpack.c.l.b16 %v8379
    %v8640 = vunpack.c.l.b16 %v8380
    %v8641 = vunpack.c.l.b16 %v8381
    %v8642 = vunpack.c.l.b16 %v8382
    %v8643 = vunpack.c.l.b16 %v8383
    %v8644 = vunpack.c.l.b16 %v8384
    %v8645 = vunpack.c.l.b16 %v8385
    %v8646 = vunpack.c.l.b16 %v8386
    %v8647 = vunpack.c.l.b16 %v8387
    %v8648 = vunpack.c.l.b16 %v8388
    %v8649 = vunpack.c.l.b16 %v8389
    %v8650 = vunpack.c.l.b16 %v8390
    %v8651 = vunpack.c.l.b16 %v8391
    %v8652 = vunpack.c.l.b16 %v8392
    %v8653 = vunpack.c.l.b16 %v8393
    %v8654 = vunpack.c.l.b16 %v8394
    %v8655 = vunpack.c.l.b16 %v8395
    %v8656 = vunpack.c.l.b16 %v8396
    %v8657 = vunpack.c.l.b16 %v8397
    %v8658 = vunpack.c.l.b16 %v8398
    %v8659 = vunpack.c.l.b16 %v8399
    %v8660 = vunpack.c.l.b16 %v8400
    %v8661 = vunpack.c.l.b16 %v8401
    %v8662 = vunpack.c.l.b16 %v8402
    %v8663 = vunpack.c.l.b16 %v8403
    %v8664 = vunpack.c.l.b16 %v8404
    %v8665 = vunpack.c.l.b16 %v8405
    %v8666 = vunpack.c.l.b16 %v8406
    %v8667 = vunpack.c.l.b16 %v8407
    %v8668 = vunpack.c.l.b16 %v8408
    %v8669 = vunpack.c.l.b16 %v8409
    %v8670 = vunpack.c.l.b16 %v8410
    %v8671 = vunpack.c.l.b16 %v8411
    %v8672 = vunpack.c.l.b16 %v8412
    %v8673 = vunpack.c.l.b16 %v8413
    %v8674 = vunpack.c.l.b16 %v8414
    %v8675 = vunpack.c.l.b16 %v8415
    %v8676 = vunpack.c.l.b16 %v8416
    %v8677 = vunpack.c.l.b16 %v8417
    %v8678 = vunpack.c.l.b16 %v8418
    %v8679 = vpack.c.b16 %v8552, %v8551
    %v8680 = vpack.c.b16 %v8554, %v8553
    %v8681 = vpack.c.b16 %v8556, %v8555
    %v8682 = vpack.c.b16 %v8558, %v8557
    %v8683 = vpack.c.b16 %v8560, %v8559
    %v8684 = vpack.c.b16 %v8562, %v8561
    %v8685 = vpack.c.b16 %v8564, %v8563
    %v8686 = vpack.c.b16 %v8566, %v8565
    %v8687 = vpack.c.b16 %v8568, %v8567
    %v8688 = vpack.c.b16 %v8570, %v8569
    %v8689 = vpack.c.b16 %v8572, %v8571
    %v8690 = vpack.c.b16 %v8574, %v8573
    %v8691 = vpack.c.b16 %v8576, %v8575
    %v8692 = vpack.c.b16 %v8578, %v8577
    %v8693 = vpack.c.b16 %v8580, %v8579
    %v8694 = vpack.c.b16 %v8582, %v8581
    %v8695 = vpack.c.b16 %v8584, %v8583
    %v8696 = vpack.c.b16 %v8586, %v8585
    %v8697 = vpack.c.b16 %v8588, %v8587
    %v8698 = vpack.c.b16 %v8590, %v8589
    %v8699 = vpack.c.b16 %v8592, %v8591
    %v8700 = vpack.c.b16 %v8594, %v8593
    %v8701 = vpack.c.b16 %v8596, %v8595
    %v8702 = vpack.c.b16 %v8598, %v8597
    %v8703 = vpack.c.b16 %v8600, %v8599
    %v8704 = vpack.c.b16 %v8602, %v8601
    %v8705 = vpack.c.b16 %v8604, %v8603
    %v8706 = vpack.c.b16 %v8606, %v8605
    %v8707 = vpack.c.b16 %v8608, %v8607
    %v8708 = vpack.c.b16 %v8610, %v8609
    %v8709 = vpack.c.b16 %v8612, %v8611
    %v8710 = vpack.c.b16 %v8614, %v8613
    %v8711 = vpack.c.b16 %v8616, %v8615
    %v8712 = vpack.c.b16 %v8618, %v8617
    %v8713 = vpack.c.b16 %v8620, %v8619
    %v8714 = vpack.c.b16 %v8622, %v8621
    %v8715 = vpack.c.b16 %v8624, %v8623
    %v8716 = vpack.c.b16 %v8626, %v8625
    %v8717 = vpack.c.b16 %v8628, %v8627
    %v8718 = vpack.c.b16 %v8630, %v8629
    %v8719 = vpack.c.b16 %v8632, %v8631
    %v8720 = vpack.c.b16 %v8634, %v8633
    %v8721 = vpack.c.b16 %v8636, %v8635
    %v8722 = vpack.c.b16 %v8638, %v8637
    %v8723 = vpack.c.b16 %v8640, %v8639
    %v8724 = vpack.c.b16 %v8642, %v8641
    %v8725 = vpack.c.b16 %v8644, %v8643
    %v8726 = vpack.c.b16 %v8646, %v8645
    %v8727 = vpack.c.b16 %v8648, %v8647
    %v8728 = vpack.c.b16 %v8650, %v8649
    %v8729 = vpack.c.b16 %v8652, %v8651
    %v8730 = vpack.c.b16 %v8654, %v8653
    %v8731 = vpack.c.b16 %v8656, %v8655
    %v8732 = vpack.c.b16 %v8658, %v8657
    %v8733 = vpack.c.b16 %v8660, %v8659
    %v8734 = vpack.c.b16 %v8662, %v8661
    %v8735 = vpack.c.b16 %v8664, %v8663
    %v8736 = vpack.c.b16 %v8666, %v8665
    %v8737 = vpack.c.b16 %v8668, %v8667
    %v8738 = vpack.c.b16 %v8670, %v8669
    %v8739 = vpack.c.b16 %v8672, %v8671
    %v8740 = vpack.c.b16 %v8674, %v8673
    %v8741 = vpack.c.b16 %v8676, %v8675
    %v8742 = vpack.c.b16 %v8678, %v8677
    %8807 = vmatpush.bf16.msra.mxu0 %v8686
    %8808 = vmatpush.bf16.msra.mxu0 %v8685
    %8809 = vmatpush.bf16.msra.mxu0 %v8684
    %8810 = vmatpush.bf16.msra.mxu0 %v8683
    %8811 = vmatpush.bf16.msra.mxu0 %v8682
    %8812 = vmatpush.bf16.msra.mxu0 %v8681
    %8813 = vmatpush.bf16.msra.mxu0 %v8680
    %8814 = vmatpush.bf16.msra.mxu0 %v8679
    %8815 = vmatmul.bf16.gmra.mxu0 %v8283
    %v8816 = vpop.f32.mrf.mxu0
    %v8817 = vadd.f32 %v8421, %v8816
    %v8818 = vpop.f32.mrf.mxu0
    %8819 = vdwg.mxu0
    %8820 = vmatpush.bf16.msra.mxu0 %v8694
    %8821 = vmatpush.bf16.msra.mxu0 %v8693
    %8822 = vmatpush.bf16.msra.mxu0 %v8692
    %8823 = vmatpush.bf16.msra.mxu0 %v8691
    %8824 = vmatpush.bf16.msra.mxu0 %v8690
    %8825 = vmatpush.bf16.msra.mxu0 %v8689
    %8826 = vmatpush.bf16.msra.mxu0 %v8688
    %8827 = vmatpush.bf16.msra.mxu0 %v8687
    %8828 = vmatmul.bf16.gmra.mxu0 %v8284
    %v8829 = vpop.f32.mrf.mxu0
    %v8830 = vadd.f32 %v8817, %v8829
    %v8831 = vpop.f32.mrf.mxu0
    %8832 = vdwg.mxu0
    %8833 = vmatpush.bf16.msra.mxu0 %v8702
    %8834 = vmatpush.bf16.msra.mxu0 %v8701
    %8835 = vmatpush.bf16.msra.mxu0 %v8700
    %8836 = vmatpush.bf16.msra.mxu0 %v8699
    %8837 = vmatpush.bf16.msra.mxu0 %v8698
    %8838 = vmatpush.bf16.msra.mxu0 %v8697
    %8839 = vmatpush.bf16.msra.mxu0 %v8696
    %8840 = vmatpush.bf16.msra.mxu0 %v8695
    %8841 = vmatmul.bf16.gmra.mxu0 %v8285
    %v8842 = vpop.f32.mrf.mxu0
    %v8843 = vadd.f32 %v8830, %v8842
    %v8844 = vpop.f32.mrf.mxu0
    %8845 = vdwg.mxu0
    %8846 = vmatpush.bf16.msra.mxu0 %v8710
    %8847 = vmatpush.bf16.msra.mxu0 %v8709
    %8848 = vmatpush.bf16.msra.mxu0 %v8708
    %8849 = vmatpush.bf16.msra.mxu0 %v8707
    %8850 = vmatpush.bf16.msra.mxu0 %v8706
    %8851 = vmatpush.bf16.msra.mxu0 %v8705
    %8852 = vmatpush.bf16.msra.mxu0 %v8704
    %8853 = vmatpush.bf16.msra.mxu0 %v8703
    %8854 = vmatmul.bf16.gmra.mxu0 %v8286
    %v8855 = vpop.f32.mrf.mxu0
    %v8856 = vadd.f32 %v8843, %v8855
    %v8857 = vpop.f32.mrf.mxu0
    %8858 = vdwg.mxu0
    %8859 = vmatpush.bf16.msra.mxu0 %v8718
    %8860 = vmatpush.bf16.msra.mxu0 %v8717
    %8861 = vmatpush.bf16.msra.mxu0 %v8716
    %8862 = vmatpush.bf16.msra.mxu0 %v8715
    %8863 = vmatpush.bf16.msra.mxu0 %v8714
    %8864 = vmatpush.bf16.msra.mxu0 %v8713
    %8865 = vmatpush.bf16.msra.mxu0 %v8712
    %8866 = vmatpush.bf16.msra.mxu0 %v8711
    %8867 = vmatmul.bf16.gmra.mxu0 %v8287
    %v8868 = vpop.f32.mrf.mxu0
    %v8869 = vadd.f32 %v8856, %v8868
    %v8870 = vpop.f32.mrf.mxu0
    %8871 = vdwg.mxu0
    %8872 = vmatpush.bf16.msra.mxu0 %v8726
    %8873 = vmatpush.bf16.msra.mxu0 %v8725
    %8874 = vmatpush.bf16.msra.mxu0 %v8724
    %8875 = vmatpush.bf16.msra.mxu0 %v8723
    %8876 = vmatpush.bf16.msra.mxu0 %v8722
    %8877 = vmatpush.bf16.msra.mxu0 %v8721
    %8878 = vmatpush.bf16.msra.mxu0 %v8720
    %8879 = vmatpush.bf16.msra.mxu0 %v8719
    %8880 = vmatmul.bf16.gmra.mxu0 %v8288
    %v8881 = vpop.f32.mrf.mxu0
    %v8882 = vadd.f32 %v8869, %v8881
    %v8883 = vpop.f32.mrf.mxu0
    %8884 = vdwg.mxu0
    %8885 = vmatpush.bf16.msra.mxu0 %v8734
    %8886 = vmatpush.bf16.msra.mxu0 %v8733
    %8887 = vmatpush.bf16.msra.mxu0 %v8732
    %8888 = vmatpush.bf16.msra.mxu0 %v8731
    %8889 = vmatpush.bf16.msra.mxu0 %v8730
    %8890 = vmatpush.bf16.msra.mxu0 %v8729
    %8891 = vmatpush.bf16.msra.mxu0 %v8728
    %8892 = vmatpush.bf16.msra.mxu0 %v8727
    %8893 = vmatmul.bf16.gmra.mxu0 %v8289
    %v8894 = vpop.f32.mrf.mxu0
    %v8895 = vadd.f32 %v8882, %v8894
    %v8896 = vpop.f32.mrf.mxu0
    %8897 = vdwg.mxu0
    %8898 = vmatpush.bf16.msra.mxu0 %v8742
    %8899 = vmatpush.bf16.msra.mxu0 %v8741
    %8900 = vmatpush.bf16.msra.mxu0 %v8740
    %8901 = vmatpush.bf16.msra.mxu0 %v8739
    %8902 = vmatpush.bf16.msra.mxu0 %v8738
    %8903 = vmatpush.bf16.msra.mxu0 %v8737
    %8904 = vmatpush.bf16.msra.mxu0 %v8736
    %8905 = vmatpush.bf16.msra.mxu0 %v8735
    %8906 = vmatmul.bf16.gmra.mxu0 %v8290
    %v8907 = vpop.f32.mrf.mxu0
    %v8908 = vadd.f32 %v8895, %v8907
    %v8909 = vpop.f32.mrf.mxu0
    %8910 = vdwg.mxu0
    %8911 = vst [vmem:[#allocation17] sm:$0x3] %v8908
    // Predicated region
    $region77: #{tpu_custom_call.1} parent=1 // pred_check
      _
    $region78: #{tpu_custom_call.1} parent=1 // pred_check_branch
      %8913 = sbr.rel (0) target = $region80
    $region79: #{tpu_custom_call.1} parent=1 // pred_region
      %8915 = vsyncadd [#allocation5], 0
      %s8917 = sshll.u32 [#allocation17], 4
      %s8918 = int_to_ptr.vmem [resolvable:$true] %s8917
      %s8919 = sshll.u32 %s9, 4
      %s8920 = int_to_ptr.hbm [resolvable:$true] %s8919
      %8922 = dma.vmem_to_hbm [thread:$0]  %s8918, 32, %s8920, [#allocation5]
    $region80: #{tpu_custom_call.1} parent=1 // pred_fallthru
      _
    // Predicated region
    $region81: #{tpu_custom_call.1} parent=1 // pred_check
      _
    $region82: #{tpu_custom_call.1} parent=1 // pred_check_branch
      %8924 = sbr.rel (0) target = $region84
    $region83: #{tpu_custom_call.1} parent=1 // pred_region
      %8926 = dma.done [#allocation5], 32
    $region84: #{tpu_custom_call.1} parent=1 // pred_fallthru
      _
    %8927 = vsyncpa [#allocation4], 1
    %8928 = vsyncpa [#allocation7], 1
    %8929 = vsyncpa [#allocation10], 1
    %8930 = vsyncpa [#allocation13], 1
    %8931 = vsyncpa [#allocation16], 1
    %8932 = vsyncpa [#allocation5], 1

</llo_original>
